<compile_context>
chip_gen: v6e
topology: v6e:2x2x1
jax: 0.10.0
libtpu: 0.0.40
codegen_flags: <defaults>
</compile_context>

<pallas_src>
import functools

import jax
import jax.numpy as jnp
from jax.experimental import pallas as pl
from jax.experimental.pallas import tpu as pltpu

CP = 128          # padded channel / class width (one full lane tile)
PADW = 8          # left/right spatial halo width in the padded slab (8-aligned)
NEG_INF = -1e30   # logit value for padded class lanes -> softmax weight 0


# ------------------------------ fused kernel ------------------------------- #

def _fused_kernel(x_ref, wconv_ref, bconv_ref, wexit_ref, bexit_ref,
                  logits_ref, conf_ref, cls_ref, feat_ref, fmap_ref,
                  *, H, W, NS):
    """All stages + all exit heads of the branched model in one kernel.

    x_ref    : (H+2, W+2*PADW, CP) f32  zero-halo input feature slab
    wconv_ref: (NS*9, CP, CP)      bf16 per-tap 3x3 conv weights (zero padded)
    bconv_ref: (NS, 1, CP)         f32  conv bias (zero padded)
    wexit_ref: (NS, CP, CP)        bf16 exit classifier weights (1/T folded)
    bexit_ref: (NS, 1, CP)         f32  exit bias (1/T folded, NEG_INF in pads)
    logits_ref/conf_ref/cls_ref : (NS, CP) per-exit scaled logits / conf / class
    feat_ref : (H*W, CP) f32 last-stage feature map (fall-through return)
    fmap_ref : VMEM scratch slab holding the current feature map (halo == 0)
    """
    # Halo (and everything else) of the inter-stage slab must be zero; the
    # interior is overwritten at the end of each stage.
    if NS > 1:
        fmap_ref[...] = jnp.zeros((H + 2, W + 2 * PADW, CP), jnp.float32)

    logits_rows, conf_rows, cls_rows = [], [], []
    feat = None
    for s in range(NS):
        # TODO(synk): gate stages s>0 with pl.when on "conf[s-1] <= p_tar" to
        # skip redundant work once an earlier exit has already fired (needs a
        # vector->scalar conf readback); currently all exits are computed and
        # the unused ones are discarded on the host.
        src = x_ref if s == 0 else fmap_ref

        # ---- 3x3 conv (pad 1) as 9 shifted-slice matmuls (in-VMEM im2col) ----
        acc = jnp.zeros((H * W, CP), jnp.float32)
        for t in range(9):
            di, dj = divmod(t, 3)
            win = src[di:di + H, (PADW - 1) + dj:(PADW - 1) + dj + W, :]  # (H,W,CP)
            lhs = win.reshape(H * W, CP).astype(jnp.bfloat16)
            acc = acc + jnp.dot(lhs, wconv_ref[s * 9 + t],
                                preferred_element_type=jnp.float32)
        feat = jnp.maximum(acc + bconv_ref[s], 0.0)                       # ReLU, f32

        # feed the next stage (halo columns/rows of the slab stay zero)
        if s + 1 < NS:
            fmap_ref[1:H + 1, PADW:PADW + W, :] = feat.reshape(H, W, CP)

        # ---- fused exit head: GAP -> linear(/T folded) -> softmax -> max ----
        pooled = jnp.mean(feat, axis=0, keepdims=True)                    # (1, CP)
        logits = jnp.dot(pooled.astype(jnp.bfloat16), wexit_ref[s],
                         preferred_element_type=jnp.float32) + bexit_ref[s]
        # padded class lanes carry NEG_INF bias -> exp() == 0 -> excluded below
        m = jnp.max(logits, axis=1, keepdims=True)
        e = jnp.exp(logits - m)
        probs = e / jnp.sum(e, axis=1, keepdims=True)
        conf = jnp.max(probs, axis=1, keepdims=True)                      # (1, 1)
        idx = jax.lax.broadcasted_iota(jnp.int32, probs.shape, 1)
        cls = jnp.min(jnp.where(probs >= conf, idx, CP), axis=1, keepdims=True)

        logits_rows.append(logits)
        conf_rows.append(jnp.broadcast_to(conf, (1, CP)))                 # lane-dense
        cls_rows.append(jnp.broadcast_to(cls, (1, CP)))

    # single lane-dense store per output
    logits_ref[...] = jnp.concatenate(logits_rows, axis=0)
    conf_ref[...] = jnp.concatenate(conf_rows, axis=0)
    cls_ref[...] = jnp.concatenate(cls_rows, axis=0)
    feat_ref[...] = feat


@jax.jit
def _branches_forward(x_nchw, wconv, bconv, wexit, bexit):
    _, c_in, H, W = x_nchw.shape
    NS = wexit.shape[0]
    assert W % 8 == 0, "spatial width must be a multiple of 8 (sublane tiling)"

    # zero-halo, channel-padded NHWC slab built once on the XLA side
    x_hwc = jnp.transpose(x_nchw[0], (1, 2, 0)).astype(jnp.float32)
    x_pad = jnp.zeros((H + 2, W + 2 * PADW, CP), jnp.float32)
    x_pad = x_pad.at[1:H + 1, PADW:PADW + W, :c_in].set(x_hwc)

    kernel = functools.partial(_fused_kernel, H=H, W=W, NS=NS)
    flops = NS * (2 * 9 * H * W * CP * CP + 2 * CP * CP)
    bytes_accessed = (x_pad.size * 4 + wconv.size * 2 + bconv.size * 4
                      + wexit.size * 2 + bexit.size * 4
                      + (3 * NS * CP + H * W * CP) * 4)

    return pl.pallas_call(
        kernel,
        out_shape=(
            jax.ShapeDtypeStruct((NS, CP), jnp.float32),    # temperature-scaled logits
            jax.ShapeDtypeStruct((NS, CP), jnp.float32),    # confidence (lane-broadcast)
            jax.ShapeDtypeStruct((NS, CP), jnp.int32),      # argmax class (lane-broadcast)
            jax.ShapeDtypeStruct((H * W, CP), jnp.float32)  # last-stage feature map
        ),
        in_specs=[pl.BlockSpec(memory_space=pltpu.MemorySpace.VMEM)] * 5,
        out_specs=(pl.BlockSpec(memory_space=pltpu.MemorySpace.VMEM),) * 4,
        scratch_shapes=[pltpu.VMEM((H + 2, W + 2 * PADW, CP), jnp.float32)],
        compiler_params=pltpu.CompilerParams(vmem_limit_bytes=32 * 1024 * 1024),
        cost_estimate=pl.CostEstimate(flops=int(flops),
                                      transcendentals=int(NS * CP),
                                      bytes_accessed=int(bytes_accessed)),
    )(x_pad, wconv, bconv, wexit, bexit)


# ------------------------------ model wrapper ------------------------------ #

class BranchesModelWithTemperature:
    """JAX/Pallas re-implementation of the PyTorch early-exit module.

    Synthetic inner model (one per temperature entry):
      stage i : 3x3 conv (stride 1, pad 1) + ReLU
      exit  i : global avg pool -> linear -> /temperature -> softmax -> max
    All stages + exits run in ONE fused Pallas kernel; the early-exit control
    flow (`conf.item() > p_tar`) uses a single host sync afterwards.
    """

    def __init__(self, key, in_channels, stage_channels, num_classes, temperature):
        assert len(stage_channels) == len(temperature)
        self.temperature = list(temperature)
        self.num_exits = len(temperature)
        self.num_classes = num_classes
        self.stage_channels = list(stage_channels)

        NS = self.num_exits
        wconv = jnp.zeros((NS * 9, CP, CP), jnp.float32)
        bconv = jnp.zeros((NS, 1, CP), jnp.float32)
        wexit = jnp.zeros((NS, CP, CP), jnp.float32)
        bexit = jnp.full((NS, 1, CP), NEG_INF, jnp.float32)  # pad classes -> prob 0

        c_in = in_channels
        for i, c_out in enumerate(stage_channels):
            key, k1, k2 = jax.random.split(key, 3)
            w_s = 0.1 * jax.random.normal(k1, (9, c_in, c_out), jnp.float32)
            b_s = jnp.zeros((c_out,), jnp.float32)
            w_e = 0.1 * jax.random.normal(k2, (c_out, num_classes), jnp.float32)
            b_e = jnp.zeros((num_classes,), jnp.float32)
            inv_t = 1.0 / float(temperature[i])          # fold 1/T into exit head
            wconv = wconv.at[i * 9:(i + 1) * 9, :c_in, :c_out].set(w_s)
            bconv = bconv.at[i, 0, :c_out].set(b_s)
            wexit = wexit.at[i, :c_out, :num_classes].set(w_e * inv_t)
            bexit = bexit.at[i, 0, :num_classes].set(b_e * inv_t)
            c_in = c_out

        # bf16 MXU operands (accumulation stays f32 inside the kernel)
        self.wconv = wconv.astype(jnp.bfloat16)
        self.bconv = bconv
        self.wexit = wexit.astype(jnp.bfloat16)
        self.bexit = bexit

    def forward(self, x, p_tar=0.5, train=True, repo=False):
        return self.forward_eval(x, p_tar)

    def forward_eval(self, x_nchw, p_tar):
        assert x_nchw.shape[0] == 1, "conf.item() early-exit semantics require batch=1"
        _, _, H, W = x_nchw.shape
        logits_all, conf_all, cls_all, feat_last = _branches_forward(
            x_nchw, self.wconv, self.bconv, self.wexit, self.bexit)

        # single host sync for the whole early-exit chain (mirrors conf.item())
        conf_host = jax.device_get(conf_all)[:, 0]
        nc = self.num_classes
        for i in range(self.num_exits):
            if float(conf_host[i]) > p_tar:
                # (temperature-scaled logits, conf, inferred class) -- as PyTorch
                return (logits_all[i:i + 1, :nc], conf_all[i, :1], cls_all[i, :1])

        # fall-through: (last-stage feature map NCHW, conf_list, None)
        conf_list = [conf_all[i, :1] for i in range(self.num_exits)]
        c_last = self.stage_channels[-1]
        x_out = feat_last[:, :c_last].reshape(H, W, c_last).transpose(2, 0, 1)[None]
        return (x_out, conf_list, None)


# ----------------------------------- main ----------------------------------- #

if __name__ == "__main__":
    key = jax.random.PRNGKey(0)
    k_param, k_input = jax.random.split(key)

    in_channels, spatial, num_classes = 4, 16, 10
    model = BranchesModelWithTemperature(
        k_param,
        in_channels=in_channels,
        stage_channels=[8, 16],
        num_classes=num_classes,
        temperature=[1.5, 2.0],
    )

    x = jax.random.normal(k_input, (1, in_channels, spatial, spatial), jnp.float32)

    result = model.forward(x, p_tar=0.5)
    jax.block_until_ready(result)
    print("KERNEL_OK")
</pallas_src>

<mosaic_0001>
module attributes {stable_mosaic.version = 11 : i64} {
  func.func @_fused_kernel(%arg0: memref<18x32x128xf32, #tpu.memory_space<vmem>>, %arg1: memref<18x128x128xbf16, #tpu.memory_space<vmem>>, %arg2: memref<2x1x128xf32, #tpu.memory_space<vmem>>, %arg3: memref<2x128x128xbf16, #tpu.memory_space<vmem>>, %arg4: memref<2x1x128xf32, #tpu.memory_space<vmem>>, %arg5: memref<2x128xf32, #tpu.memory_space<vmem>>, %arg6: memref<2x128xf32, #tpu.memory_space<vmem>>, %arg7: memref<2x128xi32, #tpu.memory_space<vmem>>, %arg8: memref<256x128xf32, #tpu.memory_space<vmem>>, %arg9: memref<18x32x128xf32, #tpu.memory_space<vmem>>) attributes {dimension_semantics = [], scalar_prefetch = 0 : i64, scratch_operands = 1 : i64, tpu.core_type = #tpu.core_type<tc>} {
    %cst = arith.constant 0.000000e+00 : f32
    %0 = vector.broadcast %cst : f32 to vector<18x32x128xf32>
    %c0 = arith.constant 0 : index
    %c0_0 = arith.constant 0 : index
    %c0_1 = arith.constant 0 : index
    %1 = vector.load %arg9[%c0, %c0_0, %c0_1] : memref<18x32x128xf32, #tpu.memory_space<vmem>>, vector<18x32x128xf32>
    tpu.vector_store %arg9[%c0, %c0_0, %c0_1], %0 {strides = array<i32>} : memref<18x32x128xf32, #tpu.memory_space<vmem>>, vector<18x32x128xf32>,
    %cst_2 = arith.constant 0.000000e+00 : f32
    %2 = vector.broadcast %cst_2 : f32 to vector<256x128xf32>
    %c0_3 = arith.constant 0 : index
    %c7 = arith.constant 7 : index
    %c0_4 = arith.constant 0 : index
    %3 = vector.load %arg0[%c0_3, %c7, %c0_4] : memref<18x32x128xf32, #tpu.memory_space<vmem>>, vector<16x16x128xf32>
    %4 = vector.shape_cast %3 : vector<16x16x128xf32> to vector<256x128xf32>
    %5 = arith.truncf %4 : vector<256x128xf32> to vector<256x128xbf16>
    %c0_5 = arith.constant 0 : index
    %c0_6 = arith.constant 0 : index
    %c0_7 = arith.constant 0 : index
    %6 = vector.load %arg1[%c0_5, %c0_6, %c0_7] : memref<18x128x128xbf16, #tpu.memory_space<vmem>>, vector<1x128x128xbf16>
    %7 = vector.shape_cast %6 : vector<1x128x128xbf16> to vector<128x128xbf16>
    %cst_8 = arith.constant dense<0.000000e+00> : vector<256x128xf32>
    %8 = tpu.matmul %5, %7, %cst_8 {dimension_numbers = #tpu.dot_dimension_numbers<[1], [0], [0], [1], [0, 0, 1, 1], [], []>} : vector<256x128xbf16>, vector<128x128xbf16>, vector<256x128xf32> -> vector<256x128xf32>
    %9 = arith.addf %2, %8 : vector<256x128xf32>
    %c0_9 = arith.constant 0 : index
    %c8 = arith.constant 8 : index
    %c0_10 = arith.constant 0 : index
    %10 = vector.load %arg0[%c0_9, %c8, %c0_10] : memref<18x32x128xf32, #tpu.memory_space<vmem>>, vector<16x16x128xf32>
    %11 = vector.shape_cast %10 : vector<16x16x128xf32> to vector<256x128xf32>
    %12 = arith.truncf %11 : vector<256x128xf32> to vector<256x128xbf16>
    %c1 = arith.constant 1 : index
    %c0_11 = arith.constant 0 : index
    %c0_12 = arith.constant 0 : index
    %13 = vector.load %arg1[%c1, %c0_11, %c0_12] : memref<18x128x128xbf16, #tpu.memory_space<vmem>>, vector<1x128x128xbf16>
    %14 = vector.shape_cast %13 : vector<1x128x128xbf16> to vector<128x128xbf16>
    %cst_13 = arith.constant dense<0.000000e+00> : vector<256x128xf32>
    %15 = tpu.matmul %12, %14, %cst_13 {dimension_numbers = #tpu.dot_dimension_numbers<[1], [0], [0], [1], [0, 0, 1, 1], [], []>} : vector<256x128xbf16>, vector<128x128xbf16>, vector<256x128xf32> -> vector<256x128xf32>
    %16 = arith.addf %9, %15 : vector<256x128xf32>
    %c0_14 = arith.constant 0 : index
    %c9 = arith.constant 9 : index
    %c0_15 = arith.constant 0 : index
    %17 = vector.load %arg0[%c0_14, %c9, %c0_15] : memref<18x32x128xf32, #tpu.memory_space<vmem>>, vector<16x16x128xf32>
    %18 = vector.shape_cast %17 : vector<16x16x128xf32> to vector<256x128xf32>
    %19 = arith.truncf %18 : vector<256x128xf32> to vector<256x128xbf16>
    %c2 = arith.constant 2 : index
    %c0_16 = arith.constant 0 : index
    %c0_17 = arith.constant 0 : index
    %20 = vector.load %arg1[%c2, %c0_16, %c0_17] : memref<18x128x128xbf16, #tpu.memory_space<vmem>>, vector<1x128x128xbf16>
    %21 = vector.shape_cast %20 : vector<1x128x128xbf16> to vector<128x128xbf16>
    %cst_18 = arith.constant dense<0.000000e+00> : vector<256x128xf32>
    %22 = tpu.matmul %19, %21, %cst_18 {dimension_numbers = #tpu.dot_dimension_numbers<[1], [0], [0], [1], [0, 0, 1, 1], [], []>} : vector<256x128xbf16>, vector<128x128xbf16>, vector<256x128xf32> -> vector<256x128xf32>
    %23 = arith.addf %16, %22 : vector<256x128xf32>
    %c1_19 = arith.constant 1 : index
    %c7_20 = arith.constant 7 : index
    %c0_21 = arith.constant 0 : index
    %24 = vector.load %arg0[%c1_19, %c7_20, %c0_21] : memref<18x32x128xf32, #tpu.memory_space<vmem>>, vector<16x16x128xf32>
    %25 = vector.shape_cast %24 : vector<16x16x128xf32> to vector<256x128xf32>
    %26 = arith.truncf %25 : vector<256x128xf32> to vector<256x128xbf16>
    %c3 = arith.constant 3 : index
    %c0_22 = arith.constant 0 : index
    %c0_23 = arith.constant 0 : index
    %27 = vector.load %arg1[%c3, %c0_22, %c0_23] : memref<18x128x128xbf16, #tpu.memory_space<vmem>>, vector<1x128x128xbf16>
    %28 = vector.shape_cast %27 : vector<1x128x128xbf16> to vector<128x128xbf16>
    %cst_24 = arith.constant dense<0.000000e+00> : vector<256x128xf32>
    %29 = tpu.matmul %26, %28, %cst_24 {dimension_numbers = #tpu.dot_dimension_numbers<[1], [0], [0], [1], [0, 0, 1, 1], [], []>} : vector<256x128xbf16>, vector<128x128xbf16>, vector<256x128xf32> -> vector<256x128xf32>
    %30 = arith.addf %23, %29 : vector<256x128xf32>
    %c1_25 = arith.constant 1 : index
    %c8_26 = arith.constant 8 : index
    %c0_27 = arith.constant 0 : index
    %31 = vector.load %arg0[%c1_25, %c8_26, %c0_27] : memref<18x32x128xf32, #tpu.memory_space<vmem>>, vector<16x16x128xf32>
    %32 = vector.shape_cast %31 : vector<16x16x128xf32> to vector<256x128xf32>
    %33 = arith.truncf %32 : vector<256x128xf32> to vector<256x128xbf16>
    %c4 = arith.constant 4 : index
    %c0_28 = arith.constant 0 : index
    %c0_29 = arith.constant 0 : index
    %34 = vector.load %arg1[%c4, %c0_28, %c0_29] : memref<18x128x128xbf16, #tpu.memory_space<vmem>>, vector<1x128x128xbf16>
    %35 = vector.shape_cast %34 : vector<1x128x128xbf16> to vector<128x128xbf16>
    %cst_30 = arith.constant dense<0.000000e+00> : vector<256x128xf32>
    %36 = tpu.matmul %33, %35, %cst_30 {dimension_numbers = #tpu.dot_dimension_numbers<[1], [0], [0], [1], [0, 0, 1, 1], [], []>} : vector<256x128xbf16>, vector<128x128xbf16>, vector<256x128xf32> -> vector<256x128xf32>
    %37 = arith.addf %30, %36 : vector<256x128xf32>
    %c1_31 = arith.constant 1 : index
    %c9_32 = arith.constant 9 : index
    %c0_33 = arith.constant 0 : index
    %38 = vector.load %arg0[%c1_31, %c9_32, %c0_33] : memref<18x32x128xf32, #tpu.memory_space<vmem>>, vector<16x16x128xf32>
    %39 = vector.shape_cast %38 : vector<16x16x128xf32> to vector<256x128xf32>
    %40 = arith.truncf %39 : vector<256x128xf32> to vector<256x128xbf16>
    %c5 = arith.constant 5 : index
    %c0_34 = arith.constant 0 : index
    %c0_35 = arith.constant 0 : index
    %41 = vector.load %arg1[%c5, %c0_34, %c0_35] : memref<18x128x128xbf16, #tpu.memory_space<vmem>>, vector<1x128x128xbf16>
    %42 = vector.shape_cast %41 : vector<1x128x128xbf16> to vector<128x128xbf16>
    %cst_36 = arith.constant dense<0.000000e+00> : vector<256x128xf32>
    %43 = tpu.matmul %40, %42, %cst_36 {dimension_numbers = #tpu.dot_dimension_numbers<[1], [0], [0], [1], [0, 0, 1, 1], [], []>} : vector<256x128xbf16>, vector<128x128xbf16>, vector<256x128xf32> -> vector<256x128xf32>
    %44 = arith.addf %37, %43 : vector<256x128xf32>
    %c2_37 = arith.constant 2 : index
    %c7_38 = arith.constant 7 : index
    %c0_39 = arith.constant 0 : index
    %45 = vector.load %arg0[%c2_37, %c7_38, %c0_39] : memref<18x32x128xf32, #tpu.memory_space<vmem>>, vector<16x16x128xf32>
    %46 = vector.shape_cast %45 : vector<16x16x128xf32> to vector<256x128xf32>
    %47 = arith.truncf %46 : vector<256x128xf32> to vector<256x128xbf16>
    %c6 = arith.constant 6 : index
    %c0_40 = arith.constant 0 : index
    %c0_41 = arith.constant 0 : index
    %48 = vector.load %arg1[%c6, %c0_40, %c0_41] : memref<18x128x128xbf16, #tpu.memory_space<vmem>>, vector<1x128x128xbf16>
    %49 = vector.shape_cast %48 : vector<1x128x128xbf16> to vector<128x128xbf16>
    %cst_42 = arith.constant dense<0.000000e+00> : vector<256x128xf32>
    %50 = tpu.matmul %47, %49, %cst_42 {dimension_numbers = #tpu.dot_dimension_numbers<[1], [0], [0], [1], [0, 0, 1, 1], [], []>} : vector<256x128xbf16>, vector<128x128xbf16>, vector<256x128xf32> -> vector<256x128xf32>
    %51 = arith.addf %44, %50 : vector<256x128xf32>
    %c2_43 = arith.constant 2 : index
    %c8_44 = arith.constant 8 : index
    %c0_45 = arith.constant 0 : index
    %52 = vector.load %arg0[%c2_43, %c8_44, %c0_45] : memref<18x32x128xf32, #tpu.memory_space<vmem>>, vector<16x16x128xf32>
    %53 = vector.shape_cast %52 : vector<16x16x128xf32> to vector<256x128xf32>
    %54 = arith.truncf %53 : vector<256x128xf32> to vector<256x128xbf16>
    %c7_46 = arith.constant 7 : index
    %c0_47 = arith.constant 0 : index
    %c0_48 = arith.constant 0 : index
    %55 = vector.load %arg1[%c7_46, %c0_47, %c0_48] : memref<18x128x128xbf16, #tpu.memory_space<vmem>>, vector<1x128x128xbf16>
    %56 = vector.shape_cast %55 : vector<1x128x128xbf16> to vector<128x128xbf16>
    %cst_49 = arith.constant dense<0.000000e+00> : vector<256x128xf32>
    %57 = tpu.matmul %54, %56, %cst_49 {dimension_numbers = #tpu.dot_dimension_numbers<[1], [0], [0], [1], [0, 0, 1, 1], [], []>} : vector<256x128xbf16>, vector<128x128xbf16>, vector<256x128xf32> -> vector<256x128xf32>
    %58 = arith.addf %51, %57 : vector<256x128xf32>
    %c2_50 = arith.constant 2 : index
    %c9_51 = arith.constant 9 : index
    %c0_52 = arith.constant 0 : index
    %59 = vector.load %arg0[%c2_50, %c9_51, %c0_52] : memref<18x32x128xf32, #tpu.memory_space<vmem>>, vector<16x16x128xf32>
    %60 = vector.shape_cast %59 : vector<16x16x128xf32> to vector<256x128xf32>
    %61 = arith.truncf %60 : vector<256x128xf32> to vector<256x128xbf16>
    %c8_53 = arith.constant 8 : index
    %c0_54 = arith.constant 0 : index
    %c0_55 = arith.constant 0 : index
    %62 = vector.load %arg1[%c8_53, %c0_54, %c0_55] : memref<18x128x128xbf16, #tpu.memory_space<vmem>>, vector<1x128x128xbf16>
    %63 = vector.shape_cast %62 : vector<1x128x128xbf16> to vector<128x128xbf16>
    %cst_56 = arith.constant dense<0.000000e+00> : vector<256x128xf32>
    %64 = tpu.matmul %61, %63, %cst_56 {dimension_numbers = #tpu.dot_dimension_numbers<[1], [0], [0], [1], [0, 0, 1, 1], [], []>} : vector<256x128xbf16>, vector<128x128xbf16>, vector<256x128xf32> -> vector<256x128xf32>
    %65 = arith.addf %58, %64 : vector<256x128xf32>
    %c0_57 = arith.constant 0 : index
    %c0_58 = arith.constant 0 : index
    %c0_59 = arith.constant 0 : index
    %66 = vector.load %arg2[%c0_57, %c0_58, %c0_59] : memref<2x1x128xf32, #tpu.memory_space<vmem>>, vector<1x1x128xf32>
    %67 = vector.shape_cast %66 : vector<1x1x128xf32> to vector<1x128xf32>
    %68 = vector.broadcast %67 : vector<1x128xf32> to vector<256x128xf32>
    %69 = arith.addf %65, %68 : vector<256x128xf32>
    %cst_60 = arith.constant 0.000000e+00 : f32
    %70 = vector.broadcast %cst_60 : f32 to vector<256x128xf32>
    %71 = arith.maximumf %69, %70 : vector<256x128xf32>
    %72 = vector.shape_cast %71 : vector<256x128xf32> to vector<16x16x128xf32>
    %c1_61 = arith.constant 1 : index
    %c8_62 = arith.constant 8 : index
    %c0_63 = arith.constant 0 : index
    %73 = vector.load %arg9[%c1_61, %c8_62, %c0_63] : memref<18x32x128xf32, #tpu.memory_space<vmem>>, vector<16x16x128xf32>
    tpu.vector_store %arg9[%c1_61, %c8_62, %c0_63], %72 {strides = array<i32>} : memref<18x32x128xf32, #tpu.memory_space<vmem>>, vector<16x16x128xf32>,
    %cst_64 = arith.constant dense<0.000000e+00> : vector<128xf32>
    %74 = vector.multi_reduction <add>, %71, %cst_64 [0] : vector<256x128xf32> to vector<128xf32>
    %75 = vector.shape_cast %74 : vector<128xf32> to vector<1x128xf32>
    %cst_65 = arith.constant 2.560000e+02 : f32
    %76 = vector.broadcast %cst_65 : f32 to vector<1x128xf32>
    %77 = arith.divf %75, %76 : vector<1x128xf32>
    %78 = arith.truncf %77 : vector<1x128xf32> to vector<1x128xbf16>
    %c0_66 = arith.constant 0 : index
    %c0_67 = arith.constant 0 : index
    %c0_68 = arith.constant 0 : index
    %79 = vector.load %arg3[%c0_66, %c0_67, %c0_68] : memref<2x128x128xbf16, #tpu.memory_space<vmem>>, vector<1x128x128xbf16>
    %80 = vector.shape_cast %79 : vector<1x128x128xbf16> to vector<128x128xbf16>
    %cst_69 = arith.constant dense<0.000000e+00> : vector<1x128xf32>
    %81 = tpu.matmul %78, %80, %cst_69 {dimension_numbers = #tpu.dot_dimension_numbers<[1], [0], [0], [1], [0, 0, 1, 1], [], []>} : vector<1x128xbf16>, vector<128x128xbf16>, vector<1x128xf32> -> vector<1x128xf32>
    %c0_70 = arith.constant 0 : index
    %c0_71 = arith.constant 0 : index
    %c0_72 = arith.constant 0 : index
    %82 = vector.load %arg4[%c0_70, %c0_71, %c0_72] : memref<2x1x128xf32, #tpu.memory_space<vmem>>, vector<1x1x128xf32>
    %83 = vector.shape_cast %82 : vector<1x1x128xf32> to vector<1x128xf32>
    %84 = arith.addf %81, %83 : vector<1x128xf32>
    %cst_73 = arith.constant dense<0xFF800000> : vector<1xf32>
    %85 = vector.multi_reduction <maximumf>, %84, %cst_73 [1] : vector<1x128xf32> to vector<1xf32>
    %86 = vector.shape_cast %85 : vector<1xf32> to vector<1x1xf32>
    %87 = vector.broadcast %86 : vector<1x1xf32> to vector<1x128xf32>
    %88 = arith.subf %84, %87 : vector<1x128xf32>
    %89 = math.exp %88 : vector<1x128xf32>
    %cst_74 = arith.constant dense<0.000000e+00> : vector<1xf32>
    %90 = vector.multi_reduction <add>, %89, %cst_74 [1] : vector<1x128xf32> to vector<1xf32>
    %91 = vector.shape_cast %90 : vector<1xf32> to vector<1x1xf32>
    %92 = vector.broadcast %91 : vector<1x1xf32> to vector<1x128xf32>
    %93 = arith.divf %89, %92 : vector<1x128xf32>
    %cst_75 = arith.constant dense<0xFF800000> : vector<1xf32>
    %94 = vector.multi_reduction <maximumf>, %93, %cst_75 [1] : vector<1x128xf32> to vector<1xf32>
    %95 = vector.shape_cast %94 : vector<1xf32> to vector<1x1xf32>
    %96 = tpu.iota {dimensions = array<i32: 1>} : vector<1x128xi32>
    %97 = vector.broadcast %95 : vector<1x1xf32> to vector<1x128xf32>
    %98 = arith.cmpf oge, %93, %97 : vector<1x128xf32>
    %c128_i32 = arith.constant 128 : i32
    %99 = vector.broadcast %c128_i32 : i32 to vector<1x128xi32>
    %100 = arith.select %98, %96, %99 : vector<1x128xi1>, vector<1x128xi32>
    %cst_76 = arith.constant dense<2147483647> : vector<1xi32>
    %101 = vector.multi_reduction <minsi>, %100, %cst_76 [1] : vector<1x128xi32> to vector<1xi32>
    %102 = vector.shape_cast %101 : vector<1xi32> to vector<1x1xi32>
    %103 = vector.shape_cast %95 : vector<1x1xf32> to vector<1x1xf32>
    %104 = vector.broadcast %103 : vector<1x1xf32> to vector<1x128xf32>
    %105 = vector.shape_cast %102 : vector<1x1xi32> to vector<1x1xi32>
    %106 = vector.broadcast %105 : vector<1x1xi32> to vector<1x128xi32>
    %cst_77 = arith.constant 0.000000e+00 : f32
    %107 = vector.broadcast %cst_77 : f32 to vector<256x128xf32>
    %c0_78 = arith.constant 0 : index
    %c7_79 = arith.constant 7 : index
    %c0_80 = arith.constant 0 : index
    %108 = vector.load %arg9[%c0_78, %c7_79, %c0_80] : memref<18x32x128xf32, #tpu.memory_space<vmem>>, vector<16x16x128xf32>
    %109 = vector.shape_cast %108 : vector<16x16x128xf32> to vector<256x128xf32>
    %110 = arith.truncf %109 : vector<256x128xf32> to vector<256x128xbf16>
    %c9_81 = arith.constant 9 : index
    %c0_82 = arith.constant 0 : index
    %c0_83 = arith.constant 0 : index
    %111 = vector.load %arg1[%c9_81, %c0_82, %c0_83] : memref<18x128x128xbf16, #tpu.memory_space<vmem>>, vector<1x128x128xbf16>
    %112 = vector.shape_cast %111 : vector<1x128x128xbf16> to vector<128x128xbf16>
    %cst_84 = arith.constant dense<0.000000e+00> : vector<256x128xf32>
    %113 = tpu.matmul %110, %112, %cst_84 {dimension_numbers = #tpu.dot_dimension_numbers<[1], [0], [0], [1], [0, 0, 1, 1], [], []>} : vector<256x128xbf16>, vector<128x128xbf16>, vector<256x128xf32> -> vector<256x128xf32>
    %114 = arith.addf %107, %113 : vector<256x128xf32>
    %c0_85 = arith.constant 0 : index
    %c8_86 = arith.constant 8 : index
    %c0_87 = arith.constant 0 : index
    %115 = vector.load %arg9[%c0_85, %c8_86, %c0_87] : memref<18x32x128xf32, #tpu.memory_space<vmem>>, vector<16x16x128xf32>
    %116 = vector.shape_cast %115 : vector<16x16x128xf32> to vector<256x128xf32>
    %117 = arith.truncf %116 : vector<256x128xf32> to vector<256x128xbf16>
    %c10 = arith.constant 10 : index
    %c0_88 = arith.constant 0 : index
    %c0_89 = arith.constant 0 : index
    %118 = vector.load %arg1[%c10, %c0_88, %c0_89] : memref<18x128x128xbf16, #tpu.memory_space<vmem>>, vector<1x128x128xbf16>
    %119 = vector.shape_cast %118 : vector<1x128x128xbf16> to vector<128x128xbf16>
    %cst_90 = arith.constant dense<0.000000e+00> : vector<256x128xf32>
    %120 = tpu.matmul %117, %119, %cst_90 {dimension_numbers = #tpu.dot_dimension_numbers<[1], [0], [0], [1], [0, 0, 1, 1], [], []>} : vector<256x128xbf16>, vector<128x128xbf16>, vector<256x128xf32> -> vector<256x128xf32>
    %121 = arith.addf %114, %120 : vector<256x128xf32>
    %c0_91 = arith.constant 0 : index
    %c9_92 = arith.constant 9 : index
    %c0_93 = arith.constant 0 : index
    %122 = vector.load %arg9[%c0_91, %c9_92, %c0_93] : memref<18x32x128xf32, #tpu.memory_space<vmem>>, vector<16x16x128xf32>
    %123 = vector.shape_cast %122 : vector<16x16x128xf32> to vector<256x128xf32>
    %124 = arith.truncf %123 : vector<256x128xf32> to vector<256x128xbf16>
    %c11 = arith.constant 11 : index
    %c0_94 = arith.constant 0 : index
    %c0_95 = arith.constant 0 : index
    %125 = vector.load %arg1[%c11, %c0_94, %c0_95] : memref<18x128x128xbf16, #tpu.memory_space<vmem>>, vector<1x128x128xbf16>
    %126 = vector.shape_cast %125 : vector<1x128x128xbf16> to vector<128x128xbf16>
    %cst_96 = arith.constant dense<0.000000e+00> : vector<256x128xf32>
    %127 = tpu.matmul %124, %126, %cst_96 {dimension_numbers = #tpu.dot_dimension_numbers<[1], [0], [0], [1], [0, 0, 1, 1], [], []>} : vector<256x128xbf16>, vector<128x128xbf16>, vector<256x128xf32> -> vector<256x128xf32>
    %128 = arith.addf %121, %127 : vector<256x128xf32>
    %c1_97 = arith.constant 1 : index
    %c7_98 = arith.constant 7 : index
    %c0_99 = arith.constant 0 : index
    %129 = vector.load %arg9[%c1_97, %c7_98, %c0_99] : memref<18x32x128xf32, #tpu.memory_space<vmem>>, vector<16x16x128xf32>
    %130 = vector.shape_cast %129 : vector<16x16x128xf32> to vector<256x128xf32>
    %131 = arith.truncf %130 : vector<256x128xf32> to vector<256x128xbf16>
    %c12 = arith.constant 12 : index
    %c0_100 = arith.constant 0 : index
    %c0_101 = arith.constant 0 : index
    %132 = vector.load %arg1[%c12, %c0_100, %c0_101] : memref<18x128x128xbf16, #tpu.memory_space<vmem>>, vector<1x128x128xbf16>
    %133 = vector.shape_cast %132 : vector<1x128x128xbf16> to vector<128x128xbf16>
    %cst_102 = arith.constant dense<0.000000e+00> : vector<256x128xf32>
    %134 = tpu.matmul %131, %133, %cst_102 {dimension_numbers = #tpu.dot_dimension_numbers<[1], [0], [0], [1], [0, 0, 1, 1], [], []>} : vector<256x128xbf16>, vector<128x128xbf16>, vector<256x128xf32> -> vector<256x128xf32>
    %135 = arith.addf %128, %134 : vector<256x128xf32>
    %c1_103 = arith.constant 1 : index
    %c8_104 = arith.constant 8 : index
    %c0_105 = arith.constant 0 : index
    %136 = vector.load %arg9[%c1_103, %c8_104, %c0_105] : memref<18x32x128xf32, #tpu.memory_space<vmem>>, vector<16x16x128xf32>
    %137 = vector.shape_cast %136 : vector<16x16x128xf32> to vector<256x128xf32>
    %138 = arith.truncf %137 : vector<256x128xf32> to vector<256x128xbf16>
    %c13 = arith.constant 13 : index
    %c0_106 = arith.constant 0 : index
    %c0_107 = arith.constant 0 : index
    %139 = vector.load %arg1[%c13, %c0_106, %c0_107] : memref<18x128x128xbf16, #tpu.memory_space<vmem>>, vector<1x128x128xbf16>
    %140 = vector.shape_cast %139 : vector<1x128x128xbf16> to vector<128x128xbf16>
    %cst_108 = arith.constant dense<0.000000e+00> : vector<256x128xf32>
    %141 = tpu.matmul %138, %140, %cst_108 {dimension_numbers = #tpu.dot_dimension_numbers<[1], [0], [0], [1], [0, 0, 1, 1], [], []>} : vector<256x128xbf16>, vector<128x128xbf16>, vector<256x128xf32> -> vector<256x128xf32>
    %142 = arith.addf %135, %141 : vector<256x128xf32>
    %c1_109 = arith.constant 1 : index
    %c9_110 = arith.constant 9 : index
    %c0_111 = arith.constant 0 : index
    %143 = vector.load %arg9[%c1_109, %c9_110, %c0_111] : memref<18x32x128xf32, #tpu.memory_space<vmem>>, vector<16x16x128xf32>
    %144 = vector.shape_cast %143 : vector<16x16x128xf32> to vector<256x128xf32>
    %145 = arith.truncf %144 : vector<256x128xf32> to vector<256x128xbf16>
    %c14 = arith.constant 14 : index
    %c0_112 = arith.constant 0 : index
    %c0_113 = arith.constant 0 : index
    %146 = vector.load %arg1[%c14, %c0_112, %c0_113] : memref<18x128x128xbf16, #tpu.memory_space<vmem>>, vector<1x128x128xbf16>
    %147 = vector.shape_cast %146 : vector<1x128x128xbf16> to vector<128x128xbf16>
    %cst_114 = arith.constant dense<0.000000e+00> : vector<256x128xf32>
    %148 = tpu.matmul %145, %147, %cst_114 {dimension_numbers = #tpu.dot_dimension_numbers<[1], [0], [0], [1], [0, 0, 1, 1], [], []>} : vector<256x128xbf16>, vector<128x128xbf16>, vector<256x128xf32> -> vector<256x128xf32>
    %149 = arith.addf %142, %148 : vector<256x128xf32>
    %c2_115 = arith.constant 2 : index
    %c7_116 = arith.constant 7 : index
    %c0_117 = arith.constant 0 : index
    %150 = vector.load %arg9[%c2_115, %c7_116, %c0_117] : memref<18x32x128xf32, #tpu.memory_space<vmem>>, vector<16x16x128xf32>
    %151 = vector.shape_cast %150 : vector<16x16x128xf32> to vector<256x128xf32>
    %152 = arith.truncf %151 : vector<256x128xf32> to vector<256x128xbf16>
    %c15 = arith.constant 15 : index
    %c0_118 = arith.constant 0 : index
    %c0_119 = arith.constant 0 : index
    %153 = vector.load %arg1[%c15, %c0_118, %c0_119] : memref<18x128x128xbf16, #tpu.memory_space<vmem>>, vector<1x128x128xbf16>
    %154 = vector.shape_cast %153 : vector<1x128x128xbf16> to vector<128x128xbf16>
    %cst_120 = arith.constant dense<0.000000e+00> : vector<256x128xf32>
    %155 = tpu.matmul %152, %154, %cst_120 {dimension_numbers = #tpu.dot_dimension_numbers<[1], [0], [0], [1], [0, 0, 1, 1], [], []>} : vector<256x128xbf16>, vector<128x128xbf16>, vector<256x128xf32> -> vector<256x128xf32>
    %156 = arith.addf %149, %155 : vector<256x128xf32>
    %c2_121 = arith.constant 2 : index
    %c8_122 = arith.constant 8 : index
    %c0_123 = arith.constant 0 : index
    %157 = vector.load %arg9[%c2_121, %c8_122, %c0_123] : memref<18x32x128xf32, #tpu.memory_space<vmem>>, vector<16x16x128xf32>
    %158 = vector.shape_cast %157 : vector<16x16x128xf32> to vector<256x128xf32>
    %159 = arith.truncf %158 : vector<256x128xf32> to vector<256x128xbf16>
    %c16 = arith.constant 16 : index
    %c0_124 = arith.constant 0 : index
    %c0_125 = arith.constant 0 : index
    %160 = vector.load %arg1[%c16, %c0_124, %c0_125] : memref<18x128x128xbf16, #tpu.memory_space<vmem>>, vector<1x128x128xbf16>
    %161 = vector.shape_cast %160 : vector<1x128x128xbf16> to vector<128x128xbf16>
    %cst_126 = arith.constant dense<0.000000e+00> : vector<256x128xf32>
    %162 = tpu.matmul %159, %161, %cst_126 {dimension_numbers = #tpu.dot_dimension_numbers<[1], [0], [0], [1], [0, 0, 1, 1], [], []>} : vector<256x128xbf16>, vector<128x128xbf16>, vector<256x128xf32> -> vector<256x128xf32>
    %163 = arith.addf %156, %162 : vector<256x128xf32>
    %c2_127 = arith.constant 2 : index
    %c9_128 = arith.constant 9 : index
    %c0_129 = arith.constant 0 : index
    %164 = vector.load %arg9[%c2_127, %c9_128, %c0_129] : memref<18x32x128xf32, #tpu.memory_space<vmem>>, vector<16x16x128xf32>
    %165 = vector.shape_cast %164 : vector<16x16x128xf32> to vector<256x128xf32>
    %166 = arith.truncf %165 : vector<256x128xf32> to vector<256x128xbf16>
    %c17 = arith.constant 17 : index
    %c0_130 = arith.constant 0 : index
    %c0_131 = arith.constant 0 : index
    %167 = vector.load %arg1[%c17, %c0_130, %c0_131] : memref<18x128x128xbf16, #tpu.memory_space<vmem>>, vector<1x128x128xbf16>
    %168 = vector.shape_cast %167 : vector<1x128x128xbf16> to vector<128x128xbf16>
    %cst_132 = arith.constant dense<0.000000e+00> : vector<256x128xf32>
    %169 = tpu.matmul %166, %168, %cst_132 {dimension_numbers = #tpu.dot_dimension_numbers<[1], [0], [0], [1], [0, 0, 1, 1], [], []>} : vector<256x128xbf16>, vector<128x128xbf16>, vector<256x128xf32> -> vector<256x128xf32>
    %170 = arith.addf %163, %169 : vector<256x128xf32>
    %c1_133 = arith.constant 1 : index
    %c0_134 = arith.constant 0 : index
    %c0_135 = arith.constant 0 : index
    %171 = vector.load %arg2[%c1_133, %c0_134, %c0_135] : memref<2x1x128xf32, #tpu.memory_space<vmem>>, vector<1x1x128xf32>
    %172 = vector.shape_cast %171 : vector<1x1x128xf32> to vector<1x128xf32>
    %173 = vector.broadcast %172 : vector<1x128xf32> to vector<256x128xf32>
    %174 = arith.addf %170, %173 : vector<256x128xf32>
    %cst_136 = arith.constant 0.000000e+00 : f32
    %175 = vector.broadcast %cst_136 : f32 to vector<256x128xf32>
    %176 = arith.maximumf %174, %175 : vector<256x128xf32>
    %cst_137 = arith.constant dense<0.000000e+00> : vector<128xf32>
    %177 = vector.multi_reduction <add>, %176, %cst_137 [0] : vector<256x128xf32> to vector<128xf32>
    %178 = vector.shape_cast %177 : vector<128xf32> to vector<1x128xf32>
    %cst_138 = arith.constant 2.560000e+02 : f32
    %179 = vector.broadcast %cst_138 : f32 to vector<1x128xf32>
    %180 = arith.divf %178, %179 : vector<1x128xf32>
    %181 = arith.truncf %180 : vector<1x128xf32> to vector<1x128xbf16>
    %c1_139 = arith.constant 1 : index
    %c0_140 = arith.constant 0 : index
    %c0_141 = arith.constant 0 : index
    %182 = vector.load %arg3[%c1_139, %c0_140, %c0_141] : memref<2x128x128xbf16, #tpu.memory_space<vmem>>, vector<1x128x128xbf16>
    %183 = vector.shape_cast %182 : vector<1x128x128xbf16> to vector<128x128xbf16>
    %cst_142 = arith.constant dense<0.000000e+00> : vector<1x128xf32>
    %184 = tpu.matmul %181, %183, %cst_142 {dimension_numbers = #tpu.dot_dimension_numbers<[1], [0], [0], [1], [0, 0, 1, 1], [], []>} : vector<1x128xbf16>, vector<128x128xbf16>, vector<1x128xf32> -> vector<1x128xf32>
    %c1_143 = arith.constant 1 : index
    %c0_144 = arith.constant 0 : index
    %c0_145 = arith.constant 0 : index
    %185 = vector.load %arg4[%c1_143, %c0_144, %c0_145] : memref<2x1x128xf32, #tpu.memory_space<vmem>>, vector<1x1x128xf32>
    %186 = vector.shape_cast %185 : vector<1x1x128xf32> to vector<1x128xf32>
    %187 = arith.addf %184, %186 : vector<1x128xf32>
    %cst_146 = arith.constant dense<0xFF800000> : vector<1xf32>
    %188 = vector.multi_reduction <maximumf>, %187, %cst_146 [1] : vector<1x128xf32> to vector<1xf32>
    %189 = vector.shape_cast %188 : vector<1xf32> to vector<1x1xf32>
    %190 = vector.broadcast %189 : vector<1x1xf32> to vector<1x128xf32>
    %191 = arith.subf %187, %190 : vector<1x128xf32>
    %192 = math.exp %191 : vector<1x128xf32>
    %cst_147 = arith.constant dense<0.000000e+00> : vector<1xf32>
    %193 = vector.multi_reduction <add>, %192, %cst_147 [1] : vector<1x128xf32> to vector<1xf32>
    %194 = vector.shape_cast %193 : vector<1xf32> to vector<1x1xf32>
    %195 = vector.broadcast %194 : vector<1x1xf32> to vector<1x128xf32>
    %196 = arith.divf %192, %195 : vector<1x128xf32>
    %cst_148 = arith.constant dense<0xFF800000> : vector<1xf32>
    %197 = vector.multi_reduction <maximumf>, %196, %cst_148 [1] : vector<1x128xf32> to vector<1xf32>
    %198 = vector.shape_cast %197 : vector<1xf32> to vector<1x1xf32>
    %199 = tpu.iota {dimensions = array<i32: 1>} : vector<1x128xi32>
    %200 = vector.broadcast %198 : vector<1x1xf32> to vector<1x128xf32>
    %201 = arith.cmpf oge, %196, %200 : vector<1x128xf32>
    %c128_i32_149 = arith.constant 128 : i32
    %202 = vector.broadcast %c128_i32_149 : i32 to vector<1x128xi32>
    %203 = arith.select %201, %199, %202 : vector<1x128xi1>, vector<1x128xi32>
    %cst_150 = arith.constant dense<2147483647> : vector<1xi32>
    %204 = vector.multi_reduction <minsi>, %203, %cst_150 [1] : vector<1x128xi32> to vector<1xi32>
    %205 = vector.shape_cast %204 : vector<1xi32> to vector<1x1xi32>
    %206 = vector.shape_cast %198 : vector<1x1xf32> to vector<1x1xf32>
    %207 = vector.broadcast %206 : vector<1x1xf32> to vector<1x128xf32>
    %208 = vector.shape_cast %205 : vector<1x1xi32> to vector<1x1xi32>
    %209 = vector.broadcast %208 : vector<1x1xi32> to vector<1x128xi32>
    %210 = tpu.concatenate %84, %187 in 0 : vector<1x128xf32>, vector<1x128xf32> -> vector<2x128xf32>
    %c0_151 = arith.constant 0 : index
    %c0_152 = arith.constant 0 : index
    %211 = vector.load %arg5[%c0_151, %c0_152] : memref<2x128xf32, #tpu.memory_space<vmem>>, vector<2x128xf32>
    tpu.vector_store %arg5[%c0_151, %c0_152], %210 {strides = array<i32>} : memref<2x128xf32, #tpu.memory_space<vmem>>, vector<2x128xf32>,
    %212 = tpu.concatenate %104, %207 in 0 : vector<1x128xf32>, vector<1x128xf32> -> vector<2x128xf32>
    %c0_153 = arith.constant 0 : index
    %c0_154 = arith.constant 0 : index
    %213 = vector.load %arg6[%c0_153, %c0_154] : memref<2x128xf32, #tpu.memory_space<vmem>>, vector<2x128xf32>
    tpu.vector_store %arg6[%c0_153, %c0_154], %212 {strides = array<i32>} : memref<2x128xf32, #tpu.memory_space<vmem>>, vector<2x128xf32>,
    %214 = tpu.concatenate %106, %209 in 0 : vector<1x128xi32>, vector<1x128xi32> -> vector<2x128xi32>
    %c0_155 = arith.constant 0 : index
    %c0_156 = arith.constant 0 : index
    %215 = vector.load %arg7[%c0_155, %c0_156] : memref<2x128xi32, #tpu.memory_space<vmem>>, vector<2x128xi32>
    tpu.vector_store %arg7[%c0_155, %c0_156], %214 {strides = array<i32>} : memref<2x128xi32, #tpu.memory_space<vmem>>, vector<2x128xi32>,
    %c0_157 = arith.constant 0 : index
    %c0_158 = arith.constant 0 : index
    %216 = vector.load %arg8[%c0_157, %c0_158] : memref<256x128xf32, #tpu.memory_space<vmem>>, vector<256x128xf32>
    tpu.vector_store %arg8[%c0_157, %c0_158], %176 {strides = array<i32>} : memref<256x128xf32, #tpu.memory_space<vmem>>, vector<256x128xf32>,
    return
  }
}

</mosaic_0001>

<llo_original>
// kernel: _branches_forward.1
$region0: #{_branches_forward.1}
  #allocation0 [shape = 'u32[]', space=smem, size = 0x4, offset = 0x4, fixed_abs, tag = 'smem constant byte address 0x4 - core index']
  #allocation1 [shape = 'u32[144,128]{1,0:T(1,128)}', space=vmem, size = 0x12000, scoped, tag = 'internal scratch']
  #allocation2 [shape = 'f32[18,32,128]{2,1,0:T(8,128)}', space=vmem, size = 0x48000, scoped, tag = 'scratch operand']
  %s0 = inlined_call_operand.vmem [shape: f32[18,32,128], index: 0, kind: input, shape index: {}]
  %s1 = inlined_call_operand.vmem [shape: bf16[18,128,128], index: 1, kind: input, shape index: {}]
  %s2 = inlined_call_operand.vmem [shape: f32[2,1,128], index: 2, kind: input, shape index: {}]
  %s3 = inlined_call_operand.hbm [shape: bf16[2,128,128], index: 3, kind: input, shape index: {}]
  %s4 = inlined_call_operand.vmem [shape: f32[2,1,128], index: 4, kind: input, shape index: {}]
  %s5 = inlined_call_operand.hbm [shape: f32[2,128], index: 5, kind: output, shape index: {0}]
  %s6 = inlined_call_operand.hbm [shape: f32[2,128], index: 6, kind: output, shape index: {1}]
  %s7 = inlined_call_operand.hbm [shape: s32[2,128], index: 7, kind: output, shape index: {2}]
  %s8 = inlined_call_operand.hbm [shape: f32[256,128], index: 8, kind: output, shape index: {3}]
  %9 = xla_tuple %s5, %s6, %s7, %s8
  %s10 = sld [smem:[#allocation0]]
  $region58: #{_branches_forward.1} parent=0
    _
  %s12 = ssub.s32 1, %s10
  %s13 = scalar_select 0, %s12, %s10
  $region1: #{_branches_forward.1} parent=0
    #allocation3 [shape = 'u8[65536]{0}', space=vmem, size = 0x10000, scoped, tag = 'input window, operand 3, single buffered']
    #allocation4 [shape = 's32[1]{0}', space=sflag, size = 0x4, scoped, tag = 'scoped memory for _branches_forward.1']
    #allocation5 [shape = 's32[1]{0}', space=sflag, size = 0x4, scoped, tag = 'scoped memory for _branches_forward.1']
    #allocation6 [shape = 'u8[1024]{0}', space=vmem, size = 0x400, scoped, tag = 'output window, operand 0, single buffered']
    #allocation7 [shape = 'u8[1024]{0}', space=vmem, size = 0x400, scoped, tag = 'output window, operand 1, single buffered']
    #allocation8 [shape = 's32[1]{0}', space=sflag, size = 0x4, scoped, tag = 'scoped memory for _branches_forward.1']
    #allocation9 [shape = 'u8[1024]{0}', space=vmem, size = 0x400, scoped, tag = 'output window, operand 2, single buffered']
    #allocation10 [shape = 'u8[131072]{0}', space=vmem, size = 0x20000, scoped, tag = 'output window, operand 3, single buffered']
    #allocation11 [shape = 's32[1]{0}', space=sflag, size = 0x4, scoped, tag = 'scoped memory for _branches_forward.1']
    %14 = vsyncpa [#allocation4], 0
    %15 = vsyncpa [#allocation5], 0
    %16 = vsyncpa [#allocation8], 0
    %17 = vsyncpa [#allocation11], 0
    // Predicated region
    $region2: #{_branches_forward.1} parent=1 // pred_check
      _
    $region3: #{_branches_forward.1} parent=1 // pred_check_branch
      %19 = sbr.rel (0) target = $region5
    $region4: #{_branches_forward.1} parent=1 // pred_region
      _
    $region5: #{_branches_forward.1} parent=1 // pred_fallthru
      _
    // Predicated region
    $region6: #{_branches_forward.1} parent=1 // pred_check
      _
    $region7: #{_branches_forward.1} parent=1 // pred_check_branch
      %21 = sbr.rel (0) target = $region9
    $region8: #{_branches_forward.1} parent=1 // pred_region
      _
    $region9: #{_branches_forward.1} parent=1 // pred_fallthru
      _
    // Predicated region
    $region10: #{_branches_forward.1} parent=1 // pred_check
      _
    $region11: #{_branches_forward.1} parent=1 // pred_check_branch
      %23 = sbr.rel (0) target = $region13
    $region12: #{_branches_forward.1} parent=1 // pred_region
      _
    $region13: #{_branches_forward.1} parent=1 // pred_fallthru
      _
    // Predicated region
    $region14: #{_branches_forward.1} parent=1 // pred_check
      _
    $region15: #{_branches_forward.1} parent=1 // pred_check_branch
      %25 = sbr.rel (0) target = $region17
    $region16: #{_branches_forward.1} parent=1 // pred_region
      %s27 = ssub.s32 2048, 2048
      %28 = vsyncadd [#allocation4], %s27
      %s29 = sshll.u32 [#allocation3], 4
      %s30 = int_to_ptr.vmem [resolvable:$true] %s29
      %35 = dma.hbm_to_vmem [thread:$0]  %s3, 2048, %s30, [#allocation4], 64, 64, 4
    $region17: #{_branches_forward.1} parent=1 // pred_fallthru
      _
    // Predicated region
    $region18: #{_branches_forward.1} parent=1 // pred_check
      _
    $region19: #{_branches_forward.1} parent=1 // pred_check_branch
      %37 = sbr.rel (0) target = $region21
    $region20: #{_branches_forward.1} parent=1 // pred_region
      _
    $region21: #{_branches_forward.1} parent=1 // pred_fallthru
      _
    // Predicated region
    $region22: #{_branches_forward.1} parent=1 // pred_check
      _
    $region23: #{_branches_forward.1} parent=1 // pred_check_branch
      %39 = sbr.rel (0) target = $region25
    $region24: #{_branches_forward.1} parent=1 // pred_region
      %40 = dma.done [#allocation4], 2048
    $region25: #{_branches_forward.1} parent=1 // pred_fallthru
      _
    %42 = vst [vmem:[#allocation2] sm:$0xff] 0.0
    %43 = vst [vmem:[#allocation2 + $0x8] sm:$0xff] 0.0
    %44 = vst [vmem:[#allocation2 + $0x10] sm:$0xff] 0.0
    %45 = vst [vmem:[#allocation2 + $0x18] sm:$0xff] 0.0
    %46 = vst [vmem:[#allocation2 + $0x20] sm:$0xff] 0.0
    %47 = vst [vmem:[#allocation2 + $0x28] sm:$0xff] 0.0
    %48 = vst [vmem:[#allocation2 + $0x30] sm:$0xff] 0.0
    %49 = vst [vmem:[#allocation2 + $0x38] sm:$0xff] 0.0
    %50 = vst [vmem:[#allocation2 + $0x40] sm:$0xff] 0.0
    %51 = vst [vmem:[#allocation2 + $0x48] sm:$0xff] 0.0
    %52 = vst [vmem:[#allocation2 + $0x50] sm:$0xff] 0.0
    %53 = vst [vmem:[#allocation2 + $0x58] sm:$0xff] 0.0
    %54 = vst [vmem:[#allocation2 + $0x60] sm:$0xff] 0.0
    %55 = vst [vmem:[#allocation2 + $0x68] sm:$0xff] 0.0
    %56 = vst [vmem:[#allocation2 + $0x70] sm:$0xff] 0.0
    %57 = vst [vmem:[#allocation2 + $0x78] sm:$0xff] 0.0
    %58 = vst [vmem:[#allocation2 + $0x80] sm:$0xff] 0.0
    %59 = vst [vmem:[#allocation2 + $0x88] sm:$0xff] 0.0
    %60 = vst [vmem:[#allocation2 + $0x90] sm:$0xff] 0.0
    %61 = vst [vmem:[#allocation2 + $0x98] sm:$0xff] 0.0
    %62 = vst [vmem:[#allocation2 + $0xa0] sm:$0xff] 0.0
    %63 = vst [vmem:[#allocation2 + $0xa8] sm:$0xff] 0.0
    %64 = vst [vmem:[#allocation2 + $0xb0] sm:$0xff] 0.0
    %65 = vst [vmem:[#allocation2 + $0xb8] sm:$0xff] 0.0
    %66 = vst [vmem:[#allocation2 + $0xc0] sm:$0xff] 0.0
    %67 = vst [vmem:[#allocation2 + $0xc8] sm:$0xff] 0.0
    %68 = vst [vmem:[#allocation2 + $0xd0] sm:$0xff] 0.0
    %69 = vst [vmem:[#allocation2 + $0xd8] sm:$0xff] 0.0
    %70 = vst [vmem:[#allocation2 + $0xe0] sm:$0xff] 0.0
    %71 = vst [vmem:[#allocation2 + $0xe8] sm:$0xff] 0.0
    %72 = vst [vmem:[#allocation2 + $0xf0] sm:$0xff] 0.0
    %73 = vst [vmem:[#allocation2 + $0xf8] sm:$0xff] 0.0
    %74 = vst [vmem:[#allocation2 + $0x100] sm:$0xff] 0.0
    %75 = vst [vmem:[#allocation2 + $0x108] sm:$0xff] 0.0
    %76 = vst [vmem:[#allocation2 + $0x110] sm:$0xff] 0.0
    %77 = vst [vmem:[#allocation2 + $0x118] sm:$0xff] 0.0
    %78 = vst [vmem:[#allocation2 + $0x120] sm:$0xff] 0.0
    %79 = vst [vmem:[#allocation2 + $0x128] sm:$0xff] 0.0
    %80 = vst [vmem:[#allocation2 + $0x130] sm:$0xff] 0.0
    %81 = vst [vmem:[#allocation2 + $0x138] sm:$0xff] 0.0
    %82 = vst [vmem:[#allocation2 + $0x140] sm:$0xff] 0.0
    %83 = vst [vmem:[#allocation2 + $0x148] sm:$0xff] 0.0
    %84 = vst [vmem:[#allocation2 + $0x150] sm:$0xff] 0.0
    %85 = vst [vmem:[#allocation2 + $0x158] sm:$0xff] 0.0
    %86 = vst [vmem:[#allocation2 + $0x160] sm:$0xff] 0.0
    %87 = vst [vmem:[#allocation2 + $0x168] sm:$0xff] 0.0
    %88 = vst [vmem:[#allocation2 + $0x170] sm:$0xff] 0.0
    %89 = vst [vmem:[#allocation2 + $0x178] sm:$0xff] 0.0
    %90 = vst [vmem:[#allocation2 + $0x180] sm:$0xff] 0.0
    %91 = vst [vmem:[#allocation2 + $0x188] sm:$0xff] 0.0
    %92 = vst [vmem:[#allocation2 + $0x190] sm:$0xff] 0.0
    %93 = vst [vmem:[#allocation2 + $0x198] sm:$0xff] 0.0
    %94 = vst [vmem:[#allocation2 + $0x1a0] sm:$0xff] 0.0
    %95 = vst [vmem:[#allocation2 + $0x1a8] sm:$0xff] 0.0
    %96 = vst [vmem:[#allocation2 + $0x1b0] sm:$0xff] 0.0
    %97 = vst [vmem:[#allocation2 + $0x1b8] sm:$0xff] 0.0
    %98 = vst [vmem:[#allocation2 + $0x1c0] sm:$0xff] 0.0
    %99 = vst [vmem:[#allocation2 + $0x1c8] sm:$0xff] 0.0
    %100 = vst [vmem:[#allocation2 + $0x1d0] sm:$0xff] 0.0
    %101 = vst [vmem:[#allocation2 + $0x1d8] sm:$0xff] 0.0
    %102 = vst [vmem:[#allocation2 + $0x1e0] sm:$0xff] 0.0
    %103 = vst [vmem:[#allocation2 + $0x1e8] sm:$0xff] 0.0
    %104 = vst [vmem:[#allocation2 + $0x1f0] sm:$0xff] 0.0
    %105 = vst [vmem:[#allocation2 + $0x1f8] sm:$0xff] 0.0
    %106 = vst [vmem:[#allocation2 + $0x200] sm:$0xff] 0.0
    %107 = vst [vmem:[#allocation2 + $0x208] sm:$0xff] 0.0
    %108 = vst [vmem:[#allocation2 + $0x210] sm:$0xff] 0.0
    %109 = vst [vmem:[#allocation2 + $0x218] sm:$0xff] 0.0
    %110 = vst [vmem:[#allocation2 + $0x220] sm:$0xff] 0.0
    %111 = vst [vmem:[#allocation2 + $0x228] sm:$0xff] 0.0
    %112 = vst [vmem:[#allocation2 + $0x230] sm:$0xff] 0.0
    %113 = vst [vmem:[#allocation2 + $0x238] sm:$0xff] 0.0
    %v114 = vld [vmem:[%s0 + $0x7] sm:$0xff]
    %v115 = vld [vmem:[%s0 + $0xf] sm:$0xff]
    %v116 = vld [vmem:[%s0 + $0x27] sm:$0xff]
    %v117 = vld [vmem:[%s0 + $0x2f] sm:$0xff]
    %v118 = vld [vmem:[%s0 + $0x47] sm:$0xff]
    %v119 = vld [vmem:[%s0 + $0x4f] sm:$0xff]
    %v120 = vld [vmem:[%s0 + $0x67] sm:$0xff]
    %v121 = vld [vmem:[%s0 + $0x6f] sm:$0xff]
    %v122 = vld [vmem:[%s0 + $0x87] sm:$0xff]
    %v123 = vld [vmem:[%s0 + $0x8f] sm:$0xff]
    %v124 = vld [vmem:[%s0 + $0xa7] sm:$0xff]
    %v125 = vld [vmem:[%s0 + $0xaf] sm:$0xff]
    %v126 = vld [vmem:[%s0 + $0xc7] sm:$0xff]
    %v127 = vld [vmem:[%s0 + $0xcf] sm:$0xff]
    %v128 = vld [vmem:[%s0 + $0xe7] sm:$0xff]
    %v129 = vld [vmem:[%s0 + $0xef] sm:$0xff]
    %v130 = vld [vmem:[%s0 + $0x107] sm:$0xff]
    %v131 = vld [vmem:[%s0 + $0x10f] sm:$0xff]
    %v132 = vld [vmem:[%s0 + $0x127] sm:$0xff]
    %v133 = vld [vmem:[%s0 + $0x12f] sm:$0xff]
    %v134 = vld [vmem:[%s0 + $0x147] sm:$0xff]
    %v135 = vld [vmem:[%s0 + $0x14f] sm:$0xff]
    %v136 = vld [vmem:[%s0 + $0x167] sm:$0xff]
    %v137 = vld [vmem:[%s0 + $0x16f] sm:$0xff]
    %v138 = vld [vmem:[%s0 + $0x187] sm:$0xff]
    %v139 = vld [vmem:[%s0 + $0x18f] sm:$0xff]
    %v140 = vld [vmem:[%s0 + $0x1a7] sm:$0xff]
    %v141 = vld [vmem:[%s0 + $0x1af] sm:$0xff]
    %v142 = vld [vmem:[%s0 + $0x1c7] sm:$0xff]
    %v143 = vld [vmem:[%s0 + $0x1cf] sm:$0xff]
    %v144 = vld [vmem:[%s0 + $0x1e7] sm:$0xff]
    %v145 = vld [vmem:[%s0 + $0x1ef] sm:$0xff]
    %v146 = vpack.c.bf16 %v115, %v114
    %v147 = vpack.c.bf16 %v117, %v116
    %v148 = vpack.c.bf16 %v119, %v118
    %v149 = vpack.c.bf16 %v121, %v120
    %v150 = vpack.c.bf16 %v123, %v122
    %v151 = vpack.c.bf16 %v125, %v124
    %v152 = vpack.c.bf16 %v127, %v126
    %v153 = vpack.c.bf16 %v129, %v128
    %v154 = vpack.c.bf16 %v131, %v130
    %v155 = vpack.c.bf16 %v133, %v132
    %v156 = vpack.c.bf16 %v135, %v134
    %v157 = vpack.c.bf16 %v137, %v136
    %v158 = vpack.c.bf16 %v139, %v138
    %v159 = vpack.c.bf16 %v141, %v140
    %v160 = vpack.c.bf16 %v143, %v142
    %v161 = vpack.c.bf16 %v145, %v144
    %v162 = vld [vmem:[%s1] sm:$0xf]
    %v163 = vld [vmem:[%s1 + $0x4] sm:$0xf]
    %v164 = vld [vmem:[%s1 + $0x8] sm:$0xf]
    %v165 = vld [vmem:[%s1 + $0xc] sm:$0xf]
    %v166 = vld [vmem:[%s1 + $0x10] sm:$0xf]
    %v167 = vld [vmem:[%s1 + $0x14] sm:$0xf]
    %v168 = vld [vmem:[%s1 + $0x18] sm:$0xf]
    %v169 = vld [vmem:[%s1 + $0x1c] sm:$0xf]
    %v170 = vld [vmem:[%s1 + $0x20] sm:$0xf]
    %v171 = vld [vmem:[%s1 + $0x24] sm:$0xf]
    %v172 = vld [vmem:[%s1 + $0x28] sm:$0xf]
    %v173 = vld [vmem:[%s1 + $0x2c] sm:$0xf]
    %v174 = vld [vmem:[%s1 + $0x30] sm:$0xf]
    %v175 = vld [vmem:[%s1 + $0x34] sm:$0xf]
    %v176 = vld [vmem:[%s1 + $0x38] sm:$0xf]
    %v177 = vld [vmem:[%s1 + $0x3c] sm:$0xf]
    %v178 = vld [vmem:[%s0 + $0x8] sm:$0xff]
    %v179 = vld [vmem:[%s0 + $0x10] sm:$0xff]
    %v180 = vld [vmem:[%s0 + $0x28] sm:$0xff]
    %v181 = vld [vmem:[%s0 + $0x30] sm:$0xff]
    %v182 = vld [vmem:[%s0 + $0x48] sm:$0xff]
    %v183 = vld [vmem:[%s0 + $0x50] sm:$0xff]
    %v184 = vld [vmem:[%s0 + $0x68] sm:$0xff]
    %v185 = vld [vmem:[%s0 + $0x70] sm:$0xff]
    %v186 = vld [vmem:[%s0 + $0x88] sm:$0xff]
    %v187 = vld [vmem:[%s0 + $0x90] sm:$0xff]
    %v188 = vld [vmem:[%s0 + $0xa8] sm:$0xff]
    %v189 = vld [vmem:[%s0 + $0xb0] sm:$0xff]
    %v190 = vld [vmem:[%s0 + $0xc8] sm:$0xff]
    %v191 = vld [vmem:[%s0 + $0xd0] sm:$0xff]
    %v192 = vld [vmem:[%s0 + $0xe8] sm:$0xff]
    %v193 = vld [vmem:[%s0 + $0xf0] sm:$0xff]
    %v194 = vld [vmem:[%s0 + $0x108] sm:$0xff]
    %v195 = vld [vmem:[%s0 + $0x110] sm:$0xff]
    %v196 = vld [vmem:[%s0 + $0x128] sm:$0xff]
    %v197 = vld [vmem:[%s0 + $0x130] sm:$0xff]
    %v198 = vld [vmem:[%s0 + $0x148] sm:$0xff]
    %v199 = vld [vmem:[%s0 + $0x150] sm:$0xff]
    %v200 = vld [vmem:[%s0 + $0x168] sm:$0xff]
    %v201 = vld [vmem:[%s0 + $0x170] sm:$0xff]
    %v202 = vld [vmem:[%s0 + $0x188] sm:$0xff]
    %v203 = vld [vmem:[%s0 + $0x190] sm:$0xff]
    %v204 = vld [vmem:[%s0 + $0x1a8] sm:$0xff]
    %v205 = vld [vmem:[%s0 + $0x1b0] sm:$0xff]
    %v206 = vld [vmem:[%s0 + $0x1c8] sm:$0xff]
    %v207 = vld [vmem:[%s0 + $0x1d0] sm:$0xff]
    %v208 = vld [vmem:[%s0 + $0x1e8] sm:$0xff]
    %v209 = vld [vmem:[%s0 + $0x1f0] sm:$0xff]
    %v210 = vpack.c.bf16 %v179, %v178
    %v211 = vpack.c.bf16 %v181, %v180
    %v212 = vpack.c.bf16 %v183, %v182
    %v213 = vpack.c.bf16 %v185, %v184
    %v214 = vpack.c.bf16 %v187, %v186
    %v215 = vpack.c.bf16 %v189, %v188
    %v216 = vpack.c.bf16 %v191, %v190
    %v217 = vpack.c.bf16 %v193, %v192
    %v218 = vpack.c.bf16 %v195, %v194
    %v219 = vpack.c.bf16 %v197, %v196
    %v220 = vpack.c.bf16 %v199, %v198
    %v221 = vpack.c.bf16 %v201, %v200
    %v222 = vpack.c.bf16 %v203, %v202
    %v223 = vpack.c.bf16 %v205, %v204
    %v224 = vpack.c.bf16 %v207, %v206
    %v225 = vpack.c.bf16 %v209, %v208
    %s226 = scalar_lea.vmem %s1, 64
    %v227 = vld [vmem:[%s226] sm:$0xf]
    %v228 = vld [vmem:[%s226 + $0x4] sm:$0xf]
    %v229 = vld [vmem:[%s226 + $0x8] sm:$0xf]
    %v230 = vld [vmem:[%s226 + $0xc] sm:$0xf]
    %v231 = vld [vmem:[%s226 + $0x10] sm:$0xf]
    %v232 = vld [vmem:[%s226 + $0x14] sm:$0xf]
    %v233 = vld [vmem:[%s226 + $0x18] sm:$0xf]
    %v234 = vld [vmem:[%s226 + $0x1c] sm:$0xf]
    %v235 = vld [vmem:[%s226 + $0x20] sm:$0xf]
    %v236 = vld [vmem:[%s226 + $0x24] sm:$0xf]
    %v237 = vld [vmem:[%s226 + $0x28] sm:$0xf]
    %v238 = vld [vmem:[%s226 + $0x2c] sm:$0xf]
    %v239 = vld [vmem:[%s226 + $0x30] sm:$0xf]
    %v240 = vld [vmem:[%s226 + $0x34] sm:$0xf]
    %v241 = vld [vmem:[%s226 + $0x38] sm:$0xf]
    %v242 = vld [vmem:[%s226 + $0x3c] sm:$0xf]
    %v259 = vunpack.c.l.b16 %v227
    %v260 = vunpack.c.l.b16 %v228
    %v261 = vunpack.c.l.b16 %v229
    %v262 = vunpack.c.l.b16 %v230
    %v263 = vunpack.c.l.b16 %v231
    %v264 = vunpack.c.l.b16 %v232
    %v265 = vunpack.c.l.b16 %v233
    %v266 = vunpack.c.l.b16 %v234
    %v267 = vunpack.c.l.b16 %v235
    %v268 = vunpack.c.l.b16 %v236
    %v269 = vunpack.c.l.b16 %v237
    %v270 = vunpack.c.l.b16 %v238
    %v271 = vunpack.c.l.b16 %v239
    %v272 = vunpack.c.l.b16 %v240
    %v273 = vunpack.c.l.b16 %v241
    %v274 = vunpack.c.l.b16 %v242
    %v275 = vpack.c.b16 %v260, %v259
    %v276 = vpack.c.b16 %v262, %v261
    %v277 = vpack.c.b16 %v264, %v263
    %v278 = vpack.c.b16 %v266, %v265
    %v279 = vpack.c.b16 %v268, %v267
    %v280 = vpack.c.b16 %v270, %v269
    %v281 = vpack.c.b16 %v272, %v271
    %v282 = vpack.c.b16 %v274, %v273
    %291 = vmatprep.subr.bf16.mxu0 0
    %292 = vmatpush1.bf16.msra.mxu0 %v282
    %293 = vmatprep.subr.bf16.mxu0 0
    %294 = vmatpush1.bf16.msra.mxu0 %v281
    %295 = vmatprep.subr.bf16.mxu0 0
    %296 = vmatpush1.bf16.msra.mxu0 %v280
    %297 = vmatprep.subr.bf16.mxu0 0
    %298 = vmatpush1.bf16.msra.mxu0 %v279
    %299 = vmatprep.subr.bf16.mxu0 0
    %300 = vmatpush1.bf16.msra.mxu0 %v278
    %301 = vmatprep.subr.bf16.mxu0 0
    %302 = vmatpush1.bf16.msra.mxu0 %v277
    %303 = vmatprep.subr.bf16.mxu0 0
    %304 = vmatpush1.bf16.msra.mxu0 %v276
    %305 = vmatprep.subr.bf16.mxu0 0
    %306 = vmatpush1.bf16.msra.mxu0 %v275
    %307 = vmatprep.subr.bf16.mxu0 0
    %308 = vmatpush2.bf16.msra.mxu0 0
    %309 = vmatprep.subr.bf16.mxu0 0
    %310 = vmatpush2.bf16.msra.mxu0 0
    %311 = vmatprep.subr.bf16.mxu0 0
    %312 = vmatpush2.bf16.msra.mxu0 0
    %313 = vmatprep.subr.bf16.mxu0 0
    %314 = vmatpush2.bf16.msra.mxu0 0
    %315 = vmatprep.subr.bf16.mxu0 0
    %316 = vmatpush2.bf16.msra.mxu0 0
    %317 = vmatprep.subr.bf16.mxu0 0
    %318 = vmatpush2.bf16.msra.mxu0 0
    %319 = vmatprep.subr.bf16.mxu0 0
    %320 = vmatpush2.bf16.msra.mxu0 0
    %321 = vmatprep.subr.bf16.mxu0 0
    %322 = vmatpush2.bf16.msra.mxu0 0
    %323 = vmatprep.mubr.bf16.mxu0 0
    %324 = vmatmul.mubr.bf16.gmra.mxu0 %v210
    %v325 = vpop.f32.mrf.mxu0
    %v326 = vadd.f32 0.0, %v325
    %v327 = vpop.f32.mrf.mxu0
    %v328 = vpop.f32.mrf.mxu0
    %v329 = vadd.f32 0.0, %v328
    %v330 = vpop.f32.mrf.mxu0
    %331 = vmatprep.mubr.bf16.mxu0 0
    %332 = vmatmul.mubr.bf16.gmra.mxu0 %v211
    %v333 = vpop.f32.mrf.mxu0
    %v334 = vadd.f32 0.0, %v333
    %v335 = vpop.f32.mrf.mxu0
    %v336 = vpop.f32.mrf.mxu0
    %v337 = vadd.f32 0.0, %v336
    %v338 = vpop.f32.mrf.mxu0
    %339 = vmatprep.mubr.bf16.mxu0 0
    %340 = vmatmul.mubr.bf16.gmra.mxu0 %v212
    %v341 = vpop.f32.mrf.mxu0
    %v342 = vadd.f32 0.0, %v341
    %v343 = vpop.f32.mrf.mxu0
    %v344 = vpop.f32.mrf.mxu0
    %v345 = vadd.f32 0.0, %v344
    %v346 = vpop.f32.mrf.mxu0
    %347 = vmatprep.mubr.bf16.mxu0 0
    %348 = vmatmul.mubr.bf16.gmra.mxu0 %v213
    %v349 = vpop.f32.mrf.mxu0
    %v350 = vadd.f32 0.0, %v349
    %v351 = vpop.f32.mrf.mxu0
    %v352 = vpop.f32.mrf.mxu0
    %v353 = vadd.f32 0.0, %v352
    %v354 = vpop.f32.mrf.mxu0
    %355 = vmatprep.mubr.bf16.mxu0 0
    %356 = vmatmul.mubr.bf16.gmra.mxu0 %v214
    %v357 = vpop.f32.mrf.mxu0
    %v358 = vadd.f32 0.0, %v357
    %v359 = vpop.f32.mrf.mxu0
    %v360 = vpop.f32.mrf.mxu0
    %v361 = vadd.f32 0.0, %v360
    %v362 = vpop.f32.mrf.mxu0
    %363 = vmatprep.mubr.bf16.mxu0 0
    %364 = vmatmul.mubr.bf16.gmra.mxu0 %v215
    %v365 = vpop.f32.mrf.mxu0
    %v366 = vadd.f32 0.0, %v365
    %v367 = vpop.f32.mrf.mxu0
    %v368 = vpop.f32.mrf.mxu0
    %v369 = vadd.f32 0.0, %v368
    %v370 = vpop.f32.mrf.mxu0
    %371 = vmatprep.mubr.bf16.mxu0 0
    %372 = vmatmul.mubr.bf16.gmra.mxu0 %v216
    %v373 = vpop.f32.mrf.mxu0
    %v374 = vadd.f32 0.0, %v373
    %v375 = vpop.f32.mrf.mxu0
    %v376 = vpop.f32.mrf.mxu0
    %v377 = vadd.f32 0.0, %v376
    %v378 = vpop.f32.mrf.mxu0
    %379 = vmatprep.mubr.bf16.mxu0 0
    %380 = vmatmul.mubr.bf16.gmra.mxu0 %v217
    %v381 = vpop.f32.mrf.mxu0
    %v382 = vadd.f32 0.0, %v381
    %v383 = vpop.f32.mrf.mxu0
    %v384 = vpop.f32.mrf.mxu0
    %v385 = vadd.f32 0.0, %v384
    %v386 = vpop.f32.mrf.mxu0
    %387 = vmatprep.mubr.bf16.mxu0 0
    %388 = vmatmul.mubr.bf16.gmra.mxu0 %v218
    %v389 = vpop.f32.mrf.mxu0
    %v390 = vadd.f32 0.0, %v389
    %v391 = vpop.f32.mrf.mxu0
    %v392 = vpop.f32.mrf.mxu0
    %v393 = vadd.f32 0.0, %v392
    %v394 = vpop.f32.mrf.mxu0
    %395 = vmatprep.mubr.bf16.mxu0 0
    %396 = vmatmul.mubr.bf16.gmra.mxu0 %v219
    %v397 = vpop.f32.mrf.mxu0
    %v398 = vadd.f32 0.0, %v397
    %v399 = vpop.f32.mrf.mxu0
    %v400 = vpop.f32.mrf.mxu0
    %v401 = vadd.f32 0.0, %v400
    %v402 = vpop.f32.mrf.mxu0
    %403 = vmatprep.mubr.bf16.mxu0 0
    %404 = vmatmul.mubr.bf16.gmra.mxu0 %v220
    %v405 = vpop.f32.mrf.mxu0
    %v406 = vadd.f32 0.0, %v405
    %v407 = vpop.f32.mrf.mxu0
    %v408 = vpop.f32.mrf.mxu0
    %v409 = vadd.f32 0.0, %v408
    %v410 = vpop.f32.mrf.mxu0
    %411 = vmatprep.mubr.bf16.mxu0 0
    %412 = vmatmul.mubr.bf16.gmra.mxu0 %v221
    %v413 = vpop.f32.mrf.mxu0
    %v414 = vadd.f32 0.0, %v413
    %v415 = vpop.f32.mrf.mxu0
    %v416 = vpop.f32.mrf.mxu0
    %v417 = vadd.f32 0.0, %v416
    %v418 = vpop.f32.mrf.mxu0
    %419 = vmatprep.mubr.bf16.mxu0 0
    %420 = vmatmul.mubr.bf16.gmra.mxu0 %v222
    %v421 = vpop.f32.mrf.mxu0
    %v422 = vadd.f32 0.0, %v421
    %v423 = vpop.f32.mrf.mxu0
    %v424 = vpop.f32.mrf.mxu0
    %v425 = vadd.f32 0.0, %v424
    %v426 = vpop.f32.mrf.mxu0
    %427 = vmatprep.mubr.bf16.mxu0 0
    %428 = vmatmul.mubr.bf16.gmra.mxu0 %v223
    %v429 = vpop.f32.mrf.mxu0
    %v430 = vadd.f32 0.0, %v429
    %v431 = vpop.f32.mrf.mxu0
    %v432 = vpop.f32.mrf.mxu0
    %v433 = vadd.f32 0.0, %v432
    %v434 = vpop.f32.mrf.mxu0
    %435 = vmatprep.mubr.bf16.mxu0 0
    %436 = vmatmul.mubr.bf16.gmra.mxu0 %v224
    %v437 = vpop.f32.mrf.mxu0
    %v438 = vadd.f32 0.0, %v437
    %v439 = vpop.f32.mrf.mxu0
    %v440 = vpop.f32.mrf.mxu0
    %v441 = vadd.f32 0.0, %v440
    %v442 = vpop.f32.mrf.mxu0
    %443 = vmatprep.mubr.bf16.mxu0 0
    %444 = vmatmul.mubr.bf16.gmra.mxu0 %v225
    %v445 = vpop.f32.mrf.mxu0
    %v446 = vadd.f32 0.0, %v445
    %v447 = vpop.f32.mrf.mxu0
    %v448 = vpop.f32.mrf.mxu0
    %v449 = vadd.f32 0.0, %v448
    %v450 = vpop.f32.mrf.mxu0
    %451 = vdwg.mxu0
    %v468 = vunpack.c.l.b16 %v162
    %v469 = vunpack.c.l.b16 %v163
    %v470 = vunpack.c.l.b16 %v164
    %v471 = vunpack.c.l.b16 %v165
    %v472 = vunpack.c.l.b16 %v166
    %v473 = vunpack.c.l.b16 %v167
    %v474 = vunpack.c.l.b16 %v168
    %v475 = vunpack.c.l.b16 %v169
    %v476 = vunpack.c.l.b16 %v170
    %v477 = vunpack.c.l.b16 %v171
    %v478 = vunpack.c.l.b16 %v172
    %v479 = vunpack.c.l.b16 %v173
    %v480 = vunpack.c.l.b16 %v174
    %v481 = vunpack.c.l.b16 %v175
    %v482 = vunpack.c.l.b16 %v176
    %v483 = vunpack.c.l.b16 %v177
    %v484 = vpack.c.b16 %v469, %v468
    %v485 = vpack.c.b16 %v471, %v470
    %v486 = vpack.c.b16 %v473, %v472
    %v487 = vpack.c.b16 %v475, %v474
    %v488 = vpack.c.b16 %v477, %v476
    %v489 = vpack.c.b16 %v479, %v478
    %v490 = vpack.c.b16 %v481, %v480
    %v491 = vpack.c.b16 %v483, %v482
    %500 = vmatprep.subr.bf16.mxu0 0
    %501 = vmatpush1.bf16.msra.mxu0 %v491
    %502 = vmatprep.subr.bf16.mxu0 0
    %503 = vmatpush1.bf16.msra.mxu0 %v490
    %504 = vmatprep.subr.bf16.mxu0 0
    %505 = vmatpush1.bf16.msra.mxu0 %v489
    %506 = vmatprep.subr.bf16.mxu0 0
    %507 = vmatpush1.bf16.msra.mxu0 %v488
    %508 = vmatprep.subr.bf16.mxu0 0
    %509 = vmatpush1.bf16.msra.mxu0 %v487
    %510 = vmatprep.subr.bf16.mxu0 0
    %511 = vmatpush1.bf16.msra.mxu0 %v486
    %512 = vmatprep.subr.bf16.mxu0 0
    %513 = vmatpush1.bf16.msra.mxu0 %v485
    %514 = vmatprep.subr.bf16.mxu0 0
    %515 = vmatpush1.bf16.msra.mxu0 %v484
    %516 = vmatprep.subr.bf16.mxu0 0
    %517 = vmatpush2.bf16.msra.mxu0 0
    %518 = vmatprep.subr.bf16.mxu0 0
    %519 = vmatpush2.bf16.msra.mxu0 0
    %520 = vmatprep.subr.bf16.mxu0 0
    %521 = vmatpush2.bf16.msra.mxu0 0
    %522 = vmatprep.subr.bf16.mxu0 0
    %523 = vmatpush2.bf16.msra.mxu0 0
    %524 = vmatprep.subr.bf16.mxu0 0
    %525 = vmatpush2.bf16.msra.mxu0 0
    %526 = vmatprep.subr.bf16.mxu0 0
    %527 = vmatpush2.bf16.msra.mxu0 0
    %528 = vmatprep.subr.bf16.mxu0 0
    %529 = vmatpush2.bf16.msra.mxu0 0
    %530 = vmatprep.subr.bf16.mxu0 0
    %531 = vmatpush2.bf16.msra.mxu0 0
    %532 = vmatprep.mubr.bf16.mxu0 0
    %533 = vmatmul.mubr.bf16.gmra.mxu0 %v146
    %v534 = vpop.f32.mrf.mxu0
    %v535 = vadd.f32 %v326, %v534
    %v536 = vpop.f32.mrf.mxu0
    %v537 = vpop.f32.mrf.mxu0
    %v538 = vadd.f32 %v329, %v537
    %v539 = vpop.f32.mrf.mxu0
    %540 = vmatprep.mubr.bf16.mxu0 0
    %541 = vmatmul.mubr.bf16.gmra.mxu0 %v147
    %v542 = vpop.f32.mrf.mxu0
    %v543 = vadd.f32 %v334, %v542
    %v544 = vpop.f32.mrf.mxu0
    %v545 = vpop.f32.mrf.mxu0
    %v546 = vadd.f32 %v337, %v545
    %v547 = vpop.f32.mrf.mxu0
    %548 = vmatprep.mubr.bf16.mxu0 0
    %549 = vmatmul.mubr.bf16.gmra.mxu0 %v148
    %v550 = vpop.f32.mrf.mxu0
    %v551 = vadd.f32 %v342, %v550
    %v552 = vpop.f32.mrf.mxu0
    %v553 = vpop.f32.mrf.mxu0
    %v554 = vadd.f32 %v345, %v553
    %v555 = vpop.f32.mrf.mxu0
    %556 = vmatprep.mubr.bf16.mxu0 0
    %557 = vmatmul.mubr.bf16.gmra.mxu0 %v149
    %v558 = vpop.f32.mrf.mxu0
    %v559 = vadd.f32 %v350, %v558
    %v560 = vpop.f32.mrf.mxu0
    %v561 = vpop.f32.mrf.mxu0
    %v562 = vadd.f32 %v353, %v561
    %v563 = vpop.f32.mrf.mxu0
    %564 = vmatprep.mubr.bf16.mxu0 0
    %565 = vmatmul.mubr.bf16.gmra.mxu0 %v150
    %v566 = vpop.f32.mrf.mxu0
    %v567 = vadd.f32 %v358, %v566
    %v568 = vpop.f32.mrf.mxu0
    %v569 = vpop.f32.mrf.mxu0
    %v570 = vadd.f32 %v361, %v569
    %v571 = vpop.f32.mrf.mxu0
    %572 = vmatprep.mubr.bf16.mxu0 0
    %573 = vmatmul.mubr.bf16.gmra.mxu0 %v151
    %v574 = vpop.f32.mrf.mxu0
    %v575 = vadd.f32 %v366, %v574
    %v576 = vpop.f32.mrf.mxu0
    %v577 = vpop.f32.mrf.mxu0
    %v578 = vadd.f32 %v369, %v577
    %v579 = vpop.f32.mrf.mxu0
    %580 = vmatprep.mubr.bf16.mxu0 0
    %581 = vmatmul.mubr.bf16.gmra.mxu0 %v152
    %v582 = vpop.f32.mrf.mxu0
    %v583 = vadd.f32 %v374, %v582
    %v584 = vpop.f32.mrf.mxu0
    %v585 = vpop.f32.mrf.mxu0
    %v586 = vadd.f32 %v377, %v585
    %v587 = vpop.f32.mrf.mxu0
    %588 = vmatprep.mubr.bf16.mxu0 0
    %589 = vmatmul.mubr.bf16.gmra.mxu0 %v153
    %v590 = vpop.f32.mrf.mxu0
    %v591 = vadd.f32 %v382, %v590
    %v592 = vpop.f32.mrf.mxu0
    %v593 = vpop.f32.mrf.mxu0
    %v594 = vadd.f32 %v385, %v593
    %v595 = vpop.f32.mrf.mxu0
    %596 = vmatprep.mubr.bf16.mxu0 0
    %597 = vmatmul.mubr.bf16.gmra.mxu0 %v154
    %v598 = vpop.f32.mrf.mxu0
    %v599 = vadd.f32 %v390, %v598
    %v600 = vpop.f32.mrf.mxu0
    %v601 = vpop.f32.mrf.mxu0
    %v602 = vadd.f32 %v393, %v601
    %v603 = vpop.f32.mrf.mxu0
    %604 = vmatprep.mubr.bf16.mxu0 0
    %605 = vmatmul.mubr.bf16.gmra.mxu0 %v155
    %v606 = vpop.f32.mrf.mxu0
    %v607 = vadd.f32 %v398, %v606
    %v608 = vpop.f32.mrf.mxu0
    %v609 = vpop.f32.mrf.mxu0
    %v610 = vadd.f32 %v401, %v609
    %v611 = vpop.f32.mrf.mxu0
    %612 = vmatprep.mubr.bf16.mxu0 0
    %613 = vmatmul.mubr.bf16.gmra.mxu0 %v156
    %v614 = vpop.f32.mrf.mxu0
    %v615 = vadd.f32 %v406, %v614
    %v616 = vpop.f32.mrf.mxu0
    %v617 = vpop.f32.mrf.mxu0
    %v618 = vadd.f32 %v409, %v617
    %v619 = vpop.f32.mrf.mxu0
    %620 = vmatprep.mubr.bf16.mxu0 0
    %621 = vmatmul.mubr.bf16.gmra.mxu0 %v157
    %v622 = vpop.f32.mrf.mxu0
    %v623 = vadd.f32 %v414, %v622
    %v624 = vpop.f32.mrf.mxu0
    %v625 = vpop.f32.mrf.mxu0
    %v626 = vadd.f32 %v417, %v625
    %v627 = vpop.f32.mrf.mxu0
    %628 = vmatprep.mubr.bf16.mxu0 0
    %629 = vmatmul.mubr.bf16.gmra.mxu0 %v158
    %v630 = vpop.f32.mrf.mxu0
    %v631 = vadd.f32 %v422, %v630
    %v632 = vpop.f32.mrf.mxu0
    %v633 = vpop.f32.mrf.mxu0
    %v634 = vadd.f32 %v425, %v633
    %v635 = vpop.f32.mrf.mxu0
    %636 = vmatprep.mubr.bf16.mxu0 0
    %637 = vmatmul.mubr.bf16.gmra.mxu0 %v159
    %v638 = vpop.f32.mrf.mxu0
    %v639 = vadd.f32 %v430, %v638
    %v640 = vpop.f32.mrf.mxu0
    %v641 = vpop.f32.mrf.mxu0
    %v642 = vadd.f32 %v433, %v641
    %v643 = vpop.f32.mrf.mxu0
    %644 = vmatprep.mubr.bf16.mxu0 0
    %645 = vmatmul.mubr.bf16.gmra.mxu0 %v160
    %v646 = vpop.f32.mrf.mxu0
    %v647 = vadd.f32 %v438, %v646
    %v648 = vpop.f32.mrf.mxu0
    %v649 = vpop.f32.mrf.mxu0
    %v650 = vadd.f32 %v441, %v649
    %v651 = vpop.f32.mrf.mxu0
    %652 = vmatprep.mubr.bf16.mxu0 0
    %653 = vmatmul.mubr.bf16.gmra.mxu0 %v161
    %v654 = vpop.f32.mrf.mxu0
    %v655 = vadd.f32 %v446, %v654
    %v656 = vpop.f32.mrf.mxu0
    %v657 = vpop.f32.mrf.mxu0
    %v658 = vadd.f32 %v449, %v657
    %v659 = vpop.f32.mrf.mxu0
    %660 = vdwg.mxu0
    %v661 = vld [vmem:[%s0 + $0x9] sm:$0xff]
    %v662 = vld [vmem:[%s0 + $0x11] sm:$0xff]
    %v663 = vld [vmem:[%s0 + $0x29] sm:$0xff]
    %v664 = vld [vmem:[%s0 + $0x31] sm:$0xff]
    %v665 = vld [vmem:[%s0 + $0x49] sm:$0xff]
    %v666 = vld [vmem:[%s0 + $0x51] sm:$0xff]
    %v667 = vld [vmem:[%s0 + $0x69] sm:$0xff]
    %v668 = vld [vmem:[%s0 + $0x71] sm:$0xff]
    %v669 = vld [vmem:[%s0 + $0x89] sm:$0xff]
    %v670 = vld [vmem:[%s0 + $0x91] sm:$0xff]
    %v671 = vld [vmem:[%s0 + $0xa9] sm:$0xff]
    %v672 = vld [vmem:[%s0 + $0xb1] sm:$0xff]
    %v673 = vld [vmem:[%s0 + $0xc9] sm:$0xff]
    %v674 = vld [vmem:[%s0 + $0xd1] sm:$0xff]
    %v675 = vld [vmem:[%s0 + $0xe9] sm:$0xff]
    %v676 = vld [vmem:[%s0 + $0xf1] sm:$0xff]
    %v677 = vld [vmem:[%s0 + $0x109] sm:$0xff]
    %v678 = vld [vmem:[%s0 + $0x111] sm:$0xff]
    %v679 = vld [vmem:[%s0 + $0x129] sm:$0xff]
    %v680 = vld [vmem:[%s0 + $0x131] sm:$0xff]
    %v681 = vld [vmem:[%s0 + $0x149] sm:$0xff]
    %v682 = vld [vmem:[%s0 + $0x151] sm:$0xff]
    %v683 = vld [vmem:[%s0 + $0x169] sm:$0xff]
    %v684 = vld [vmem:[%s0 + $0x171] sm:$0xff]
    %v685 = vld [vmem:[%s0 + $0x189] sm:$0xff]
    %v686 = vld [vmem:[%s0 + $0x191] sm:$0xff]
    %v687 = vld [vmem:[%s0 + $0x1a9] sm:$0xff]
    %v688 = vld [vmem:[%s0 + $0x1b1] sm:$0xff]
    %v689 = vld [vmem:[%s0 + $0x1c9] sm:$0xff]
    %v690 = vld [vmem:[%s0 + $0x1d1] sm:$0xff]
    %v691 = vld [vmem:[%s0 + $0x1e9] sm:$0xff]
    %v692 = vld [vmem:[%s0 + $0x1f1] sm:$0xff]
    %v693 = vpack.c.bf16 %v662, %v661
    %v694 = vpack.c.bf16 %v664, %v663
    %v695 = vpack.c.bf16 %v666, %v665
    %v696 = vpack.c.bf16 %v668, %v667
    %v697 = vpack.c.bf16 %v670, %v669
    %v698 = vpack.c.bf16 %v672, %v671
    %v699 = vpack.c.bf16 %v674, %v673
    %v700 = vpack.c.bf16 %v676, %v675
    %v701 = vpack.c.bf16 %v678, %v677
    %v702 = vpack.c.bf16 %v680, %v679
    %v703 = vpack.c.bf16 %v682, %v681
    %v704 = vpack.c.bf16 %v684, %v683
    %v705 = vpack.c.bf16 %v686, %v685
    %v706 = vpack.c.bf16 %v688, %v687
    %v707 = vpack.c.bf16 %v690, %v689
    %v708 = vpack.c.bf16 %v692, %v691
    %s709 = scalar_lea.vmem %s1, 128
    %v710 = vld [vmem:[%s709] sm:$0xf]
    %v711 = vld [vmem:[%s709 + $0x4] sm:$0xf]
    %v712 = vld [vmem:[%s709 + $0x8] sm:$0xf]
    %v713 = vld [vmem:[%s709 + $0xc] sm:$0xf]
    %v714 = vld [vmem:[%s709 + $0x10] sm:$0xf]
    %v715 = vld [vmem:[%s709 + $0x14] sm:$0xf]
    %v716 = vld [vmem:[%s709 + $0x18] sm:$0xf]
    %v717 = vld [vmem:[%s709 + $0x1c] sm:$0xf]
    %v718 = vld [vmem:[%s709 + $0x20] sm:$0xf]
    %v719 = vld [vmem:[%s709 + $0x24] sm:$0xf]
    %v720 = vld [vmem:[%s709 + $0x28] sm:$0xf]
    %v721 = vld [vmem:[%s709 + $0x2c] sm:$0xf]
    %v722 = vld [vmem:[%s709 + $0x30] sm:$0xf]
    %v723 = vld [vmem:[%s709 + $0x34] sm:$0xf]
    %v724 = vld [vmem:[%s709 + $0x38] sm:$0xf]
    %v725 = vld [vmem:[%s709 + $0x3c] sm:$0xf]
    %v742 = vunpack.c.l.b16 %v710
    %v743 = vunpack.c.l.b16 %v711
    %v744 = vunpack.c.l.b16 %v712
    %v745 = vunpack.c.l.b16 %v713
    %v746 = vunpack.c.l.b16 %v714
    %v747 = vunpack.c.l.b16 %v715
    %v748 = vunpack.c.l.b16 %v716
    %v749 = vunpack.c.l.b16 %v717
    %v750 = vunpack.c.l.b16 %v718
    %v751 = vunpack.c.l.b16 %v719
    %v752 = vunpack.c.l.b16 %v720
    %v753 = vunpack.c.l.b16 %v721
    %v754 = vunpack.c.l.b16 %v722
    %v755 = vunpack.c.l.b16 %v723
    %v756 = vunpack.c.l.b16 %v724
    %v757 = vunpack.c.l.b16 %v725
    %v758 = vpack.c.b16 %v743, %v742
    %v759 = vpack.c.b16 %v745, %v744
    %v760 = vpack.c.b16 %v747, %v746
    %v761 = vpack.c.b16 %v749, %v748
    %v762 = vpack.c.b16 %v751, %v750
    %v763 = vpack.c.b16 %v753, %v752
    %v764 = vpack.c.b16 %v755, %v754
    %v765 = vpack.c.b16 %v757, %v756
    %774 = vmatprep.subr.bf16.mxu0 0
    %775 = vmatpush1.bf16.msra.mxu0 %v765
    %776 = vmatprep.subr.bf16.mxu0 0
    %777 = vmatpush1.bf16.msra.mxu0 %v764
    %778 = vmatprep.subr.bf16.mxu0 0
    %779 = vmatpush1.bf16.msra.mxu0 %v763
    %780 = vmatprep.subr.bf16.mxu0 0
    %781 = vmatpush1.bf16.msra.mxu0 %v762
    %782 = vmatprep.subr.bf16.mxu0 0
    %783 = vmatpush1.bf16.msra.mxu0 %v761
    %784 = vmatprep.subr.bf16.mxu0 0
    %785 = vmatpush1.bf16.msra.mxu0 %v760
    %786 = vmatprep.subr.bf16.mxu0 0
    %787 = vmatpush1.bf16.msra.mxu0 %v759
    %788 = vmatprep.subr.bf16.mxu0 0
    %789 = vmatpush1.bf16.msra.mxu0 %v758
    %790 = vmatprep.subr.bf16.mxu0 0
    %791 = vmatpush2.bf16.msra.mxu0 0
    %792 = vmatprep.subr.bf16.mxu0 0
    %793 = vmatpush2.bf16.msra.mxu0 0
    %794 = vmatprep.subr.bf16.mxu0 0
    %795 = vmatpush2.bf16.msra.mxu0 0
    %796 = vmatprep.subr.bf16.mxu0 0
    %797 = vmatpush2.bf16.msra.mxu0 0
    %798 = vmatprep.subr.bf16.mxu0 0
    %799 = vmatpush2.bf16.msra.mxu0 0
    %800 = vmatprep.subr.bf16.mxu0 0
    %801 = vmatpush2.bf16.msra.mxu0 0
    %802 = vmatprep.subr.bf16.mxu0 0
    %803 = vmatpush2.bf16.msra.mxu0 0
    %804 = vmatprep.subr.bf16.mxu0 0
    %805 = vmatpush2.bf16.msra.mxu0 0
    %806 = vmatprep.mubr.bf16.mxu0 0
    %807 = vmatmul.mubr.bf16.gmra.mxu0 %v693
    %v808 = vpop.f32.mrf.mxu0
    %v809 = vadd.f32 0.0, %v808
    %v810 = vpop.f32.mrf.mxu0
    %v811 = vpop.f32.mrf.mxu0
    %v812 = vadd.f32 0.0, %v811
    %v813 = vpop.f32.mrf.mxu0
    %814 = vmatprep.mubr.bf16.mxu0 0
    %815 = vmatmul.mubr.bf16.gmra.mxu0 %v694
    %v816 = vpop.f32.mrf.mxu0
    %v817 = vadd.f32 0.0, %v816
    %v818 = vpop.f32.mrf.mxu0
    %v819 = vpop.f32.mrf.mxu0
    %v820 = vadd.f32 0.0, %v819
    %v821 = vpop.f32.mrf.mxu0
    %822 = vmatprep.mubr.bf16.mxu0 0
    %823 = vmatmul.mubr.bf16.gmra.mxu0 %v695
    %v824 = vpop.f32.mrf.mxu0
    %v825 = vadd.f32 0.0, %v824
    %v826 = vpop.f32.mrf.mxu0
    %v827 = vpop.f32.mrf.mxu0
    %v828 = vadd.f32 0.0, %v827
    %v829 = vpop.f32.mrf.mxu0
    %830 = vmatprep.mubr.bf16.mxu0 0
    %831 = vmatmul.mubr.bf16.gmra.mxu0 %v696
    %v832 = vpop.f32.mrf.mxu0
    %v833 = vadd.f32 0.0, %v832
    %v834 = vpop.f32.mrf.mxu0
    %v835 = vpop.f32.mrf.mxu0
    %v836 = vadd.f32 0.0, %v835
    %v837 = vpop.f32.mrf.mxu0
    %838 = vmatprep.mubr.bf16.mxu0 0
    %839 = vmatmul.mubr.bf16.gmra.mxu0 %v697
    %v840 = vpop.f32.mrf.mxu0
    %v841 = vadd.f32 0.0, %v840
    %v842 = vpop.f32.mrf.mxu0
    %v843 = vpop.f32.mrf.mxu0
    %v844 = vadd.f32 0.0, %v843
    %v845 = vpop.f32.mrf.mxu0
    %846 = vmatprep.mubr.bf16.mxu0 0
    %847 = vmatmul.mubr.bf16.gmra.mxu0 %v698
    %v848 = vpop.f32.mrf.mxu0
    %v849 = vadd.f32 0.0, %v848
    %v850 = vpop.f32.mrf.mxu0
    %v851 = vpop.f32.mrf.mxu0
    %v852 = vadd.f32 0.0, %v851
    %v853 = vpop.f32.mrf.mxu0
    %854 = vmatprep.mubr.bf16.mxu0 0
    %855 = vmatmul.mubr.bf16.gmra.mxu0 %v699
    %v856 = vpop.f32.mrf.mxu0
    %v857 = vadd.f32 0.0, %v856
    %v858 = vpop.f32.mrf.mxu0
    %v859 = vpop.f32.mrf.mxu0
    %v860 = vadd.f32 0.0, %v859
    %v861 = vpop.f32.mrf.mxu0
    %862 = vmatprep.mubr.bf16.mxu0 0
    %863 = vmatmul.mubr.bf16.gmra.mxu0 %v700
    %v864 = vpop.f32.mrf.mxu0
    %v865 = vadd.f32 0.0, %v864
    %v866 = vpop.f32.mrf.mxu0
    %v867 = vpop.f32.mrf.mxu0
    %v868 = vadd.f32 0.0, %v867
    %v869 = vpop.f32.mrf.mxu0
    %870 = vmatprep.mubr.bf16.mxu0 0
    %871 = vmatmul.mubr.bf16.gmra.mxu0 %v701
    %v872 = vpop.f32.mrf.mxu0
    %v873 = vadd.f32 0.0, %v872
    %v874 = vpop.f32.mrf.mxu0
    %v875 = vpop.f32.mrf.mxu0
    %v876 = vadd.f32 0.0, %v875
    %v877 = vpop.f32.mrf.mxu0
    %878 = vmatprep.mubr.bf16.mxu0 0
    %879 = vmatmul.mubr.bf16.gmra.mxu0 %v702
    %v880 = vpop.f32.mrf.mxu0
    %v881 = vadd.f32 0.0, %v880
    %v882 = vpop.f32.mrf.mxu0
    %v883 = vpop.f32.mrf.mxu0
    %v884 = vadd.f32 0.0, %v883
    %v885 = vpop.f32.mrf.mxu0
    %886 = vmatprep.mubr.bf16.mxu0 0
    %887 = vmatmul.mubr.bf16.gmra.mxu0 %v703
    %v888 = vpop.f32.mrf.mxu0
    %v889 = vadd.f32 0.0, %v888
    %v890 = vpop.f32.mrf.mxu0
    %v891 = vpop.f32.mrf.mxu0
    %v892 = vadd.f32 0.0, %v891
    %v893 = vpop.f32.mrf.mxu0
    %894 = vmatprep.mubr.bf16.mxu0 0
    %895 = vmatmul.mubr.bf16.gmra.mxu0 %v704
    %v896 = vpop.f32.mrf.mxu0
    %v897 = vadd.f32 0.0, %v896
    %v898 = vpop.f32.mrf.mxu0
    %v899 = vpop.f32.mrf.mxu0
    %v900 = vadd.f32 0.0, %v899
    %v901 = vpop.f32.mrf.mxu0
    %902 = vmatprep.mubr.bf16.mxu0 0
    %903 = vmatmul.mubr.bf16.gmra.mxu0 %v705
    %v904 = vpop.f32.mrf.mxu0
    %v905 = vadd.f32 0.0, %v904
    %v906 = vpop.f32.mrf.mxu0
    %v907 = vpop.f32.mrf.mxu0
    %v908 = vadd.f32 0.0, %v907
    %v909 = vpop.f32.mrf.mxu0
    %910 = vmatprep.mubr.bf16.mxu0 0
    %911 = vmatmul.mubr.bf16.gmra.mxu0 %v706
    %v912 = vpop.f32.mrf.mxu0
    %v913 = vadd.f32 0.0, %v912
    %v914 = vpop.f32.mrf.mxu0
    %v915 = vpop.f32.mrf.mxu0
    %v916 = vadd.f32 0.0, %v915
    %v917 = vpop.f32.mrf.mxu0
    %918 = vmatprep.mubr.bf16.mxu0 0
    %919 = vmatmul.mubr.bf16.gmra.mxu0 %v707
    %v920 = vpop.f32.mrf.mxu0
    %v921 = vadd.f32 0.0, %v920
    %v922 = vpop.f32.mrf.mxu0
    %v923 = vpop.f32.mrf.mxu0
    %v924 = vadd.f32 0.0, %v923
    %v925 = vpop.f32.mrf.mxu0
    %926 = vmatprep.mubr.bf16.mxu0 0
    %927 = vmatmul.mubr.bf16.gmra.mxu0 %v708
    %v928 = vpop.f32.mrf.mxu0
    %v929 = vadd.f32 0.0, %v928
    %v930 = vpop.f32.mrf.mxu0
    %v931 = vpop.f32.mrf.mxu0
    %v932 = vadd.f32 0.0, %v931
    %v933 = vpop.f32.mrf.mxu0
    %934 = vdwg.mxu0
    %v935 = vadd.f32 %v535, %v809
    %v936 = vadd.f32 %v538, %v812
    %v937 = vadd.f32 %v543, %v817
    %v938 = vadd.f32 %v546, %v820
    %v939 = vadd.f32 %v551, %v825
    %v940 = vadd.f32 %v554, %v828
    %v941 = vadd.f32 %v559, %v833
    %v942 = vadd.f32 %v562, %v836
    %v943 = vadd.f32 %v567, %v841
    %v944 = vadd.f32 %v570, %v844
    %v945 = vadd.f32 %v575, %v849
    %v946 = vadd.f32 %v578, %v852
    %v947 = vadd.f32 %v583, %v857
    %v948 = vadd.f32 %v586, %v860
    %v949 = vadd.f32 %v591, %v865
    %v950 = vadd.f32 %v594, %v868
    %v951 = vadd.f32 %v599, %v873
    %v952 = vadd.f32 %v602, %v876
    %v953 = vadd.f32 %v607, %v881
    %v954 = vadd.f32 %v610, %v884
    %v955 = vadd.f32 %v615, %v889
    %v956 = vadd.f32 %v618, %v892
    %v957 = vadd.f32 %v623, %v897
    %v958 = vadd.f32 %v626, %v900
    %v959 = vadd.f32 %v631, %v905
    %v960 = vadd.f32 %v634, %v908
    %v961 = vadd.f32 %v639, %v913
    %v962 = vadd.f32 %v642, %v916
    %v963 = vadd.f32 %v647, %v921
    %v964 = vadd.f32 %v650, %v924
    %v965 = vadd.f32 %v655, %v929
    %v966 = vadd.f32 %v658, %v932
    %s967 = scalar_lea.vmem %s0, 32
    %v968 = vld [vmem:[%s967 + $0x7] sm:$0xff]
    %v969 = vld [vmem:[%s967 + $0xf] sm:$0xff]
    %v970 = vld [vmem:[%s967 + $0x27] sm:$0xff]
    %v971 = vld [vmem:[%s967 + $0x2f] sm:$0xff]
    %v972 = vld [vmem:[%s967 + $0x47] sm:$0xff]
    %v973 = vld [vmem:[%s967 + $0x4f] sm:$0xff]
    %v974 = vld [vmem:[%s967 + $0x67] sm:$0xff]
    %v975 = vld [vmem:[%s967 + $0x6f] sm:$0xff]
    %v976 = vld [vmem:[%s967 + $0x87] sm:$0xff]
    %v977 = vld [vmem:[%s967 + $0x8f] sm:$0xff]
    %v978 = vld [vmem:[%s967 + $0xa7] sm:$0xff]
    %v979 = vld [vmem:[%s967 + $0xaf] sm:$0xff]
    %v980 = vld [vmem:[%s967 + $0xc7] sm:$0xff]
    %v981 = vld [vmem:[%s967 + $0xcf] sm:$0xff]
    %v982 = vld [vmem:[%s967 + $0xe7] sm:$0xff]
    %v983 = vld [vmem:[%s967 + $0xef] sm:$0xff]
    %v984 = vld [vmem:[%s967 + $0x107] sm:$0xff]
    %v985 = vld [vmem:[%s967 + $0x10f] sm:$0xff]
    %v986 = vld [vmem:[%s967 + $0x127] sm:$0xff]
    %v987 = vld [vmem:[%s967 + $0x12f] sm:$0xff]
    %v988 = vld [vmem:[%s967 + $0x147] sm:$0xff]
    %v989 = vld [vmem:[%s967 + $0x14f] sm:$0xff]
    %v990 = vld [vmem:[%s967 + $0x167] sm:$0xff]
    %v991 = vld [vmem:[%s967 + $0x16f] sm:$0xff]
    %v992 = vld [vmem:[%s967 + $0x187] sm:$0xff]
    %v993 = vld [vmem:[%s967 + $0x18f] sm:$0xff]
    %v994 = vld [vmem:[%s967 + $0x1a7] sm:$0xff]
    %v995 = vld [vmem:[%s967 + $0x1af] sm:$0xff]
    %v996 = vld [vmem:[%s967 + $0x1c7] sm:$0xff]
    %v997 = vld [vmem:[%s967 + $0x1cf] sm:$0xff]
    %v998 = vld [vmem:[%s967 + $0x1e7] sm:$0xff]
    %v999 = vld [vmem:[%s967 + $0x1ef] sm:$0xff]
    %v1000 = vpack.c.bf16 %v969, %v968
    %v1001 = vpack.c.bf16 %v971, %v970
    %v1002 = vpack.c.bf16 %v973, %v972
    %v1003 = vpack.c.bf16 %v975, %v974
    %v1004 = vpack.c.bf16 %v977, %v976
    %v1005 = vpack.c.bf16 %v979, %v978
    %v1006 = vpack.c.bf16 %v981, %v980
    %v1007 = vpack.c.bf16 %v983, %v982
    %v1008 = vpack.c.bf16 %v985, %v984
    %v1009 = vpack.c.bf16 %v987, %v986
    %v1010 = vpack.c.bf16 %v989, %v988
    %v1011 = vpack.c.bf16 %v991, %v990
    %v1012 = vpack.c.bf16 %v993, %v992
    %v1013 = vpack.c.bf16 %v995, %v994
    %v1014 = vpack.c.bf16 %v997, %v996
    %v1015 = vpack.c.bf16 %v999, %v998
    %s1016 = scalar_lea.vmem %s1, 192
    %v1017 = vld [vmem:[%s1016] sm:$0xf]
    %v1018 = vld [vmem:[%s1016 + $0x4] sm:$0xf]
    %v1019 = vld [vmem:[%s1016 + $0x8] sm:$0xf]
    %v1020 = vld [vmem:[%s1016 + $0xc] sm:$0xf]
    %v1021 = vld [vmem:[%s1016 + $0x10] sm:$0xf]
    %v1022 = vld [vmem:[%s1016 + $0x14] sm:$0xf]
    %v1023 = vld [vmem:[%s1016 + $0x18] sm:$0xf]
    %v1024 = vld [vmem:[%s1016 + $0x1c] sm:$0xf]
    %v1025 = vld [vmem:[%s1016 + $0x20] sm:$0xf]
    %v1026 = vld [vmem:[%s1016 + $0x24] sm:$0xf]
    %v1027 = vld [vmem:[%s1016 + $0x28] sm:$0xf]
    %v1028 = vld [vmem:[%s1016 + $0x2c] sm:$0xf]
    %v1029 = vld [vmem:[%s1016 + $0x30] sm:$0xf]
    %v1030 = vld [vmem:[%s1016 + $0x34] sm:$0xf]
    %v1031 = vld [vmem:[%s1016 + $0x38] sm:$0xf]
    %v1032 = vld [vmem:[%s1016 + $0x3c] sm:$0xf]
    %v1049 = vunpack.c.l.b16 %v1017
    %v1050 = vunpack.c.l.b16 %v1018
    %v1051 = vunpack.c.l.b16 %v1019
    %v1052 = vunpack.c.l.b16 %v1020
    %v1053 = vunpack.c.l.b16 %v1021
    %v1054 = vunpack.c.l.b16 %v1022
    %v1055 = vunpack.c.l.b16 %v1023
    %v1056 = vunpack.c.l.b16 %v1024
    %v1057 = vunpack.c.l.b16 %v1025
    %v1058 = vunpack.c.l.b16 %v1026
    %v1059 = vunpack.c.l.b16 %v1027
    %v1060 = vunpack.c.l.b16 %v1028
    %v1061 = vunpack.c.l.b16 %v1029
    %v1062 = vunpack.c.l.b16 %v1030
    %v1063 = vunpack.c.l.b16 %v1031
    %v1064 = vunpack.c.l.b16 %v1032
    %v1065 = vpack.c.b16 %v1050, %v1049
    %v1066 = vpack.c.b16 %v1052, %v1051
    %v1067 = vpack.c.b16 %v1054, %v1053
    %v1068 = vpack.c.b16 %v1056, %v1055
    %v1069 = vpack.c.b16 %v1058, %v1057
    %v1070 = vpack.c.b16 %v1060, %v1059
    %v1071 = vpack.c.b16 %v1062, %v1061
    %v1072 = vpack.c.b16 %v1064, %v1063
    %1081 = vmatprep.subr.bf16.mxu0 0
    %1082 = vmatpush1.bf16.msra.mxu0 %v1072
    %1083 = vmatprep.subr.bf16.mxu0 0
    %1084 = vmatpush1.bf16.msra.mxu0 %v1071
    %1085 = vmatprep.subr.bf16.mxu0 0
    %1086 = vmatpush1.bf16.msra.mxu0 %v1070
    %1087 = vmatprep.subr.bf16.mxu0 0
    %1088 = vmatpush1.bf16.msra.mxu0 %v1069
    %1089 = vmatprep.subr.bf16.mxu0 0
    %1090 = vmatpush1.bf16.msra.mxu0 %v1068
    %1091 = vmatprep.subr.bf16.mxu0 0
    %1092 = vmatpush1.bf16.msra.mxu0 %v1067
    %1093 = vmatprep.subr.bf16.mxu0 0
    %1094 = vmatpush1.bf16.msra.mxu0 %v1066
    %1095 = vmatprep.subr.bf16.mxu0 0
    %1096 = vmatpush1.bf16.msra.mxu0 %v1065
    %1097 = vmatprep.subr.bf16.mxu0 0
    %1098 = vmatpush2.bf16.msra.mxu0 0
    %1099 = vmatprep.subr.bf16.mxu0 0
    %1100 = vmatpush2.bf16.msra.mxu0 0
    %1101 = vmatprep.subr.bf16.mxu0 0
    %1102 = vmatpush2.bf16.msra.mxu0 0
    %1103 = vmatprep.subr.bf16.mxu0 0
    %1104 = vmatpush2.bf16.msra.mxu0 0
    %1105 = vmatprep.subr.bf16.mxu0 0
    %1106 = vmatpush2.bf16.msra.mxu0 0
    %1107 = vmatprep.subr.bf16.mxu0 0
    %1108 = vmatpush2.bf16.msra.mxu0 0
    %1109 = vmatprep.subr.bf16.mxu0 0
    %1110 = vmatpush2.bf16.msra.mxu0 0
    %1111 = vmatprep.subr.bf16.mxu0 0
    %1112 = vmatpush2.bf16.msra.mxu0 0
    %1113 = vmatprep.mubr.bf16.mxu0 0
    %1114 = vmatmul.mubr.bf16.gmra.mxu0 %v1000
    %v1115 = vpop.f32.mrf.mxu0
    %v1116 = vadd.f32 0.0, %v1115
    %v1117 = vpop.f32.mrf.mxu0
    %v1118 = vpop.f32.mrf.mxu0
    %v1119 = vadd.f32 0.0, %v1118
    %v1120 = vpop.f32.mrf.mxu0
    %1121 = vmatprep.mubr.bf16.mxu0 0
    %1122 = vmatmul.mubr.bf16.gmra.mxu0 %v1001
    %v1123 = vpop.f32.mrf.mxu0
    %v1124 = vadd.f32 0.0, %v1123
    %v1125 = vpop.f32.mrf.mxu0
    %v1126 = vpop.f32.mrf.mxu0
    %v1127 = vadd.f32 0.0, %v1126
    %v1128 = vpop.f32.mrf.mxu0
    %1129 = vmatprep.mubr.bf16.mxu0 0
    %1130 = vmatmul.mubr.bf16.gmra.mxu0 %v1002
    %v1131 = vpop.f32.mrf.mxu0
    %v1132 = vadd.f32 0.0, %v1131
    %v1133 = vpop.f32.mrf.mxu0
    %v1134 = vpop.f32.mrf.mxu0
    %v1135 = vadd.f32 0.0, %v1134
    %v1136 = vpop.f32.mrf.mxu0
    %1137 = vmatprep.mubr.bf16.mxu0 0
    %1138 = vmatmul.mubr.bf16.gmra.mxu0 %v1003
    %v1139 = vpop.f32.mrf.mxu0
    %v1140 = vadd.f32 0.0, %v1139
    %v1141 = vpop.f32.mrf.mxu0
    %v1142 = vpop.f32.mrf.mxu0
    %v1143 = vadd.f32 0.0, %v1142
    %v1144 = vpop.f32.mrf.mxu0
    %1145 = vmatprep.mubr.bf16.mxu0 0
    %1146 = vmatmul.mubr.bf16.gmra.mxu0 %v1004
    %v1147 = vpop.f32.mrf.mxu0
    %v1148 = vadd.f32 0.0, %v1147
    %v1149 = vpop.f32.mrf.mxu0
    %v1150 = vpop.f32.mrf.mxu0
    %v1151 = vadd.f32 0.0, %v1150
    %v1152 = vpop.f32.mrf.mxu0
    %1153 = vmatprep.mubr.bf16.mxu0 0
    %1154 = vmatmul.mubr.bf16.gmra.mxu0 %v1005
    %v1155 = vpop.f32.mrf.mxu0
    %v1156 = vadd.f32 0.0, %v1155
    %v1157 = vpop.f32.mrf.mxu0
    %v1158 = vpop.f32.mrf.mxu0
    %v1159 = vadd.f32 0.0, %v1158
    %v1160 = vpop.f32.mrf.mxu0
    %1161 = vmatprep.mubr.bf16.mxu0 0
    %1162 = vmatmul.mubr.bf16.gmra.mxu0 %v1006
    %v1163 = vpop.f32.mrf.mxu0
    %v1164 = vadd.f32 0.0, %v1163
    %v1165 = vpop.f32.mrf.mxu0
    %v1166 = vpop.f32.mrf.mxu0
    %v1167 = vadd.f32 0.0, %v1166
    %v1168 = vpop.f32.mrf.mxu0
    %1169 = vmatprep.mubr.bf16.mxu0 0
    %1170 = vmatmul.mubr.bf16.gmra.mxu0 %v1007
    %v1171 = vpop.f32.mrf.mxu0
    %v1172 = vadd.f32 0.0, %v1171
    %v1173 = vpop.f32.mrf.mxu0
    %v1174 = vpop.f32.mrf.mxu0
    %v1175 = vadd.f32 0.0, %v1174
    %v1176 = vpop.f32.mrf.mxu0
    %1177 = vmatprep.mubr.bf16.mxu0 0
    %1178 = vmatmul.mubr.bf16.gmra.mxu0 %v1008
    %v1179 = vpop.f32.mrf.mxu0
    %v1180 = vadd.f32 0.0, %v1179
    %v1181 = vpop.f32.mrf.mxu0
    %v1182 = vpop.f32.mrf.mxu0
    %v1183 = vadd.f32 0.0, %v1182
    %v1184 = vpop.f32.mrf.mxu0
    %1185 = vmatprep.mubr.bf16.mxu0 0
    %1186 = vmatmul.mubr.bf16.gmra.mxu0 %v1009
    %v1187 = vpop.f32.mrf.mxu0
    %v1188 = vadd.f32 0.0, %v1187
    %v1189 = vpop.f32.mrf.mxu0
    %v1190 = vpop.f32.mrf.mxu0
    %v1191 = vadd.f32 0.0, %v1190
    %v1192 = vpop.f32.mrf.mxu0
    %1193 = vmatprep.mubr.bf16.mxu0 0
    %1194 = vmatmul.mubr.bf16.gmra.mxu0 %v1010
    %v1195 = vpop.f32.mrf.mxu0
    %v1196 = vadd.f32 0.0, %v1195
    %v1197 = vpop.f32.mrf.mxu0
    %v1198 = vpop.f32.mrf.mxu0
    %v1199 = vadd.f32 0.0, %v1198
    %v1200 = vpop.f32.mrf.mxu0
    %1201 = vmatprep.mubr.bf16.mxu0 0
    %1202 = vmatmul.mubr.bf16.gmra.mxu0 %v1011
    %v1203 = vpop.f32.mrf.mxu0
    %v1204 = vadd.f32 0.0, %v1203
    %v1205 = vpop.f32.mrf.mxu0
    %v1206 = vpop.f32.mrf.mxu0
    %v1207 = vadd.f32 0.0, %v1206
    %v1208 = vpop.f32.mrf.mxu0
    %1209 = vmatprep.mubr.bf16.mxu0 0
    %1210 = vmatmul.mubr.bf16.gmra.mxu0 %v1012
    %v1211 = vpop.f32.mrf.mxu0
    %v1212 = vadd.f32 0.0, %v1211
    %v1213 = vpop.f32.mrf.mxu0
    %v1214 = vpop.f32.mrf.mxu0
    %v1215 = vadd.f32 0.0, %v1214
    %v1216 = vpop.f32.mrf.mxu0
    %1217 = vmatprep.mubr.bf16.mxu0 0
    %1218 = vmatmul.mubr.bf16.gmra.mxu0 %v1013
    %v1219 = vpop.f32.mrf.mxu0
    %v1220 = vadd.f32 0.0, %v1219
    %v1221 = vpop.f32.mrf.mxu0
    %v1222 = vpop.f32.mrf.mxu0
    %v1223 = vadd.f32 0.0, %v1222
    %v1224 = vpop.f32.mrf.mxu0
    %1225 = vmatprep.mubr.bf16.mxu0 0
    %1226 = vmatmul.mubr.bf16.gmra.mxu0 %v1014
    %v1227 = vpop.f32.mrf.mxu0
    %v1228 = vadd.f32 0.0, %v1227
    %v1229 = vpop.f32.mrf.mxu0
    %v1230 = vpop.f32.mrf.mxu0
    %v1231 = vadd.f32 0.0, %v1230
    %v1232 = vpop.f32.mrf.mxu0
    %1233 = vmatprep.mubr.bf16.mxu0 0
    %1234 = vmatmul.mubr.bf16.gmra.mxu0 %v1015
    %v1235 = vpop.f32.mrf.mxu0
    %v1236 = vadd.f32 0.0, %v1235
    %v1237 = vpop.f32.mrf.mxu0
    %v1238 = vpop.f32.mrf.mxu0
    %v1239 = vadd.f32 0.0, %v1238
    %v1240 = vpop.f32.mrf.mxu0
    %1241 = vdwg.mxu0
    %v1242 = vadd.f32 %v935, %v1116
    %v1243 = vadd.f32 %v936, %v1119
    %v1244 = vadd.f32 %v937, %v1124
    %v1245 = vadd.f32 %v938, %v1127
    %v1246 = vadd.f32 %v939, %v1132
    %v1247 = vadd.f32 %v940, %v1135
    %v1248 = vadd.f32 %v941, %v1140
    %v1249 = vadd.f32 %v942, %v1143
    %v1250 = vadd.f32 %v943, %v1148
    %v1251 = vadd.f32 %v944, %v1151
    %v1252 = vadd.f32 %v945, %v1156
    %v1253 = vadd.f32 %v946, %v1159
    %v1254 = vadd.f32 %v947, %v1164
    %v1255 = vadd.f32 %v948, %v1167
    %v1256 = vadd.f32 %v949, %v1172
    %v1257 = vadd.f32 %v950, %v1175
    %v1258 = vadd.f32 %v951, %v1180
    %v1259 = vadd.f32 %v952, %v1183
    %v1260 = vadd.f32 %v953, %v1188
    %v1261 = vadd.f32 %v954, %v1191
    %v1262 = vadd.f32 %v955, %v1196
    %v1263 = vadd.f32 %v956, %v1199
    %v1264 = vadd.f32 %v957, %v1204
    %v1265 = vadd.f32 %v958, %v1207
    %v1266 = vadd.f32 %v959, %v1212
    %v1267 = vadd.f32 %v960, %v1215
    %v1268 = vadd.f32 %v961, %v1220
    %v1269 = vadd.f32 %v962, %v1223
    %v1270 = vadd.f32 %v963, %v1228
    %v1271 = vadd.f32 %v964, %v1231
    %v1272 = vadd.f32 %v965, %v1236
    %v1273 = vadd.f32 %v966, %v1239
    %v1274 = vld [vmem:[%s967 + $0x8] sm:$0xff]
    %v1275 = vld [vmem:[%s967 + $0x10] sm:$0xff]
    %v1276 = vld [vmem:[%s967 + $0x28] sm:$0xff]
    %v1277 = vld [vmem:[%s967 + $0x30] sm:$0xff]
    %v1278 = vld [vmem:[%s967 + $0x48] sm:$0xff]
    %v1279 = vld [vmem:[%s967 + $0x50] sm:$0xff]
    %v1280 = vld [vmem:[%s967 + $0x68] sm:$0xff]
    %v1281 = vld [vmem:[%s967 + $0x70] sm:$0xff]
    %v1282 = vld [vmem:[%s967 + $0x88] sm:$0xff]
    %v1283 = vld [vmem:[%s967 + $0x90] sm:$0xff]
    %v1284 = vld [vmem:[%s967 + $0xa8] sm:$0xff]
    %v1285 = vld [vmem:[%s967 + $0xb0] sm:$0xff]
    %v1286 = vld [vmem:[%s967 + $0xc8] sm:$0xff]
    %v1287 = vld [vmem:[%s967 + $0xd0] sm:$0xff]
    %v1288 = vld [vmem:[%s967 + $0xe8] sm:$0xff]
    %v1289 = vld [vmem:[%s967 + $0xf0] sm:$0xff]
    %v1290 = vld [vmem:[%s967 + $0x108] sm:$0xff]
    %v1291 = vld [vmem:[%s967 + $0x110] sm:$0xff]
    %v1292 = vld [vmem:[%s967 + $0x128] sm:$0xff]
    %v1293 = vld [vmem:[%s967 + $0x130] sm:$0xff]
    %v1294 = vld [vmem:[%s967 + $0x148] sm:$0xff]
    %v1295 = vld [vmem:[%s967 + $0x150] sm:$0xff]
    %v1296 = vld [vmem:[%s967 + $0x168] sm:$0xff]
    %v1297 = vld [vmem:[%s967 + $0x170] sm:$0xff]
    %v1298 = vld [vmem:[%s967 + $0x188] sm:$0xff]
    %v1299 = vld [vmem:[%s967 + $0x190] sm:$0xff]
    %v1300 = vld [vmem:[%s967 + $0x1a8] sm:$0xff]
    %v1301 = vld [vmem:[%s967 + $0x1b0] sm:$0xff]
    %v1302 = vld [vmem:[%s967 + $0x1c8] sm:$0xff]
    %v1303 = vld [vmem:[%s967 + $0x1d0] sm:$0xff]
    %v1304 = vld [vmem:[%s967 + $0x1e8] sm:$0xff]
    %v1305 = vld [vmem:[%s967 + $0x1f0] sm:$0xff]
    %v1306 = vpack.c.bf16 %v1275, %v1274
    %v1307 = vpack.c.bf16 %v1277, %v1276
    %v1308 = vpack.c.bf16 %v1279, %v1278
    %v1309 = vpack.c.bf16 %v1281, %v1280
    %v1310 = vpack.c.bf16 %v1283, %v1282
    %v1311 = vpack.c.bf16 %v1285, %v1284
    %v1312 = vpack.c.bf16 %v1287, %v1286
    %v1313 = vpack.c.bf16 %v1289, %v1288
    %v1314 = vpack.c.bf16 %v1291, %v1290
    %v1315 = vpack.c.bf16 %v1293, %v1292
    %v1316 = vpack.c.bf16 %v1295, %v1294
    %v1317 = vpack.c.bf16 %v1297, %v1296
    %v1318 = vpack.c.bf16 %v1299, %v1298
    %v1319 = vpack.c.bf16 %v1301, %v1300
    %v1320 = vpack.c.bf16 %v1303, %v1302
    %v1321 = vpack.c.bf16 %v1305, %v1304
    %s1322 = scalar_lea.vmem %s1, 256
    %v1323 = vld [vmem:[%s1322] sm:$0xf]
    %v1324 = vld [vmem:[%s1322 + $0x4] sm:$0xf]
    %v1325 = vld [vmem:[%s1322 + $0x8] sm:$0xf]
    %v1326 = vld [vmem:[%s1322 + $0xc] sm:$0xf]
    %v1327 = vld [vmem:[%s1322 + $0x10] sm:$0xf]
    %v1328 = vld [vmem:[%s1322 + $0x14] sm:$0xf]
    %v1329 = vld [vmem:[%s1322 + $0x18] sm:$0xf]
    %v1330 = vld [vmem:[%s1322 + $0x1c] sm:$0xf]
    %v1331 = vld [vmem:[%s1322 + $0x20] sm:$0xf]
    %v1332 = vld [vmem:[%s1322 + $0x24] sm:$0xf]
    %v1333 = vld [vmem:[%s1322 + $0x28] sm:$0xf]
    %v1334 = vld [vmem:[%s1322 + $0x2c] sm:$0xf]
    %v1335 = vld [vmem:[%s1322 + $0x30] sm:$0xf]
    %v1336 = vld [vmem:[%s1322 + $0x34] sm:$0xf]
    %v1337 = vld [vmem:[%s1322 + $0x38] sm:$0xf]
    %v1338 = vld [vmem:[%s1322 + $0x3c] sm:$0xf]
    %v1355 = vunpack.c.l.b16 %v1323
    %v1356 = vunpack.c.l.b16 %v1324
    %v1357 = vunpack.c.l.b16 %v1325
    %v1358 = vunpack.c.l.b16 %v1326
    %v1359 = vunpack.c.l.b16 %v1327
    %v1360 = vunpack.c.l.b16 %v1328
    %v1361 = vunpack.c.l.b16 %v1329
    %v1362 = vunpack.c.l.b16 %v1330
    %v1363 = vunpack.c.l.b16 %v1331
    %v1364 = vunpack.c.l.b16 %v1332
    %v1365 = vunpack.c.l.b16 %v1333
    %v1366 = vunpack.c.l.b16 %v1334
    %v1367 = vunpack.c.l.b16 %v1335
    %v1368 = vunpack.c.l.b16 %v1336
    %v1369 = vunpack.c.l.b16 %v1337
    %v1370 = vunpack.c.l.b16 %v1338
    %v1371 = vpack.c.b16 %v1356, %v1355
    %v1372 = vpack.c.b16 %v1358, %v1357
    %v1373 = vpack.c.b16 %v1360, %v1359
    %v1374 = vpack.c.b16 %v1362, %v1361
    %v1375 = vpack.c.b16 %v1364, %v1363
    %v1376 = vpack.c.b16 %v1366, %v1365
    %v1377 = vpack.c.b16 %v1368, %v1367
    %v1378 = vpack.c.b16 %v1370, %v1369
    %1387 = vmatprep.subr.bf16.mxu0 0
    %1388 = vmatpush1.bf16.msra.mxu0 %v1378
    %1389 = vmatprep.subr.bf16.mxu0 0
    %1390 = vmatpush1.bf16.msra.mxu0 %v1377
    %1391 = vmatprep.subr.bf16.mxu0 0
    %1392 = vmatpush1.bf16.msra.mxu0 %v1376
    %1393 = vmatprep.subr.bf16.mxu0 0
    %1394 = vmatpush1.bf16.msra.mxu0 %v1375
    %1395 = vmatprep.subr.bf16.mxu0 0
    %1396 = vmatpush1.bf16.msra.mxu0 %v1374
    %1397 = vmatprep.subr.bf16.mxu0 0
    %1398 = vmatpush1.bf16.msra.mxu0 %v1373
    %1399 = vmatprep.subr.bf16.mxu0 0
    %1400 = vmatpush1.bf16.msra.mxu0 %v1372
    %1401 = vmatprep.subr.bf16.mxu0 0
    %1402 = vmatpush1.bf16.msra.mxu0 %v1371
    %1403 = vmatprep.subr.bf16.mxu0 0
    %1404 = vmatpush2.bf16.msra.mxu0 0
    %1405 = vmatprep.subr.bf16.mxu0 0
    %1406 = vmatpush2.bf16.msra.mxu0 0
    %1407 = vmatprep.subr.bf16.mxu0 0
    %1408 = vmatpush2.bf16.msra.mxu0 0
    %1409 = vmatprep.subr.bf16.mxu0 0
    %1410 = vmatpush2.bf16.msra.mxu0 0
    %1411 = vmatprep.subr.bf16.mxu0 0
    %1412 = vmatpush2.bf16.msra.mxu0 0
    %1413 = vmatprep.subr.bf16.mxu0 0
    %1414 = vmatpush2.bf16.msra.mxu0 0
    %1415 = vmatprep.subr.bf16.mxu0 0
    %1416 = vmatpush2.bf16.msra.mxu0 0
    %1417 = vmatprep.subr.bf16.mxu0 0
    %1418 = vmatpush2.bf16.msra.mxu0 0
    %1419 = vmatprep.mubr.bf16.mxu0 0
    %1420 = vmatmul.mubr.bf16.gmra.mxu0 %v1306
    %v1421 = vpop.f32.mrf.mxu0
    %v1422 = vadd.f32 0.0, %v1421
    %v1423 = vpop.f32.mrf.mxu0
    %v1424 = vpop.f32.mrf.mxu0
    %v1425 = vadd.f32 0.0, %v1424
    %v1426 = vpop.f32.mrf.mxu0
    %1427 = vmatprep.mubr.bf16.mxu0 0
    %1428 = vmatmul.mubr.bf16.gmra.mxu0 %v1307
    %v1429 = vpop.f32.mrf.mxu0
    %v1430 = vadd.f32 0.0, %v1429
    %v1431 = vpop.f32.mrf.mxu0
    %v1432 = vpop.f32.mrf.mxu0
    %v1433 = vadd.f32 0.0, %v1432
    %v1434 = vpop.f32.mrf.mxu0
    %1435 = vmatprep.mubr.bf16.mxu0 0
    %1436 = vmatmul.mubr.bf16.gmra.mxu0 %v1308
    %v1437 = vpop.f32.mrf.mxu0
    %v1438 = vadd.f32 0.0, %v1437
    %v1439 = vpop.f32.mrf.mxu0
    %v1440 = vpop.f32.mrf.mxu0
    %v1441 = vadd.f32 0.0, %v1440
    %v1442 = vpop.f32.mrf.mxu0
    %1443 = vmatprep.mubr.bf16.mxu0 0
    %1444 = vmatmul.mubr.bf16.gmra.mxu0 %v1309
    %v1445 = vpop.f32.mrf.mxu0
    %v1446 = vadd.f32 0.0, %v1445
    %v1447 = vpop.f32.mrf.mxu0
    %v1448 = vpop.f32.mrf.mxu0
    %v1449 = vadd.f32 0.0, %v1448
    %v1450 = vpop.f32.mrf.mxu0
    %1451 = vmatprep.mubr.bf16.mxu0 0
    %1452 = vmatmul.mubr.bf16.gmra.mxu0 %v1310
    %v1453 = vpop.f32.mrf.mxu0
    %v1454 = vadd.f32 0.0, %v1453
    %v1455 = vpop.f32.mrf.mxu0
    %v1456 = vpop.f32.mrf.mxu0
    %v1457 = vadd.f32 0.0, %v1456
    %v1458 = vpop.f32.mrf.mxu0
    %1459 = vmatprep.mubr.bf16.mxu0 0
    %1460 = vmatmul.mubr.bf16.gmra.mxu0 %v1311
    %v1461 = vpop.f32.mrf.mxu0
    %v1462 = vadd.f32 0.0, %v1461
    %v1463 = vpop.f32.mrf.mxu0
    %v1464 = vpop.f32.mrf.mxu0
    %v1465 = vadd.f32 0.0, %v1464
    %v1466 = vpop.f32.mrf.mxu0
    %1467 = vmatprep.mubr.bf16.mxu0 0
    %1468 = vmatmul.mubr.bf16.gmra.mxu0 %v1312
    %v1469 = vpop.f32.mrf.mxu0
    %v1470 = vadd.f32 0.0, %v1469
    %v1471 = vpop.f32.mrf.mxu0
    %v1472 = vpop.f32.mrf.mxu0
    %v1473 = vadd.f32 0.0, %v1472
    %v1474 = vpop.f32.mrf.mxu0
    %1475 = vmatprep.mubr.bf16.mxu0 0
    %1476 = vmatmul.mubr.bf16.gmra.mxu0 %v1313
    %v1477 = vpop.f32.mrf.mxu0
    %v1478 = vadd.f32 0.0, %v1477
    %v1479 = vpop.f32.mrf.mxu0
    %v1480 = vpop.f32.mrf.mxu0
    %v1481 = vadd.f32 0.0, %v1480
    %v1482 = vpop.f32.mrf.mxu0
    %1483 = vmatprep.mubr.bf16.mxu0 0
    %1484 = vmatmul.mubr.bf16.gmra.mxu0 %v1314
    %v1485 = vpop.f32.mrf.mxu0
    %v1486 = vadd.f32 0.0, %v1485
    %v1487 = vpop.f32.mrf.mxu0
    %v1488 = vpop.f32.mrf.mxu0
    %v1489 = vadd.f32 0.0, %v1488
    %v1490 = vpop.f32.mrf.mxu0
    %1491 = vmatprep.mubr.bf16.mxu0 0
    %1492 = vmatmul.mubr.bf16.gmra.mxu0 %v1315
    %v1493 = vpop.f32.mrf.mxu0
    %v1494 = vadd.f32 0.0, %v1493
    %v1495 = vpop.f32.mrf.mxu0
    %v1496 = vpop.f32.mrf.mxu0
    %v1497 = vadd.f32 0.0, %v1496
    %v1498 = vpop.f32.mrf.mxu0
    %1499 = vmatprep.mubr.bf16.mxu0 0
    %1500 = vmatmul.mubr.bf16.gmra.mxu0 %v1316
    %v1501 = vpop.f32.mrf.mxu0
    %v1502 = vadd.f32 0.0, %v1501
    %v1503 = vpop.f32.mrf.mxu0
    %v1504 = vpop.f32.mrf.mxu0
    %v1505 = vadd.f32 0.0, %v1504
    %v1506 = vpop.f32.mrf.mxu0
    %1507 = vmatprep.mubr.bf16.mxu0 0
    %1508 = vmatmul.mubr.bf16.gmra.mxu0 %v1317
    %v1509 = vpop.f32.mrf.mxu0
    %v1510 = vadd.f32 0.0, %v1509
    %v1511 = vpop.f32.mrf.mxu0
    %v1512 = vpop.f32.mrf.mxu0
    %v1513 = vadd.f32 0.0, %v1512
    %v1514 = vpop.f32.mrf.mxu0
    %1515 = vmatprep.mubr.bf16.mxu0 0
    %1516 = vmatmul.mubr.bf16.gmra.mxu0 %v1318
    %v1517 = vpop.f32.mrf.mxu0
    %v1518 = vadd.f32 0.0, %v1517
    %v1519 = vpop.f32.mrf.mxu0
    %v1520 = vpop.f32.mrf.mxu0
    %v1521 = vadd.f32 0.0, %v1520
    %v1522 = vpop.f32.mrf.mxu0
    %1523 = vmatprep.mubr.bf16.mxu0 0
    %1524 = vmatmul.mubr.bf16.gmra.mxu0 %v1319
    %v1525 = vpop.f32.mrf.mxu0
    %v1526 = vadd.f32 0.0, %v1525
    %v1527 = vpop.f32.mrf.mxu0
    %v1528 = vpop.f32.mrf.mxu0
    %v1529 = vadd.f32 0.0, %v1528
    %v1530 = vpop.f32.mrf.mxu0
    %1531 = vmatprep.mubr.bf16.mxu0 0
    %1532 = vmatmul.mubr.bf16.gmra.mxu0 %v1320
    %v1533 = vpop.f32.mrf.mxu0
    %v1534 = vadd.f32 0.0, %v1533
    %v1535 = vpop.f32.mrf.mxu0
    %v1536 = vpop.f32.mrf.mxu0
    %v1537 = vadd.f32 0.0, %v1536
    %v1538 = vpop.f32.mrf.mxu0
    %1539 = vmatprep.mubr.bf16.mxu0 0
    %1540 = vmatmul.mubr.bf16.gmra.mxu0 %v1321
    %v1541 = vpop.f32.mrf.mxu0
    %v1542 = vadd.f32 0.0, %v1541
    %v1543 = vpop.f32.mrf.mxu0
    %v1544 = vpop.f32.mrf.mxu0
    %v1545 = vadd.f32 0.0, %v1544
    %v1546 = vpop.f32.mrf.mxu0
    %1547 = vdwg.mxu0
    %v1548 = vadd.f32 %v1242, %v1422
    %v1549 = vadd.f32 %v1243, %v1425
    %v1550 = vadd.f32 %v1244, %v1430
    %v1551 = vadd.f32 %v1245, %v1433
    %v1552 = vadd.f32 %v1246, %v1438
    %v1553 = vadd.f32 %v1247, %v1441
    %v1554 = vadd.f32 %v1248, %v1446
    %v1555 = vadd.f32 %v1249, %v1449
    %v1556 = vadd.f32 %v1250, %v1454
    %v1557 = vadd.f32 %v1251, %v1457
    %v1558 = vadd.f32 %v1252, %v1462
    %v1559 = vadd.f32 %v1253, %v1465
    %v1560 = vadd.f32 %v1254, %v1470
    %v1561 = vadd.f32 %v1255, %v1473
    %v1562 = vadd.f32 %v1256, %v1478
    %v1563 = vadd.f32 %v1257, %v1481
    %v1564 = vadd.f32 %v1258, %v1486
    %v1565 = vadd.f32 %v1259, %v1489
    %v1566 = vadd.f32 %v1260, %v1494
    %v1567 = vadd.f32 %v1261, %v1497
    %v1568 = vadd.f32 %v1262, %v1502
    %v1569 = vadd.f32 %v1263, %v1505
    %v1570 = vadd.f32 %v1264, %v1510
    %v1571 = vadd.f32 %v1265, %v1513
    %v1572 = vadd.f32 %v1266, %v1518
    %v1573 = vadd.f32 %v1267, %v1521
    %v1574 = vadd.f32 %v1268, %v1526
    %v1575 = vadd.f32 %v1269, %v1529
    %v1576 = vadd.f32 %v1270, %v1534
    %v1577 = vadd.f32 %v1271, %v1537
    %v1578 = vadd.f32 %v1272, %v1542
    %v1579 = vadd.f32 %v1273, %v1545
    %v1580 = vld [vmem:[%s967 + $0x9] sm:$0xff]
    %v1581 = vld [vmem:[%s967 + $0x11] sm:$0xff]
    %v1582 = vld [vmem:[%s967 + $0x29] sm:$0xff]
    %v1583 = vld [vmem:[%s967 + $0x31] sm:$0xff]
    %v1584 = vld [vmem:[%s967 + $0x49] sm:$0xff]
    %v1585 = vld [vmem:[%s967 + $0x51] sm:$0xff]
    %v1586 = vld [vmem:[%s967 + $0x69] sm:$0xff]
    %v1587 = vld [vmem:[%s967 + $0x71] sm:$0xff]
    %v1588 = vld [vmem:[%s967 + $0x89] sm:$0xff]
    %v1589 = vld [vmem:[%s967 + $0x91] sm:$0xff]
    %v1590 = vld [vmem:[%s967 + $0xa9] sm:$0xff]
    %v1591 = vld [vmem:[%s967 + $0xb1] sm:$0xff]
    %v1592 = vld [vmem:[%s967 + $0xc9] sm:$0xff]
    %v1593 = vld [vmem:[%s967 + $0xd1] sm:$0xff]
    %v1594 = vld [vmem:[%s967 + $0xe9] sm:$0xff]
    %v1595 = vld [vmem:[%s967 + $0xf1] sm:$0xff]
    %v1596 = vld [vmem:[%s967 + $0x109] sm:$0xff]
    %v1597 = vld [vmem:[%s967 + $0x111] sm:$0xff]
    %v1598 = vld [vmem:[%s967 + $0x129] sm:$0xff]
    %v1599 = vld [vmem:[%s967 + $0x131] sm:$0xff]
    %v1600 = vld [vmem:[%s967 + $0x149] sm:$0xff]
    %v1601 = vld [vmem:[%s967 + $0x151] sm:$0xff]
    %v1602 = vld [vmem:[%s967 + $0x169] sm:$0xff]
    %v1603 = vld [vmem:[%s967 + $0x171] sm:$0xff]
    %v1604 = vld [vmem:[%s967 + $0x189] sm:$0xff]
    %v1605 = vld [vmem:[%s967 + $0x191] sm:$0xff]
    %v1606 = vld [vmem:[%s967 + $0x1a9] sm:$0xff]
    %v1607 = vld [vmem:[%s967 + $0x1b1] sm:$0xff]
    %v1608 = vld [vmem:[%s967 + $0x1c9] sm:$0xff]
    %v1609 = vld [vmem:[%s967 + $0x1d1] sm:$0xff]
    %v1610 = vld [vmem:[%s967 + $0x1e9] sm:$0xff]
    %v1611 = vld [vmem:[%s967 + $0x1f1] sm:$0xff]
    %v1612 = vpack.c.bf16 %v1581, %v1580
    %v1613 = vpack.c.bf16 %v1583, %v1582
    %v1614 = vpack.c.bf16 %v1585, %v1584
    %v1615 = vpack.c.bf16 %v1587, %v1586
    %v1616 = vpack.c.bf16 %v1589, %v1588
    %v1617 = vpack.c.bf16 %v1591, %v1590
    %v1618 = vpack.c.bf16 %v1593, %v1592
    %v1619 = vpack.c.bf16 %v1595, %v1594
    %v1620 = vpack.c.bf16 %v1597, %v1596
    %v1621 = vpack.c.bf16 %v1599, %v1598
    %v1622 = vpack.c.bf16 %v1601, %v1600
    %v1623 = vpack.c.bf16 %v1603, %v1602
    %v1624 = vpack.c.bf16 %v1605, %v1604
    %v1625 = vpack.c.bf16 %v1607, %v1606
    %v1626 = vpack.c.bf16 %v1609, %v1608
    %v1627 = vpack.c.bf16 %v1611, %v1610
    %s1628 = scalar_lea.vmem %s1, 320
    %v1629 = vld [vmem:[%s1628] sm:$0xf]
    %v1630 = vld [vmem:[%s1628 + $0x4] sm:$0xf]
    %v1631 = vld [vmem:[%s1628 + $0x8] sm:$0xf]
    %v1632 = vld [vmem:[%s1628 + $0xc] sm:$0xf]
    %v1633 = vld [vmem:[%s1628 + $0x10] sm:$0xf]
    %v1634 = vld [vmem:[%s1628 + $0x14] sm:$0xf]
    %v1635 = vld [vmem:[%s1628 + $0x18] sm:$0xf]
    %v1636 = vld [vmem:[%s1628 + $0x1c] sm:$0xf]
    %v1637 = vld [vmem:[%s1628 + $0x20] sm:$0xf]
    %v1638 = vld [vmem:[%s1628 + $0x24] sm:$0xf]
    %v1639 = vld [vmem:[%s1628 + $0x28] sm:$0xf]
    %v1640 = vld [vmem:[%s1628 + $0x2c] sm:$0xf]
    %v1641 = vld [vmem:[%s1628 + $0x30] sm:$0xf]
    %v1642 = vld [vmem:[%s1628 + $0x34] sm:$0xf]
    %v1643 = vld [vmem:[%s1628 + $0x38] sm:$0xf]
    %v1644 = vld [vmem:[%s1628 + $0x3c] sm:$0xf]
    %v1661 = vunpack.c.l.b16 %v1629
    %v1662 = vunpack.c.l.b16 %v1630
    %v1663 = vunpack.c.l.b16 %v1631
    %v1664 = vunpack.c.l.b16 %v1632
    %v1665 = vunpack.c.l.b16 %v1633
    %v1666 = vunpack.c.l.b16 %v1634
    %v1667 = vunpack.c.l.b16 %v1635
    %v1668 = vunpack.c.l.b16 %v1636
    %v1669 = vunpack.c.l.b16 %v1637
    %v1670 = vunpack.c.l.b16 %v1638
    %v1671 = vunpack.c.l.b16 %v1639
    %v1672 = vunpack.c.l.b16 %v1640
    %v1673 = vunpack.c.l.b16 %v1641
    %v1674 = vunpack.c.l.b16 %v1642
    %v1675 = vunpack.c.l.b16 %v1643
    %v1676 = vunpack.c.l.b16 %v1644
    %v1677 = vpack.c.b16 %v1662, %v1661
    %v1678 = vpack.c.b16 %v1664, %v1663
    %v1679 = vpack.c.b16 %v1666, %v1665
    %v1680 = vpack.c.b16 %v1668, %v1667
    %v1681 = vpack.c.b16 %v1670, %v1669
    %v1682 = vpack.c.b16 %v1672, %v1671
    %v1683 = vpack.c.b16 %v1674, %v1673
    %v1684 = vpack.c.b16 %v1676, %v1675
    %1693 = vmatprep.subr.bf16.mxu0 0
    %1694 = vmatpush1.bf16.msra.mxu0 %v1684
    %1695 = vmatprep.subr.bf16.mxu0 0
    %1696 = vmatpush1.bf16.msra.mxu0 %v1683
    %1697 = vmatprep.subr.bf16.mxu0 0
    %1698 = vmatpush1.bf16.msra.mxu0 %v1682
    %1699 = vmatprep.subr.bf16.mxu0 0
    %1700 = vmatpush1.bf16.msra.mxu0 %v1681
    %1701 = vmatprep.subr.bf16.mxu0 0
    %1702 = vmatpush1.bf16.msra.mxu0 %v1680
    %1703 = vmatprep.subr.bf16.mxu0 0
    %1704 = vmatpush1.bf16.msra.mxu0 %v1679
    %1705 = vmatprep.subr.bf16.mxu0 0
    %1706 = vmatpush1.bf16.msra.mxu0 %v1678
    %1707 = vmatprep.subr.bf16.mxu0 0
    %1708 = vmatpush1.bf16.msra.mxu0 %v1677
    %1709 = vmatprep.subr.bf16.mxu0 0
    %1710 = vmatpush2.bf16.msra.mxu0 0
    %1711 = vmatprep.subr.bf16.mxu0 0
    %1712 = vmatpush2.bf16.msra.mxu0 0
    %1713 = vmatprep.subr.bf16.mxu0 0
    %1714 = vmatpush2.bf16.msra.mxu0 0
    %1715 = vmatprep.subr.bf16.mxu0 0
    %1716 = vmatpush2.bf16.msra.mxu0 0
    %1717 = vmatprep.subr.bf16.mxu0 0
    %1718 = vmatpush2.bf16.msra.mxu0 0
    %1719 = vmatprep.subr.bf16.mxu0 0
    %1720 = vmatpush2.bf16.msra.mxu0 0
    %1721 = vmatprep.subr.bf16.mxu0 0
    %1722 = vmatpush2.bf16.msra.mxu0 0
    %1723 = vmatprep.subr.bf16.mxu0 0
    %1724 = vmatpush2.bf16.msra.mxu0 0
    %1725 = vmatprep.mubr.bf16.mxu0 0
    %1726 = vmatmul.mubr.bf16.gmra.mxu0 %v1612
    %v1727 = vpop.f32.mrf.mxu0
    %v1728 = vadd.f32 0.0, %v1727
    %v1729 = vpop.f32.mrf.mxu0
    %v1730 = vpop.f32.mrf.mxu0
    %v1731 = vadd.f32 0.0, %v1730
    %v1732 = vpop.f32.mrf.mxu0
    %1733 = vmatprep.mubr.bf16.mxu0 0
    %1734 = vmatmul.mubr.bf16.gmra.mxu0 %v1613
    %v1735 = vpop.f32.mrf.mxu0
    %v1736 = vadd.f32 0.0, %v1735
    %v1737 = vpop.f32.mrf.mxu0
    %v1738 = vpop.f32.mrf.mxu0
    %v1739 = vadd.f32 0.0, %v1738
    %v1740 = vpop.f32.mrf.mxu0
    %1741 = vmatprep.mubr.bf16.mxu0 0
    %1742 = vmatmul.mubr.bf16.gmra.mxu0 %v1614
    %v1743 = vpop.f32.mrf.mxu0
    %v1744 = vadd.f32 0.0, %v1743
    %v1745 = vpop.f32.mrf.mxu0
    %v1746 = vpop.f32.mrf.mxu0
    %v1747 = vadd.f32 0.0, %v1746
    %v1748 = vpop.f32.mrf.mxu0
    %1749 = vmatprep.mubr.bf16.mxu0 0
    %1750 = vmatmul.mubr.bf16.gmra.mxu0 %v1615
    %v1751 = vpop.f32.mrf.mxu0
    %v1752 = vadd.f32 0.0, %v1751
    %v1753 = vpop.f32.mrf.mxu0
    %v1754 = vpop.f32.mrf.mxu0
    %v1755 = vadd.f32 0.0, %v1754
    %v1756 = vpop.f32.mrf.mxu0
    %1757 = vmatprep.mubr.bf16.mxu0 0
    %1758 = vmatmul.mubr.bf16.gmra.mxu0 %v1616
    %v1759 = vpop.f32.mrf.mxu0
    %v1760 = vadd.f32 0.0, %v1759
    %v1761 = vpop.f32.mrf.mxu0
    %v1762 = vpop.f32.mrf.mxu0
    %v1763 = vadd.f32 0.0, %v1762
    %v1764 = vpop.f32.mrf.mxu0
    %1765 = vmatprep.mubr.bf16.mxu0 0
    %1766 = vmatmul.mubr.bf16.gmra.mxu0 %v1617
    %v1767 = vpop.f32.mrf.mxu0
    %v1768 = vadd.f32 0.0, %v1767
    %v1769 = vpop.f32.mrf.mxu0
    %v1770 = vpop.f32.mrf.mxu0
    %v1771 = vadd.f32 0.0, %v1770
    %v1772 = vpop.f32.mrf.mxu0
    %1773 = vmatprep.mubr.bf16.mxu0 0
    %1774 = vmatmul.mubr.bf16.gmra.mxu0 %v1618
    %v1775 = vpop.f32.mrf.mxu0
    %v1776 = vadd.f32 0.0, %v1775
    %v1777 = vpop.f32.mrf.mxu0
    %v1778 = vpop.f32.mrf.mxu0
    %v1779 = vadd.f32 0.0, %v1778
    %v1780 = vpop.f32.mrf.mxu0
    %1781 = vmatprep.mubr.bf16.mxu0 0
    %1782 = vmatmul.mubr.bf16.gmra.mxu0 %v1619
    %v1783 = vpop.f32.mrf.mxu0
    %v1784 = vadd.f32 0.0, %v1783
    %v1785 = vpop.f32.mrf.mxu0
    %v1786 = vpop.f32.mrf.mxu0
    %v1787 = vadd.f32 0.0, %v1786
    %v1788 = vpop.f32.mrf.mxu0
    %1789 = vmatprep.mubr.bf16.mxu0 0
    %1790 = vmatmul.mubr.bf16.gmra.mxu0 %v1620
    %v1791 = vpop.f32.mrf.mxu0
    %v1792 = vadd.f32 0.0, %v1791
    %v1793 = vpop.f32.mrf.mxu0
    %v1794 = vpop.f32.mrf.mxu0
    %v1795 = vadd.f32 0.0, %v1794
    %v1796 = vpop.f32.mrf.mxu0
    %1797 = vmatprep.mubr.bf16.mxu0 0
    %1798 = vmatmul.mubr.bf16.gmra.mxu0 %v1621
    %v1799 = vpop.f32.mrf.mxu0
    %v1800 = vadd.f32 0.0, %v1799
    %v1801 = vpop.f32.mrf.mxu0
    %v1802 = vpop.f32.mrf.mxu0
    %v1803 = vadd.f32 0.0, %v1802
    %v1804 = vpop.f32.mrf.mxu0
    %1805 = vmatprep.mubr.bf16.mxu0 0
    %1806 = vmatmul.mubr.bf16.gmra.mxu0 %v1622
    %v1807 = vpop.f32.mrf.mxu0
    %v1808 = vadd.f32 0.0, %v1807
    %v1809 = vpop.f32.mrf.mxu0
    %v1810 = vpop.f32.mrf.mxu0
    %v1811 = vadd.f32 0.0, %v1810
    %v1812 = vpop.f32.mrf.mxu0
    %1813 = vmatprep.mubr.bf16.mxu0 0
    %1814 = vmatmul.mubr.bf16.gmra.mxu0 %v1623
    %v1815 = vpop.f32.mrf.mxu0
    %v1816 = vadd.f32 0.0, %v1815
    %v1817 = vpop.f32.mrf.mxu0
    %v1818 = vpop.f32.mrf.mxu0
    %v1819 = vadd.f32 0.0, %v1818
    %v1820 = vpop.f32.mrf.mxu0
    %1821 = vmatprep.mubr.bf16.mxu0 0
    %1822 = vmatmul.mubr.bf16.gmra.mxu0 %v1624
    %v1823 = vpop.f32.mrf.mxu0
    %v1824 = vadd.f32 0.0, %v1823
    %v1825 = vpop.f32.mrf.mxu0
    %v1826 = vpop.f32.mrf.mxu0
    %v1827 = vadd.f32 0.0, %v1826
    %v1828 = vpop.f32.mrf.mxu0
    %1829 = vmatprep.mubr.bf16.mxu0 0
    %1830 = vmatmul.mubr.bf16.gmra.mxu0 %v1625
    %v1831 = vpop.f32.mrf.mxu0
    %v1832 = vadd.f32 0.0, %v1831
    %v1833 = vpop.f32.mrf.mxu0
    %v1834 = vpop.f32.mrf.mxu0
    %v1835 = vadd.f32 0.0, %v1834
    %v1836 = vpop.f32.mrf.mxu0
    %1837 = vmatprep.mubr.bf16.mxu0 0
    %1838 = vmatmul.mubr.bf16.gmra.mxu0 %v1626
    %v1839 = vpop.f32.mrf.mxu0
    %v1840 = vadd.f32 0.0, %v1839
    %v1841 = vpop.f32.mrf.mxu0
    %v1842 = vpop.f32.mrf.mxu0
    %v1843 = vadd.f32 0.0, %v1842
    %v1844 = vpop.f32.mrf.mxu0
    %1845 = vmatprep.mubr.bf16.mxu0 0
    %1846 = vmatmul.mubr.bf16.gmra.mxu0 %v1627
    %v1847 = vpop.f32.mrf.mxu0
    %v1848 = vadd.f32 0.0, %v1847
    %v1849 = vpop.f32.mrf.mxu0
    %v1850 = vpop.f32.mrf.mxu0
    %v1851 = vadd.f32 0.0, %v1850
    %v1852 = vpop.f32.mrf.mxu0
    %1853 = vdwg.mxu0
    %v1854 = vadd.f32 %v1548, %v1728
    %v1855 = vadd.f32 %v1549, %v1731
    %v1856 = vadd.f32 %v1550, %v1736
    %v1857 = vadd.f32 %v1551, %v1739
    %v1858 = vadd.f32 %v1552, %v1744
    %v1859 = vadd.f32 %v1553, %v1747
    %v1860 = vadd.f32 %v1554, %v1752
    %v1861 = vadd.f32 %v1555, %v1755
    %v1862 = vadd.f32 %v1556, %v1760
    %v1863 = vadd.f32 %v1557, %v1763
    %v1864 = vadd.f32 %v1558, %v1768
    %v1865 = vadd.f32 %v1559, %v1771
    %v1866 = vadd.f32 %v1560, %v1776
    %v1867 = vadd.f32 %v1561, %v1779
    %v1868 = vadd.f32 %v1562, %v1784
    %v1869 = vadd.f32 %v1563, %v1787
    %v1870 = vadd.f32 %v1564, %v1792
    %v1871 = vadd.f32 %v1565, %v1795
    %v1872 = vadd.f32 %v1566, %v1800
    %v1873 = vadd.f32 %v1567, %v1803
    %v1874 = vadd.f32 %v1568, %v1808
    %v1875 = vadd.f32 %v1569, %v1811
    %v1876 = vadd.f32 %v1570, %v1816
    %v1877 = vadd.f32 %v1571, %v1819
    %v1878 = vadd.f32 %v1572, %v1824
    %v1879 = vadd.f32 %v1573, %v1827
    %v1880 = vadd.f32 %v1574, %v1832
    %v1881 = vadd.f32 %v1575, %v1835
    %v1882 = vadd.f32 %v1576, %v1840
    %v1883 = vadd.f32 %v1577, %v1843
    %v1884 = vadd.f32 %v1578, %v1848
    %v1885 = vadd.f32 %v1579, %v1851
    %s1886 = scalar_lea.vmem %s0, 64
    %v1887 = vld [vmem:[%s1886 + $0x7] sm:$0xff]
    %v1888 = vld [vmem:[%s1886 + $0xf] sm:$0xff]
    %v1889 = vld [vmem:[%s1886 + $0x27] sm:$0xff]
    %v1890 = vld [vmem:[%s1886 + $0x2f] sm:$0xff]
    %v1891 = vld [vmem:[%s1886 + $0x47] sm:$0xff]
    %v1892 = vld [vmem:[%s1886 + $0x4f] sm:$0xff]
    %v1893 = vld [vmem:[%s1886 + $0x67] sm:$0xff]
    %v1894 = vld [vmem:[%s1886 + $0x6f] sm:$0xff]
    %v1895 = vld [vmem:[%s1886 + $0x87] sm:$0xff]
    %v1896 = vld [vmem:[%s1886 + $0x8f] sm:$0xff]
    %v1897 = vld [vmem:[%s1886 + $0xa7] sm:$0xff]
    %v1898 = vld [vmem:[%s1886 + $0xaf] sm:$0xff]
    %v1899 = vld [vmem:[%s1886 + $0xc7] sm:$0xff]
    %v1900 = vld [vmem:[%s1886 + $0xcf] sm:$0xff]
    %v1901 = vld [vmem:[%s1886 + $0xe7] sm:$0xff]
    %v1902 = vld [vmem:[%s1886 + $0xef] sm:$0xff]
    %v1903 = vld [vmem:[%s1886 + $0x107] sm:$0xff]
    %v1904 = vld [vmem:[%s1886 + $0x10f] sm:$0xff]
    %v1905 = vld [vmem:[%s1886 + $0x127] sm:$0xff]
    %v1906 = vld [vmem:[%s1886 + $0x12f] sm:$0xff]
    %v1907 = vld [vmem:[%s1886 + $0x147] sm:$0xff]
    %v1908 = vld [vmem:[%s1886 + $0x14f] sm:$0xff]
    %v1909 = vld [vmem:[%s1886 + $0x167] sm:$0xff]
    %v1910 = vld [vmem:[%s1886 + $0x16f] sm:$0xff]
    %v1911 = vld [vmem:[%s1886 + $0x187] sm:$0xff]
    %v1912 = vld [vmem:[%s1886 + $0x18f] sm:$0xff]
    %v1913 = vld [vmem:[%s1886 + $0x1a7] sm:$0xff]
    %v1914 = vld [vmem:[%s1886 + $0x1af] sm:$0xff]
    %v1915 = vld [vmem:[%s1886 + $0x1c7] sm:$0xff]
    %v1916 = vld [vmem:[%s1886 + $0x1cf] sm:$0xff]
    %v1917 = vld [vmem:[%s1886 + $0x1e7] sm:$0xff]
    %v1918 = vld [vmem:[%s1886 + $0x1ef] sm:$0xff]
    %v1919 = vpack.c.bf16 %v1888, %v1887
    %v1920 = vpack.c.bf16 %v1890, %v1889
    %v1921 = vpack.c.bf16 %v1892, %v1891
    %v1922 = vpack.c.bf16 %v1894, %v1893
    %v1923 = vpack.c.bf16 %v1896, %v1895
    %v1924 = vpack.c.bf16 %v1898, %v1897
    %v1925 = vpack.c.bf16 %v1900, %v1899
    %v1926 = vpack.c.bf16 %v1902, %v1901
    %v1927 = vpack.c.bf16 %v1904, %v1903
    %v1928 = vpack.c.bf16 %v1906, %v1905
    %v1929 = vpack.c.bf16 %v1908, %v1907
    %v1930 = vpack.c.bf16 %v1910, %v1909
    %v1931 = vpack.c.bf16 %v1912, %v1911
    %v1932 = vpack.c.bf16 %v1914, %v1913
    %v1933 = vpack.c.bf16 %v1916, %v1915
    %v1934 = vpack.c.bf16 %v1918, %v1917
    %s1935 = scalar_lea.vmem %s1, 384
    %v1936 = vld [vmem:[%s1935] sm:$0xf]
    %v1937 = vld [vmem:[%s1935 + $0x4] sm:$0xf]
    %v1938 = vld [vmem:[%s1935 + $0x8] sm:$0xf]
    %v1939 = vld [vmem:[%s1935 + $0xc] sm:$0xf]
    %v1940 = vld [vmem:[%s1935 + $0x10] sm:$0xf]
    %v1941 = vld [vmem:[%s1935 + $0x14] sm:$0xf]
    %v1942 = vld [vmem:[%s1935 + $0x18] sm:$0xf]
    %v1943 = vld [vmem:[%s1935 + $0x1c] sm:$0xf]
    %v1944 = vld [vmem:[%s1935 + $0x20] sm:$0xf]
    %v1945 = vld [vmem:[%s1935 + $0x24] sm:$0xf]
    %v1946 = vld [vmem:[%s1935 + $0x28] sm:$0xf]
    %v1947 = vld [vmem:[%s1935 + $0x2c] sm:$0xf]
    %v1948 = vld [vmem:[%s1935 + $0x30] sm:$0xf]
    %v1949 = vld [vmem:[%s1935 + $0x34] sm:$0xf]
    %v1950 = vld [vmem:[%s1935 + $0x38] sm:$0xf]
    %v1951 = vld [vmem:[%s1935 + $0x3c] sm:$0xf]
    %v1968 = vunpack.c.l.b16 %v1936
    %v1969 = vunpack.c.l.b16 %v1937
    %v1970 = vunpack.c.l.b16 %v1938
    %v1971 = vunpack.c.l.b16 %v1939
    %v1972 = vunpack.c.l.b16 %v1940
    %v1973 = vunpack.c.l.b16 %v1941
    %v1974 = vunpack.c.l.b16 %v1942
    %v1975 = vunpack.c.l.b16 %v1943
    %v1976 = vunpack.c.l.b16 %v1944
    %v1977 = vunpack.c.l.b16 %v1945
    %v1978 = vunpack.c.l.b16 %v1946
    %v1979 = vunpack.c.l.b16 %v1947
    %v1980 = vunpack.c.l.b16 %v1948
    %v1981 = vunpack.c.l.b16 %v1949
    %v1982 = vunpack.c.l.b16 %v1950
    %v1983 = vunpack.c.l.b16 %v1951
    %v1984 = vpack.c.b16 %v1969, %v1968
    %v1985 = vpack.c.b16 %v1971, %v1970
    %v1986 = vpack.c.b16 %v1973, %v1972
    %v1987 = vpack.c.b16 %v1975, %v1974
    %v1988 = vpack.c.b16 %v1977, %v1976
    %v1989 = vpack.c.b16 %v1979, %v1978
    %v1990 = vpack.c.b16 %v1981, %v1980
    %v1991 = vpack.c.b16 %v1983, %v1982
    %2000 = vmatprep.subr.bf16.mxu0 0
    %2001 = vmatpush1.bf16.msra.mxu0 %v1991
    %2002 = vmatprep.subr.bf16.mxu0 0
    %2003 = vmatpush1.bf16.msra.mxu0 %v1990
    %2004 = vmatprep.subr.bf16.mxu0 0
    %2005 = vmatpush1.bf16.msra.mxu0 %v1989
    %2006 = vmatprep.subr.bf16.mxu0 0
    %2007 = vmatpush1.bf16.msra.mxu0 %v1988
    %2008 = vmatprep.subr.bf16.mxu0 0
    %2009 = vmatpush1.bf16.msra.mxu0 %v1987
    %2010 = vmatprep.subr.bf16.mxu0 0
    %2011 = vmatpush1.bf16.msra.mxu0 %v1986
    %2012 = vmatprep.subr.bf16.mxu0 0
    %2013 = vmatpush1.bf16.msra.mxu0 %v1985
    %2014 = vmatprep.subr.bf16.mxu0 0
    %2015 = vmatpush1.bf16.msra.mxu0 %v1984
    %2016 = vmatprep.subr.bf16.mxu0 0
    %2017 = vmatpush2.bf16.msra.mxu0 0
    %2018 = vmatprep.subr.bf16.mxu0 0
    %2019 = vmatpush2.bf16.msra.mxu0 0
    %2020 = vmatprep.subr.bf16.mxu0 0
    %2021 = vmatpush2.bf16.msra.mxu0 0
    %2022 = vmatprep.subr.bf16.mxu0 0
    %2023 = vmatpush2.bf16.msra.mxu0 0
    %2024 = vmatprep.subr.bf16.mxu0 0
    %2025 = vmatpush2.bf16.msra.mxu0 0
    %2026 = vmatprep.subr.bf16.mxu0 0
    %2027 = vmatpush2.bf16.msra.mxu0 0
    %2028 = vmatprep.subr.bf16.mxu0 0
    %2029 = vmatpush2.bf16.msra.mxu0 0
    %2030 = vmatprep.subr.bf16.mxu0 0
    %2031 = vmatpush2.bf16.msra.mxu0 0
    %2032 = vmatprep.mubr.bf16.mxu0 0
    %2033 = vmatmul.mubr.bf16.gmra.mxu0 %v1919
    %v2034 = vpop.f32.mrf.mxu0
    %v2035 = vadd.f32 0.0, %v2034
    %v2036 = vpop.f32.mrf.mxu0
    %v2037 = vpop.f32.mrf.mxu0
    %v2038 = vadd.f32 0.0, %v2037
    %v2039 = vpop.f32.mrf.mxu0
    %2040 = vmatprep.mubr.bf16.mxu0 0
    %2041 = vmatmul.mubr.bf16.gmra.mxu0 %v1920
    %v2042 = vpop.f32.mrf.mxu0
    %v2043 = vadd.f32 0.0, %v2042
    %v2044 = vpop.f32.mrf.mxu0
    %v2045 = vpop.f32.mrf.mxu0
    %v2046 = vadd.f32 0.0, %v2045
    %v2047 = vpop.f32.mrf.mxu0
    %2048 = vmatprep.mubr.bf16.mxu0 0
    %2049 = vmatmul.mubr.bf16.gmra.mxu0 %v1921
    %v2050 = vpop.f32.mrf.mxu0
    %v2051 = vadd.f32 0.0, %v2050
    %v2052 = vpop.f32.mrf.mxu0
    %v2053 = vpop.f32.mrf.mxu0
    %v2054 = vadd.f32 0.0, %v2053
    %v2055 = vpop.f32.mrf.mxu0
    %2056 = vmatprep.mubr.bf16.mxu0 0
    %2057 = vmatmul.mubr.bf16.gmra.mxu0 %v1922
    %v2058 = vpop.f32.mrf.mxu0
    %v2059 = vadd.f32 0.0, %v2058
    %v2060 = vpop.f32.mrf.mxu0
    %v2061 = vpop.f32.mrf.mxu0
    %v2062 = vadd.f32 0.0, %v2061
    %v2063 = vpop.f32.mrf.mxu0
    %2064 = vmatprep.mubr.bf16.mxu0 0
    %2065 = vmatmul.mubr.bf16.gmra.mxu0 %v1923
    %v2066 = vpop.f32.mrf.mxu0
    %v2067 = vadd.f32 0.0, %v2066
    %v2068 = vpop.f32.mrf.mxu0
    %v2069 = vpop.f32.mrf.mxu0
    %v2070 = vadd.f32 0.0, %v2069
    %v2071 = vpop.f32.mrf.mxu0
    %2072 = vmatprep.mubr.bf16.mxu0 0
    %2073 = vmatmul.mubr.bf16.gmra.mxu0 %v1924
    %v2074 = vpop.f32.mrf.mxu0
    %v2075 = vadd.f32 0.0, %v2074
    %v2076 = vpop.f32.mrf.mxu0
    %v2077 = vpop.f32.mrf.mxu0
    %v2078 = vadd.f32 0.0, %v2077
    %v2079 = vpop.f32.mrf.mxu0
    %2080 = vmatprep.mubr.bf16.mxu0 0
    %2081 = vmatmul.mubr.bf16.gmra.mxu0 %v1925
    %v2082 = vpop.f32.mrf.mxu0
    %v2083 = vadd.f32 0.0, %v2082
    %v2084 = vpop.f32.mrf.mxu0
    %v2085 = vpop.f32.mrf.mxu0
    %v2086 = vadd.f32 0.0, %v2085
    %v2087 = vpop.f32.mrf.mxu0
    %2088 = vmatprep.mubr.bf16.mxu0 0
    %2089 = vmatmul.mubr.bf16.gmra.mxu0 %v1926
    %v2090 = vpop.f32.mrf.mxu0
    %v2091 = vadd.f32 0.0, %v2090
    %v2092 = vpop.f32.mrf.mxu0
    %v2093 = vpop.f32.mrf.mxu0
    %v2094 = vadd.f32 0.0, %v2093
    %v2095 = vpop.f32.mrf.mxu0
    %2096 = vmatprep.mubr.bf16.mxu0 0
    %2097 = vmatmul.mubr.bf16.gmra.mxu0 %v1927
    %v2098 = vpop.f32.mrf.mxu0
    %v2099 = vadd.f32 0.0, %v2098
    %v2100 = vpop.f32.mrf.mxu0
    %v2101 = vpop.f32.mrf.mxu0
    %v2102 = vadd.f32 0.0, %v2101
    %v2103 = vpop.f32.mrf.mxu0
    %2104 = vmatprep.mubr.bf16.mxu0 0
    %2105 = vmatmul.mubr.bf16.gmra.mxu0 %v1928
    %v2106 = vpop.f32.mrf.mxu0
    %v2107 = vadd.f32 0.0, %v2106
    %v2108 = vpop.f32.mrf.mxu0
    %v2109 = vpop.f32.mrf.mxu0
    %v2110 = vadd.f32 0.0, %v2109
    %v2111 = vpop.f32.mrf.mxu0
    %2112 = vmatprep.mubr.bf16.mxu0 0
    %2113 = vmatmul.mubr.bf16.gmra.mxu0 %v1929
    %v2114 = vpop.f32.mrf.mxu0
    %v2115 = vadd.f32 0.0, %v2114
    %v2116 = vpop.f32.mrf.mxu0
    %v2117 = vpop.f32.mrf.mxu0
    %v2118 = vadd.f32 0.0, %v2117
    %v2119 = vpop.f32.mrf.mxu0
    %2120 = vmatprep.mubr.bf16.mxu0 0
    %2121 = vmatmul.mubr.bf16.gmra.mxu0 %v1930
    %v2122 = vpop.f32.mrf.mxu0
    %v2123 = vadd.f32 0.0, %v2122
    %v2124 = vpop.f32.mrf.mxu0
    %v2125 = vpop.f32.mrf.mxu0
    %v2126 = vadd.f32 0.0, %v2125
    %v2127 = vpop.f32.mrf.mxu0
    %2128 = vmatprep.mubr.bf16.mxu0 0
    %2129 = vmatmul.mubr.bf16.gmra.mxu0 %v1931
    %v2130 = vpop.f32.mrf.mxu0
    %v2131 = vadd.f32 0.0, %v2130
    %v2132 = vpop.f32.mrf.mxu0
    %v2133 = vpop.f32.mrf.mxu0
    %v2134 = vadd.f32 0.0, %v2133
    %v2135 = vpop.f32.mrf.mxu0
    %2136 = vmatprep.mubr.bf16.mxu0 0
    %2137 = vmatmul.mubr.bf16.gmra.mxu0 %v1932
    %v2138 = vpop.f32.mrf.mxu0
    %v2139 = vadd.f32 0.0, %v2138
    %v2140 = vpop.f32.mrf.mxu0
    %v2141 = vpop.f32.mrf.mxu0
    %v2142 = vadd.f32 0.0, %v2141
    %v2143 = vpop.f32.mrf.mxu0
    %2144 = vmatprep.mubr.bf16.mxu0 0
    %2145 = vmatmul.mubr.bf16.gmra.mxu0 %v1933
    %v2146 = vpop.f32.mrf.mxu0
    %v2147 = vadd.f32 0.0, %v2146
    %v2148 = vpop.f32.mrf.mxu0
    %v2149 = vpop.f32.mrf.mxu0
    %v2150 = vadd.f32 0.0, %v2149
    %v2151 = vpop.f32.mrf.mxu0
    %2152 = vmatprep.mubr.bf16.mxu0 0
    %2153 = vmatmul.mubr.bf16.gmra.mxu0 %v1934
    %v2154 = vpop.f32.mrf.mxu0
    %v2155 = vadd.f32 0.0, %v2154
    %v2156 = vpop.f32.mrf.mxu0
    %v2157 = vpop.f32.mrf.mxu0
    %v2158 = vadd.f32 0.0, %v2157
    %v2159 = vpop.f32.mrf.mxu0
    %2160 = vdwg.mxu0
    %v2161 = vadd.f32 %v1854, %v2035
    %v2162 = vadd.f32 %v1855, %v2038
    %v2163 = vadd.f32 %v1856, %v2043
    %v2164 = vadd.f32 %v1857, %v2046
    %v2165 = vadd.f32 %v1858, %v2051
    %v2166 = vadd.f32 %v1859, %v2054
    %v2167 = vadd.f32 %v1860, %v2059
    %v2168 = vadd.f32 %v1861, %v2062
    %v2169 = vadd.f32 %v1862, %v2067
    %v2170 = vadd.f32 %v1863, %v2070
    %v2171 = vadd.f32 %v1864, %v2075
    %v2172 = vadd.f32 %v1865, %v2078
    %v2173 = vadd.f32 %v1866, %v2083
    %v2174 = vadd.f32 %v1867, %v2086
    %v2175 = vadd.f32 %v1868, %v2091
    %v2176 = vadd.f32 %v1869, %v2094
    %v2177 = vadd.f32 %v1870, %v2099
    %v2178 = vadd.f32 %v1871, %v2102
    %v2179 = vadd.f32 %v1872, %v2107
    %v2180 = vadd.f32 %v1873, %v2110
    %v2181 = vadd.f32 %v1874, %v2115
    %v2182 = vadd.f32 %v1875, %v2118
    %v2183 = vadd.f32 %v1876, %v2123
    %v2184 = vadd.f32 %v1877, %v2126
    %v2185 = vadd.f32 %v1878, %v2131
    %v2186 = vadd.f32 %v1879, %v2134
    %v2187 = vadd.f32 %v1880, %v2139
    %v2188 = vadd.f32 %v1881, %v2142
    %v2189 = vadd.f32 %v1882, %v2147
    %v2190 = vadd.f32 %v1883, %v2150
    %v2191 = vadd.f32 %v1884, %v2155
    %v2192 = vadd.f32 %v1885, %v2158
    %v2193 = vld [vmem:[%s1886 + $0x8] sm:$0xff]
    %v2194 = vld [vmem:[%s1886 + $0x10] sm:$0xff]
    %v2195 = vld [vmem:[%s1886 + $0x28] sm:$0xff]
    %v2196 = vld [vmem:[%s1886 + $0x30] sm:$0xff]
    %v2197 = vld [vmem:[%s1886 + $0x48] sm:$0xff]
    %v2198 = vld [vmem:[%s1886 + $0x50] sm:$0xff]
    %v2199 = vld [vmem:[%s1886 + $0x68] sm:$0xff]
    %v2200 = vld [vmem:[%s1886 + $0x70] sm:$0xff]
    %v2201 = vld [vmem:[%s1886 + $0x88] sm:$0xff]
    %v2202 = vld [vmem:[%s1886 + $0x90] sm:$0xff]
    %v2203 = vld [vmem:[%s1886 + $0xa8] sm:$0xff]
    %v2204 = vld [vmem:[%s1886 + $0xb0] sm:$0xff]
    %v2205 = vld [vmem:[%s1886 + $0xc8] sm:$0xff]
    %v2206 = vld [vmem:[%s1886 + $0xd0] sm:$0xff]
    %v2207 = vld [vmem:[%s1886 + $0xe8] sm:$0xff]
    %v2208 = vld [vmem:[%s1886 + $0xf0] sm:$0xff]
    %v2209 = vld [vmem:[%s1886 + $0x108] sm:$0xff]
    %v2210 = vld [vmem:[%s1886 + $0x110] sm:$0xff]
    %v2211 = vld [vmem:[%s1886 + $0x128] sm:$0xff]
    %v2212 = vld [vmem:[%s1886 + $0x130] sm:$0xff]
    %v2213 = vld [vmem:[%s1886 + $0x148] sm:$0xff]
    %v2214 = vld [vmem:[%s1886 + $0x150] sm:$0xff]
    %v2215 = vld [vmem:[%s1886 + $0x168] sm:$0xff]
    %v2216 = vld [vmem:[%s1886 + $0x170] sm:$0xff]
    %v2217 = vld [vmem:[%s1886 + $0x188] sm:$0xff]
    %v2218 = vld [vmem:[%s1886 + $0x190] sm:$0xff]
    %v2219 = vld [vmem:[%s1886 + $0x1a8] sm:$0xff]
    %v2220 = vld [vmem:[%s1886 + $0x1b0] sm:$0xff]
    %v2221 = vld [vmem:[%s1886 + $0x1c8] sm:$0xff]
    %v2222 = vld [vmem:[%s1886 + $0x1d0] sm:$0xff]
    %v2223 = vld [vmem:[%s1886 + $0x1e8] sm:$0xff]
    %v2224 = vld [vmem:[%s1886 + $0x1f0] sm:$0xff]
    %v2225 = vpack.c.bf16 %v2194, %v2193
    %v2226 = vpack.c.bf16 %v2196, %v2195
    %v2227 = vpack.c.bf16 %v2198, %v2197
    %v2228 = vpack.c.bf16 %v2200, %v2199
    %v2229 = vpack.c.bf16 %v2202, %v2201
    %v2230 = vpack.c.bf16 %v2204, %v2203
    %v2231 = vpack.c.bf16 %v2206, %v2205
    %v2232 = vpack.c.bf16 %v2208, %v2207
    %v2233 = vpack.c.bf16 %v2210, %v2209
    %v2234 = vpack.c.bf16 %v2212, %v2211
    %v2235 = vpack.c.bf16 %v2214, %v2213
    %v2236 = vpack.c.bf16 %v2216, %v2215
    %v2237 = vpack.c.bf16 %v2218, %v2217
    %v2238 = vpack.c.bf16 %v2220, %v2219
    %v2239 = vpack.c.bf16 %v2222, %v2221
    %v2240 = vpack.c.bf16 %v2224, %v2223
    %s2241 = scalar_lea.vmem %s1, 448
    %v2242 = vld [vmem:[%s2241] sm:$0xf]
    %v2243 = vld [vmem:[%s2241 + $0x4] sm:$0xf]
    %v2244 = vld [vmem:[%s2241 + $0x8] sm:$0xf]
    %v2245 = vld [vmem:[%s2241 + $0xc] sm:$0xf]
    %v2246 = vld [vmem:[%s2241 + $0x10] sm:$0xf]
    %v2247 = vld [vmem:[%s2241 + $0x14] sm:$0xf]
    %v2248 = vld [vmem:[%s2241 + $0x18] sm:$0xf]
    %v2249 = vld [vmem:[%s2241 + $0x1c] sm:$0xf]
    %v2250 = vld [vmem:[%s2241 + $0x20] sm:$0xf]
    %v2251 = vld [vmem:[%s2241 + $0x24] sm:$0xf]
    %v2252 = vld [vmem:[%s2241 + $0x28] sm:$0xf]
    %v2253 = vld [vmem:[%s2241 + $0x2c] sm:$0xf]
    %v2254 = vld [vmem:[%s2241 + $0x30] sm:$0xf]
    %v2255 = vld [vmem:[%s2241 + $0x34] sm:$0xf]
    %v2256 = vld [vmem:[%s2241 + $0x38] sm:$0xf]
    %v2257 = vld [vmem:[%s2241 + $0x3c] sm:$0xf]
    %v2274 = vunpack.c.l.b16 %v2242
    %v2275 = vunpack.c.l.b16 %v2243
    %v2276 = vunpack.c.l.b16 %v2244
    %v2277 = vunpack.c.l.b16 %v2245
    %v2278 = vunpack.c.l.b16 %v2246
    %v2279 = vunpack.c.l.b16 %v2247
    %v2280 = vunpack.c.l.b16 %v2248
    %v2281 = vunpack.c.l.b16 %v2249
    %v2282 = vunpack.c.l.b16 %v2250
    %v2283 = vunpack.c.l.b16 %v2251
    %v2284 = vunpack.c.l.b16 %v2252
    %v2285 = vunpack.c.l.b16 %v2253
    %v2286 = vunpack.c.l.b16 %v2254
    %v2287 = vunpack.c.l.b16 %v2255
    %v2288 = vunpack.c.l.b16 %v2256
    %v2289 = vunpack.c.l.b16 %v2257
    %v2290 = vpack.c.b16 %v2275, %v2274
    %v2291 = vpack.c.b16 %v2277, %v2276
    %v2292 = vpack.c.b16 %v2279, %v2278
    %v2293 = vpack.c.b16 %v2281, %v2280
    %v2294 = vpack.c.b16 %v2283, %v2282
    %v2295 = vpack.c.b16 %v2285, %v2284
    %v2296 = vpack.c.b16 %v2287, %v2286
    %v2297 = vpack.c.b16 %v2289, %v2288
    %2306 = vmatprep.subr.bf16.mxu0 0
    %2307 = vmatpush1.bf16.msra.mxu0 %v2297
    %2308 = vmatprep.subr.bf16.mxu0 0
    %2309 = vmatpush1.bf16.msra.mxu0 %v2296
    %2310 = vmatprep.subr.bf16.mxu0 0
    %2311 = vmatpush1.bf16.msra.mxu0 %v2295
    %2312 = vmatprep.subr.bf16.mxu0 0
    %2313 = vmatpush1.bf16.msra.mxu0 %v2294
    %2314 = vmatprep.subr.bf16.mxu0 0
    %2315 = vmatpush1.bf16.msra.mxu0 %v2293
    %2316 = vmatprep.subr.bf16.mxu0 0
    %2317 = vmatpush1.bf16.msra.mxu0 %v2292
    %2318 = vmatprep.subr.bf16.mxu0 0
    %2319 = vmatpush1.bf16.msra.mxu0 %v2291
    %2320 = vmatprep.subr.bf16.mxu0 0
    %2321 = vmatpush1.bf16.msra.mxu0 %v2290
    %2322 = vmatprep.subr.bf16.mxu0 0
    %2323 = vmatpush2.bf16.msra.mxu0 0
    %2324 = vmatprep.subr.bf16.mxu0 0
    %2325 = vmatpush2.bf16.msra.mxu0 0
    %2326 = vmatprep.subr.bf16.mxu0 0
    %2327 = vmatpush2.bf16.msra.mxu0 0
    %2328 = vmatprep.subr.bf16.mxu0 0
    %2329 = vmatpush2.bf16.msra.mxu0 0
    %2330 = vmatprep.subr.bf16.mxu0 0
    %2331 = vmatpush2.bf16.msra.mxu0 0
    %2332 = vmatprep.subr.bf16.mxu0 0
    %2333 = vmatpush2.bf16.msra.mxu0 0
    %2334 = vmatprep.subr.bf16.mxu0 0
    %2335 = vmatpush2.bf16.msra.mxu0 0
    %2336 = vmatprep.subr.bf16.mxu0 0
    %2337 = vmatpush2.bf16.msra.mxu0 0
    %2338 = vmatprep.mubr.bf16.mxu0 0
    %2339 = vmatmul.mubr.bf16.gmra.mxu0 %v2225
    %v2340 = vpop.f32.mrf.mxu0
    %v2341 = vadd.f32 0.0, %v2340
    %v2342 = vpop.f32.mrf.mxu0
    %v2343 = vpop.f32.mrf.mxu0
    %v2344 = vadd.f32 0.0, %v2343
    %v2345 = vpop.f32.mrf.mxu0
    %2346 = vmatprep.mubr.bf16.mxu0 0
    %2347 = vmatmul.mubr.bf16.gmra.mxu0 %v2226
    %v2348 = vpop.f32.mrf.mxu0
    %v2349 = vadd.f32 0.0, %v2348
    %v2350 = vpop.f32.mrf.mxu0
    %v2351 = vpop.f32.mrf.mxu0
    %v2352 = vadd.f32 0.0, %v2351
    %v2353 = vpop.f32.mrf.mxu0
    %2354 = vmatprep.mubr.bf16.mxu0 0
    %2355 = vmatmul.mubr.bf16.gmra.mxu0 %v2227
    %v2356 = vpop.f32.mrf.mxu0
    %v2357 = vadd.f32 0.0, %v2356
    %v2358 = vpop.f32.mrf.mxu0
    %v2359 = vpop.f32.mrf.mxu0
    %v2360 = vadd.f32 0.0, %v2359
    %v2361 = vpop.f32.mrf.mxu0
    %2362 = vmatprep.mubr.bf16.mxu0 0
    %2363 = vmatmul.mubr.bf16.gmra.mxu0 %v2228
    %v2364 = vpop.f32.mrf.mxu0
    %v2365 = vadd.f32 0.0, %v2364
    %v2366 = vpop.f32.mrf.mxu0
    %v2367 = vpop.f32.mrf.mxu0
    %v2368 = vadd.f32 0.0, %v2367
    %v2369 = vpop.f32.mrf.mxu0
    %2370 = vmatprep.mubr.bf16.mxu0 0
    %2371 = vmatmul.mubr.bf16.gmra.mxu0 %v2229
    %v2372 = vpop.f32.mrf.mxu0
    %v2373 = vadd.f32 0.0, %v2372
    %v2374 = vpop.f32.mrf.mxu0
    %v2375 = vpop.f32.mrf.mxu0
    %v2376 = vadd.f32 0.0, %v2375
    %v2377 = vpop.f32.mrf.mxu0
    %2378 = vmatprep.mubr.bf16.mxu0 0
    %2379 = vmatmul.mubr.bf16.gmra.mxu0 %v2230
    %v2380 = vpop.f32.mrf.mxu0
    %v2381 = vadd.f32 0.0, %v2380
    %v2382 = vpop.f32.mrf.mxu0
    %v2383 = vpop.f32.mrf.mxu0
    %v2384 = vadd.f32 0.0, %v2383
    %v2385 = vpop.f32.mrf.mxu0
    %2386 = vmatprep.mubr.bf16.mxu0 0
    %2387 = vmatmul.mubr.bf16.gmra.mxu0 %v2231
    %v2388 = vpop.f32.mrf.mxu0
    %v2389 = vadd.f32 0.0, %v2388
    %v2390 = vpop.f32.mrf.mxu0
    %v2391 = vpop.f32.mrf.mxu0
    %v2392 = vadd.f32 0.0, %v2391
    %v2393 = vpop.f32.mrf.mxu0
    %2394 = vmatprep.mubr.bf16.mxu0 0
    %2395 = vmatmul.mubr.bf16.gmra.mxu0 %v2232
    %v2396 = vpop.f32.mrf.mxu0
    %v2397 = vadd.f32 0.0, %v2396
    %v2398 = vpop.f32.mrf.mxu0
    %v2399 = vpop.f32.mrf.mxu0
    %v2400 = vadd.f32 0.0, %v2399
    %v2401 = vpop.f32.mrf.mxu0
    %2402 = vmatprep.mubr.bf16.mxu0 0
    %2403 = vmatmul.mubr.bf16.gmra.mxu0 %v2233
    %v2404 = vpop.f32.mrf.mxu0
    %v2405 = vadd.f32 0.0, %v2404
    %v2406 = vpop.f32.mrf.mxu0
    %v2407 = vpop.f32.mrf.mxu0
    %v2408 = vadd.f32 0.0, %v2407
    %v2409 = vpop.f32.mrf.mxu0
    %2410 = vmatprep.mubr.bf16.mxu0 0
    %2411 = vmatmul.mubr.bf16.gmra.mxu0 %v2234
    %v2412 = vpop.f32.mrf.mxu0
    %v2413 = vadd.f32 0.0, %v2412
    %v2414 = vpop.f32.mrf.mxu0
    %v2415 = vpop.f32.mrf.mxu0
    %v2416 = vadd.f32 0.0, %v2415
    %v2417 = vpop.f32.mrf.mxu0
    %2418 = vmatprep.mubr.bf16.mxu0 0
    %2419 = vmatmul.mubr.bf16.gmra.mxu0 %v2235
    %v2420 = vpop.f32.mrf.mxu0
    %v2421 = vadd.f32 0.0, %v2420
    %v2422 = vpop.f32.mrf.mxu0
    %v2423 = vpop.f32.mrf.mxu0
    %v2424 = vadd.f32 0.0, %v2423
    %v2425 = vpop.f32.mrf.mxu0
    %2426 = vmatprep.mubr.bf16.mxu0 0
    %2427 = vmatmul.mubr.bf16.gmra.mxu0 %v2236
    %v2428 = vpop.f32.mrf.mxu0
    %v2429 = vadd.f32 0.0, %v2428
    %v2430 = vpop.f32.mrf.mxu0
    %v2431 = vpop.f32.mrf.mxu0
    %v2432 = vadd.f32 0.0, %v2431
    %v2433 = vpop.f32.mrf.mxu0
    %2434 = vmatprep.mubr.bf16.mxu0 0
    %2435 = vmatmul.mubr.bf16.gmra.mxu0 %v2237
    %v2436 = vpop.f32.mrf.mxu0
    %v2437 = vadd.f32 0.0, %v2436
    %v2438 = vpop.f32.mrf.mxu0
    %v2439 = vpop.f32.mrf.mxu0
    %v2440 = vadd.f32 0.0, %v2439
    %v2441 = vpop.f32.mrf.mxu0
    %2442 = vmatprep.mubr.bf16.mxu0 0
    %2443 = vmatmul.mubr.bf16.gmra.mxu0 %v2238
    %v2444 = vpop.f32.mrf.mxu0
    %v2445 = vadd.f32 0.0, %v2444
    %v2446 = vpop.f32.mrf.mxu0
    %v2447 = vpop.f32.mrf.mxu0
    %v2448 = vadd.f32 0.0, %v2447
    %v2449 = vpop.f32.mrf.mxu0
    %2450 = vmatprep.mubr.bf16.mxu0 0
    %2451 = vmatmul.mubr.bf16.gmra.mxu0 %v2239
    %v2452 = vpop.f32.mrf.mxu0
    %v2453 = vadd.f32 0.0, %v2452
    %v2454 = vpop.f32.mrf.mxu0
    %v2455 = vpop.f32.mrf.mxu0
    %v2456 = vadd.f32 0.0, %v2455
    %v2457 = vpop.f32.mrf.mxu0
    %2458 = vmatprep.mubr.bf16.mxu0 0
    %2459 = vmatmul.mubr.bf16.gmra.mxu0 %v2240
    %v2460 = vpop.f32.mrf.mxu0
    %v2461 = vadd.f32 0.0, %v2460
    %v2462 = vpop.f32.mrf.mxu0
    %v2463 = vpop.f32.mrf.mxu0
    %v2464 = vadd.f32 0.0, %v2463
    %v2465 = vpop.f32.mrf.mxu0
    %2466 = vdwg.mxu0
    %v2467 = vadd.f32 %v2161, %v2341
    %v2468 = vadd.f32 %v2162, %v2344
    %v2469 = vadd.f32 %v2163, %v2349
    %v2470 = vadd.f32 %v2164, %v2352
    %v2471 = vadd.f32 %v2165, %v2357
    %v2472 = vadd.f32 %v2166, %v2360
    %v2473 = vadd.f32 %v2167, %v2365
    %v2474 = vadd.f32 %v2168, %v2368
    %v2475 = vadd.f32 %v2169, %v2373
    %v2476 = vadd.f32 %v2170, %v2376
    %v2477 = vadd.f32 %v2171, %v2381
    %v2478 = vadd.f32 %v2172, %v2384
    %v2479 = vadd.f32 %v2173, %v2389
    %v2480 = vadd.f32 %v2174, %v2392
    %v2481 = vadd.f32 %v2175, %v2397
    %v2482 = vadd.f32 %v2176, %v2400
    %v2483 = vadd.f32 %v2177, %v2405
    %v2484 = vadd.f32 %v2178, %v2408
    %v2485 = vadd.f32 %v2179, %v2413
    %v2486 = vadd.f32 %v2180, %v2416
    %v2487 = vadd.f32 %v2181, %v2421
    %v2488 = vadd.f32 %v2182, %v2424
    %v2489 = vadd.f32 %v2183, %v2429
    %v2490 = vadd.f32 %v2184, %v2432
    %v2491 = vadd.f32 %v2185, %v2437
    %v2492 = vadd.f32 %v2186, %v2440
    %v2493 = vadd.f32 %v2187, %v2445
    %v2494 = vadd.f32 %v2188, %v2448
    %v2495 = vadd.f32 %v2189, %v2453
    %v2496 = vadd.f32 %v2190, %v2456
    %v2497 = vadd.f32 %v2191, %v2461
    %v2498 = vadd.f32 %v2192, %v2464
    %v2499 = vld [vmem:[%s1886 + $0x9] sm:$0xff]
    %v2500 = vld [vmem:[%s1886 + $0x11] sm:$0xff]
    %v2501 = vld [vmem:[%s1886 + $0x29] sm:$0xff]
    %v2502 = vld [vmem:[%s1886 + $0x31] sm:$0xff]
    %v2503 = vld [vmem:[%s1886 + $0x49] sm:$0xff]
    %v2504 = vld [vmem:[%s1886 + $0x51] sm:$0xff]
    %v2505 = vld [vmem:[%s1886 + $0x69] sm:$0xff]
    %v2506 = vld [vmem:[%s1886 + $0x71] sm:$0xff]
    %v2507 = vld [vmem:[%s1886 + $0x89] sm:$0xff]
    %v2508 = vld [vmem:[%s1886 + $0x91] sm:$0xff]
    %v2509 = vld [vmem:[%s1886 + $0xa9] sm:$0xff]
    %v2510 = vld [vmem:[%s1886 + $0xb1] sm:$0xff]
    %v2511 = vld [vmem:[%s1886 + $0xc9] sm:$0xff]
    %v2512 = vld [vmem:[%s1886 + $0xd1] sm:$0xff]
    %v2513 = vld [vmem:[%s1886 + $0xe9] sm:$0xff]
    %v2514 = vld [vmem:[%s1886 + $0xf1] sm:$0xff]
    %v2515 = vld [vmem:[%s1886 + $0x109] sm:$0xff]
    %v2516 = vld [vmem:[%s1886 + $0x111] sm:$0xff]
    %v2517 = vld [vmem:[%s1886 + $0x129] sm:$0xff]
    %v2518 = vld [vmem:[%s1886 + $0x131] sm:$0xff]
    %v2519 = vld [vmem:[%s1886 + $0x149] sm:$0xff]
    %v2520 = vld [vmem:[%s1886 + $0x151] sm:$0xff]
    %v2521 = vld [vmem:[%s1886 + $0x169] sm:$0xff]
    %v2522 = vld [vmem:[%s1886 + $0x171] sm:$0xff]
    %v2523 = vld [vmem:[%s1886 + $0x189] sm:$0xff]
    %v2524 = vld [vmem:[%s1886 + $0x191] sm:$0xff]
    %v2525 = vld [vmem:[%s1886 + $0x1a9] sm:$0xff]
    %v2526 = vld [vmem:[%s1886 + $0x1b1] sm:$0xff]
    %v2527 = vld [vmem:[%s1886 + $0x1c9] sm:$0xff]
    %v2528 = vld [vmem:[%s1886 + $0x1d1] sm:$0xff]
    %v2529 = vld [vmem:[%s1886 + $0x1e9] sm:$0xff]
    %v2530 = vld [vmem:[%s1886 + $0x1f1] sm:$0xff]
    %v2531 = vpack.c.bf16 %v2500, %v2499
    %v2532 = vpack.c.bf16 %v2502, %v2501
    %v2533 = vpack.c.bf16 %v2504, %v2503
    %v2534 = vpack.c.bf16 %v2506, %v2505
    %v2535 = vpack.c.bf16 %v2508, %v2507
    %v2536 = vpack.c.bf16 %v2510, %v2509
    %v2537 = vpack.c.bf16 %v2512, %v2511
    %v2538 = vpack.c.bf16 %v2514, %v2513
    %v2539 = vpack.c.bf16 %v2516, %v2515
    %v2540 = vpack.c.bf16 %v2518, %v2517
    %v2541 = vpack.c.bf16 %v2520, %v2519
    %v2542 = vpack.c.bf16 %v2522, %v2521
    %v2543 = vpack.c.bf16 %v2524, %v2523
    %v2544 = vpack.c.bf16 %v2526, %v2525
    %v2545 = vpack.c.bf16 %v2528, %v2527
    %v2546 = vpack.c.bf16 %v2530, %v2529
    %s2547 = scalar_lea.vmem %s1, 512
    %v2548 = vld [vmem:[%s2547] sm:$0xf]
    %v2549 = vld [vmem:[%s2547 + $0x4] sm:$0xf]
    %v2550 = vld [vmem:[%s2547 + $0x8] sm:$0xf]
    %v2551 = vld [vmem:[%s2547 + $0xc] sm:$0xf]
    %v2552 = vld [vmem:[%s2547 + $0x10] sm:$0xf]
    %v2553 = vld [vmem:[%s2547 + $0x14] sm:$0xf]
    %v2554 = vld [vmem:[%s2547 + $0x18] sm:$0xf]
    %v2555 = vld [vmem:[%s2547 + $0x1c] sm:$0xf]
    %v2556 = vld [vmem:[%s2547 + $0x20] sm:$0xf]
    %v2557 = vld [vmem:[%s2547 + $0x24] sm:$0xf]
    %v2558 = vld [vmem:[%s2547 + $0x28] sm:$0xf]
    %v2559 = vld [vmem:[%s2547 + $0x2c] sm:$0xf]
    %v2560 = vld [vmem:[%s2547 + $0x30] sm:$0xf]
    %v2561 = vld [vmem:[%s2547 + $0x34] sm:$0xf]
    %v2562 = vld [vmem:[%s2547 + $0x38] sm:$0xf]
    %v2563 = vld [vmem:[%s2547 + $0x3c] sm:$0xf]
    %v2580 = vunpack.c.l.b16 %v2548
    %v2581 = vunpack.c.l.b16 %v2549
    %v2582 = vunpack.c.l.b16 %v2550
    %v2583 = vunpack.c.l.b16 %v2551
    %v2584 = vunpack.c.l.b16 %v2552
    %v2585 = vunpack.c.l.b16 %v2553
    %v2586 = vunpack.c.l.b16 %v2554
    %v2587 = vunpack.c.l.b16 %v2555
    %v2588 = vunpack.c.l.b16 %v2556
    %v2589 = vunpack.c.l.b16 %v2557
    %v2590 = vunpack.c.l.b16 %v2558
    %v2591 = vunpack.c.l.b16 %v2559
    %v2592 = vunpack.c.l.b16 %v2560
    %v2593 = vunpack.c.l.b16 %v2561
    %v2594 = vunpack.c.l.b16 %v2562
    %v2595 = vunpack.c.l.b16 %v2563
    %v2596 = vpack.c.b16 %v2581, %v2580
    %v2597 = vpack.c.b16 %v2583, %v2582
    %v2598 = vpack.c.b16 %v2585, %v2584
    %v2599 = vpack.c.b16 %v2587, %v2586
    %v2600 = vpack.c.b16 %v2589, %v2588
    %v2601 = vpack.c.b16 %v2591, %v2590
    %v2602 = vpack.c.b16 %v2593, %v2592
    %v2603 = vpack.c.b16 %v2595, %v2594
    %2612 = vmatprep.subr.bf16.mxu0 0
    %2613 = vmatpush1.bf16.msra.mxu0 %v2603
    %2614 = vmatprep.subr.bf16.mxu0 0
    %2615 = vmatpush1.bf16.msra.mxu0 %v2602
    %2616 = vmatprep.subr.bf16.mxu0 0
    %2617 = vmatpush1.bf16.msra.mxu0 %v2601
    %2618 = vmatprep.subr.bf16.mxu0 0
    %2619 = vmatpush1.bf16.msra.mxu0 %v2600
    %2620 = vmatprep.subr.bf16.mxu0 0
    %2621 = vmatpush1.bf16.msra.mxu0 %v2599
    %2622 = vmatprep.subr.bf16.mxu0 0
    %2623 = vmatpush1.bf16.msra.mxu0 %v2598
    %2624 = vmatprep.subr.bf16.mxu0 0
    %2625 = vmatpush1.bf16.msra.mxu0 %v2597
    %2626 = vmatprep.subr.bf16.mxu0 0
    %2627 = vmatpush1.bf16.msra.mxu0 %v2596
    %2628 = vmatprep.subr.bf16.mxu0 0
    %2629 = vmatpush2.bf16.msra.mxu0 0
    %2630 = vmatprep.subr.bf16.mxu0 0
    %2631 = vmatpush2.bf16.msra.mxu0 0
    %2632 = vmatprep.subr.bf16.mxu0 0
    %2633 = vmatpush2.bf16.msra.mxu0 0
    %2634 = vmatprep.subr.bf16.mxu0 0
    %2635 = vmatpush2.bf16.msra.mxu0 0
    %2636 = vmatprep.subr.bf16.mxu0 0
    %2637 = vmatpush2.bf16.msra.mxu0 0
    %2638 = vmatprep.subr.bf16.mxu0 0
    %2639 = vmatpush2.bf16.msra.mxu0 0
    %2640 = vmatprep.subr.bf16.mxu0 0
    %2641 = vmatpush2.bf16.msra.mxu0 0
    %2642 = vmatprep.subr.bf16.mxu0 0
    %2643 = vmatpush2.bf16.msra.mxu0 0
    %2644 = vmatprep.mubr.bf16.mxu0 0
    %2645 = vmatmul.mubr.bf16.gmra.mxu0 %v2531
    %v2646 = vpop.f32.mrf.mxu0
    %v2647 = vadd.f32 0.0, %v2646
    %v2648 = vpop.f32.mrf.mxu0
    %v2649 = vpop.f32.mrf.mxu0
    %v2650 = vadd.f32 0.0, %v2649
    %v2651 = vpop.f32.mrf.mxu0
    %2652 = vmatprep.mubr.bf16.mxu0 0
    %2653 = vmatmul.mubr.bf16.gmra.mxu0 %v2532
    %v2654 = vpop.f32.mrf.mxu0
    %v2655 = vadd.f32 0.0, %v2654
    %v2656 = vpop.f32.mrf.mxu0
    %v2657 = vpop.f32.mrf.mxu0
    %v2658 = vadd.f32 0.0, %v2657
    %v2659 = vpop.f32.mrf.mxu0
    %2660 = vmatprep.mubr.bf16.mxu0 0
    %2661 = vmatmul.mubr.bf16.gmra.mxu0 %v2533
    %v2662 = vpop.f32.mrf.mxu0
    %v2663 = vadd.f32 0.0, %v2662
    %v2664 = vpop.f32.mrf.mxu0
    %v2665 = vpop.f32.mrf.mxu0
    %v2666 = vadd.f32 0.0, %v2665
    %v2667 = vpop.f32.mrf.mxu0
    %2668 = vmatprep.mubr.bf16.mxu0 0
    %2669 = vmatmul.mubr.bf16.gmra.mxu0 %v2534
    %v2670 = vpop.f32.mrf.mxu0
    %v2671 = vadd.f32 0.0, %v2670
    %v2672 = vpop.f32.mrf.mxu0
    %v2673 = vpop.f32.mrf.mxu0
    %v2674 = vadd.f32 0.0, %v2673
    %v2675 = vpop.f32.mrf.mxu0
    %2676 = vmatprep.mubr.bf16.mxu0 0
    %2677 = vmatmul.mubr.bf16.gmra.mxu0 %v2535
    %v2678 = vpop.f32.mrf.mxu0
    %v2679 = vadd.f32 0.0, %v2678
    %v2680 = vpop.f32.mrf.mxu0
    %v2681 = vpop.f32.mrf.mxu0
    %v2682 = vadd.f32 0.0, %v2681
    %v2683 = vpop.f32.mrf.mxu0
    %2684 = vmatprep.mubr.bf16.mxu0 0
    %2685 = vmatmul.mubr.bf16.gmra.mxu0 %v2536
    %v2686 = vpop.f32.mrf.mxu0
    %v2687 = vadd.f32 0.0, %v2686
    %v2688 = vpop.f32.mrf.mxu0
    %v2689 = vpop.f32.mrf.mxu0
    %v2690 = vadd.f32 0.0, %v2689
    %v2691 = vpop.f32.mrf.mxu0
    %2692 = vmatprep.mubr.bf16.mxu0 0
    %2693 = vmatmul.mubr.bf16.gmra.mxu0 %v2537
    %v2694 = vpop.f32.mrf.mxu0
    %v2695 = vadd.f32 0.0, %v2694
    %v2696 = vpop.f32.mrf.mxu0
    %v2697 = vpop.f32.mrf.mxu0
    %v2698 = vadd.f32 0.0, %v2697
    %v2699 = vpop.f32.mrf.mxu0
    %2700 = vmatprep.mubr.bf16.mxu0 0
    %2701 = vmatmul.mubr.bf16.gmra.mxu0 %v2538
    %v2702 = vpop.f32.mrf.mxu0
    %v2703 = vadd.f32 0.0, %v2702
    %v2704 = vpop.f32.mrf.mxu0
    %v2705 = vpop.f32.mrf.mxu0
    %v2706 = vadd.f32 0.0, %v2705
    %v2707 = vpop.f32.mrf.mxu0
    %2708 = vmatprep.mubr.bf16.mxu0 0
    %2709 = vmatmul.mubr.bf16.gmra.mxu0 %v2539
    %v2710 = vpop.f32.mrf.mxu0
    %v2711 = vadd.f32 0.0, %v2710
    %v2712 = vpop.f32.mrf.mxu0
    %v2713 = vpop.f32.mrf.mxu0
    %v2714 = vadd.f32 0.0, %v2713
    %v2715 = vpop.f32.mrf.mxu0
    %2716 = vmatprep.mubr.bf16.mxu0 0
    %2717 = vmatmul.mubr.bf16.gmra.mxu0 %v2540
    %v2718 = vpop.f32.mrf.mxu0
    %v2719 = vadd.f32 0.0, %v2718
    %v2720 = vpop.f32.mrf.mxu0
    %v2721 = vpop.f32.mrf.mxu0
    %v2722 = vadd.f32 0.0, %v2721
    %v2723 = vpop.f32.mrf.mxu0
    %2724 = vmatprep.mubr.bf16.mxu0 0
    %2725 = vmatmul.mubr.bf16.gmra.mxu0 %v2541
    %v2726 = vpop.f32.mrf.mxu0
    %v2727 = vadd.f32 0.0, %v2726
    %v2728 = vpop.f32.mrf.mxu0
    %v2729 = vpop.f32.mrf.mxu0
    %v2730 = vadd.f32 0.0, %v2729
    %v2731 = vpop.f32.mrf.mxu0
    %2732 = vmatprep.mubr.bf16.mxu0 0
    %2733 = vmatmul.mubr.bf16.gmra.mxu0 %v2542
    %v2734 = vpop.f32.mrf.mxu0
    %v2735 = vadd.f32 0.0, %v2734
    %v2736 = vpop.f32.mrf.mxu0
    %v2737 = vpop.f32.mrf.mxu0
    %v2738 = vadd.f32 0.0, %v2737
    %v2739 = vpop.f32.mrf.mxu0
    %2740 = vmatprep.mubr.bf16.mxu0 0
    %2741 = vmatmul.mubr.bf16.gmra.mxu0 %v2543
    %v2742 = vpop.f32.mrf.mxu0
    %v2743 = vadd.f32 0.0, %v2742
    %v2744 = vpop.f32.mrf.mxu0
    %v2745 = vpop.f32.mrf.mxu0
    %v2746 = vadd.f32 0.0, %v2745
    %v2747 = vpop.f32.mrf.mxu0
    %2748 = vmatprep.mubr.bf16.mxu0 0
    %2749 = vmatmul.mubr.bf16.gmra.mxu0 %v2544
    %v2750 = vpop.f32.mrf.mxu0
    %v2751 = vadd.f32 0.0, %v2750
    %v2752 = vpop.f32.mrf.mxu0
    %v2753 = vpop.f32.mrf.mxu0
    %v2754 = vadd.f32 0.0, %v2753
    %v2755 = vpop.f32.mrf.mxu0
    %2756 = vmatprep.mubr.bf16.mxu0 0
    %2757 = vmatmul.mubr.bf16.gmra.mxu0 %v2545
    %v2758 = vpop.f32.mrf.mxu0
    %v2759 = vadd.f32 0.0, %v2758
    %v2760 = vpop.f32.mrf.mxu0
    %v2761 = vpop.f32.mrf.mxu0
    %v2762 = vadd.f32 0.0, %v2761
    %v2763 = vpop.f32.mrf.mxu0
    %2764 = vmatprep.mubr.bf16.mxu0 0
    %2765 = vmatmul.mubr.bf16.gmra.mxu0 %v2546
    %v2766 = vpop.f32.mrf.mxu0
    %v2767 = vadd.f32 0.0, %v2766
    %v2768 = vpop.f32.mrf.mxu0
    %v2769 = vpop.f32.mrf.mxu0
    %v2770 = vadd.f32 0.0, %v2769
    %v2771 = vpop.f32.mrf.mxu0
    %2772 = vdwg.mxu0
    %v2773 = vadd.f32 %v2467, %v2647
    %v2774 = vadd.f32 %v2468, %v2650
    %v2775 = vadd.f32 %v2469, %v2655
    %v2776 = vadd.f32 %v2470, %v2658
    %v2777 = vadd.f32 %v2471, %v2663
    %v2778 = vadd.f32 %v2472, %v2666
    %v2779 = vadd.f32 %v2473, %v2671
    %v2780 = vadd.f32 %v2474, %v2674
    %v2781 = vadd.f32 %v2475, %v2679
    %v2782 = vadd.f32 %v2476, %v2682
    %v2783 = vadd.f32 %v2477, %v2687
    %v2784 = vadd.f32 %v2478, %v2690
    %v2785 = vadd.f32 %v2479, %v2695
    %v2786 = vadd.f32 %v2480, %v2698
    %v2787 = vadd.f32 %v2481, %v2703
    %v2788 = vadd.f32 %v2482, %v2706
    %v2789 = vadd.f32 %v2483, %v2711
    %v2790 = vadd.f32 %v2484, %v2714
    %v2791 = vadd.f32 %v2485, %v2719
    %v2792 = vadd.f32 %v2486, %v2722
    %v2793 = vadd.f32 %v2487, %v2727
    %v2794 = vadd.f32 %v2488, %v2730
    %v2795 = vadd.f32 %v2489, %v2735
    %v2796 = vadd.f32 %v2490, %v2738
    %v2797 = vadd.f32 %v2491, %v2743
    %v2798 = vadd.f32 %v2492, %v2746
    %v2799 = vadd.f32 %v2493, %v2751
    %v2800 = vadd.f32 %v2494, %v2754
    %v2801 = vadd.f32 %v2495, %v2759
    %v2802 = vadd.f32 %v2496, %v2762
    %v2803 = vadd.f32 %v2497, %v2767
    %v2804 = vadd.f32 %v2498, %v2770
    %v2805 = vld [vmem:[%s2] sm:$0x1]
    %v2807 = vlaneseq
    %v2808 = vshrl.u32 %v2807, 7
    %v2809 = vsub.s32 0, %v2808
    %v2810 = vrot.slane %v2805, %v2809
    %v2812 = vadd.f32 %v2773, %v2810
    %v2813 = vadd.f32 %v2774, %v2810
    %v2814 = vadd.f32 %v2775, %v2810
    %v2815 = vadd.f32 %v2776, %v2810
    %v2816 = vadd.f32 %v2777, %v2810
    %v2817 = vadd.f32 %v2778, %v2810
    %v2818 = vadd.f32 %v2779, %v2810
    %v2819 = vadd.f32 %v2780, %v2810
    %v2820 = vadd.f32 %v2781, %v2810
    %v2821 = vadd.f32 %v2782, %v2810
    %v2822 = vadd.f32 %v2783, %v2810
    %v2823 = vadd.f32 %v2784, %v2810
    %v2824 = vadd.f32 %v2785, %v2810
    %v2825 = vadd.f32 %v2786, %v2810
    %v2826 = vadd.f32 %v2787, %v2810
    %v2827 = vadd.f32 %v2788, %v2810
    %v2828 = vadd.f32 %v2789, %v2810
    %v2829 = vadd.f32 %v2790, %v2810
    %v2830 = vadd.f32 %v2791, %v2810
    %v2831 = vadd.f32 %v2792, %v2810
    %v2832 = vadd.f32 %v2793, %v2810
    %v2833 = vadd.f32 %v2794, %v2810
    %v2834 = vadd.f32 %v2795, %v2810
    %v2835 = vadd.f32 %v2796, %v2810
    %v2836 = vadd.f32 %v2797, %v2810
    %v2837 = vadd.f32 %v2798, %v2810
    %v2838 = vadd.f32 %v2799, %v2810
    %v2839 = vadd.f32 %v2800, %v2810
    %v2840 = vadd.f32 %v2801, %v2810
    %v2841 = vadd.f32 %v2802, %v2810
    %v2842 = vadd.f32 %v2803, %v2810
    %v2843 = vadd.f32 %v2804, %v2810
    %v2844 = vmax.f32 %v2812, 0.0
    %v2845 = vmax.f32 %v2813, 0.0
    %v2846 = vmax.f32 %v2814, 0.0
    %v2847 = vmax.f32 %v2815, 0.0
    %v2848 = vmax.f32 %v2816, 0.0
    %v2849 = vmax.f32 %v2817, 0.0
    %v2850 = vmax.f32 %v2818, 0.0
    %v2851 = vmax.f32 %v2819, 0.0
    %v2852 = vmax.f32 %v2820, 0.0
    %v2853 = vmax.f32 %v2821, 0.0
    %v2854 = vmax.f32 %v2822, 0.0
    %v2855 = vmax.f32 %v2823, 0.0
    %v2856 = vmax.f32 %v2824, 0.0
    %v2857 = vmax.f32 %v2825, 0.0
    %v2858 = vmax.f32 %v2826, 0.0
    %v2859 = vmax.f32 %v2827, 0.0
    %v2860 = vmax.f32 %v2828, 0.0
    %v2861 = vmax.f32 %v2829, 0.0
    %v2862 = vmax.f32 %v2830, 0.0
    %v2863 = vmax.f32 %v2831, 0.0
    %v2864 = vmax.f32 %v2832, 0.0
    %v2865 = vmax.f32 %v2833, 0.0
    %v2866 = vmax.f32 %v2834, 0.0
    %v2867 = vmax.f32 %v2835, 0.0
    %v2868 = vmax.f32 %v2836, 0.0
    %v2869 = vmax.f32 %v2837, 0.0
    %v2870 = vmax.f32 %v2838, 0.0
    %v2871 = vmax.f32 %v2839, 0.0
    %v2872 = vmax.f32 %v2840, 0.0
    %v2873 = vmax.f32 %v2841, 0.0
    %v2874 = vmax.f32 %v2842, 0.0
    %v2875 = vmax.f32 %v2843, 0.0
    %s2876 = scalar_lea.vmem [#allocation2], 32
    %2877 = vst [vmem:[%s2876 + $0x8] sm:$0xff] %v2844
    %2878 = vst [vmem:[%s2876 + $0x10] sm:$0xff] %v2845
    %2879 = vst [vmem:[%s2876 + $0x28] sm:$0xff] %v2846
    %2880 = vst [vmem:[%s2876 + $0x30] sm:$0xff] %v2847
    %2881 = vst [vmem:[%s2876 + $0x48] sm:$0xff] %v2848
    %2882 = vst [vmem:[%s2876 + $0x50] sm:$0xff] %v2849
    %2883 = vst [vmem:[%s2876 + $0x68] sm:$0xff] %v2850
    %2884 = vst [vmem:[%s2876 + $0x70] sm:$0xff] %v2851
    %2885 = vst [vmem:[%s2876 + $0x88] sm:$0xff] %v2852
    %2886 = vst [vmem:[%s2876 + $0x90] sm:$0xff] %v2853
    %2887 = vst [vmem:[%s2876 + $0xa8] sm:$0xff] %v2854
    %2888 = vst [vmem:[%s2876 + $0xb0] sm:$0xff] %v2855
    %2889 = vst [vmem:[%s2876 + $0xc8] sm:$0xff] %v2856
    %2890 = vst [vmem:[%s2876 + $0xd0] sm:$0xff] %v2857
    %2891 = vst [vmem:[%s2876 + $0xe8] sm:$0xff] %v2858
    %2892 = vst [vmem:[%s2876 + $0xf0] sm:$0xff] %v2859
    %2893 = vst [vmem:[%s2876 + $0x108] sm:$0xff] %v2860
    %2894 = vst [vmem:[%s2876 + $0x110] sm:$0xff] %v2861
    %2895 = vst [vmem:[%s2876 + $0x128] sm:$0xff] %v2862
    %2896 = vst [vmem:[%s2876 + $0x130] sm:$0xff] %v2863
    %2897 = vst [vmem:[%s2876 + $0x148] sm:$0xff] %v2864
    %2898 = vst [vmem:[%s2876 + $0x150] sm:$0xff] %v2865
    %2899 = vst [vmem:[%s2876 + $0x168] sm:$0xff] %v2866
    %2900 = vst [vmem:[%s2876 + $0x170] sm:$0xff] %v2867
    %2901 = vst [vmem:[%s2876 + $0x188] sm:$0xff] %v2868
    %2902 = vst [vmem:[%s2876 + $0x190] sm:$0xff] %v2869
    %2903 = vst [vmem:[%s2876 + $0x1a8] sm:$0xff] %v2870
    %2904 = vst [vmem:[%s2876 + $0x1b0] sm:$0xff] %v2871
    %2905 = vst [vmem:[%s2876 + $0x1c8] sm:$0xff] %v2872
    %2906 = vst [vmem:[%s2876 + $0x1d0] sm:$0xff] %v2873
    %2907 = vst [vmem:[%s2876 + $0x1e8] sm:$0xff] %v2874
    %2908 = vst [vmem:[%s2876 + $0x1f0] sm:$0xff] %v2875
    %v2909 = vadd.f32 %v2844, %v2845
    %v2910 = vadd.f32 %v2909, %v2846
    %v2911 = vadd.f32 %v2910, %v2847
    %v2912 = vadd.f32 %v2911, %v2848
    %v2913 = vadd.f32 %v2912, %v2849
    %v2914 = vadd.f32 %v2913, %v2850
    %v2915 = vadd.f32 %v2914, %v2851
    %v2916 = vadd.f32 %v2915, %v2852
    %v2917 = vadd.f32 %v2916, %v2853
    %v2918 = vadd.f32 %v2917, %v2854
    %v2919 = vadd.f32 %v2918, %v2855
    %v2920 = vadd.f32 %v2919, %v2856
    %v2921 = vadd.f32 %v2920, %v2857
    %v2922 = vadd.f32 %v2921, %v2858
    %v2923 = vadd.f32 %v2922, %v2859
    %v2924 = vadd.f32 %v2923, %v2860
    %v2925 = vadd.f32 %v2924, %v2861
    %v2926 = vadd.f32 %v2925, %v2862
    %v2927 = vadd.f32 %v2926, %v2863
    %v2928 = vadd.f32 %v2927, %v2864
    %v2929 = vadd.f32 %v2928, %v2865
    %v2930 = vadd.f32 %v2929, %v2866
    %v2931 = vadd.f32 %v2930, %v2867
    %v2932 = vadd.f32 %v2931, %v2868
    %v2933 = vadd.f32 %v2932, %v2869
    %v2934 = vadd.f32 %v2933, %v2870
    %v2935 = vadd.f32 %v2934, %v2871
    %v2936 = vadd.f32 %v2935, %v2872
    %v2937 = vadd.f32 %v2936, %v2873
    %v2938 = vadd.f32 %v2937, %v2874
    %v2939 = vadd.f32 %v2938, %v2875
    %v2940 = vrot.slane %v2939, 4
    %v2941 = vadd.f32 %v2939, %v2940
    %v2942 = vrot.slane %v2941, 2
    %v2943 = vadd.f32 %v2941, %v2942
    %v2944 = vrot.slane %v2943, 1
    %v2945 = vadd.f32 %v2943, %v2944
    %v2946 = vrcp.pop 256.0
    %v2947 = vmul.f32 %v2945, %v2946
    %v2948 = vpack.c.bf16 %v2947, %v2947
    %v2949 = vld [vmem:[#allocation3] sm:$0xf]
    %v2950 = vld [vmem:[#allocation3 + $0x4] sm:$0xf]
    %v2951 = vld [vmem:[#allocation3 + $0x8] sm:$0xf]
    %v2952 = vld [vmem:[#allocation3 + $0xc] sm:$0xf]
    %v2953 = vld [vmem:[#allocation3 + $0x10] sm:$0xf]
    %v2954 = vld [vmem:[#allocation3 + $0x14] sm:$0xf]
    %v2955 = vld [vmem:[#allocation3 + $0x18] sm:$0xf]
    %v2956 = vld [vmem:[#allocation3 + $0x1c] sm:$0xf]
    %v2957 = vld [vmem:[#allocation3 + $0x20] sm:$0xf]
    %v2958 = vld [vmem:[#allocation3 + $0x24] sm:$0xf]
    %v2959 = vld [vmem:[#allocation3 + $0x28] sm:$0xf]
    %v2960 = vld [vmem:[#allocation3 + $0x2c] sm:$0xf]
    %v2961 = vld [vmem:[#allocation3 + $0x30] sm:$0xf]
    %v2962 = vld [vmem:[#allocation3 + $0x34] sm:$0xf]
    %v2963 = vld [vmem:[#allocation3 + $0x38] sm:$0xf]
    %v2964 = vld [vmem:[#allocation3 + $0x3c] sm:$0xf]
    %v2965 = vld [vmem:[%s4] sm:$0x1]
    %v2982 = vunpack.c.l.b16 %v2949
    %v2983 = vunpack.c.l.b16 %v2950
    %v2984 = vunpack.c.l.b16 %v2951
    %v2985 = vunpack.c.l.b16 %v2952
    %v2986 = vunpack.c.l.b16 %v2953
    %v2987 = vunpack.c.l.b16 %v2954
    %v2988 = vunpack.c.l.b16 %v2955
    %v2989 = vunpack.c.l.b16 %v2956
    %v2990 = vunpack.c.l.b16 %v2957
    %v2991 = vunpack.c.l.b16 %v2958
    %v2992 = vunpack.c.l.b16 %v2959
    %v2993 = vunpack.c.l.b16 %v2960
    %v2994 = vunpack.c.l.b16 %v2961
    %v2995 = vunpack.c.l.b16 %v2962
    %v2996 = vunpack.c.l.b16 %v2963
    %v2997 = vunpack.c.l.b16 %v2964
    %v2998 = vpack.c.b16 %v2983, %v2982
    %v2999 = vpack.c.b16 %v2985, %v2984
    %v3000 = vpack.c.b16 %v2987, %v2986
    %v3001 = vpack.c.b16 %v2989, %v2988
    %v3002 = vpack.c.b16 %v2991, %v2990
    %v3003 = vpack.c.b16 %v2993, %v2992
    %v3004 = vpack.c.b16 %v2995, %v2994
    %v3005 = vpack.c.b16 %v2997, %v2996
    %3014 = vmatprep.subr.bf16.mxu0 0
    %3015 = vmatpush1.bf16.msra.mxu0 %v3005
    %3016 = vmatprep.subr.bf16.mxu0 0
    %3017 = vmatpush1.bf16.msra.mxu0 %v3004
    %3018 = vmatprep.subr.bf16.mxu0 0
    %3019 = vmatpush1.bf16.msra.mxu0 %v3003
    %3020 = vmatprep.subr.bf16.mxu0 0
    %3021 = vmatpush1.bf16.msra.mxu0 %v3002
    %3022 = vmatprep.subr.bf16.mxu0 0
    %3023 = vmatpush1.bf16.msra.mxu0 %v3001
    %3024 = vmatprep.subr.bf16.mxu0 0
    %3025 = vmatpush1.bf16.msra.mxu0 %v3000
    %3026 = vmatprep.subr.bf16.mxu0 0
    %3027 = vmatpush1.bf16.msra.mxu0 %v2999
    %3028 = vmatprep.subr.bf16.mxu0 0
    %3029 = vmatpush1.bf16.msra.mxu0 %v2998
    %3030 = vmatprep.subr.bf16.mxu0 0
    %3031 = vmatpush2.bf16.msra.mxu0 0
    %3032 = vmatprep.subr.bf16.mxu0 0
    %3033 = vmatpush2.bf16.msra.mxu0 0
    %3034 = vmatprep.subr.bf16.mxu0 0
    %3035 = vmatpush2.bf16.msra.mxu0 0
    %3036 = vmatprep.subr.bf16.mxu0 0
    %3037 = vmatpush2.bf16.msra.mxu0 0
    %3038 = vmatprep.subr.bf16.mxu0 0
    %3039 = vmatpush2.bf16.msra.mxu0 0
    %3040 = vmatprep.subr.bf16.mxu0 0
    %3041 = vmatpush2.bf16.msra.mxu0 0
    %3042 = vmatprep.subr.bf16.mxu0 0
    %3043 = vmatpush2.bf16.msra.mxu0 0
    %3044 = vmatprep.subr.bf16.mxu0 0
    %3045 = vmatpush2.bf16.msra.mxu0 0
    %3046 = vmatprep.mubr.bf16.mxu0 0
    %3047 = vmatmul.mubr.bf16.gmra.mxu0 %v2948
    %v3048 = vpop.f32.mrf.mxu0
    %v3049 = vadd.f32 %v2965, %v3048
    %v3050 = vpop.f32.mrf.mxu0
    %v3051 = vpop.f32.mrf.mxu0
    %v3052 = vpop.f32.mrf.mxu0
    %3053 = vdwg.mxu0
    %vm3054 = vcmask 1040384
    %v3055 = vsel %vm3054, %v3049, -inf
    %3056 = vmax.xlane.f32.xlu0 %v3055
    %v3057 = vpop.xlane.xlu0 %3056
    %v3058 = vsub.f32 %v3049, %v3057
    %v3059 = vmul.f32 %v3058, 1.442695
    %v3060 = vpow.pop %v3059
    %v3061 = vsel %vm3054, %v3060, 0.0
    %3062 = vadd.xlane.f32.xlu0 %v3061
    %v3063 = vpop.xlane.xlu0 %3062
    %v3064 = vrcp.pop %v3063
    %v3065 = vmul.f32 %v3060, %v3064
    %v3066 = vsel %vm3054, %v3065, -inf
    %3067 = vmax.xlane.f32.xlu0 %v3066
    %v3068 = vpop.xlane.xlu0 %3067
    %v3069 = vlaneseq
    %v3070 = vand.u32 %v3069, 127
    %vm3071 = vcmp.ge.f32.partialorder %v3065, %v3068
    %v3072 = vsel %vm3071, %v3070, 128
    %v3073 = vsel %vm3054, %v3072, 2147483647
    %v3074 = vand.u32 %v3073, 65535
    %v3075 = vshra.s32 %v3073, 16
    %v3076 = vcvt.s32.f32 %v3074
    %v3077 = vcvt.s32.f32 %v3075
    %3078 = vmin.xlane.f32.xlu0 %v3077
    %v3079 = vpop.xlane.xlu0 %3078
    %vm3080 = vcmp.eq.f32.partialorder %v3077, %v3079
    %v3081 = vsel %vm3080, %v3076, inf
    %3082 = vmin.xlane.f32.xlu0 %v3081
    %v3083 = vpop.xlane.xlu0 %3082
    %v3084 = vcvt.f32.s32 %v3083
    %v3085 = vcvt.f32.s32 %v3079
    %v3086 = vshll.u32 %v3085, 16
    %v3087 = vadd.s32 %v3086, %v3084
    %v3088 = vld [vmem:[#allocation2 + $0x7] sm:$0xff]
    %v3089 = vld [vmem:[#allocation2 + $0xf] sm:$0xff]
    %v3090 = vld [vmem:[#allocation2 + $0x27] sm:$0xff]
    %v3091 = vld [vmem:[#allocation2 + $0x2f] sm:$0xff]
    %v3092 = vld [vmem:[#allocation2 + $0x47] sm:$0xff]
    %v3093 = vld [vmem:[#allocation2 + $0x4f] sm:$0xff]
    %v3094 = vld [vmem:[#allocation2 + $0x67] sm:$0xff]
    %v3095 = vld [vmem:[#allocation2 + $0x6f] sm:$0xff]
    %v3096 = vld [vmem:[#allocation2 + $0x87] sm:$0xff]
    %v3097 = vld [vmem:[#allocation2 + $0x8f] sm:$0xff]
    %v3098 = vld [vmem:[#allocation2 + $0xa7] sm:$0xff]
    %v3099 = vld [vmem:[#allocation2 + $0xaf] sm:$0xff]
    %v3100 = vld [vmem:[#allocation2 + $0xc7] sm:$0xff]
    %v3101 = vld [vmem:[#allocation2 + $0xcf] sm:$0xff]
    %v3102 = vld [vmem:[#allocation2 + $0xe7] sm:$0xff]
    %v3103 = vld [vmem:[#allocation2 + $0xef] sm:$0xff]
    %v3104 = vld [vmem:[#allocation2 + $0x107] sm:$0xff]
    %v3105 = vld [vmem:[#allocation2 + $0x10f] sm:$0xff]
    %v3106 = vld [vmem:[#allocation2 + $0x127] sm:$0xff]
    %v3107 = vld [vmem:[#allocation2 + $0x12f] sm:$0xff]
    %v3108 = vld [vmem:[#allocation2 + $0x147] sm:$0xff]
    %v3109 = vld [vmem:[#allocation2 + $0x14f] sm:$0xff]
    %v3110 = vld [vmem:[#allocation2 + $0x167] sm:$0xff]
    %v3111 = vld [vmem:[#allocation2 + $0x16f] sm:$0xff]
    %v3112 = vld [vmem:[#allocation2 + $0x187] sm:$0xff]
    %v3113 = vld [vmem:[#allocation2 + $0x18f] sm:$0xff]
    %v3114 = vld [vmem:[#allocation2 + $0x1a7] sm:$0xff]
    %v3115 = vld [vmem:[#allocation2 + $0x1af] sm:$0xff]
    %v3116 = vld [vmem:[#allocation2 + $0x1c7] sm:$0xff]
    %v3117 = vld [vmem:[#allocation2 + $0x1cf] sm:$0xff]
    %v3118 = vld [vmem:[#allocation2 + $0x1e7] sm:$0xff]
    %v3119 = vld [vmem:[#allocation2 + $0x1ef] sm:$0xff]
    %v3120 = vpack.c.bf16 %v3089, %v3088
    %v3121 = vpack.c.bf16 %v3091, %v3090
    %v3122 = vpack.c.bf16 %v3093, %v3092
    %v3123 = vpack.c.bf16 %v3095, %v3094
    %v3124 = vpack.c.bf16 %v3097, %v3096
    %v3125 = vpack.c.bf16 %v3099, %v3098
    %v3126 = vpack.c.bf16 %v3101, %v3100
    %v3127 = vpack.c.bf16 %v3103, %v3102
    %v3128 = vpack.c.bf16 %v3105, %v3104
    %v3129 = vpack.c.bf16 %v3107, %v3106
    %v3130 = vpack.c.bf16 %v3109, %v3108
    %v3131 = vpack.c.bf16 %v3111, %v3110
    %v3132 = vpack.c.bf16 %v3113, %v3112
    %v3133 = vpack.c.bf16 %v3115, %v3114
    %v3134 = vpack.c.bf16 %v3117, %v3116
    %v3135 = vpack.c.bf16 %v3119, %v3118
    %s3136 = scalar_lea.vmem %s1, 576
    %v3137 = vld [vmem:[%s3136] sm:$0xf]
    %v3138 = vld [vmem:[%s3136 + $0x4] sm:$0xf]
    %v3139 = vld [vmem:[%s3136 + $0x8] sm:$0xf]
    %v3140 = vld [vmem:[%s3136 + $0xc] sm:$0xf]
    %v3141 = vld [vmem:[%s3136 + $0x10] sm:$0xf]
    %v3142 = vld [vmem:[%s3136 + $0x14] sm:$0xf]
    %v3143 = vld [vmem:[%s3136 + $0x18] sm:$0xf]
    %v3144 = vld [vmem:[%s3136 + $0x1c] sm:$0xf]
    %v3145 = vld [vmem:[%s3136 + $0x20] sm:$0xf]
    %v3146 = vld [vmem:[%s3136 + $0x24] sm:$0xf]
    %v3147 = vld [vmem:[%s3136 + $0x28] sm:$0xf]
    %v3148 = vld [vmem:[%s3136 + $0x2c] sm:$0xf]
    %v3149 = vld [vmem:[%s3136 + $0x30] sm:$0xf]
    %v3150 = vld [vmem:[%s3136 + $0x34] sm:$0xf]
    %v3151 = vld [vmem:[%s3136 + $0x38] sm:$0xf]
    %v3152 = vld [vmem:[%s3136 + $0x3c] sm:$0xf]
    %v3153 = vld [vmem:[#allocation2 + $0x8] sm:$0xff]
    %v3154 = vld [vmem:[#allocation2 + $0x10] sm:$0xff]
    %v3155 = vld [vmem:[#allocation2 + $0x28] sm:$0xff]
    %v3156 = vld [vmem:[#allocation2 + $0x30] sm:$0xff]
    %v3157 = vld [vmem:[#allocation2 + $0x48] sm:$0xff]
    %v3158 = vld [vmem:[#allocation2 + $0x50] sm:$0xff]
    %v3159 = vld [vmem:[#allocation2 + $0x68] sm:$0xff]
    %v3160 = vld [vmem:[#allocation2 + $0x70] sm:$0xff]
    %v3161 = vld [vmem:[#allocation2 + $0x88] sm:$0xff]
    %v3162 = vld [vmem:[#allocation2 + $0x90] sm:$0xff]
    %v3163 = vld [vmem:[#allocation2 + $0xa8] sm:$0xff]
    %v3164 = vld [vmem:[#allocation2 + $0xb0] sm:$0xff]
    %v3165 = vld [vmem:[#allocation2 + $0xc8] sm:$0xff]
    %v3166 = vld [vmem:[#allocation2 + $0xd0] sm:$0xff]
    %v3167 = vld [vmem:[#allocation2 + $0xe8] sm:$0xff]
    %v3168 = vld [vmem:[#allocation2 + $0xf0] sm:$0xff]
    %v3169 = vld [vmem:[#allocation2 + $0x108] sm:$0xff]
    %v3170 = vld [vmem:[#allocation2 + $0x110] sm:$0xff]
    %v3171 = vld [vmem:[#allocation2 + $0x128] sm:$0xff]
    %v3172 = vld [vmem:[#allocation2 + $0x130] sm:$0xff]
    %v3173 = vld [vmem:[#allocation2 + $0x148] sm:$0xff]
    %v3174 = vld [vmem:[#allocation2 + $0x150] sm:$0xff]
    %v3175 = vld [vmem:[#allocation2 + $0x168] sm:$0xff]
    %v3176 = vld [vmem:[#allocation2 + $0x170] sm:$0xff]
    %v3177 = vld [vmem:[#allocation2 + $0x188] sm:$0xff]
    %v3178 = vld [vmem:[#allocation2 + $0x190] sm:$0xff]
    %v3179 = vld [vmem:[#allocation2 + $0x1a8] sm:$0xff]
    %v3180 = vld [vmem:[#allocation2 + $0x1b0] sm:$0xff]
    %v3181 = vld [vmem:[#allocation2 + $0x1c8] sm:$0xff]
    %v3182 = vld [vmem:[#allocation2 + $0x1d0] sm:$0xff]
    %v3183 = vld [vmem:[#allocation2 + $0x1e8] sm:$0xff]
    %v3184 = vld [vmem:[#allocation2 + $0x1f0] sm:$0xff]
    %v3185 = vpack.c.bf16 %v3154, %v3153
    %v3186 = vpack.c.bf16 %v3156, %v3155
    %v3187 = vpack.c.bf16 %v3158, %v3157
    %v3188 = vpack.c.bf16 %v3160, %v3159
    %v3189 = vpack.c.bf16 %v3162, %v3161
    %v3190 = vpack.c.bf16 %v3164, %v3163
    %v3191 = vpack.c.bf16 %v3166, %v3165
    %v3192 = vpack.c.bf16 %v3168, %v3167
    %v3193 = vpack.c.bf16 %v3170, %v3169
    %v3194 = vpack.c.bf16 %v3172, %v3171
    %v3195 = vpack.c.bf16 %v3174, %v3173
    %v3196 = vpack.c.bf16 %v3176, %v3175
    %v3197 = vpack.c.bf16 %v3178, %v3177
    %v3198 = vpack.c.bf16 %v3180, %v3179
    %v3199 = vpack.c.bf16 %v3182, %v3181
    %v3200 = vpack.c.bf16 %v3184, %v3183
    %s3201 = scalar_lea.vmem %s1, 640
    %v3202 = vld [vmem:[%s3201] sm:$0xf]
    %v3203 = vld [vmem:[%s3201 + $0x4] sm:$0xf]
    %v3204 = vld [vmem:[%s3201 + $0x8] sm:$0xf]
    %v3205 = vld [vmem:[%s3201 + $0xc] sm:$0xf]
    %v3206 = vld [vmem:[%s3201 + $0x10] sm:$0xf]
    %v3207 = vld [vmem:[%s3201 + $0x14] sm:$0xf]
    %v3208 = vld [vmem:[%s3201 + $0x18] sm:$0xf]
    %v3209 = vld [vmem:[%s3201 + $0x1c] sm:$0xf]
    %v3210 = vld [vmem:[%s3201 + $0x20] sm:$0xf]
    %v3211 = vld [vmem:[%s3201 + $0x24] sm:$0xf]
    %v3212 = vld [vmem:[%s3201 + $0x28] sm:$0xf]
    %v3213 = vld [vmem:[%s3201 + $0x2c] sm:$0xf]
    %v3214 = vld [vmem:[%s3201 + $0x30] sm:$0xf]
    %v3215 = vld [vmem:[%s3201 + $0x34] sm:$0xf]
    %v3216 = vld [vmem:[%s3201 + $0x38] sm:$0xf]
    %v3217 = vld [vmem:[%s3201 + $0x3c] sm:$0xf]
    %v3234 = vunpack.c.l.b16 %v3202
    %v3235 = vunpack.c.l.b16 %v3203
    %v3236 = vunpack.c.l.b16 %v3204
    %v3237 = vunpack.c.l.b16 %v3205
    %v3238 = vunpack.c.l.b16 %v3206
    %v3239 = vunpack.c.l.b16 %v3207
    %v3240 = vunpack.c.l.b16 %v3208
    %v3241 = vunpack.c.l.b16 %v3209
    %v3242 = vunpack.c.l.b16 %v3210
    %v3243 = vunpack.c.l.b16 %v3211
    %v3244 = vunpack.c.l.b16 %v3212
    %v3245 = vunpack.c.l.b16 %v3213
    %v3246 = vunpack.c.l.b16 %v3214
    %v3247 = vunpack.c.l.b16 %v3215
    %v3248 = vunpack.c.l.b16 %v3216
    %v3249 = vunpack.c.l.b16 %v3217
    %v3250 = vpack.c.b16 %v3235, %v3234
    %v3251 = vpack.c.b16 %v3237, %v3236
    %v3252 = vpack.c.b16 %v3239, %v3238
    %v3253 = vpack.c.b16 %v3241, %v3240
    %v3254 = vpack.c.b16 %v3243, %v3242
    %v3255 = vpack.c.b16 %v3245, %v3244
    %v3256 = vpack.c.b16 %v3247, %v3246
    %v3257 = vpack.c.b16 %v3249, %v3248
    %3266 = vmatprep.subr.bf16.mxu0 0
    %3267 = vmatpush1.bf16.msra.mxu0 %v3257
    %3268 = vmatprep.subr.bf16.mxu0 0
    %3269 = vmatpush1.bf16.msra.mxu0 %v3256
    %3270 = vmatprep.subr.bf16.mxu0 0
    %3271 = vmatpush1.bf16.msra.mxu0 %v3255
    %3272 = vmatprep.subr.bf16.mxu0 0
    %3273 = vmatpush1.bf16.msra.mxu0 %v3254
    %3274 = vmatprep.subr.bf16.mxu0 0
    %3275 = vmatpush1.bf16.msra.mxu0 %v3253
    %3276 = vmatprep.subr.bf16.mxu0 0
    %3277 = vmatpush1.bf16.msra.mxu0 %v3252
    %3278 = vmatprep.subr.bf16.mxu0 0
    %3279 = vmatpush1.bf16.msra.mxu0 %v3251
    %3280 = vmatprep.subr.bf16.mxu0 0
    %3281 = vmatpush1.bf16.msra.mxu0 %v3250
    %3282 = vmatprep.subr.bf16.mxu0 0
    %3283 = vmatpush2.bf16.msra.mxu0 0
    %3284 = vmatprep.subr.bf16.mxu0 0
    %3285 = vmatpush2.bf16.msra.mxu0 0
    %3286 = vmatprep.subr.bf16.mxu0 0
    %3287 = vmatpush2.bf16.msra.mxu0 0
    %3288 = vmatprep.subr.bf16.mxu0 0
    %3289 = vmatpush2.bf16.msra.mxu0 0
    %3290 = vmatprep.subr.bf16.mxu0 0
    %3291 = vmatpush2.bf16.msra.mxu0 0
    %3292 = vmatprep.subr.bf16.mxu0 0
    %3293 = vmatpush2.bf16.msra.mxu0 0
    %3294 = vmatprep.subr.bf16.mxu0 0
    %3295 = vmatpush2.bf16.msra.mxu0 0
    %3296 = vmatprep.subr.bf16.mxu0 0
    %3297 = vmatpush2.bf16.msra.mxu0 0
    %3298 = vmatprep.mubr.bf16.mxu0 0
    %3299 = vmatmul.mubr.bf16.gmra.mxu0 %v3185
    %v3300 = vpop.f32.mrf.mxu0
    %v3301 = vadd.f32 0.0, %v3300
    %v3302 = vpop.f32.mrf.mxu0
    %v3303 = vpop.f32.mrf.mxu0
    %v3304 = vadd.f32 0.0, %v3303
    %v3305 = vpop.f32.mrf.mxu0
    %3306 = vmatprep.mubr.bf16.mxu0 0
    %3307 = vmatmul.mubr.bf16.gmra.mxu0 %v3186
    %v3308 = vpop.f32.mrf.mxu0
    %v3309 = vadd.f32 0.0, %v3308
    %v3310 = vpop.f32.mrf.mxu0
    %v3311 = vpop.f32.mrf.mxu0
    %v3312 = vadd.f32 0.0, %v3311
    %v3313 = vpop.f32.mrf.mxu0
    %3314 = vmatprep.mubr.bf16.mxu0 0
    %3315 = vmatmul.mubr.bf16.gmra.mxu0 %v3187
    %v3316 = vpop.f32.mrf.mxu0
    %v3317 = vadd.f32 0.0, %v3316
    %v3318 = vpop.f32.mrf.mxu0
    %v3319 = vpop.f32.mrf.mxu0
    %v3320 = vadd.f32 0.0, %v3319
    %v3321 = vpop.f32.mrf.mxu0
    %3322 = vmatprep.mubr.bf16.mxu0 0
    %3323 = vmatmul.mubr.bf16.gmra.mxu0 %v3188
    %v3324 = vpop.f32.mrf.mxu0
    %v3325 = vadd.f32 0.0, %v3324
    %v3326 = vpop.f32.mrf.mxu0
    %v3327 = vpop.f32.mrf.mxu0
    %v3328 = vadd.f32 0.0, %v3327
    %v3329 = vpop.f32.mrf.mxu0
    %3330 = vmatprep.mubr.bf16.mxu0 0
    %3331 = vmatmul.mubr.bf16.gmra.mxu0 %v3189
    %v3332 = vpop.f32.mrf.mxu0
    %v3333 = vadd.f32 0.0, %v3332
    %v3334 = vpop.f32.mrf.mxu0
    %v3335 = vpop.f32.mrf.mxu0
    %v3336 = vadd.f32 0.0, %v3335
    %v3337 = vpop.f32.mrf.mxu0
    %3338 = vmatprep.mubr.bf16.mxu0 0
    %3339 = vmatmul.mubr.bf16.gmra.mxu0 %v3190
    %v3340 = vpop.f32.mrf.mxu0
    %v3341 = vadd.f32 0.0, %v3340
    %v3342 = vpop.f32.mrf.mxu0
    %v3343 = vpop.f32.mrf.mxu0
    %v3344 = vadd.f32 0.0, %v3343
    %v3345 = vpop.f32.mrf.mxu0
    %3346 = vmatprep.mubr.bf16.mxu0 0
    %3347 = vmatmul.mubr.bf16.gmra.mxu0 %v3191
    %v3348 = vpop.f32.mrf.mxu0
    %v3349 = vadd.f32 0.0, %v3348
    %v3350 = vpop.f32.mrf.mxu0
    %v3351 = vpop.f32.mrf.mxu0
    %v3352 = vadd.f32 0.0, %v3351
    %v3353 = vpop.f32.mrf.mxu0
    %3354 = vmatprep.mubr.bf16.mxu0 0
    %3355 = vmatmul.mubr.bf16.gmra.mxu0 %v3192
    %v3356 = vpop.f32.mrf.mxu0
    %v3357 = vadd.f32 0.0, %v3356
    %v3358 = vpop.f32.mrf.mxu0
    %v3359 = vpop.f32.mrf.mxu0
    %v3360 = vadd.f32 0.0, %v3359
    %v3361 = vpop.f32.mrf.mxu0
    %3362 = vmatprep.mubr.bf16.mxu0 0
    %3363 = vmatmul.mubr.bf16.gmra.mxu0 %v3193
    %v3364 = vpop.f32.mrf.mxu0
    %v3365 = vadd.f32 0.0, %v3364
    %v3366 = vpop.f32.mrf.mxu0
    %v3367 = vpop.f32.mrf.mxu0
    %v3368 = vadd.f32 0.0, %v3367
    %v3369 = vpop.f32.mrf.mxu0
    %3370 = vmatprep.mubr.bf16.mxu0 0
    %3371 = vmatmul.mubr.bf16.gmra.mxu0 %v3194
    %v3372 = vpop.f32.mrf.mxu0
    %v3373 = vadd.f32 0.0, %v3372
    %v3374 = vpop.f32.mrf.mxu0
    %v3375 = vpop.f32.mrf.mxu0
    %v3376 = vadd.f32 0.0, %v3375
    %v3377 = vpop.f32.mrf.mxu0
    %3378 = vmatprep.mubr.bf16.mxu0 0
    %3379 = vmatmul.mubr.bf16.gmra.mxu0 %v3195
    %v3380 = vpop.f32.mrf.mxu0
    %v3381 = vadd.f32 0.0, %v3380
    %v3382 = vpop.f32.mrf.mxu0
    %v3383 = vpop.f32.mrf.mxu0
    %v3384 = vadd.f32 0.0, %v3383
    %v3385 = vpop.f32.mrf.mxu0
    %3386 = vmatprep.mubr.bf16.mxu0 0
    %3387 = vmatmul.mubr.bf16.gmra.mxu0 %v3196
    %v3388 = vpop.f32.mrf.mxu0
    %v3389 = vadd.f32 0.0, %v3388
    %v3390 = vpop.f32.mrf.mxu0
    %v3391 = vpop.f32.mrf.mxu0
    %v3392 = vadd.f32 0.0, %v3391
    %v3393 = vpop.f32.mrf.mxu0
    %3394 = vmatprep.mubr.bf16.mxu0 0
    %3395 = vmatmul.mubr.bf16.gmra.mxu0 %v3197
    %v3396 = vpop.f32.mrf.mxu0
    %v3397 = vadd.f32 0.0, %v3396
    %v3398 = vpop.f32.mrf.mxu0
    %v3399 = vpop.f32.mrf.mxu0
    %v3400 = vadd.f32 0.0, %v3399
    %v3401 = vpop.f32.mrf.mxu0
    %3402 = vmatprep.mubr.bf16.mxu0 0
    %3403 = vmatmul.mubr.bf16.gmra.mxu0 %v3198
    %v3404 = vpop.f32.mrf.mxu0
    %v3405 = vadd.f32 0.0, %v3404
    %v3406 = vpop.f32.mrf.mxu0
    %v3407 = vpop.f32.mrf.mxu0
    %v3408 = vadd.f32 0.0, %v3407
    %v3409 = vpop.f32.mrf.mxu0
    %3410 = vmatprep.mubr.bf16.mxu0 0
    %3411 = vmatmul.mubr.bf16.gmra.mxu0 %v3199
    %v3412 = vpop.f32.mrf.mxu0
    %v3413 = vadd.f32 0.0, %v3412
    %v3414 = vpop.f32.mrf.mxu0
    %v3415 = vpop.f32.mrf.mxu0
    %v3416 = vadd.f32 0.0, %v3415
    %v3417 = vpop.f32.mrf.mxu0
    %3418 = vmatprep.mubr.bf16.mxu0 0
    %3419 = vmatmul.mubr.bf16.gmra.mxu0 %v3200
    %v3420 = vpop.f32.mrf.mxu0
    %v3421 = vadd.f32 0.0, %v3420
    %v3422 = vpop.f32.mrf.mxu0
    %v3423 = vpop.f32.mrf.mxu0
    %v3424 = vadd.f32 0.0, %v3423
    %v3425 = vpop.f32.mrf.mxu0
    %3426 = vdwg.mxu0
    %v3443 = vunpack.c.l.b16 %v3137
    %v3444 = vunpack.c.l.b16 %v3138
    %v3445 = vunpack.c.l.b16 %v3139
    %v3446 = vunpack.c.l.b16 %v3140
    %v3447 = vunpack.c.l.b16 %v3141
    %v3448 = vunpack.c.l.b16 %v3142
    %v3449 = vunpack.c.l.b16 %v3143
    %v3450 = vunpack.c.l.b16 %v3144
    %v3451 = vunpack.c.l.b16 %v3145
    %v3452 = vunpack.c.l.b16 %v3146
    %v3453 = vunpack.c.l.b16 %v3147
    %v3454 = vunpack.c.l.b16 %v3148
    %v3455 = vunpack.c.l.b16 %v3149
    %v3456 = vunpack.c.l.b16 %v3150
    %v3457 = vunpack.c.l.b16 %v3151
    %v3458 = vunpack.c.l.b16 %v3152
    %v3459 = vpack.c.b16 %v3444, %v3443
    %v3460 = vpack.c.b16 %v3446, %v3445
    %v3461 = vpack.c.b16 %v3448, %v3447
    %v3462 = vpack.c.b16 %v3450, %v3449
    %v3463 = vpack.c.b16 %v3452, %v3451
    %v3464 = vpack.c.b16 %v3454, %v3453
    %v3465 = vpack.c.b16 %v3456, %v3455
    %v3466 = vpack.c.b16 %v3458, %v3457
    %3475 = vmatprep.subr.bf16.mxu0 0
    %3476 = vmatpush1.bf16.msra.mxu0 %v3466
    %3477 = vmatprep.subr.bf16.mxu0 0
    %3478 = vmatpush1.bf16.msra.mxu0 %v3465
    %3479 = vmatprep.subr.bf16.mxu0 0
    %3480 = vmatpush1.bf16.msra.mxu0 %v3464
    %3481 = vmatprep.subr.bf16.mxu0 0
    %3482 = vmatpush1.bf16.msra.mxu0 %v3463
    %3483 = vmatprep.subr.bf16.mxu0 0
    %3484 = vmatpush1.bf16.msra.mxu0 %v3462
    %3485 = vmatprep.subr.bf16.mxu0 0
    %3486 = vmatpush1.bf16.msra.mxu0 %v3461
    %3487 = vmatprep.subr.bf16.mxu0 0
    %3488 = vmatpush1.bf16.msra.mxu0 %v3460
    %3489 = vmatprep.subr.bf16.mxu0 0
    %3490 = vmatpush1.bf16.msra.mxu0 %v3459
    %3491 = vmatprep.subr.bf16.mxu0 0
    %3492 = vmatpush2.bf16.msra.mxu0 0
    %3493 = vmatprep.subr.bf16.mxu0 0
    %3494 = vmatpush2.bf16.msra.mxu0 0
    %3495 = vmatprep.subr.bf16.mxu0 0
    %3496 = vmatpush2.bf16.msra.mxu0 0
    %3497 = vmatprep.subr.bf16.mxu0 0
    %3498 = vmatpush2.bf16.msra.mxu0 0
    %3499 = vmatprep.subr.bf16.mxu0 0
    %3500 = vmatpush2.bf16.msra.mxu0 0
    %3501 = vmatprep.subr.bf16.mxu0 0
    %3502 = vmatpush2.bf16.msra.mxu0 0
    %3503 = vmatprep.subr.bf16.mxu0 0
    %3504 = vmatpush2.bf16.msra.mxu0 0
    %3505 = vmatprep.subr.bf16.mxu0 0
    %3506 = vmatpush2.bf16.msra.mxu0 0
    %3507 = vmatprep.mubr.bf16.mxu0 0
    %3508 = vmatmul.mubr.bf16.gmra.mxu0 %v3120
    %v3509 = vpop.f32.mrf.mxu0
    %v3510 = vadd.f32 %v3301, %v3509
    %v3511 = vpop.f32.mrf.mxu0
    %v3512 = vpop.f32.mrf.mxu0
    %v3513 = vadd.f32 %v3304, %v3512
    %v3514 = vpop.f32.mrf.mxu0
    %3515 = vmatprep.mubr.bf16.mxu0 0
    %3516 = vmatmul.mubr.bf16.gmra.mxu0 %v3121
    %v3517 = vpop.f32.mrf.mxu0
    %v3518 = vadd.f32 %v3309, %v3517
    %v3519 = vpop.f32.mrf.mxu0
    %v3520 = vpop.f32.mrf.mxu0
    %v3521 = vadd.f32 %v3312, %v3520
    %v3522 = vpop.f32.mrf.mxu0
    %3523 = vmatprep.mubr.bf16.mxu0 0
    %3524 = vmatmul.mubr.bf16.gmra.mxu0 %v3122
    %v3525 = vpop.f32.mrf.mxu0
    %v3526 = vadd.f32 %v3317, %v3525
    %v3527 = vpop.f32.mrf.mxu0
    %v3528 = vpop.f32.mrf.mxu0
    %v3529 = vadd.f32 %v3320, %v3528
    %v3530 = vpop.f32.mrf.mxu0
    %3531 = vmatprep.mubr.bf16.mxu0 0
    %3532 = vmatmul.mubr.bf16.gmra.mxu0 %v3123
    %v3533 = vpop.f32.mrf.mxu0
    %v3534 = vadd.f32 %v3325, %v3533
    %v3535 = vpop.f32.mrf.mxu0
    %v3536 = vpop.f32.mrf.mxu0
    %v3537 = vadd.f32 %v3328, %v3536
    %v3538 = vpop.f32.mrf.mxu0
    %3539 = vmatprep.mubr.bf16.mxu0 0
    %3540 = vmatmul.mubr.bf16.gmra.mxu0 %v3124
    %v3541 = vpop.f32.mrf.mxu0
    %v3542 = vadd.f32 %v3333, %v3541
    %v3543 = vpop.f32.mrf.mxu0
    %v3544 = vpop.f32.mrf.mxu0
    %v3545 = vadd.f32 %v3336, %v3544
    %v3546 = vpop.f32.mrf.mxu0
    %3547 = vmatprep.mubr.bf16.mxu0 0
    %3548 = vmatmul.mubr.bf16.gmra.mxu0 %v3125
    %v3549 = vpop.f32.mrf.mxu0
    %v3550 = vadd.f32 %v3341, %v3549
    %v3551 = vpop.f32.mrf.mxu0
    %v3552 = vpop.f32.mrf.mxu0
    %v3553 = vadd.f32 %v3344, %v3552
    %v3554 = vpop.f32.mrf.mxu0
    %3555 = vmatprep.mubr.bf16.mxu0 0
    %3556 = vmatmul.mubr.bf16.gmra.mxu0 %v3126
    %v3557 = vpop.f32.mrf.mxu0
    %v3558 = vadd.f32 %v3349, %v3557
    %v3559 = vpop.f32.mrf.mxu0
    %v3560 = vpop.f32.mrf.mxu0
    %v3561 = vadd.f32 %v3352, %v3560
    %v3562 = vpop.f32.mrf.mxu0
    %3563 = vmatprep.mubr.bf16.mxu0 0
    %3564 = vmatmul.mubr.bf16.gmra.mxu0 %v3127
    %v3565 = vpop.f32.mrf.mxu0
    %v3566 = vadd.f32 %v3357, %v3565
    %v3567 = vpop.f32.mrf.mxu0
    %v3568 = vpop.f32.mrf.mxu0
    %v3569 = vadd.f32 %v3360, %v3568
    %v3570 = vpop.f32.mrf.mxu0
    %3571 = vmatprep.mubr.bf16.mxu0 0
    %3572 = vmatmul.mubr.bf16.gmra.mxu0 %v3128
    %v3573 = vpop.f32.mrf.mxu0
    %v3574 = vadd.f32 %v3365, %v3573
    %v3575 = vpop.f32.mrf.mxu0
    %v3576 = vpop.f32.mrf.mxu0
    %v3577 = vadd.f32 %v3368, %v3576
    %v3578 = vpop.f32.mrf.mxu0
    %3579 = vmatprep.mubr.bf16.mxu0 0
    %3580 = vmatmul.mubr.bf16.gmra.mxu0 %v3129
    %v3581 = vpop.f32.mrf.mxu0
    %v3582 = vadd.f32 %v3373, %v3581
    %v3583 = vpop.f32.mrf.mxu0
    %v3584 = vpop.f32.mrf.mxu0
    %v3585 = vadd.f32 %v3376, %v3584
    %v3586 = vpop.f32.mrf.mxu0
    %3587 = vmatprep.mubr.bf16.mxu0 0
    %3588 = vmatmul.mubr.bf16.gmra.mxu0 %v3130
    %v3589 = vpop.f32.mrf.mxu0
    %v3590 = vadd.f32 %v3381, %v3589
    %v3591 = vpop.f32.mrf.mxu0
    %v3592 = vpop.f32.mrf.mxu0
    %v3593 = vadd.f32 %v3384, %v3592
    %v3594 = vpop.f32.mrf.mxu0
    %3595 = vmatprep.mubr.bf16.mxu0 0
    %3596 = vmatmul.mubr.bf16.gmra.mxu0 %v3131
    %v3597 = vpop.f32.mrf.mxu0
    %v3598 = vadd.f32 %v3389, %v3597
    %v3599 = vpop.f32.mrf.mxu0
    %v3600 = vpop.f32.mrf.mxu0
    %v3601 = vadd.f32 %v3392, %v3600
    %v3602 = vpop.f32.mrf.mxu0
    %3603 = vmatprep.mubr.bf16.mxu0 0
    %3604 = vmatmul.mubr.bf16.gmra.mxu0 %v3132
    %v3605 = vpop.f32.mrf.mxu0
    %v3606 = vadd.f32 %v3397, %v3605
    %v3607 = vpop.f32.mrf.mxu0
    %v3608 = vpop.f32.mrf.mxu0
    %v3609 = vadd.f32 %v3400, %v3608
    %v3610 = vpop.f32.mrf.mxu0
    %3611 = vmatprep.mubr.bf16.mxu0 0
    %3612 = vmatmul.mubr.bf16.gmra.mxu0 %v3133
    %v3613 = vpop.f32.mrf.mxu0
    %v3614 = vadd.f32 %v3405, %v3613
    %v3615 = vpop.f32.mrf.mxu0
    %v3616 = vpop.f32.mrf.mxu0
    %v3617 = vadd.f32 %v3408, %v3616
    %v3618 = vpop.f32.mrf.mxu0
    %3619 = vmatprep.mubr.bf16.mxu0 0
    %3620 = vmatmul.mubr.bf16.gmra.mxu0 %v3134
    %v3621 = vpop.f32.mrf.mxu0
    %v3622 = vadd.f32 %v3413, %v3621
    %v3623 = vpop.f32.mrf.mxu0
    %v3624 = vpop.f32.mrf.mxu0
    %v3625 = vadd.f32 %v3416, %v3624
    %v3626 = vpop.f32.mrf.mxu0
    %3627 = vmatprep.mubr.bf16.mxu0 0
    %3628 = vmatmul.mubr.bf16.gmra.mxu0 %v3135
    %v3629 = vpop.f32.mrf.mxu0
    %v3630 = vadd.f32 %v3421, %v3629
    %v3631 = vpop.f32.mrf.mxu0
    %v3632 = vpop.f32.mrf.mxu0
    %v3633 = vadd.f32 %v3424, %v3632
    %v3634 = vpop.f32.mrf.mxu0
    %3635 = vdwg.mxu0
    %v3636 = vld [vmem:[#allocation2 + $0x9] sm:$0xff]
    %v3637 = vld [vmem:[#allocation2 + $0x11] sm:$0xff]
    %v3638 = vld [vmem:[#allocation2 + $0x29] sm:$0xff]
    %v3639 = vld [vmem:[#allocation2 + $0x31] sm:$0xff]
    %v3640 = vld [vmem:[#allocation2 + $0x49] sm:$0xff]
    %v3641 = vld [vmem:[#allocation2 + $0x51] sm:$0xff]
    %v3642 = vld [vmem:[#allocation2 + $0x69] sm:$0xff]
    %v3643 = vld [vmem:[#allocation2 + $0x71] sm:$0xff]
    %v3644 = vld [vmem:[#allocation2 + $0x89] sm:$0xff]
    %v3645 = vld [vmem:[#allocation2 + $0x91] sm:$0xff]
    %v3646 = vld [vmem:[#allocation2 + $0xa9] sm:$0xff]
    %v3647 = vld [vmem:[#allocation2 + $0xb1] sm:$0xff]
    %v3648 = vld [vmem:[#allocation2 + $0xc9] sm:$0xff]
    %v3649 = vld [vmem:[#allocation2 + $0xd1] sm:$0xff]
    %v3650 = vld [vmem:[#allocation2 + $0xe9] sm:$0xff]
    %v3651 = vld [vmem:[#allocation2 + $0xf1] sm:$0xff]
    %v3652 = vld [vmem:[#allocation2 + $0x109] sm:$0xff]
    %v3653 = vld [vmem:[#allocation2 + $0x111] sm:$0xff]
    %v3654 = vld [vmem:[#allocation2 + $0x129] sm:$0xff]
    %v3655 = vld [vmem:[#allocation2 + $0x131] sm:$0xff]
    %v3656 = vld [vmem:[#allocation2 + $0x149] sm:$0xff]
    %v3657 = vld [vmem:[#allocation2 + $0x151] sm:$0xff]
    %v3658 = vld [vmem:[#allocation2 + $0x169] sm:$0xff]
    %v3659 = vld [vmem:[#allocation2 + $0x171] sm:$0xff]
    %v3660 = vld [vmem:[#allocation2 + $0x189] sm:$0xff]
    %v3661 = vld [vmem:[#allocation2 + $0x191] sm:$0xff]
    %v3662 = vld [vmem:[#allocation2 + $0x1a9] sm:$0xff]
    %v3663 = vld [vmem:[#allocation2 + $0x1b1] sm:$0xff]
    %v3664 = vld [vmem:[#allocation2 + $0x1c9] sm:$0xff]
    %v3665 = vld [vmem:[#allocation2 + $0x1d1] sm:$0xff]
    %v3666 = vld [vmem:[#allocation2 + $0x1e9] sm:$0xff]
    %v3667 = vld [vmem:[#allocation2 + $0x1f1] sm:$0xff]
    %v3668 = vpack.c.bf16 %v3637, %v3636
    %v3669 = vpack.c.bf16 %v3639, %v3638
    %v3670 = vpack.c.bf16 %v3641, %v3640
    %v3671 = vpack.c.bf16 %v3643, %v3642
    %v3672 = vpack.c.bf16 %v3645, %v3644
    %v3673 = vpack.c.bf16 %v3647, %v3646
    %v3674 = vpack.c.bf16 %v3649, %v3648
    %v3675 = vpack.c.bf16 %v3651, %v3650
    %v3676 = vpack.c.bf16 %v3653, %v3652
    %v3677 = vpack.c.bf16 %v3655, %v3654
    %v3678 = vpack.c.bf16 %v3657, %v3656
    %v3679 = vpack.c.bf16 %v3659, %v3658
    %v3680 = vpack.c.bf16 %v3661, %v3660
    %v3681 = vpack.c.bf16 %v3663, %v3662
    %v3682 = vpack.c.bf16 %v3665, %v3664
    %v3683 = vpack.c.bf16 %v3667, %v3666
    %s3684 = scalar_lea.vmem %s1, 704
    %v3685 = vld [vmem:[%s3684] sm:$0xf]
    %v3686 = vld [vmem:[%s3684 + $0x4] sm:$0xf]
    %v3687 = vld [vmem:[%s3684 + $0x8] sm:$0xf]
    %v3688 = vld [vmem:[%s3684 + $0xc] sm:$0xf]
    %v3689 = vld [vmem:[%s3684 + $0x10] sm:$0xf]
    %v3690 = vld [vmem:[%s3684 + $0x14] sm:$0xf]
    %v3691 = vld [vmem:[%s3684 + $0x18] sm:$0xf]
    %v3692 = vld [vmem:[%s3684 + $0x1c] sm:$0xf]
    %v3693 = vld [vmem:[%s3684 + $0x20] sm:$0xf]
    %v3694 = vld [vmem:[%s3684 + $0x24] sm:$0xf]
    %v3695 = vld [vmem:[%s3684 + $0x28] sm:$0xf]
    %v3696 = vld [vmem:[%s3684 + $0x2c] sm:$0xf]
    %v3697 = vld [vmem:[%s3684 + $0x30] sm:$0xf]
    %v3698 = vld [vmem:[%s3684 + $0x34] sm:$0xf]
    %v3699 = vld [vmem:[%s3684 + $0x38] sm:$0xf]
    %v3700 = vld [vmem:[%s3684 + $0x3c] sm:$0xf]
    %v3717 = vunpack.c.l.b16 %v3685
    %v3718 = vunpack.c.l.b16 %v3686
    %v3719 = vunpack.c.l.b16 %v3687
    %v3720 = vunpack.c.l.b16 %v3688
    %v3721 = vunpack.c.l.b16 %v3689
    %v3722 = vunpack.c.l.b16 %v3690
    %v3723 = vunpack.c.l.b16 %v3691
    %v3724 = vunpack.c.l.b16 %v3692
    %v3725 = vunpack.c.l.b16 %v3693
    %v3726 = vunpack.c.l.b16 %v3694
    %v3727 = vunpack.c.l.b16 %v3695
    %v3728 = vunpack.c.l.b16 %v3696
    %v3729 = vunpack.c.l.b16 %v3697
    %v3730 = vunpack.c.l.b16 %v3698
    %v3731 = vunpack.c.l.b16 %v3699
    %v3732 = vunpack.c.l.b16 %v3700
    %v3733 = vpack.c.b16 %v3718, %v3717
    %v3734 = vpack.c.b16 %v3720, %v3719
    %v3735 = vpack.c.b16 %v3722, %v3721
    %v3736 = vpack.c.b16 %v3724, %v3723
    %v3737 = vpack.c.b16 %v3726, %v3725
    %v3738 = vpack.c.b16 %v3728, %v3727
    %v3739 = vpack.c.b16 %v3730, %v3729
    %v3740 = vpack.c.b16 %v3732, %v3731
    %3749 = vmatprep.subr.bf16.mxu0 0
    %3750 = vmatpush1.bf16.msra.mxu0 %v3740
    %3751 = vmatprep.subr.bf16.mxu0 0
    %3752 = vmatpush1.bf16.msra.mxu0 %v3739
    %3753 = vmatprep.subr.bf16.mxu0 0
    %3754 = vmatpush1.bf16.msra.mxu0 %v3738
    %3755 = vmatprep.subr.bf16.mxu0 0
    %3756 = vmatpush1.bf16.msra.mxu0 %v3737
    %3757 = vmatprep.subr.bf16.mxu0 0
    %3758 = vmatpush1.bf16.msra.mxu0 %v3736
    %3759 = vmatprep.subr.bf16.mxu0 0
    %3760 = vmatpush1.bf16.msra.mxu0 %v3735
    %3761 = vmatprep.subr.bf16.mxu0 0
    %3762 = vmatpush1.bf16.msra.mxu0 %v3734
    %3763 = vmatprep.subr.bf16.mxu0 0
    %3764 = vmatpush1.bf16.msra.mxu0 %v3733
    %3765 = vmatprep.subr.bf16.mxu0 0
    %3766 = vmatpush2.bf16.msra.mxu0 0
    %3767 = vmatprep.subr.bf16.mxu0 0
    %3768 = vmatpush2.bf16.msra.mxu0 0
    %3769 = vmatprep.subr.bf16.mxu0 0
    %3770 = vmatpush2.bf16.msra.mxu0 0
    %3771 = vmatprep.subr.bf16.mxu0 0
    %3772 = vmatpush2.bf16.msra.mxu0 0
    %3773 = vmatprep.subr.bf16.mxu0 0
    %3774 = vmatpush2.bf16.msra.mxu0 0
    %3775 = vmatprep.subr.bf16.mxu0 0
    %3776 = vmatpush2.bf16.msra.mxu0 0
    %3777 = vmatprep.subr.bf16.mxu0 0
    %3778 = vmatpush2.bf16.msra.mxu0 0
    %3779 = vmatprep.subr.bf16.mxu0 0
    %3780 = vmatpush2.bf16.msra.mxu0 0
    %3781 = vmatprep.mubr.bf16.mxu0 0
    %3782 = vmatmul.mubr.bf16.gmra.mxu0 %v3668
    %v3783 = vpop.f32.mrf.mxu0
    %v3784 = vadd.f32 0.0, %v3783
    %v3785 = vpop.f32.mrf.mxu0
    %v3786 = vpop.f32.mrf.mxu0
    %v3787 = vadd.f32 0.0, %v3786
    %v3788 = vpop.f32.mrf.mxu0
    %3789 = vmatprep.mubr.bf16.mxu0 0
    %3790 = vmatmul.mubr.bf16.gmra.mxu0 %v3669
    %v3791 = vpop.f32.mrf.mxu0
    %v3792 = vadd.f32 0.0, %v3791
    %v3793 = vpop.f32.mrf.mxu0
    %v3794 = vpop.f32.mrf.mxu0
    %v3795 = vadd.f32 0.0, %v3794
    %v3796 = vpop.f32.mrf.mxu0
    %3797 = vmatprep.mubr.bf16.mxu0 0
    %3798 = vmatmul.mubr.bf16.gmra.mxu0 %v3670
    %v3799 = vpop.f32.mrf.mxu0
    %v3800 = vadd.f32 0.0, %v3799
    %v3801 = vpop.f32.mrf.mxu0
    %v3802 = vpop.f32.mrf.mxu0
    %v3803 = vadd.f32 0.0, %v3802
    %v3804 = vpop.f32.mrf.mxu0
    %3805 = vmatprep.mubr.bf16.mxu0 0
    %3806 = vmatmul.mubr.bf16.gmra.mxu0 %v3671
    %v3807 = vpop.f32.mrf.mxu0
    %v3808 = vadd.f32 0.0, %v3807
    %v3809 = vpop.f32.mrf.mxu0
    %v3810 = vpop.f32.mrf.mxu0
    %v3811 = vadd.f32 0.0, %v3810
    %v3812 = vpop.f32.mrf.mxu0
    %3813 = vmatprep.mubr.bf16.mxu0 0
    %3814 = vmatmul.mubr.bf16.gmra.mxu0 %v3672
    %v3815 = vpop.f32.mrf.mxu0
    %v3816 = vadd.f32 0.0, %v3815
    %v3817 = vpop.f32.mrf.mxu0
    %v3818 = vpop.f32.mrf.mxu0
    %v3819 = vadd.f32 0.0, %v3818
    %v3820 = vpop.f32.mrf.mxu0
    %3821 = vmatprep.mubr.bf16.mxu0 0
    %3822 = vmatmul.mubr.bf16.gmra.mxu0 %v3673
    %v3823 = vpop.f32.mrf.mxu0
    %v3824 = vadd.f32 0.0, %v3823
    %v3825 = vpop.f32.mrf.mxu0
    %v3826 = vpop.f32.mrf.mxu0
    %v3827 = vadd.f32 0.0, %v3826
    %v3828 = vpop.f32.mrf.mxu0
    %3829 = vmatprep.mubr.bf16.mxu0 0
    %3830 = vmatmul.mubr.bf16.gmra.mxu0 %v3674
    %v3831 = vpop.f32.mrf.mxu0
    %v3832 = vadd.f32 0.0, %v3831
    %v3833 = vpop.f32.mrf.mxu0
    %v3834 = vpop.f32.mrf.mxu0
    %v3835 = vadd.f32 0.0, %v3834
    %v3836 = vpop.f32.mrf.mxu0
    %3837 = vmatprep.mubr.bf16.mxu0 0
    %3838 = vmatmul.mubr.bf16.gmra.mxu0 %v3675
    %v3839 = vpop.f32.mrf.mxu0
    %v3840 = vadd.f32 0.0, %v3839
    %v3841 = vpop.f32.mrf.mxu0
    %v3842 = vpop.f32.mrf.mxu0
    %v3843 = vadd.f32 0.0, %v3842
    %v3844 = vpop.f32.mrf.mxu0
    %3845 = vmatprep.mubr.bf16.mxu0 0
    %3846 = vmatmul.mubr.bf16.gmra.mxu0 %v3676
    %v3847 = vpop.f32.mrf.mxu0
    %v3848 = vadd.f32 0.0, %v3847
    %v3849 = vpop.f32.mrf.mxu0
    %v3850 = vpop.f32.mrf.mxu0
    %v3851 = vadd.f32 0.0, %v3850
    %v3852 = vpop.f32.mrf.mxu0
    %3853 = vmatprep.mubr.bf16.mxu0 0
    %3854 = vmatmul.mubr.bf16.gmra.mxu0 %v3677
    %v3855 = vpop.f32.mrf.mxu0
    %v3856 = vadd.f32 0.0, %v3855
    %v3857 = vpop.f32.mrf.mxu0
    %v3858 = vpop.f32.mrf.mxu0
    %v3859 = vadd.f32 0.0, %v3858
    %v3860 = vpop.f32.mrf.mxu0
    %3861 = vmatprep.mubr.bf16.mxu0 0
    %3862 = vmatmul.mubr.bf16.gmra.mxu0 %v3678
    %v3863 = vpop.f32.mrf.mxu0
    %v3864 = vadd.f32 0.0, %v3863
    %v3865 = vpop.f32.mrf.mxu0
    %v3866 = vpop.f32.mrf.mxu0
    %v3867 = vadd.f32 0.0, %v3866
    %v3868 = vpop.f32.mrf.mxu0
    %3869 = vmatprep.mubr.bf16.mxu0 0
    %3870 = vmatmul.mubr.bf16.gmra.mxu0 %v3679
    %v3871 = vpop.f32.mrf.mxu0
    %v3872 = vadd.f32 0.0, %v3871
    %v3873 = vpop.f32.mrf.mxu0
    %v3874 = vpop.f32.mrf.mxu0
    %v3875 = vadd.f32 0.0, %v3874
    %v3876 = vpop.f32.mrf.mxu0
    %3877 = vmatprep.mubr.bf16.mxu0 0
    %3878 = vmatmul.mubr.bf16.gmra.mxu0 %v3680
    %v3879 = vpop.f32.mrf.mxu0
    %v3880 = vadd.f32 0.0, %v3879
    %v3881 = vpop.f32.mrf.mxu0
    %v3882 = vpop.f32.mrf.mxu0
    %v3883 = vadd.f32 0.0, %v3882
    %v3884 = vpop.f32.mrf.mxu0
    %3885 = vmatprep.mubr.bf16.mxu0 0
    %3886 = vmatmul.mubr.bf16.gmra.mxu0 %v3681
    %v3887 = vpop.f32.mrf.mxu0
    %v3888 = vadd.f32 0.0, %v3887
    %v3889 = vpop.f32.mrf.mxu0
    %v3890 = vpop.f32.mrf.mxu0
    %v3891 = vadd.f32 0.0, %v3890
    %v3892 = vpop.f32.mrf.mxu0
    %3893 = vmatprep.mubr.bf16.mxu0 0
    %3894 = vmatmul.mubr.bf16.gmra.mxu0 %v3682
    %v3895 = vpop.f32.mrf.mxu0
    %v3896 = vadd.f32 0.0, %v3895
    %v3897 = vpop.f32.mrf.mxu0
    %v3898 = vpop.f32.mrf.mxu0
    %v3899 = vadd.f32 0.0, %v3898
    %v3900 = vpop.f32.mrf.mxu0
    %3901 = vmatprep.mubr.bf16.mxu0 0
    %3902 = vmatmul.mubr.bf16.gmra.mxu0 %v3683
    %v3903 = vpop.f32.mrf.mxu0
    %v3904 = vadd.f32 0.0, %v3903
    %v3905 = vpop.f32.mrf.mxu0
    %v3906 = vpop.f32.mrf.mxu0
    %v3907 = vadd.f32 0.0, %v3906
    %v3908 = vpop.f32.mrf.mxu0
    %3909 = vdwg.mxu0
    %v3910 = vadd.f32 %v3510, %v3784
    %v3911 = vadd.f32 %v3513, %v3787
    %v3912 = vadd.f32 %v3518, %v3792
    %v3913 = vadd.f32 %v3521, %v3795
    %v3914 = vadd.f32 %v3526, %v3800
    %v3915 = vadd.f32 %v3529, %v3803
    %v3916 = vadd.f32 %v3534, %v3808
    %v3917 = vadd.f32 %v3537, %v3811
    %v3918 = vadd.f32 %v3542, %v3816
    %v3919 = vadd.f32 %v3545, %v3819
    %v3920 = vadd.f32 %v3550, %v3824
    %v3921 = vadd.f32 %v3553, %v3827
    %v3922 = vadd.f32 %v3558, %v3832
    %v3923 = vadd.f32 %v3561, %v3835
    %v3924 = vadd.f32 %v3566, %v3840
    %v3925 = vadd.f32 %v3569, %v3843
    %v3926 = vadd.f32 %v3574, %v3848
    %v3927 = vadd.f32 %v3577, %v3851
    %v3928 = vadd.f32 %v3582, %v3856
    %v3929 = vadd.f32 %v3585, %v3859
    %v3930 = vadd.f32 %v3590, %v3864
    %v3931 = vadd.f32 %v3593, %v3867
    %v3932 = vadd.f32 %v3598, %v3872
    %v3933 = vadd.f32 %v3601, %v3875
    %v3934 = vadd.f32 %v3606, %v3880
    %v3935 = vadd.f32 %v3609, %v3883
    %v3936 = vadd.f32 %v3614, %v3888
    %v3937 = vadd.f32 %v3617, %v3891
    %v3938 = vadd.f32 %v3622, %v3896
    %v3939 = vadd.f32 %v3625, %v3899
    %v3940 = vadd.f32 %v3630, %v3904
    %v3941 = vadd.f32 %v3633, %v3907
    %v3942 = vld [vmem:[%s2876 + $0x7] sm:$0xff]
    %v3943 = vld [vmem:[%s2876 + $0xf] sm:$0xff]
    %v3944 = vld [vmem:[%s2876 + $0x27] sm:$0xff]
    %v3945 = vld [vmem:[%s2876 + $0x2f] sm:$0xff]
    %v3946 = vld [vmem:[%s2876 + $0x47] sm:$0xff]
    %v3947 = vld [vmem:[%s2876 + $0x4f] sm:$0xff]
    %v3948 = vld [vmem:[%s2876 + $0x67] sm:$0xff]
    %v3949 = vld [vmem:[%s2876 + $0x6f] sm:$0xff]
    %v3950 = vld [vmem:[%s2876 + $0x87] sm:$0xff]
    %v3951 = vld [vmem:[%s2876 + $0x8f] sm:$0xff]
    %v3952 = vld [vmem:[%s2876 + $0xa7] sm:$0xff]
    %v3953 = vld [vmem:[%s2876 + $0xaf] sm:$0xff]
    %v3954 = vld [vmem:[%s2876 + $0xc7] sm:$0xff]
    %v3955 = vld [vmem:[%s2876 + $0xcf] sm:$0xff]
    %v3956 = vld [vmem:[%s2876 + $0xe7] sm:$0xff]
    %v3957 = vld [vmem:[%s2876 + $0xef] sm:$0xff]
    %v3958 = vld [vmem:[%s2876 + $0x107] sm:$0xff]
    %v3959 = vld [vmem:[%s2876 + $0x10f] sm:$0xff]
    %v3960 = vld [vmem:[%s2876 + $0x127] sm:$0xff]
    %v3961 = vld [vmem:[%s2876 + $0x12f] sm:$0xff]
    %v3962 = vld [vmem:[%s2876 + $0x147] sm:$0xff]
    %v3963 = vld [vmem:[%s2876 + $0x14f] sm:$0xff]
    %v3964 = vld [vmem:[%s2876 + $0x167] sm:$0xff]
    %v3965 = vld [vmem:[%s2876 + $0x16f] sm:$0xff]
    %v3966 = vld [vmem:[%s2876 + $0x187] sm:$0xff]
    %v3967 = vld [vmem:[%s2876 + $0x18f] sm:$0xff]
    %v3968 = vld [vmem:[%s2876 + $0x1a7] sm:$0xff]
    %v3969 = vld [vmem:[%s2876 + $0x1af] sm:$0xff]
    %v3970 = vld [vmem:[%s2876 + $0x1c7] sm:$0xff]
    %v3971 = vld [vmem:[%s2876 + $0x1cf] sm:$0xff]
    %v3972 = vld [vmem:[%s2876 + $0x1e7] sm:$0xff]
    %v3973 = vld [vmem:[%s2876 + $0x1ef] sm:$0xff]
    %v3974 = vpack.c.bf16 %v3943, %v3942
    %v3975 = vpack.c.bf16 %v3945, %v3944
    %v3976 = vpack.c.bf16 %v3947, %v3946
    %v3977 = vpack.c.bf16 %v3949, %v3948
    %v3978 = vpack.c.bf16 %v3951, %v3950
    %v3979 = vpack.c.bf16 %v3953, %v3952
    %v3980 = vpack.c.bf16 %v3955, %v3954
    %v3981 = vpack.c.bf16 %v3957, %v3956
    %v3982 = vpack.c.bf16 %v3959, %v3958
    %v3983 = vpack.c.bf16 %v3961, %v3960
    %v3984 = vpack.c.bf16 %v3963, %v3962
    %v3985 = vpack.c.bf16 %v3965, %v3964
    %v3986 = vpack.c.bf16 %v3967, %v3966
    %v3987 = vpack.c.bf16 %v3969, %v3968
    %v3988 = vpack.c.bf16 %v3971, %v3970
    %v3989 = vpack.c.bf16 %v3973, %v3972
    %s3990 = scalar_lea.vmem %s1, 768
    %v3991 = vld [vmem:[%s3990] sm:$0xf]
    %v3992 = vld [vmem:[%s3990 + $0x4] sm:$0xf]
    %v3993 = vld [vmem:[%s3990 + $0x8] sm:$0xf]
    %v3994 = vld [vmem:[%s3990 + $0xc] sm:$0xf]
    %v3995 = vld [vmem:[%s3990 + $0x10] sm:$0xf]
    %v3996 = vld [vmem:[%s3990 + $0x14] sm:$0xf]
    %v3997 = vld [vmem:[%s3990 + $0x18] sm:$0xf]
    %v3998 = vld [vmem:[%s3990 + $0x1c] sm:$0xf]
    %v3999 = vld [vmem:[%s3990 + $0x20] sm:$0xf]
    %v4000 = vld [vmem:[%s3990 + $0x24] sm:$0xf]
    %v4001 = vld [vmem:[%s3990 + $0x28] sm:$0xf]
    %v4002 = vld [vmem:[%s3990 + $0x2c] sm:$0xf]
    %v4003 = vld [vmem:[%s3990 + $0x30] sm:$0xf]
    %v4004 = vld [vmem:[%s3990 + $0x34] sm:$0xf]
    %v4005 = vld [vmem:[%s3990 + $0x38] sm:$0xf]
    %v4006 = vld [vmem:[%s3990 + $0x3c] sm:$0xf]
    %v4023 = vunpack.c.l.b16 %v3991
    %v4024 = vunpack.c.l.b16 %v3992
    %v4025 = vunpack.c.l.b16 %v3993
    %v4026 = vunpack.c.l.b16 %v3994
    %v4027 = vunpack.c.l.b16 %v3995
    %v4028 = vunpack.c.l.b16 %v3996
    %v4029 = vunpack.c.l.b16 %v3997
    %v4030 = vunpack.c.l.b16 %v3998
    %v4031 = vunpack.c.l.b16 %v3999
    %v4032 = vunpack.c.l.b16 %v4000
    %v4033 = vunpack.c.l.b16 %v4001
    %v4034 = vunpack.c.l.b16 %v4002
    %v4035 = vunpack.c.l.b16 %v4003
    %v4036 = vunpack.c.l.b16 %v4004
    %v4037 = vunpack.c.l.b16 %v4005
    %v4038 = vunpack.c.l.b16 %v4006
    %v4039 = vpack.c.b16 %v4024, %v4023
    %v4040 = vpack.c.b16 %v4026, %v4025
    %v4041 = vpack.c.b16 %v4028, %v4027
    %v4042 = vpack.c.b16 %v4030, %v4029
    %v4043 = vpack.c.b16 %v4032, %v4031
    %v4044 = vpack.c.b16 %v4034, %v4033
    %v4045 = vpack.c.b16 %v4036, %v4035
    %v4046 = vpack.c.b16 %v4038, %v4037
    %4055 = vmatprep.subr.bf16.mxu0 0
    %4056 = vmatpush1.bf16.msra.mxu0 %v4046
    %4057 = vmatprep.subr.bf16.mxu0 0
    %4058 = vmatpush1.bf16.msra.mxu0 %v4045
    %4059 = vmatprep.subr.bf16.mxu0 0
    %4060 = vmatpush1.bf16.msra.mxu0 %v4044
    %4061 = vmatprep.subr.bf16.mxu0 0
    %4062 = vmatpush1.bf16.msra.mxu0 %v4043
    %4063 = vmatprep.subr.bf16.mxu0 0
    %4064 = vmatpush1.bf16.msra.mxu0 %v4042
    %4065 = vmatprep.subr.bf16.mxu0 0
    %4066 = vmatpush1.bf16.msra.mxu0 %v4041
    %4067 = vmatprep.subr.bf16.mxu0 0
    %4068 = vmatpush1.bf16.msra.mxu0 %v4040
    %4069 = vmatprep.subr.bf16.mxu0 0
    %4070 = vmatpush1.bf16.msra.mxu0 %v4039
    %4071 = vmatprep.subr.bf16.mxu0 0
    %4072 = vmatpush2.bf16.msra.mxu0 0
    %4073 = vmatprep.subr.bf16.mxu0 0
    %4074 = vmatpush2.bf16.msra.mxu0 0
    %4075 = vmatprep.subr.bf16.mxu0 0
    %4076 = vmatpush2.bf16.msra.mxu0 0
    %4077 = vmatprep.subr.bf16.mxu0 0
    %4078 = vmatpush2.bf16.msra.mxu0 0
    %4079 = vmatprep.subr.bf16.mxu0 0
    %4080 = vmatpush2.bf16.msra.mxu0 0
    %4081 = vmatprep.subr.bf16.mxu0 0
    %4082 = vmatpush2.bf16.msra.mxu0 0
    %4083 = vmatprep.subr.bf16.mxu0 0
    %4084 = vmatpush2.bf16.msra.mxu0 0
    %4085 = vmatprep.subr.bf16.mxu0 0
    %4086 = vmatpush2.bf16.msra.mxu0 0
    %4087 = vmatprep.mubr.bf16.mxu0 0
    %4088 = vmatmul.mubr.bf16.gmra.mxu0 %v3974
    %v4089 = vpop.f32.mrf.mxu0
    %v4090 = vadd.f32 0.0, %v4089
    %v4091 = vpop.f32.mrf.mxu0
    %v4092 = vpop.f32.mrf.mxu0
    %v4093 = vadd.f32 0.0, %v4092
    %v4094 = vpop.f32.mrf.mxu0
    %4095 = vmatprep.mubr.bf16.mxu0 0
    %4096 = vmatmul.mubr.bf16.gmra.mxu0 %v3975
    %v4097 = vpop.f32.mrf.mxu0
    %v4098 = vadd.f32 0.0, %v4097
    %v4099 = vpop.f32.mrf.mxu0
    %v4100 = vpop.f32.mrf.mxu0
    %v4101 = vadd.f32 0.0, %v4100
    %v4102 = vpop.f32.mrf.mxu0
    %4103 = vmatprep.mubr.bf16.mxu0 0
    %4104 = vmatmul.mubr.bf16.gmra.mxu0 %v3976
    %v4105 = vpop.f32.mrf.mxu0
    %v4106 = vadd.f32 0.0, %v4105
    %v4107 = vpop.f32.mrf.mxu0
    %v4108 = vpop.f32.mrf.mxu0
    %v4109 = vadd.f32 0.0, %v4108
    %v4110 = vpop.f32.mrf.mxu0
    %4111 = vmatprep.mubr.bf16.mxu0 0
    %4112 = vmatmul.mubr.bf16.gmra.mxu0 %v3977
    %v4113 = vpop.f32.mrf.mxu0
    %v4114 = vadd.f32 0.0, %v4113
    %v4115 = vpop.f32.mrf.mxu0
    %v4116 = vpop.f32.mrf.mxu0
    %v4117 = vadd.f32 0.0, %v4116
    %v4118 = vpop.f32.mrf.mxu0
    %4119 = vmatprep.mubr.bf16.mxu0 0
    %4120 = vmatmul.mubr.bf16.gmra.mxu0 %v3978
    %v4121 = vpop.f32.mrf.mxu0
    %v4122 = vadd.f32 0.0, %v4121
    %v4123 = vpop.f32.mrf.mxu0
    %v4124 = vpop.f32.mrf.mxu0
    %v4125 = vadd.f32 0.0, %v4124
    %v4126 = vpop.f32.mrf.mxu0
    %4127 = vmatprep.mubr.bf16.mxu0 0
    %4128 = vmatmul.mubr.bf16.gmra.mxu0 %v3979
    %v4129 = vpop.f32.mrf.mxu0
    %v4130 = vadd.f32 0.0, %v4129
    %v4131 = vpop.f32.mrf.mxu0
    %v4132 = vpop.f32.mrf.mxu0
    %v4133 = vadd.f32 0.0, %v4132
    %v4134 = vpop.f32.mrf.mxu0
    %4135 = vmatprep.mubr.bf16.mxu0 0
    %4136 = vmatmul.mubr.bf16.gmra.mxu0 %v3980
    %v4137 = vpop.f32.mrf.mxu0
    %v4138 = vadd.f32 0.0, %v4137
    %v4139 = vpop.f32.mrf.mxu0
    %v4140 = vpop.f32.mrf.mxu0
    %v4141 = vadd.f32 0.0, %v4140
    %v4142 = vpop.f32.mrf.mxu0
    %4143 = vmatprep.mubr.bf16.mxu0 0
    %4144 = vmatmul.mubr.bf16.gmra.mxu0 %v3981
    %v4145 = vpop.f32.mrf.mxu0
    %v4146 = vadd.f32 0.0, %v4145
    %v4147 = vpop.f32.mrf.mxu0
    %v4148 = vpop.f32.mrf.mxu0
    %v4149 = vadd.f32 0.0, %v4148
    %v4150 = vpop.f32.mrf.mxu0
    %4151 = vmatprep.mubr.bf16.mxu0 0
    %4152 = vmatmul.mubr.bf16.gmra.mxu0 %v3982
    %v4153 = vpop.f32.mrf.mxu0
    %v4154 = vadd.f32 0.0, %v4153
    %v4155 = vpop.f32.mrf.mxu0
    %v4156 = vpop.f32.mrf.mxu0
    %v4157 = vadd.f32 0.0, %v4156
    %v4158 = vpop.f32.mrf.mxu0
    %4159 = vmatprep.mubr.bf16.mxu0 0
    %4160 = vmatmul.mubr.bf16.gmra.mxu0 %v3983
    %v4161 = vpop.f32.mrf.mxu0
    %v4162 = vadd.f32 0.0, %v4161
    %v4163 = vpop.f32.mrf.mxu0
    %v4164 = vpop.f32.mrf.mxu0
    %v4165 = vadd.f32 0.0, %v4164
    %v4166 = vpop.f32.mrf.mxu0
    %4167 = vmatprep.mubr.bf16.mxu0 0
    %4168 = vmatmul.mubr.bf16.gmra.mxu0 %v3984
    %v4169 = vpop.f32.mrf.mxu0
    %v4170 = vadd.f32 0.0, %v4169
    %v4171 = vpop.f32.mrf.mxu0
    %v4172 = vpop.f32.mrf.mxu0
    %v4173 = vadd.f32 0.0, %v4172
    %v4174 = vpop.f32.mrf.mxu0
    %4175 = vmatprep.mubr.bf16.mxu0 0
    %4176 = vmatmul.mubr.bf16.gmra.mxu0 %v3985
    %v4177 = vpop.f32.mrf.mxu0
    %v4178 = vadd.f32 0.0, %v4177
    %v4179 = vpop.f32.mrf.mxu0
    %v4180 = vpop.f32.mrf.mxu0
    %v4181 = vadd.f32 0.0, %v4180
    %v4182 = vpop.f32.mrf.mxu0
    %4183 = vmatprep.mubr.bf16.mxu0 0
    %4184 = vmatmul.mubr.bf16.gmra.mxu0 %v3986
    %v4185 = vpop.f32.mrf.mxu0
    %v4186 = vadd.f32 0.0, %v4185
    %v4187 = vpop.f32.mrf.mxu0
    %v4188 = vpop.f32.mrf.mxu0
    %v4189 = vadd.f32 0.0, %v4188
    %v4190 = vpop.f32.mrf.mxu0
    %4191 = vmatprep.mubr.bf16.mxu0 0
    %4192 = vmatmul.mubr.bf16.gmra.mxu0 %v3987
    %v4193 = vpop.f32.mrf.mxu0
    %v4194 = vadd.f32 0.0, %v4193
    %v4195 = vpop.f32.mrf.mxu0
    %v4196 = vpop.f32.mrf.mxu0
    %v4197 = vadd.f32 0.0, %v4196
    %v4198 = vpop.f32.mrf.mxu0
    %4199 = vmatprep.mubr.bf16.mxu0 0
    %4200 = vmatmul.mubr.bf16.gmra.mxu0 %v3988
    %v4201 = vpop.f32.mrf.mxu0
    %v4202 = vadd.f32 0.0, %v4201
    %v4203 = vpop.f32.mrf.mxu0
    %v4204 = vpop.f32.mrf.mxu0
    %v4205 = vadd.f32 0.0, %v4204
    %v4206 = vpop.f32.mrf.mxu0
    %4207 = vmatprep.mubr.bf16.mxu0 0
    %4208 = vmatmul.mubr.bf16.gmra.mxu0 %v3989
    %v4209 = vpop.f32.mrf.mxu0
    %v4210 = vadd.f32 0.0, %v4209
    %v4211 = vpop.f32.mrf.mxu0
    %v4212 = vpop.f32.mrf.mxu0
    %v4213 = vadd.f32 0.0, %v4212
    %v4214 = vpop.f32.mrf.mxu0
    %4215 = vdwg.mxu0
    %v4216 = vadd.f32 %v3910, %v4090
    %v4217 = vadd.f32 %v3911, %v4093
    %v4218 = vadd.f32 %v3912, %v4098
    %v4219 = vadd.f32 %v3913, %v4101
    %v4220 = vadd.f32 %v3914, %v4106
    %v4221 = vadd.f32 %v3915, %v4109
    %v4222 = vadd.f32 %v3916, %v4114
    %v4223 = vadd.f32 %v3917, %v4117
    %v4224 = vadd.f32 %v3918, %v4122
    %v4225 = vadd.f32 %v3919, %v4125
    %v4226 = vadd.f32 %v3920, %v4130
    %v4227 = vadd.f32 %v3921, %v4133
    %v4228 = vadd.f32 %v3922, %v4138
    %v4229 = vadd.f32 %v3923, %v4141
    %v4230 = vadd.f32 %v3924, %v4146
    %v4231 = vadd.f32 %v3925, %v4149
    %v4232 = vadd.f32 %v3926, %v4154
    %v4233 = vadd.f32 %v3927, %v4157
    %v4234 = vadd.f32 %v3928, %v4162
    %v4235 = vadd.f32 %v3929, %v4165
    %v4236 = vadd.f32 %v3930, %v4170
    %v4237 = vadd.f32 %v3931, %v4173
    %v4238 = vadd.f32 %v3932, %v4178
    %v4239 = vadd.f32 %v3933, %v4181
    %v4240 = vadd.f32 %v3934, %v4186
    %v4241 = vadd.f32 %v3935, %v4189
    %v4242 = vadd.f32 %v3936, %v4194
    %v4243 = vadd.f32 %v3937, %v4197
    %v4244 = vadd.f32 %v3938, %v4202
    %v4245 = vadd.f32 %v3939, %v4205
    %v4246 = vadd.f32 %v3940, %v4210
    %v4247 = vadd.f32 %v3941, %v4213
    %v4248 = vld [vmem:[%s2876 + $0x8] sm:$0xff]
    %v4249 = vld [vmem:[%s2876 + $0x10] sm:$0xff]
    %v4250 = vld [vmem:[%s2876 + $0x28] sm:$0xff]
    %v4251 = vld [vmem:[%s2876 + $0x30] sm:$0xff]
    %v4252 = vld [vmem:[%s2876 + $0x48] sm:$0xff]
    %v4253 = vld [vmem:[%s2876 + $0x50] sm:$0xff]
    %v4254 = vld [vmem:[%s2876 + $0x68] sm:$0xff]
    %v4255 = vld [vmem:[%s2876 + $0x70] sm:$0xff]
    %v4256 = vld [vmem:[%s2876 + $0x88] sm:$0xff]
    %v4257 = vld [vmem:[%s2876 + $0x90] sm:$0xff]
    %v4258 = vld [vmem:[%s2876 + $0xa8] sm:$0xff]
    %v4259 = vld [vmem:[%s2876 + $0xb0] sm:$0xff]
    %v4260 = vld [vmem:[%s2876 + $0xc8] sm:$0xff]
    %v4261 = vld [vmem:[%s2876 + $0xd0] sm:$0xff]
    %v4262 = vld [vmem:[%s2876 + $0xe8] sm:$0xff]
    %v4263 = vld [vmem:[%s2876 + $0xf0] sm:$0xff]
    %v4264 = vld [vmem:[%s2876 + $0x108] sm:$0xff]
    %v4265 = vld [vmem:[%s2876 + $0x110] sm:$0xff]
    %v4266 = vld [vmem:[%s2876 + $0x128] sm:$0xff]
    %v4267 = vld [vmem:[%s2876 + $0x130] sm:$0xff]
    %v4268 = vld [vmem:[%s2876 + $0x148] sm:$0xff]
    %v4269 = vld [vmem:[%s2876 + $0x150] sm:$0xff]
    %v4270 = vld [vmem:[%s2876 + $0x168] sm:$0xff]
    %v4271 = vld [vmem:[%s2876 + $0x170] sm:$0xff]
    %v4272 = vld [vmem:[%s2876 + $0x188] sm:$0xff]
    %v4273 = vld [vmem:[%s2876 + $0x190] sm:$0xff]
    %v4274 = vld [vmem:[%s2876 + $0x1a8] sm:$0xff]
    %v4275 = vld [vmem:[%s2876 + $0x1b0] sm:$0xff]
    %v4276 = vld [vmem:[%s2876 + $0x1c8] sm:$0xff]
    %v4277 = vld [vmem:[%s2876 + $0x1d0] sm:$0xff]
    %v4278 = vld [vmem:[%s2876 + $0x1e8] sm:$0xff]
    %v4279 = vld [vmem:[%s2876 + $0x1f0] sm:$0xff]
    %v4280 = vpack.c.bf16 %v4249, %v4248
    %v4281 = vpack.c.bf16 %v4251, %v4250
    %v4282 = vpack.c.bf16 %v4253, %v4252
    %v4283 = vpack.c.bf16 %v4255, %v4254
    %v4284 = vpack.c.bf16 %v4257, %v4256
    %v4285 = vpack.c.bf16 %v4259, %v4258
    %v4286 = vpack.c.bf16 %v4261, %v4260
    %v4287 = vpack.c.bf16 %v4263, %v4262
    %v4288 = vpack.c.bf16 %v4265, %v4264
    %v4289 = vpack.c.bf16 %v4267, %v4266
    %v4290 = vpack.c.bf16 %v4269, %v4268
    %v4291 = vpack.c.bf16 %v4271, %v4270
    %v4292 = vpack.c.bf16 %v4273, %v4272
    %v4293 = vpack.c.bf16 %v4275, %v4274
    %v4294 = vpack.c.bf16 %v4277, %v4276
    %v4295 = vpack.c.bf16 %v4279, %v4278
    %s4296 = scalar_lea.vmem %s1, 832
    %v4297 = vld [vmem:[%s4296] sm:$0xf]
    %v4298 = vld [vmem:[%s4296 + $0x4] sm:$0xf]
    %v4299 = vld [vmem:[%s4296 + $0x8] sm:$0xf]
    %v4300 = vld [vmem:[%s4296 + $0xc] sm:$0xf]
    %v4301 = vld [vmem:[%s4296 + $0x10] sm:$0xf]
    %v4302 = vld [vmem:[%s4296 + $0x14] sm:$0xf]
    %v4303 = vld [vmem:[%s4296 + $0x18] sm:$0xf]
    %v4304 = vld [vmem:[%s4296 + $0x1c] sm:$0xf]
    %v4305 = vld [vmem:[%s4296 + $0x20] sm:$0xf]
    %v4306 = vld [vmem:[%s4296 + $0x24] sm:$0xf]
    %v4307 = vld [vmem:[%s4296 + $0x28] sm:$0xf]
    %v4308 = vld [vmem:[%s4296 + $0x2c] sm:$0xf]
    %v4309 = vld [vmem:[%s4296 + $0x30] sm:$0xf]
    %v4310 = vld [vmem:[%s4296 + $0x34] sm:$0xf]
    %v4311 = vld [vmem:[%s4296 + $0x38] sm:$0xf]
    %v4312 = vld [vmem:[%s4296 + $0x3c] sm:$0xf]
    %v4329 = vunpack.c.l.b16 %v4297
    %v4330 = vunpack.c.l.b16 %v4298
    %v4331 = vunpack.c.l.b16 %v4299
    %v4332 = vunpack.c.l.b16 %v4300
    %v4333 = vunpack.c.l.b16 %v4301
    %v4334 = vunpack.c.l.b16 %v4302
    %v4335 = vunpack.c.l.b16 %v4303
    %v4336 = vunpack.c.l.b16 %v4304
    %v4337 = vunpack.c.l.b16 %v4305
    %v4338 = vunpack.c.l.b16 %v4306
    %v4339 = vunpack.c.l.b16 %v4307
    %v4340 = vunpack.c.l.b16 %v4308
    %v4341 = vunpack.c.l.b16 %v4309
    %v4342 = vunpack.c.l.b16 %v4310
    %v4343 = vunpack.c.l.b16 %v4311
    %v4344 = vunpack.c.l.b16 %v4312
    %v4345 = vpack.c.b16 %v4330, %v4329
    %v4346 = vpack.c.b16 %v4332, %v4331
    %v4347 = vpack.c.b16 %v4334, %v4333
    %v4348 = vpack.c.b16 %v4336, %v4335
    %v4349 = vpack.c.b16 %v4338, %v4337
    %v4350 = vpack.c.b16 %v4340, %v4339
    %v4351 = vpack.c.b16 %v4342, %v4341
    %v4352 = vpack.c.b16 %v4344, %v4343
    %4361 = vmatprep.subr.bf16.mxu0 0
    %4362 = vmatpush1.bf16.msra.mxu0 %v4352
    %4363 = vmatprep.subr.bf16.mxu0 0
    %4364 = vmatpush1.bf16.msra.mxu0 %v4351
    %4365 = vmatprep.subr.bf16.mxu0 0
    %4366 = vmatpush1.bf16.msra.mxu0 %v4350
    %4367 = vmatprep.subr.bf16.mxu0 0
    %4368 = vmatpush1.bf16.msra.mxu0 %v4349
    %4369 = vmatprep.subr.bf16.mxu0 0
    %4370 = vmatpush1.bf16.msra.mxu0 %v4348
    %4371 = vmatprep.subr.bf16.mxu0 0
    %4372 = vmatpush1.bf16.msra.mxu0 %v4347
    %4373 = vmatprep.subr.bf16.mxu0 0
    %4374 = vmatpush1.bf16.msra.mxu0 %v4346
    %4375 = vmatprep.subr.bf16.mxu0 0
    %4376 = vmatpush1.bf16.msra.mxu0 %v4345
    %4377 = vmatprep.subr.bf16.mxu0 0
    %4378 = vmatpush2.bf16.msra.mxu0 0
    %4379 = vmatprep.subr.bf16.mxu0 0
    %4380 = vmatpush2.bf16.msra.mxu0 0
    %4381 = vmatprep.subr.bf16.mxu0 0
    %4382 = vmatpush2.bf16.msra.mxu0 0
    %4383 = vmatprep.subr.bf16.mxu0 0
    %4384 = vmatpush2.bf16.msra.mxu0 0
    %4385 = vmatprep.subr.bf16.mxu0 0
    %4386 = vmatpush2.bf16.msra.mxu0 0
    %4387 = vmatprep.subr.bf16.mxu0 0
    %4388 = vmatpush2.bf16.msra.mxu0 0
    %4389 = vmatprep.subr.bf16.mxu0 0
    %4390 = vmatpush2.bf16.msra.mxu0 0
    %4391 = vmatprep.subr.bf16.mxu0 0
    %4392 = vmatpush2.bf16.msra.mxu0 0
    %4393 = vmatprep.mubr.bf16.mxu0 0
    %4394 = vmatmul.mubr.bf16.gmra.mxu0 %v4280
    %v4395 = vpop.f32.mrf.mxu0
    %v4396 = vadd.f32 0.0, %v4395
    %v4397 = vpop.f32.mrf.mxu0
    %v4398 = vpop.f32.mrf.mxu0
    %v4399 = vadd.f32 0.0, %v4398
    %v4400 = vpop.f32.mrf.mxu0
    %4401 = vmatprep.mubr.bf16.mxu0 0
    %4402 = vmatmul.mubr.bf16.gmra.mxu0 %v4281
    %v4403 = vpop.f32.mrf.mxu0
    %v4404 = vadd.f32 0.0, %v4403
    %v4405 = vpop.f32.mrf.mxu0
    %v4406 = vpop.f32.mrf.mxu0
    %v4407 = vadd.f32 0.0, %v4406
    %v4408 = vpop.f32.mrf.mxu0
    %4409 = vmatprep.mubr.bf16.mxu0 0
    %4410 = vmatmul.mubr.bf16.gmra.mxu0 %v4282
    %v4411 = vpop.f32.mrf.mxu0
    %v4412 = vadd.f32 0.0, %v4411
    %v4413 = vpop.f32.mrf.mxu0
    %v4414 = vpop.f32.mrf.mxu0
    %v4415 = vadd.f32 0.0, %v4414
    %v4416 = vpop.f32.mrf.mxu0
    %4417 = vmatprep.mubr.bf16.mxu0 0
    %4418 = vmatmul.mubr.bf16.gmra.mxu0 %v4283
    %v4419 = vpop.f32.mrf.mxu0
    %v4420 = vadd.f32 0.0, %v4419
    %v4421 = vpop.f32.mrf.mxu0
    %v4422 = vpop.f32.mrf.mxu0
    %v4423 = vadd.f32 0.0, %v4422
    %v4424 = vpop.f32.mrf.mxu0
    %4425 = vmatprep.mubr.bf16.mxu0 0
    %4426 = vmatmul.mubr.bf16.gmra.mxu0 %v4284
    %v4427 = vpop.f32.mrf.mxu0
    %v4428 = vadd.f32 0.0, %v4427
    %v4429 = vpop.f32.mrf.mxu0
    %v4430 = vpop.f32.mrf.mxu0
    %v4431 = vadd.f32 0.0, %v4430
    %v4432 = vpop.f32.mrf.mxu0
    %4433 = vmatprep.mubr.bf16.mxu0 0
    %4434 = vmatmul.mubr.bf16.gmra.mxu0 %v4285
    %v4435 = vpop.f32.mrf.mxu0
    %v4436 = vadd.f32 0.0, %v4435
    %v4437 = vpop.f32.mrf.mxu0
    %v4438 = vpop.f32.mrf.mxu0
    %v4439 = vadd.f32 0.0, %v4438
    %v4440 = vpop.f32.mrf.mxu0
    %4441 = vmatprep.mubr.bf16.mxu0 0
    %4442 = vmatmul.mubr.bf16.gmra.mxu0 %v4286
    %v4443 = vpop.f32.mrf.mxu0
    %v4444 = vadd.f32 0.0, %v4443
    %v4445 = vpop.f32.mrf.mxu0
    %v4446 = vpop.f32.mrf.mxu0
    %v4447 = vadd.f32 0.0, %v4446
    %v4448 = vpop.f32.mrf.mxu0
    %4449 = vmatprep.mubr.bf16.mxu0 0
    %4450 = vmatmul.mubr.bf16.gmra.mxu0 %v4287
    %v4451 = vpop.f32.mrf.mxu0
    %v4452 = vadd.f32 0.0, %v4451
    %v4453 = vpop.f32.mrf.mxu0
    %v4454 = vpop.f32.mrf.mxu0
    %v4455 = vadd.f32 0.0, %v4454
    %v4456 = vpop.f32.mrf.mxu0
    %4457 = vmatprep.mubr.bf16.mxu0 0
    %4458 = vmatmul.mubr.bf16.gmra.mxu0 %v4288
    %v4459 = vpop.f32.mrf.mxu0
    %v4460 = vadd.f32 0.0, %v4459
    %v4461 = vpop.f32.mrf.mxu0
    %v4462 = vpop.f32.mrf.mxu0
    %v4463 = vadd.f32 0.0, %v4462
    %v4464 = vpop.f32.mrf.mxu0
    %4465 = vmatprep.mubr.bf16.mxu0 0
    %4466 = vmatmul.mubr.bf16.gmra.mxu0 %v4289
    %v4467 = vpop.f32.mrf.mxu0
    %v4468 = vadd.f32 0.0, %v4467
    %v4469 = vpop.f32.mrf.mxu0
    %v4470 = vpop.f32.mrf.mxu0
    %v4471 = vadd.f32 0.0, %v4470
    %v4472 = vpop.f32.mrf.mxu0
    %4473 = vmatprep.mubr.bf16.mxu0 0
    %4474 = vmatmul.mubr.bf16.gmra.mxu0 %v4290
    %v4475 = vpop.f32.mrf.mxu0
    %v4476 = vadd.f32 0.0, %v4475
    %v4477 = vpop.f32.mrf.mxu0
    %v4478 = vpop.f32.mrf.mxu0
    %v4479 = vadd.f32 0.0, %v4478
    %v4480 = vpop.f32.mrf.mxu0
    %4481 = vmatprep.mubr.bf16.mxu0 0
    %4482 = vmatmul.mubr.bf16.gmra.mxu0 %v4291
    %v4483 = vpop.f32.mrf.mxu0
    %v4484 = vadd.f32 0.0, %v4483
    %v4485 = vpop.f32.mrf.mxu0
    %v4486 = vpop.f32.mrf.mxu0
    %v4487 = vadd.f32 0.0, %v4486
    %v4488 = vpop.f32.mrf.mxu0
    %4489 = vmatprep.mubr.bf16.mxu0 0
    %4490 = vmatmul.mubr.bf16.gmra.mxu0 %v4292
    %v4491 = vpop.f32.mrf.mxu0
    %v4492 = vadd.f32 0.0, %v4491
    %v4493 = vpop.f32.mrf.mxu0
    %v4494 = vpop.f32.mrf.mxu0
    %v4495 = vadd.f32 0.0, %v4494
    %v4496 = vpop.f32.mrf.mxu0
    %4497 = vmatprep.mubr.bf16.mxu0 0
    %4498 = vmatmul.mubr.bf16.gmra.mxu0 %v4293
    %v4499 = vpop.f32.mrf.mxu0
    %v4500 = vadd.f32 0.0, %v4499
    %v4501 = vpop.f32.mrf.mxu0
    %v4502 = vpop.f32.mrf.mxu0
    %v4503 = vadd.f32 0.0, %v4502
    %v4504 = vpop.f32.mrf.mxu0
    %4505 = vmatprep.mubr.bf16.mxu0 0
    %4506 = vmatmul.mubr.bf16.gmra.mxu0 %v4294
    %v4507 = vpop.f32.mrf.mxu0
    %v4508 = vadd.f32 0.0, %v4507
    %v4509 = vpop.f32.mrf.mxu0
    %v4510 = vpop.f32.mrf.mxu0
    %v4511 = vadd.f32 0.0, %v4510
    %v4512 = vpop.f32.mrf.mxu0
    %4513 = vmatprep.mubr.bf16.mxu0 0
    %4514 = vmatmul.mubr.bf16.gmra.mxu0 %v4295
    %v4515 = vpop.f32.mrf.mxu0
    %v4516 = vadd.f32 0.0, %v4515
    %v4517 = vpop.f32.mrf.mxu0
    %v4518 = vpop.f32.mrf.mxu0
    %v4519 = vadd.f32 0.0, %v4518
    %v4520 = vpop.f32.mrf.mxu0
    %4521 = vdwg.mxu0
    %v4522 = vadd.f32 %v4216, %v4396
    %v4523 = vadd.f32 %v4217, %v4399
    %v4524 = vadd.f32 %v4218, %v4404
    %v4525 = vadd.f32 %v4219, %v4407
    %v4526 = vadd.f32 %v4220, %v4412
    %v4527 = vadd.f32 %v4221, %v4415
    %v4528 = vadd.f32 %v4222, %v4420
    %v4529 = vadd.f32 %v4223, %v4423
    %v4530 = vadd.f32 %v4224, %v4428
    %v4531 = vadd.f32 %v4225, %v4431
    %v4532 = vadd.f32 %v4226, %v4436
    %v4533 = vadd.f32 %v4227, %v4439
    %v4534 = vadd.f32 %v4228, %v4444
    %v4535 = vadd.f32 %v4229, %v4447
    %v4536 = vadd.f32 %v4230, %v4452
    %v4537 = vadd.f32 %v4231, %v4455
    %v4538 = vadd.f32 %v4232, %v4460
    %v4539 = vadd.f32 %v4233, %v4463
    %v4540 = vadd.f32 %v4234, %v4468
    %v4541 = vadd.f32 %v4235, %v4471
    %v4542 = vadd.f32 %v4236, %v4476
    %v4543 = vadd.f32 %v4237, %v4479
    %v4544 = vadd.f32 %v4238, %v4484
    %v4545 = vadd.f32 %v4239, %v4487
    %v4546 = vadd.f32 %v4240, %v4492
    %v4547 = vadd.f32 %v4241, %v4495
    %v4548 = vadd.f32 %v4242, %v4500
    %v4549 = vadd.f32 %v4243, %v4503
    %v4550 = vadd.f32 %v4244, %v4508
    %v4551 = vadd.f32 %v4245, %v4511
    %v4552 = vadd.f32 %v4246, %v4516
    %v4553 = vadd.f32 %v4247, %v4519
    %v4554 = vld [vmem:[%s2876 + $0x9] sm:$0xff]
    %v4555 = vld [vmem:[%s2876 + $0x11] sm:$0xff]
    %v4556 = vld [vmem:[%s2876 + $0x29] sm:$0xff]
    %v4557 = vld [vmem:[%s2876 + $0x31] sm:$0xff]
    %v4558 = vld [vmem:[%s2876 + $0x49] sm:$0xff]
    %v4559 = vld [vmem:[%s2876 + $0x51] sm:$0xff]
    %v4560 = vld [vmem:[%s2876 + $0x69] sm:$0xff]
    %v4561 = vld [vmem:[%s2876 + $0x71] sm:$0xff]
    %v4562 = vld [vmem:[%s2876 + $0x89] sm:$0xff]
    %v4563 = vld [vmem:[%s2876 + $0x91] sm:$0xff]
    %v4564 = vld [vmem:[%s2876 + $0xa9] sm:$0xff]
    %v4565 = vld [vmem:[%s2876 + $0xb1] sm:$0xff]
    %v4566 = vld [vmem:[%s2876 + $0xc9] sm:$0xff]
    %v4567 = vld [vmem:[%s2876 + $0xd1] sm:$0xff]
    %v4568 = vld [vmem:[%s2876 + $0xe9] sm:$0xff]
    %v4569 = vld [vmem:[%s2876 + $0xf1] sm:$0xff]
    %v4570 = vld [vmem:[%s2876 + $0x109] sm:$0xff]
    %v4571 = vld [vmem:[%s2876 + $0x111] sm:$0xff]
    %v4572 = vld [vmem:[%s2876 + $0x129] sm:$0xff]
    %v4573 = vld [vmem:[%s2876 + $0x131] sm:$0xff]
    %v4574 = vld [vmem:[%s2876 + $0x149] sm:$0xff]
    %v4575 = vld [vmem:[%s2876 + $0x151] sm:$0xff]
    %v4576 = vld [vmem:[%s2876 + $0x169] sm:$0xff]
    %v4577 = vld [vmem:[%s2876 + $0x171] sm:$0xff]
    %v4578 = vld [vmem:[%s2876 + $0x189] sm:$0xff]
    %v4579 = vld [vmem:[%s2876 + $0x191] sm:$0xff]
    %v4580 = vld [vmem:[%s2876 + $0x1a9] sm:$0xff]
    %v4581 = vld [vmem:[%s2876 + $0x1b1] sm:$0xff]
    %v4582 = vld [vmem:[%s2876 + $0x1c9] sm:$0xff]
    %v4583 = vld [vmem:[%s2876 + $0x1d1] sm:$0xff]
    %v4584 = vld [vmem:[%s2876 + $0x1e9] sm:$0xff]
    %v4585 = vld [vmem:[%s2876 + $0x1f1] sm:$0xff]
    %v4586 = vpack.c.bf16 %v4555, %v4554
    %v4587 = vpack.c.bf16 %v4557, %v4556
    %v4588 = vpack.c.bf16 %v4559, %v4558
    %v4589 = vpack.c.bf16 %v4561, %v4560
    %v4590 = vpack.c.bf16 %v4563, %v4562
    %v4591 = vpack.c.bf16 %v4565, %v4564
    %v4592 = vpack.c.bf16 %v4567, %v4566
    %v4593 = vpack.c.bf16 %v4569, %v4568
    %v4594 = vpack.c.bf16 %v4571, %v4570
    %v4595 = vpack.c.bf16 %v4573, %v4572
    %v4596 = vpack.c.bf16 %v4575, %v4574
    %v4597 = vpack.c.bf16 %v4577, %v4576
    %v4598 = vpack.c.bf16 %v4579, %v4578
    %v4599 = vpack.c.bf16 %v4581, %v4580
    %v4600 = vpack.c.bf16 %v4583, %v4582
    %v4601 = vpack.c.bf16 %v4585, %v4584
    %s4602 = scalar_lea.vmem %s1, 896
    %v4603 = vld [vmem:[%s4602] sm:$0xf]
    %v4604 = vld [vmem:[%s4602 + $0x4] sm:$0xf]
    %v4605 = vld [vmem:[%s4602 + $0x8] sm:$0xf]
    %v4606 = vld [vmem:[%s4602 + $0xc] sm:$0xf]
    %v4607 = vld [vmem:[%s4602 + $0x10] sm:$0xf]
    %v4608 = vld [vmem:[%s4602 + $0x14] sm:$0xf]
    %v4609 = vld [vmem:[%s4602 + $0x18] sm:$0xf]
    %v4610 = vld [vmem:[%s4602 + $0x1c] sm:$0xf]
    %v4611 = vld [vmem:[%s4602 + $0x20] sm:$0xf]
    %v4612 = vld [vmem:[%s4602 + $0x24] sm:$0xf]
    %v4613 = vld [vmem:[%s4602 + $0x28] sm:$0xf]
    %v4614 = vld [vmem:[%s4602 + $0x2c] sm:$0xf]
    %v4615 = vld [vmem:[%s4602 + $0x30] sm:$0xf]
    %v4616 = vld [vmem:[%s4602 + $0x34] sm:$0xf]
    %v4617 = vld [vmem:[%s4602 + $0x38] sm:$0xf]
    %v4618 = vld [vmem:[%s4602 + $0x3c] sm:$0xf]
    %v4635 = vunpack.c.l.b16 %v4603
    %v4636 = vunpack.c.l.b16 %v4604
    %v4637 = vunpack.c.l.b16 %v4605
    %v4638 = vunpack.c.l.b16 %v4606
    %v4639 = vunpack.c.l.b16 %v4607
    %v4640 = vunpack.c.l.b16 %v4608
    %v4641 = vunpack.c.l.b16 %v4609
    %v4642 = vunpack.c.l.b16 %v4610
    %v4643 = vunpack.c.l.b16 %v4611
    %v4644 = vunpack.c.l.b16 %v4612
    %v4645 = vunpack.c.l.b16 %v4613
    %v4646 = vunpack.c.l.b16 %v4614
    %v4647 = vunpack.c.l.b16 %v4615
    %v4648 = vunpack.c.l.b16 %v4616
    %v4649 = vunpack.c.l.b16 %v4617
    %v4650 = vunpack.c.l.b16 %v4618
    %v4651 = vpack.c.b16 %v4636, %v4635
    %v4652 = vpack.c.b16 %v4638, %v4637
    %v4653 = vpack.c.b16 %v4640, %v4639
    %v4654 = vpack.c.b16 %v4642, %v4641
    %v4655 = vpack.c.b16 %v4644, %v4643
    %v4656 = vpack.c.b16 %v4646, %v4645
    %v4657 = vpack.c.b16 %v4648, %v4647
    %v4658 = vpack.c.b16 %v4650, %v4649
    %4667 = vmatprep.subr.bf16.mxu0 0
    %4668 = vmatpush1.bf16.msra.mxu0 %v4658
    %4669 = vmatprep.subr.bf16.mxu0 0
    %4670 = vmatpush1.bf16.msra.mxu0 %v4657
    %4671 = vmatprep.subr.bf16.mxu0 0
    %4672 = vmatpush1.bf16.msra.mxu0 %v4656
    %4673 = vmatprep.subr.bf16.mxu0 0
    %4674 = vmatpush1.bf16.msra.mxu0 %v4655
    %4675 = vmatprep.subr.bf16.mxu0 0
    %4676 = vmatpush1.bf16.msra.mxu0 %v4654
    %4677 = vmatprep.subr.bf16.mxu0 0
    %4678 = vmatpush1.bf16.msra.mxu0 %v4653
    %4679 = vmatprep.subr.bf16.mxu0 0
    %4680 = vmatpush1.bf16.msra.mxu0 %v4652
    %4681 = vmatprep.subr.bf16.mxu0 0
    %4682 = vmatpush1.bf16.msra.mxu0 %v4651
    %4683 = vmatprep.subr.bf16.mxu0 0
    %4684 = vmatpush2.bf16.msra.mxu0 0
    %4685 = vmatprep.subr.bf16.mxu0 0
    %4686 = vmatpush2.bf16.msra.mxu0 0
    %4687 = vmatprep.subr.bf16.mxu0 0
    %4688 = vmatpush2.bf16.msra.mxu0 0
    %4689 = vmatprep.subr.bf16.mxu0 0
    %4690 = vmatpush2.bf16.msra.mxu0 0
    %4691 = vmatprep.subr.bf16.mxu0 0
    %4692 = vmatpush2.bf16.msra.mxu0 0
    %4693 = vmatprep.subr.bf16.mxu0 0
    %4694 = vmatpush2.bf16.msra.mxu0 0
    %4695 = vmatprep.subr.bf16.mxu0 0
    %4696 = vmatpush2.bf16.msra.mxu0 0
    %4697 = vmatprep.subr.bf16.mxu0 0
    %4698 = vmatpush2.bf16.msra.mxu0 0
    %4699 = vmatprep.mubr.bf16.mxu0 0
    %4700 = vmatmul.mubr.bf16.gmra.mxu0 %v4586
    %v4701 = vpop.f32.mrf.mxu0
    %v4702 = vadd.f32 0.0, %v4701
    %v4703 = vpop.f32.mrf.mxu0
    %v4704 = vpop.f32.mrf.mxu0
    %v4705 = vadd.f32 0.0, %v4704
    %v4706 = vpop.f32.mrf.mxu0
    %4707 = vmatprep.mubr.bf16.mxu0 0
    %4708 = vmatmul.mubr.bf16.gmra.mxu0 %v4587
    %v4709 = vpop.f32.mrf.mxu0
    %v4710 = vadd.f32 0.0, %v4709
    %v4711 = vpop.f32.mrf.mxu0
    %v4712 = vpop.f32.mrf.mxu0
    %v4713 = vadd.f32 0.0, %v4712
    %v4714 = vpop.f32.mrf.mxu0
    %4715 = vmatprep.mubr.bf16.mxu0 0
    %4716 = vmatmul.mubr.bf16.gmra.mxu0 %v4588
    %v4717 = vpop.f32.mrf.mxu0
    %v4718 = vadd.f32 0.0, %v4717
    %v4719 = vpop.f32.mrf.mxu0
    %v4720 = vpop.f32.mrf.mxu0
    %v4721 = vadd.f32 0.0, %v4720
    %v4722 = vpop.f32.mrf.mxu0
    %4723 = vmatprep.mubr.bf16.mxu0 0
    %4724 = vmatmul.mubr.bf16.gmra.mxu0 %v4589
    %v4725 = vpop.f32.mrf.mxu0
    %v4726 = vadd.f32 0.0, %v4725
    %v4727 = vpop.f32.mrf.mxu0
    %v4728 = vpop.f32.mrf.mxu0
    %v4729 = vadd.f32 0.0, %v4728
    %v4730 = vpop.f32.mrf.mxu0
    %4731 = vmatprep.mubr.bf16.mxu0 0
    %4732 = vmatmul.mubr.bf16.gmra.mxu0 %v4590
    %v4733 = vpop.f32.mrf.mxu0
    %v4734 = vadd.f32 0.0, %v4733
    %v4735 = vpop.f32.mrf.mxu0
    %v4736 = vpop.f32.mrf.mxu0
    %v4737 = vadd.f32 0.0, %v4736
    %v4738 = vpop.f32.mrf.mxu0
    %4739 = vmatprep.mubr.bf16.mxu0 0
    %4740 = vmatmul.mubr.bf16.gmra.mxu0 %v4591
    %v4741 = vpop.f32.mrf.mxu0
    %v4742 = vadd.f32 0.0, %v4741
    %v4743 = vpop.f32.mrf.mxu0
    %v4744 = vpop.f32.mrf.mxu0
    %v4745 = vadd.f32 0.0, %v4744
    %v4746 = vpop.f32.mrf.mxu0
    %4747 = vmatprep.mubr.bf16.mxu0 0
    %4748 = vmatmul.mubr.bf16.gmra.mxu0 %v4592
    %v4749 = vpop.f32.mrf.mxu0
    %v4750 = vadd.f32 0.0, %v4749
    %v4751 = vpop.f32.mrf.mxu0
    %v4752 = vpop.f32.mrf.mxu0
    %v4753 = vadd.f32 0.0, %v4752
    %v4754 = vpop.f32.mrf.mxu0
    %4755 = vmatprep.mubr.bf16.mxu0 0
    %4756 = vmatmul.mubr.bf16.gmra.mxu0 %v4593
    %v4757 = vpop.f32.mrf.mxu0
    %v4758 = vadd.f32 0.0, %v4757
    %v4759 = vpop.f32.mrf.mxu0
    %v4760 = vpop.f32.mrf.mxu0
    %v4761 = vadd.f32 0.0, %v4760
    %v4762 = vpop.f32.mrf.mxu0
    %4763 = vmatprep.mubr.bf16.mxu0 0
    %4764 = vmatmul.mubr.bf16.gmra.mxu0 %v4594
    %v4765 = vpop.f32.mrf.mxu0
    %v4766 = vadd.f32 0.0, %v4765
    %v4767 = vpop.f32.mrf.mxu0
    %v4768 = vpop.f32.mrf.mxu0
    %v4769 = vadd.f32 0.0, %v4768
    %v4770 = vpop.f32.mrf.mxu0
    %4771 = vmatprep.mubr.bf16.mxu0 0
    %4772 = vmatmul.mubr.bf16.gmra.mxu0 %v4595
    %v4773 = vpop.f32.mrf.mxu0
    %v4774 = vadd.f32 0.0, %v4773
    %v4775 = vpop.f32.mrf.mxu0
    %v4776 = vpop.f32.mrf.mxu0
    %v4777 = vadd.f32 0.0, %v4776
    %v4778 = vpop.f32.mrf.mxu0
    %4779 = vmatprep.mubr.bf16.mxu0 0
    %4780 = vmatmul.mubr.bf16.gmra.mxu0 %v4596
    %v4781 = vpop.f32.mrf.mxu0
    %v4782 = vadd.f32 0.0, %v4781
    %v4783 = vpop.f32.mrf.mxu0
    %v4784 = vpop.f32.mrf.mxu0
    %v4785 = vadd.f32 0.0, %v4784
    %v4786 = vpop.f32.mrf.mxu0
    %4787 = vmatprep.mubr.bf16.mxu0 0
    %4788 = vmatmul.mubr.bf16.gmra.mxu0 %v4597
    %v4789 = vpop.f32.mrf.mxu0
    %v4790 = vadd.f32 0.0, %v4789
    %v4791 = vpop.f32.mrf.mxu0
    %v4792 = vpop.f32.mrf.mxu0
    %v4793 = vadd.f32 0.0, %v4792
    %v4794 = vpop.f32.mrf.mxu0
    %4795 = vmatprep.mubr.bf16.mxu0 0
    %4796 = vmatmul.mubr.bf16.gmra.mxu0 %v4598
    %v4797 = vpop.f32.mrf.mxu0
    %v4798 = vadd.f32 0.0, %v4797
    %v4799 = vpop.f32.mrf.mxu0
    %v4800 = vpop.f32.mrf.mxu0
    %v4801 = vadd.f32 0.0, %v4800
    %v4802 = vpop.f32.mrf.mxu0
    %4803 = vmatprep.mubr.bf16.mxu0 0
    %4804 = vmatmul.mubr.bf16.gmra.mxu0 %v4599
    %v4805 = vpop.f32.mrf.mxu0
    %v4806 = vadd.f32 0.0, %v4805
    %v4807 = vpop.f32.mrf.mxu0
    %v4808 = vpop.f32.mrf.mxu0
    %v4809 = vadd.f32 0.0, %v4808
    %v4810 = vpop.f32.mrf.mxu0
    %4811 = vmatprep.mubr.bf16.mxu0 0
    %4812 = vmatmul.mubr.bf16.gmra.mxu0 %v4600
    %v4813 = vpop.f32.mrf.mxu0
    %v4814 = vadd.f32 0.0, %v4813
    %v4815 = vpop.f32.mrf.mxu0
    %v4816 = vpop.f32.mrf.mxu0
    %v4817 = vadd.f32 0.0, %v4816
    %v4818 = vpop.f32.mrf.mxu0
    %4819 = vmatprep.mubr.bf16.mxu0 0
    %4820 = vmatmul.mubr.bf16.gmra.mxu0 %v4601
    %v4821 = vpop.f32.mrf.mxu0
    %v4822 = vadd.f32 0.0, %v4821
    %v4823 = vpop.f32.mrf.mxu0
    %v4824 = vpop.f32.mrf.mxu0
    %v4825 = vadd.f32 0.0, %v4824
    %v4826 = vpop.f32.mrf.mxu0
    %4827 = vdwg.mxu0
    %v4828 = vadd.f32 %v4522, %v4702
    %v4829 = vadd.f32 %v4523, %v4705
    %v4830 = vadd.f32 %v4524, %v4710
    %v4831 = vadd.f32 %v4525, %v4713
    %v4832 = vadd.f32 %v4526, %v4718
    %v4833 = vadd.f32 %v4527, %v4721
    %v4834 = vadd.f32 %v4528, %v4726
    %v4835 = vadd.f32 %v4529, %v4729
    %v4836 = vadd.f32 %v4530, %v4734
    %v4837 = vadd.f32 %v4531, %v4737
    %v4838 = vadd.f32 %v4532, %v4742
    %v4839 = vadd.f32 %v4533, %v4745
    %v4840 = vadd.f32 %v4534, %v4750
    %v4841 = vadd.f32 %v4535, %v4753
    %v4842 = vadd.f32 %v4536, %v4758
    %v4843 = vadd.f32 %v4537, %v4761
    %v4844 = vadd.f32 %v4538, %v4766
    %v4845 = vadd.f32 %v4539, %v4769
    %v4846 = vadd.f32 %v4540, %v4774
    %v4847 = vadd.f32 %v4541, %v4777
    %v4848 = vadd.f32 %v4542, %v4782
    %v4849 = vadd.f32 %v4543, %v4785
    %v4850 = vadd.f32 %v4544, %v4790
    %v4851 = vadd.f32 %v4545, %v4793
    %v4852 = vadd.f32 %v4546, %v4798
    %v4853 = vadd.f32 %v4547, %v4801
    %v4854 = vadd.f32 %v4548, %v4806
    %v4855 = vadd.f32 %v4549, %v4809
    %v4856 = vadd.f32 %v4550, %v4814
    %v4857 = vadd.f32 %v4551, %v4817
    %v4858 = vadd.f32 %v4552, %v4822
    %v4859 = vadd.f32 %v4553, %v4825
    %s4860 = scalar_lea.vmem [#allocation2], 64
    %v4861 = vld [vmem:[%s4860 + $0x7] sm:$0xff]
    %v4862 = vld [vmem:[%s4860 + $0xf] sm:$0xff]
    %v4863 = vld [vmem:[%s4860 + $0x27] sm:$0xff]
    %v4864 = vld [vmem:[%s4860 + $0x2f] sm:$0xff]
    %v4865 = vld [vmem:[%s4860 + $0x47] sm:$0xff]
    %v4866 = vld [vmem:[%s4860 + $0x4f] sm:$0xff]
    %v4867 = vld [vmem:[%s4860 + $0x67] sm:$0xff]
    %v4868 = vld [vmem:[%s4860 + $0x6f] sm:$0xff]
    %v4869 = vld [vmem:[%s4860 + $0x87] sm:$0xff]
    %v4870 = vld [vmem:[%s4860 + $0x8f] sm:$0xff]
    %v4871 = vld [vmem:[%s4860 + $0xa7] sm:$0xff]
    %v4872 = vld [vmem:[%s4860 + $0xaf] sm:$0xff]
    %v4873 = vld [vmem:[%s4860 + $0xc7] sm:$0xff]
    %v4874 = vld [vmem:[%s4860 + $0xcf] sm:$0xff]
    %v4875 = vld [vmem:[%s4860 + $0xe7] sm:$0xff]
    %v4876 = vld [vmem:[%s4860 + $0xef] sm:$0xff]
    %v4877 = vld [vmem:[%s4860 + $0x107] sm:$0xff]
    %v4878 = vld [vmem:[%s4860 + $0x10f] sm:$0xff]
    %v4879 = vld [vmem:[%s4860 + $0x127] sm:$0xff]
    %v4880 = vld [vmem:[%s4860 + $0x12f] sm:$0xff]
    %v4881 = vld [vmem:[%s4860 + $0x147] sm:$0xff]
    %v4882 = vld [vmem:[%s4860 + $0x14f] sm:$0xff]
    %v4883 = vld [vmem:[%s4860 + $0x167] sm:$0xff]
    %v4884 = vld [vmem:[%s4860 + $0x16f] sm:$0xff]
    %v4885 = vld [vmem:[%s4860 + $0x187] sm:$0xff]
    %v4886 = vld [vmem:[%s4860 + $0x18f] sm:$0xff]
    %v4887 = vld [vmem:[%s4860 + $0x1a7] sm:$0xff]
    %v4888 = vld [vmem:[%s4860 + $0x1af] sm:$0xff]
    %v4889 = vld [vmem:[%s4860 + $0x1c7] sm:$0xff]
    %v4890 = vld [vmem:[%s4860 + $0x1cf] sm:$0xff]
    %v4891 = vld [vmem:[%s4860 + $0x1e7] sm:$0xff]
    %v4892 = vld [vmem:[%s4860 + $0x1ef] sm:$0xff]
    %v4893 = vpack.c.bf16 %v4862, %v4861
    %v4894 = vpack.c.bf16 %v4864, %v4863
    %v4895 = vpack.c.bf16 %v4866, %v4865
    %v4896 = vpack.c.bf16 %v4868, %v4867
    %v4897 = vpack.c.bf16 %v4870, %v4869
    %v4898 = vpack.c.bf16 %v4872, %v4871
    %v4899 = vpack.c.bf16 %v4874, %v4873
    %v4900 = vpack.c.bf16 %v4876, %v4875
    %v4901 = vpack.c.bf16 %v4878, %v4877
    %v4902 = vpack.c.bf16 %v4880, %v4879
    %v4903 = vpack.c.bf16 %v4882, %v4881
    %v4904 = vpack.c.bf16 %v4884, %v4883
    %v4905 = vpack.c.bf16 %v4886, %v4885
    %v4906 = vpack.c.bf16 %v4888, %v4887
    %v4907 = vpack.c.bf16 %v4890, %v4889
    %v4908 = vpack.c.bf16 %v4892, %v4891
    %s4909 = scalar_lea.vmem %s1, 960
    %v4910 = vld [vmem:[%s4909] sm:$0xf]
    %v4911 = vld [vmem:[%s4909 + $0x4] sm:$0xf]
    %v4912 = vld [vmem:[%s4909 + $0x8] sm:$0xf]
    %v4913 = vld [vmem:[%s4909 + $0xc] sm:$0xf]
    %v4914 = vld [vmem:[%s4909 + $0x10] sm:$0xf]
    %v4915 = vld [vmem:[%s4909 + $0x14] sm:$0xf]
    %v4916 = vld [vmem:[%s4909 + $0x18] sm:$0xf]
    %v4917 = vld [vmem:[%s4909 + $0x1c] sm:$0xf]
    %v4918 = vld [vmem:[%s4909 + $0x20] sm:$0xf]
    %v4919 = vld [vmem:[%s4909 + $0x24] sm:$0xf]
    %v4920 = vld [vmem:[%s4909 + $0x28] sm:$0xf]
    %v4921 = vld [vmem:[%s4909 + $0x2c] sm:$0xf]
    %v4922 = vld [vmem:[%s4909 + $0x30] sm:$0xf]
    %v4923 = vld [vmem:[%s4909 + $0x34] sm:$0xf]
    %v4924 = vld [vmem:[%s4909 + $0x38] sm:$0xf]
    %v4925 = vld [vmem:[%s4909 + $0x3c] sm:$0xf]
    %v4942 = vunpack.c.l.b16 %v4910
    %v4943 = vunpack.c.l.b16 %v4911
    %v4944 = vunpack.c.l.b16 %v4912
    %v4945 = vunpack.c.l.b16 %v4913
    %v4946 = vunpack.c.l.b16 %v4914
    %v4947 = vunpack.c.l.b16 %v4915
    %v4948 = vunpack.c.l.b16 %v4916
    %v4949 = vunpack.c.l.b16 %v4917
    %v4950 = vunpack.c.l.b16 %v4918
    %v4951 = vunpack.c.l.b16 %v4919
    %v4952 = vunpack.c.l.b16 %v4920
    %v4953 = vunpack.c.l.b16 %v4921
    %v4954 = vunpack.c.l.b16 %v4922
    %v4955 = vunpack.c.l.b16 %v4923
    %v4956 = vunpack.c.l.b16 %v4924
    %v4957 = vunpack.c.l.b16 %v4925
    %v4958 = vpack.c.b16 %v4943, %v4942
    %v4959 = vpack.c.b16 %v4945, %v4944
    %v4960 = vpack.c.b16 %v4947, %v4946
    %v4961 = vpack.c.b16 %v4949, %v4948
    %v4962 = vpack.c.b16 %v4951, %v4950
    %v4963 = vpack.c.b16 %v4953, %v4952
    %v4964 = vpack.c.b16 %v4955, %v4954
    %v4965 = vpack.c.b16 %v4957, %v4956
    %4974 = vmatprep.subr.bf16.mxu0 0
    %4975 = vmatpush1.bf16.msra.mxu0 %v4965
    %4976 = vmatprep.subr.bf16.mxu0 0
    %4977 = vmatpush1.bf16.msra.mxu0 %v4964
    %4978 = vmatprep.subr.bf16.mxu0 0
    %4979 = vmatpush1.bf16.msra.mxu0 %v4963
    %4980 = vmatprep.subr.bf16.mxu0 0
    %4981 = vmatpush1.bf16.msra.mxu0 %v4962
    %4982 = vmatprep.subr.bf16.mxu0 0
    %4983 = vmatpush1.bf16.msra.mxu0 %v4961
    %4984 = vmatprep.subr.bf16.mxu0 0
    %4985 = vmatpush1.bf16.msra.mxu0 %v4960
    %4986 = vmatprep.subr.bf16.mxu0 0
    %4987 = vmatpush1.bf16.msra.mxu0 %v4959
    %4988 = vmatprep.subr.bf16.mxu0 0
    %4989 = vmatpush1.bf16.msra.mxu0 %v4958
    %4990 = vmatprep.subr.bf16.mxu0 0
    %4991 = vmatpush2.bf16.msra.mxu0 0
    %4992 = vmatprep.subr.bf16.mxu0 0
    %4993 = vmatpush2.bf16.msra.mxu0 0
    %4994 = vmatprep.subr.bf16.mxu0 0
    %4995 = vmatpush2.bf16.msra.mxu0 0
    %4996 = vmatprep.subr.bf16.mxu0 0
    %4997 = vmatpush2.bf16.msra.mxu0 0
    %4998 = vmatprep.subr.bf16.mxu0 0
    %4999 = vmatpush2.bf16.msra.mxu0 0
    %5000 = vmatprep.subr.bf16.mxu0 0
    %5001 = vmatpush2.bf16.msra.mxu0 0
    %5002 = vmatprep.subr.bf16.mxu0 0
    %5003 = vmatpush2.bf16.msra.mxu0 0
    %5004 = vmatprep.subr.bf16.mxu0 0
    %5005 = vmatpush2.bf16.msra.mxu0 0
    %5006 = vmatprep.mubr.bf16.mxu0 0
    %5007 = vmatmul.mubr.bf16.gmra.mxu0 %v4893
    %v5008 = vpop.f32.mrf.mxu0
    %v5009 = vadd.f32 0.0, %v5008
    %v5010 = vpop.f32.mrf.mxu0
    %v5011 = vpop.f32.mrf.mxu0
    %v5012 = vadd.f32 0.0, %v5011
    %v5013 = vpop.f32.mrf.mxu0
    %5014 = vmatprep.mubr.bf16.mxu0 0
    %5015 = vmatmul.mubr.bf16.gmra.mxu0 %v4894
    %v5016 = vpop.f32.mrf.mxu0
    %v5017 = vadd.f32 0.0, %v5016
    %v5018 = vpop.f32.mrf.mxu0
    %v5019 = vpop.f32.mrf.mxu0
    %v5020 = vadd.f32 0.0, %v5019
    %v5021 = vpop.f32.mrf.mxu0
    %5022 = vmatprep.mubr.bf16.mxu0 0
    %5023 = vmatmul.mubr.bf16.gmra.mxu0 %v4895
    %v5024 = vpop.f32.mrf.mxu0
    %v5025 = vadd.f32 0.0, %v5024
    %v5026 = vpop.f32.mrf.mxu0
    %v5027 = vpop.f32.mrf.mxu0
    %v5028 = vadd.f32 0.0, %v5027
    %v5029 = vpop.f32.mrf.mxu0
    %5030 = vmatprep.mubr.bf16.mxu0 0
    %5031 = vmatmul.mubr.bf16.gmra.mxu0 %v4896
    %v5032 = vpop.f32.mrf.mxu0
    %v5033 = vadd.f32 0.0, %v5032
    %v5034 = vpop.f32.mrf.mxu0
    %v5035 = vpop.f32.mrf.mxu0
    %v5036 = vadd.f32 0.0, %v5035
    %v5037 = vpop.f32.mrf.mxu0
    %5038 = vmatprep.mubr.bf16.mxu0 0
    %5039 = vmatmul.mubr.bf16.gmra.mxu0 %v4897
    %v5040 = vpop.f32.mrf.mxu0
    %v5041 = vadd.f32 0.0, %v5040
    %v5042 = vpop.f32.mrf.mxu0
    %v5043 = vpop.f32.mrf.mxu0
    %v5044 = vadd.f32 0.0, %v5043
    %v5045 = vpop.f32.mrf.mxu0
    %5046 = vmatprep.mubr.bf16.mxu0 0
    %5047 = vmatmul.mubr.bf16.gmra.mxu0 %v4898
    %v5048 = vpop.f32.mrf.mxu0
    %v5049 = vadd.f32 0.0, %v5048
    %v5050 = vpop.f32.mrf.mxu0
    %v5051 = vpop.f32.mrf.mxu0
    %v5052 = vadd.f32 0.0, %v5051
    %v5053 = vpop.f32.mrf.mxu0
    %5054 = vmatprep.mubr.bf16.mxu0 0
    %5055 = vmatmul.mubr.bf16.gmra.mxu0 %v4899
    %v5056 = vpop.f32.mrf.mxu0
    %v5057 = vadd.f32 0.0, %v5056
    %v5058 = vpop.f32.mrf.mxu0
    %v5059 = vpop.f32.mrf.mxu0
    %v5060 = vadd.f32 0.0, %v5059
    %v5061 = vpop.f32.mrf.mxu0
    %5062 = vmatprep.mubr.bf16.mxu0 0
    %5063 = vmatmul.mubr.bf16.gmra.mxu0 %v4900
    %v5064 = vpop.f32.mrf.mxu0
    %v5065 = vadd.f32 0.0, %v5064
    %v5066 = vpop.f32.mrf.mxu0
    %v5067 = vpop.f32.mrf.mxu0
    %v5068 = vadd.f32 0.0, %v5067
    %v5069 = vpop.f32.mrf.mxu0
    %5070 = vmatprep.mubr.bf16.mxu0 0
    %5071 = vmatmul.mubr.bf16.gmra.mxu0 %v4901
    %v5072 = vpop.f32.mrf.mxu0
    %v5073 = vadd.f32 0.0, %v5072
    %v5074 = vpop.f32.mrf.mxu0
    %v5075 = vpop.f32.mrf.mxu0
    %v5076 = vadd.f32 0.0, %v5075
    %v5077 = vpop.f32.mrf.mxu0
    %5078 = vmatprep.mubr.bf16.mxu0 0
    %5079 = vmatmul.mubr.bf16.gmra.mxu0 %v4902
    %v5080 = vpop.f32.mrf.mxu0
    %v5081 = vadd.f32 0.0, %v5080
    %v5082 = vpop.f32.mrf.mxu0
    %v5083 = vpop.f32.mrf.mxu0
    %v5084 = vadd.f32 0.0, %v5083
    %v5085 = vpop.f32.mrf.mxu0
    %5086 = vmatprep.mubr.bf16.mxu0 0
    %5087 = vmatmul.mubr.bf16.gmra.mxu0 %v4903
    %v5088 = vpop.f32.mrf.mxu0
    %v5089 = vadd.f32 0.0, %v5088
    %v5090 = vpop.f32.mrf.mxu0
    %v5091 = vpop.f32.mrf.mxu0
    %v5092 = vadd.f32 0.0, %v5091
    %v5093 = vpop.f32.mrf.mxu0
    %5094 = vmatprep.mubr.bf16.mxu0 0
    %5095 = vmatmul.mubr.bf16.gmra.mxu0 %v4904
    %v5096 = vpop.f32.mrf.mxu0
    %v5097 = vadd.f32 0.0, %v5096
    %v5098 = vpop.f32.mrf.mxu0
    %v5099 = vpop.f32.mrf.mxu0
    %v5100 = vadd.f32 0.0, %v5099
    %v5101 = vpop.f32.mrf.mxu0
    %5102 = vmatprep.mubr.bf16.mxu0 0
    %5103 = vmatmul.mubr.bf16.gmra.mxu0 %v4905
    %v5104 = vpop.f32.mrf.mxu0
    %v5105 = vadd.f32 0.0, %v5104
    %v5106 = vpop.f32.mrf.mxu0
    %v5107 = vpop.f32.mrf.mxu0
    %v5108 = vadd.f32 0.0, %v5107
    %v5109 = vpop.f32.mrf.mxu0
    %5110 = vmatprep.mubr.bf16.mxu0 0
    %5111 = vmatmul.mubr.bf16.gmra.mxu0 %v4906
    %v5112 = vpop.f32.mrf.mxu0
    %v5113 = vadd.f32 0.0, %v5112
    %v5114 = vpop.f32.mrf.mxu0
    %v5115 = vpop.f32.mrf.mxu0
    %v5116 = vadd.f32 0.0, %v5115
    %v5117 = vpop.f32.mrf.mxu0
    %5118 = vmatprep.mubr.bf16.mxu0 0
    %5119 = vmatmul.mubr.bf16.gmra.mxu0 %v4907
    %v5120 = vpop.f32.mrf.mxu0
    %v5121 = vadd.f32 0.0, %v5120
    %v5122 = vpop.f32.mrf.mxu0
    %v5123 = vpop.f32.mrf.mxu0
    %v5124 = vadd.f32 0.0, %v5123
    %v5125 = vpop.f32.mrf.mxu0
    %5126 = vmatprep.mubr.bf16.mxu0 0
    %5127 = vmatmul.mubr.bf16.gmra.mxu0 %v4908
    %v5128 = vpop.f32.mrf.mxu0
    %v5129 = vadd.f32 0.0, %v5128
    %v5130 = vpop.f32.mrf.mxu0
    %v5131 = vpop.f32.mrf.mxu0
    %v5132 = vadd.f32 0.0, %v5131
    %v5133 = vpop.f32.mrf.mxu0
    %5134 = vdwg.mxu0
    %v5135 = vadd.f32 %v4828, %v5009
    %v5136 = vadd.f32 %v4829, %v5012
    %v5137 = vadd.f32 %v4830, %v5017
    %v5138 = vadd.f32 %v4831, %v5020
    %v5139 = vadd.f32 %v4832, %v5025
    %v5140 = vadd.f32 %v4833, %v5028
    %v5141 = vadd.f32 %v4834, %v5033
    %v5142 = vadd.f32 %v4835, %v5036
    %v5143 = vadd.f32 %v4836, %v5041
    %v5144 = vadd.f32 %v4837, %v5044
    %v5145 = vadd.f32 %v4838, %v5049
    %v5146 = vadd.f32 %v4839, %v5052
    %v5147 = vadd.f32 %v4840, %v5057
    %v5148 = vadd.f32 %v4841, %v5060
    %v5149 = vadd.f32 %v4842, %v5065
    %v5150 = vadd.f32 %v4843, %v5068
    %v5151 = vadd.f32 %v4844, %v5073
    %v5152 = vadd.f32 %v4845, %v5076
    %v5153 = vadd.f32 %v4846, %v5081
    %v5154 = vadd.f32 %v4847, %v5084
    %v5155 = vadd.f32 %v4848, %v5089
    %v5156 = vadd.f32 %v4849, %v5092
    %v5157 = vadd.f32 %v4850, %v5097
    %v5158 = vadd.f32 %v4851, %v5100
    %v5159 = vadd.f32 %v4852, %v5105
    %v5160 = vadd.f32 %v4853, %v5108
    %v5161 = vadd.f32 %v4854, %v5113
    %v5162 = vadd.f32 %v4855, %v5116
    %v5163 = vadd.f32 %v4856, %v5121
    %v5164 = vadd.f32 %v4857, %v5124
    %v5165 = vadd.f32 %v4858, %v5129
    %v5166 = vadd.f32 %v4859, %v5132
    %v5167 = vld [vmem:[%s4860 + $0x8] sm:$0xff]
    %v5168 = vld [vmem:[%s4860 + $0x10] sm:$0xff]
    %v5169 = vld [vmem:[%s4860 + $0x28] sm:$0xff]
    %v5170 = vld [vmem:[%s4860 + $0x30] sm:$0xff]
    %v5171 = vld [vmem:[%s4860 + $0x48] sm:$0xff]
    %v5172 = vld [vmem:[%s4860 + $0x50] sm:$0xff]
    %v5173 = vld [vmem:[%s4860 + $0x68] sm:$0xff]
    %v5174 = vld [vmem:[%s4860 + $0x70] sm:$0xff]
    %v5175 = vld [vmem:[%s4860 + $0x88] sm:$0xff]
    %v5176 = vld [vmem:[%s4860 + $0x90] sm:$0xff]
    %v5177 = vld [vmem:[%s4860 + $0xa8] sm:$0xff]
    %v5178 = vld [vmem:[%s4860 + $0xb0] sm:$0xff]
    %v5179 = vld [vmem:[%s4860 + $0xc8] sm:$0xff]
    %v5180 = vld [vmem:[%s4860 + $0xd0] sm:$0xff]
    %v5181 = vld [vmem:[%s4860 + $0xe8] sm:$0xff]
    %v5182 = vld [vmem:[%s4860 + $0xf0] sm:$0xff]
    %v5183 = vld [vmem:[%s4860 + $0x108] sm:$0xff]
    %v5184 = vld [vmem:[%s4860 + $0x110] sm:$0xff]
    %v5185 = vld [vmem:[%s4860 + $0x128] sm:$0xff]
    %v5186 = vld [vmem:[%s4860 + $0x130] sm:$0xff]
    %v5187 = vld [vmem:[%s4860 + $0x148] sm:$0xff]
    %v5188 = vld [vmem:[%s4860 + $0x150] sm:$0xff]
    %v5189 = vld [vmem:[%s4860 + $0x168] sm:$0xff]
    %v5190 = vld [vmem:[%s4860 + $0x170] sm:$0xff]
    %v5191 = vld [vmem:[%s4860 + $0x188] sm:$0xff]
    %v5192 = vld [vmem:[%s4860 + $0x190] sm:$0xff]
    %v5193 = vld [vmem:[%s4860 + $0x1a8] sm:$0xff]
    %v5194 = vld [vmem:[%s4860 + $0x1b0] sm:$0xff]
    %v5195 = vld [vmem:[%s4860 + $0x1c8] sm:$0xff]
    %v5196 = vld [vmem:[%s4860 + $0x1d0] sm:$0xff]
    %v5197 = vld [vmem:[%s4860 + $0x1e8] sm:$0xff]
    %v5198 = vld [vmem:[%s4860 + $0x1f0] sm:$0xff]
    %v5199 = vpack.c.bf16 %v5168, %v5167
    %v5200 = vpack.c.bf16 %v5170, %v5169
    %v5201 = vpack.c.bf16 %v5172, %v5171
    %v5202 = vpack.c.bf16 %v5174, %v5173
    %v5203 = vpack.c.bf16 %v5176, %v5175
    %v5204 = vpack.c.bf16 %v5178, %v5177
    %v5205 = vpack.c.bf16 %v5180, %v5179
    %v5206 = vpack.c.bf16 %v5182, %v5181
    %v5207 = vpack.c.bf16 %v5184, %v5183
    %v5208 = vpack.c.bf16 %v5186, %v5185
    %v5209 = vpack.c.bf16 %v5188, %v5187
    %v5210 = vpack.c.bf16 %v5190, %v5189
    %v5211 = vpack.c.bf16 %v5192, %v5191
    %v5212 = vpack.c.bf16 %v5194, %v5193
    %v5213 = vpack.c.bf16 %v5196, %v5195
    %v5214 = vpack.c.bf16 %v5198, %v5197
    %s5215 = scalar_lea.vmem %s1, 1024
    %v5216 = vld [vmem:[%s5215] sm:$0xf]
    %v5217 = vld [vmem:[%s5215 + $0x4] sm:$0xf]
    %v5218 = vld [vmem:[%s5215 + $0x8] sm:$0xf]
    %v5219 = vld [vmem:[%s5215 + $0xc] sm:$0xf]
    %v5220 = vld [vmem:[%s5215 + $0x10] sm:$0xf]
    %v5221 = vld [vmem:[%s5215 + $0x14] sm:$0xf]
    %v5222 = vld [vmem:[%s5215 + $0x18] sm:$0xf]
    %v5223 = vld [vmem:[%s5215 + $0x1c] sm:$0xf]
    %v5224 = vld [vmem:[%s5215 + $0x20] sm:$0xf]
    %v5225 = vld [vmem:[%s5215 + $0x24] sm:$0xf]
    %v5226 = vld [vmem:[%s5215 + $0x28] sm:$0xf]
    %v5227 = vld [vmem:[%s5215 + $0x2c] sm:$0xf]
    %v5228 = vld [vmem:[%s5215 + $0x30] sm:$0xf]
    %v5229 = vld [vmem:[%s5215 + $0x34] sm:$0xf]
    %v5230 = vld [vmem:[%s5215 + $0x38] sm:$0xf]
    %v5231 = vld [vmem:[%s5215 + $0x3c] sm:$0xf]
    %v5248 = vunpack.c.l.b16 %v5216
    %v5249 = vunpack.c.l.b16 %v5217
    %v5250 = vunpack.c.l.b16 %v5218
    %v5251 = vunpack.c.l.b16 %v5219
    %v5252 = vunpack.c.l.b16 %v5220
    %v5253 = vunpack.c.l.b16 %v5221
    %v5254 = vunpack.c.l.b16 %v5222
    %v5255 = vunpack.c.l.b16 %v5223
    %v5256 = vunpack.c.l.b16 %v5224
    %v5257 = vunpack.c.l.b16 %v5225
    %v5258 = vunpack.c.l.b16 %v5226
    %v5259 = vunpack.c.l.b16 %v5227
    %v5260 = vunpack.c.l.b16 %v5228
    %v5261 = vunpack.c.l.b16 %v5229
    %v5262 = vunpack.c.l.b16 %v5230
    %v5263 = vunpack.c.l.b16 %v5231
    %v5264 = vpack.c.b16 %v5249, %v5248
    %v5265 = vpack.c.b16 %v5251, %v5250
    %v5266 = vpack.c.b16 %v5253, %v5252
    %v5267 = vpack.c.b16 %v5255, %v5254
    %v5268 = vpack.c.b16 %v5257, %v5256
    %v5269 = vpack.c.b16 %v5259, %v5258
    %v5270 = vpack.c.b16 %v5261, %v5260
    %v5271 = vpack.c.b16 %v5263, %v5262
    %5280 = vmatprep.subr.bf16.mxu0 0
    %5281 = vmatpush1.bf16.msra.mxu0 %v5271
    %5282 = vmatprep.subr.bf16.mxu0 0
    %5283 = vmatpush1.bf16.msra.mxu0 %v5270
    %5284 = vmatprep.subr.bf16.mxu0 0
    %5285 = vmatpush1.bf16.msra.mxu0 %v5269
    %5286 = vmatprep.subr.bf16.mxu0 0
    %5287 = vmatpush1.bf16.msra.mxu0 %v5268
    %5288 = vmatprep.subr.bf16.mxu0 0
    %5289 = vmatpush1.bf16.msra.mxu0 %v5267
    %5290 = vmatprep.subr.bf16.mxu0 0
    %5291 = vmatpush1.bf16.msra.mxu0 %v5266
    %5292 = vmatprep.subr.bf16.mxu0 0
    %5293 = vmatpush1.bf16.msra.mxu0 %v5265
    %5294 = vmatprep.subr.bf16.mxu0 0
    %5295 = vmatpush1.bf16.msra.mxu0 %v5264
    %5296 = vmatprep.subr.bf16.mxu0 0
    %5297 = vmatpush2.bf16.msra.mxu0 0
    %5298 = vmatprep.subr.bf16.mxu0 0
    %5299 = vmatpush2.bf16.msra.mxu0 0
    %5300 = vmatprep.subr.bf16.mxu0 0
    %5301 = vmatpush2.bf16.msra.mxu0 0
    %5302 = vmatprep.subr.bf16.mxu0 0
    %5303 = vmatpush2.bf16.msra.mxu0 0
    %5304 = vmatprep.subr.bf16.mxu0 0
    %5305 = vmatpush2.bf16.msra.mxu0 0
    %5306 = vmatprep.subr.bf16.mxu0 0
    %5307 = vmatpush2.bf16.msra.mxu0 0
    %5308 = vmatprep.subr.bf16.mxu0 0
    %5309 = vmatpush2.bf16.msra.mxu0 0
    %5310 = vmatprep.subr.bf16.mxu0 0
    %5311 = vmatpush2.bf16.msra.mxu0 0
    %5312 = vmatprep.mubr.bf16.mxu0 0
    %5313 = vmatmul.mubr.bf16.gmra.mxu0 %v5199
    %v5314 = vpop.f32.mrf.mxu0
    %v5315 = vadd.f32 0.0, %v5314
    %v5316 = vpop.f32.mrf.mxu0
    %v5317 = vpop.f32.mrf.mxu0
    %v5318 = vadd.f32 0.0, %v5317
    %v5319 = vpop.f32.mrf.mxu0
    %5320 = vmatprep.mubr.bf16.mxu0 0
    %5321 = vmatmul.mubr.bf16.gmra.mxu0 %v5200
    %v5322 = vpop.f32.mrf.mxu0
    %v5323 = vadd.f32 0.0, %v5322
    %v5324 = vpop.f32.mrf.mxu0
    %v5325 = vpop.f32.mrf.mxu0
    %v5326 = vadd.f32 0.0, %v5325
    %v5327 = vpop.f32.mrf.mxu0
    %5328 = vmatprep.mubr.bf16.mxu0 0
    %5329 = vmatmul.mubr.bf16.gmra.mxu0 %v5201
    %v5330 = vpop.f32.mrf.mxu0
    %v5331 = vadd.f32 0.0, %v5330
    %v5332 = vpop.f32.mrf.mxu0
    %v5333 = vpop.f32.mrf.mxu0
    %v5334 = vadd.f32 0.0, %v5333
    %v5335 = vpop.f32.mrf.mxu0
    %5336 = vmatprep.mubr.bf16.mxu0 0
    %5337 = vmatmul.mubr.bf16.gmra.mxu0 %v5202
    %v5338 = vpop.f32.mrf.mxu0
    %v5339 = vadd.f32 0.0, %v5338
    %v5340 = vpop.f32.mrf.mxu0
    %v5341 = vpop.f32.mrf.mxu0
    %v5342 = vadd.f32 0.0, %v5341
    %v5343 = vpop.f32.mrf.mxu0
    %5344 = vmatprep.mubr.bf16.mxu0 0
    %5345 = vmatmul.mubr.bf16.gmra.mxu0 %v5203
    %v5346 = vpop.f32.mrf.mxu0
    %v5347 = vadd.f32 0.0, %v5346
    %v5348 = vpop.f32.mrf.mxu0
    %v5349 = vpop.f32.mrf.mxu0
    %v5350 = vadd.f32 0.0, %v5349
    %v5351 = vpop.f32.mrf.mxu0
    %5352 = vmatprep.mubr.bf16.mxu0 0
    %5353 = vmatmul.mubr.bf16.gmra.mxu0 %v5204
    %v5354 = vpop.f32.mrf.mxu0
    %v5355 = vadd.f32 0.0, %v5354
    %v5356 = vpop.f32.mrf.mxu0
    %v5357 = vpop.f32.mrf.mxu0
    %v5358 = vadd.f32 0.0, %v5357
    %v5359 = vpop.f32.mrf.mxu0
    %5360 = vmatprep.mubr.bf16.mxu0 0
    %5361 = vmatmul.mubr.bf16.gmra.mxu0 %v5205
    %v5362 = vpop.f32.mrf.mxu0
    %v5363 = vadd.f32 0.0, %v5362
    %v5364 = vpop.f32.mrf.mxu0
    %v5365 = vpop.f32.mrf.mxu0
    %v5366 = vadd.f32 0.0, %v5365
    %v5367 = vpop.f32.mrf.mxu0
    %5368 = vmatprep.mubr.bf16.mxu0 0
    %5369 = vmatmul.mubr.bf16.gmra.mxu0 %v5206
    %v5370 = vpop.f32.mrf.mxu0
    %v5371 = vadd.f32 0.0, %v5370
    %v5372 = vpop.f32.mrf.mxu0
    %v5373 = vpop.f32.mrf.mxu0
    %v5374 = vadd.f32 0.0, %v5373
    %v5375 = vpop.f32.mrf.mxu0
    %5376 = vmatprep.mubr.bf16.mxu0 0
    %5377 = vmatmul.mubr.bf16.gmra.mxu0 %v5207
    %v5378 = vpop.f32.mrf.mxu0
    %v5379 = vadd.f32 0.0, %v5378
    %v5380 = vpop.f32.mrf.mxu0
    %v5381 = vpop.f32.mrf.mxu0
    %v5382 = vadd.f32 0.0, %v5381
    %v5383 = vpop.f32.mrf.mxu0
    %5384 = vmatprep.mubr.bf16.mxu0 0
    %5385 = vmatmul.mubr.bf16.gmra.mxu0 %v5208
    %v5386 = vpop.f32.mrf.mxu0
    %v5387 = vadd.f32 0.0, %v5386
    %v5388 = vpop.f32.mrf.mxu0
    %v5389 = vpop.f32.mrf.mxu0
    %v5390 = vadd.f32 0.0, %v5389
    %v5391 = vpop.f32.mrf.mxu0
    %5392 = vmatprep.mubr.bf16.mxu0 0
    %5393 = vmatmul.mubr.bf16.gmra.mxu0 %v5209
    %v5394 = vpop.f32.mrf.mxu0
    %v5395 = vadd.f32 0.0, %v5394
    %v5396 = vpop.f32.mrf.mxu0
    %v5397 = vpop.f32.mrf.mxu0
    %v5398 = vadd.f32 0.0, %v5397
    %v5399 = vpop.f32.mrf.mxu0
    %5400 = vmatprep.mubr.bf16.mxu0 0
    %5401 = vmatmul.mubr.bf16.gmra.mxu0 %v5210
    %v5402 = vpop.f32.mrf.mxu0
    %v5403 = vadd.f32 0.0, %v5402
    %v5404 = vpop.f32.mrf.mxu0
    %v5405 = vpop.f32.mrf.mxu0
    %v5406 = vadd.f32 0.0, %v5405
    %v5407 = vpop.f32.mrf.mxu0
    %5408 = vmatprep.mubr.bf16.mxu0 0
    %5409 = vmatmul.mubr.bf16.gmra.mxu0 %v5211
    %v5410 = vpop.f32.mrf.mxu0
    %v5411 = vadd.f32 0.0, %v5410
    %v5412 = vpop.f32.mrf.mxu0
    %v5413 = vpop.f32.mrf.mxu0
    %v5414 = vadd.f32 0.0, %v5413
    %v5415 = vpop.f32.mrf.mxu0
    %5416 = vmatprep.mubr.bf16.mxu0 0
    %5417 = vmatmul.mubr.bf16.gmra.mxu0 %v5212
    %v5418 = vpop.f32.mrf.mxu0
    %v5419 = vadd.f32 0.0, %v5418
    %v5420 = vpop.f32.mrf.mxu0
    %v5421 = vpop.f32.mrf.mxu0
    %v5422 = vadd.f32 0.0, %v5421
    %v5423 = vpop.f32.mrf.mxu0
    %5424 = vmatprep.mubr.bf16.mxu0 0
    %5425 = vmatmul.mubr.bf16.gmra.mxu0 %v5213
    %v5426 = vpop.f32.mrf.mxu0
    %v5427 = vadd.f32 0.0, %v5426
    %v5428 = vpop.f32.mrf.mxu0
    %v5429 = vpop.f32.mrf.mxu0
    %v5430 = vadd.f32 0.0, %v5429
    %v5431 = vpop.f32.mrf.mxu0
    %5432 = vmatprep.mubr.bf16.mxu0 0
    %5433 = vmatmul.mubr.bf16.gmra.mxu0 %v5214
    %v5434 = vpop.f32.mrf.mxu0
    %v5435 = vadd.f32 0.0, %v5434
    %v5436 = vpop.f32.mrf.mxu0
    %v5437 = vpop.f32.mrf.mxu0
    %v5438 = vadd.f32 0.0, %v5437
    %v5439 = vpop.f32.mrf.mxu0
    %5440 = vdwg.mxu0
    %v5441 = vadd.f32 %v5135, %v5315
    %v5442 = vadd.f32 %v5136, %v5318
    %v5443 = vadd.f32 %v5137, %v5323
    %v5444 = vadd.f32 %v5138, %v5326
    %v5445 = vadd.f32 %v5139, %v5331
    %v5446 = vadd.f32 %v5140, %v5334
    %v5447 = vadd.f32 %v5141, %v5339
    %v5448 = vadd.f32 %v5142, %v5342
    %v5449 = vadd.f32 %v5143, %v5347
    %v5450 = vadd.f32 %v5144, %v5350
    %v5451 = vadd.f32 %v5145, %v5355
    %v5452 = vadd.f32 %v5146, %v5358
    %v5453 = vadd.f32 %v5147, %v5363
    %v5454 = vadd.f32 %v5148, %v5366
    %v5455 = vadd.f32 %v5149, %v5371
    %v5456 = vadd.f32 %v5150, %v5374
    %v5457 = vadd.f32 %v5151, %v5379
    %v5458 = vadd.f32 %v5152, %v5382
    %v5459 = vadd.f32 %v5153, %v5387
    %v5460 = vadd.f32 %v5154, %v5390
    %v5461 = vadd.f32 %v5155, %v5395
    %v5462 = vadd.f32 %v5156, %v5398
    %v5463 = vadd.f32 %v5157, %v5403
    %v5464 = vadd.f32 %v5158, %v5406
    %v5465 = vadd.f32 %v5159, %v5411
    %v5466 = vadd.f32 %v5160, %v5414
    %v5467 = vadd.f32 %v5161, %v5419
    %v5468 = vadd.f32 %v5162, %v5422
    %v5469 = vadd.f32 %v5163, %v5427
    %v5470 = vadd.f32 %v5164, %v5430
    %v5471 = vadd.f32 %v5165, %v5435
    %v5472 = vadd.f32 %v5166, %v5438
    %v5473 = vld [vmem:[%s4860 + $0x9] sm:$0xff]
    %v5474 = vld [vmem:[%s4860 + $0x11] sm:$0xff]
    %v5475 = vld [vmem:[%s4860 + $0x29] sm:$0xff]
    %v5476 = vld [vmem:[%s4860 + $0x31] sm:$0xff]
    %v5477 = vld [vmem:[%s4860 + $0x49] sm:$0xff]
    %v5478 = vld [vmem:[%s4860 + $0x51] sm:$0xff]
    %v5479 = vld [vmem:[%s4860 + $0x69] sm:$0xff]
    %v5480 = vld [vmem:[%s4860 + $0x71] sm:$0xff]
    %v5481 = vld [vmem:[%s4860 + $0x89] sm:$0xff]
    %v5482 = vld [vmem:[%s4860 + $0x91] sm:$0xff]
    %v5483 = vld [vmem:[%s4860 + $0xa9] sm:$0xff]
    %v5484 = vld [vmem:[%s4860 + $0xb1] sm:$0xff]
    %v5485 = vld [vmem:[%s4860 + $0xc9] sm:$0xff]
    %v5486 = vld [vmem:[%s4860 + $0xd1] sm:$0xff]
    %v5487 = vld [vmem:[%s4860 + $0xe9] sm:$0xff]
    %v5488 = vld [vmem:[%s4860 + $0xf1] sm:$0xff]
    %v5489 = vld [vmem:[%s4860 + $0x109] sm:$0xff]
    %v5490 = vld [vmem:[%s4860 + $0x111] sm:$0xff]
    %v5491 = vld [vmem:[%s4860 + $0x129] sm:$0xff]
    %v5492 = vld [vmem:[%s4860 + $0x131] sm:$0xff]
    %v5493 = vld [vmem:[%s4860 + $0x149] sm:$0xff]
    %v5494 = vld [vmem:[%s4860 + $0x151] sm:$0xff]
    %v5495 = vld [vmem:[%s4860 + $0x169] sm:$0xff]
    %v5496 = vld [vmem:[%s4860 + $0x171] sm:$0xff]
    %v5497 = vld [vmem:[%s4860 + $0x189] sm:$0xff]
    %v5498 = vld [vmem:[%s4860 + $0x191] sm:$0xff]
    %v5499 = vld [vmem:[%s4860 + $0x1a9] sm:$0xff]
    %v5500 = vld [vmem:[%s4860 + $0x1b1] sm:$0xff]
    %v5501 = vld [vmem:[%s4860 + $0x1c9] sm:$0xff]
    %v5502 = vld [vmem:[%s4860 + $0x1d1] sm:$0xff]
    %v5503 = vld [vmem:[%s4860 + $0x1e9] sm:$0xff]
    %v5504 = vld [vmem:[%s4860 + $0x1f1] sm:$0xff]
    %v5505 = vpack.c.bf16 %v5474, %v5473
    %v5506 = vpack.c.bf16 %v5476, %v5475
    %v5507 = vpack.c.bf16 %v5478, %v5477
    %v5508 = vpack.c.bf16 %v5480, %v5479
    %v5509 = vpack.c.bf16 %v5482, %v5481
    %v5510 = vpack.c.bf16 %v5484, %v5483
    %v5511 = vpack.c.bf16 %v5486, %v5485
    %v5512 = vpack.c.bf16 %v5488, %v5487
    %v5513 = vpack.c.bf16 %v5490, %v5489
    %v5514 = vpack.c.bf16 %v5492, %v5491
    %v5515 = vpack.c.bf16 %v5494, %v5493
    %v5516 = vpack.c.bf16 %v5496, %v5495
    %v5517 = vpack.c.bf16 %v5498, %v5497
    %v5518 = vpack.c.bf16 %v5500, %v5499
    %v5519 = vpack.c.bf16 %v5502, %v5501
    %v5520 = vpack.c.bf16 %v5504, %v5503
    %s5521 = scalar_lea.vmem %s1, 1088
    %v5522 = vld [vmem:[%s5521] sm:$0xf]
    %v5523 = vld [vmem:[%s5521 + $0x4] sm:$0xf]
    %v5524 = vld [vmem:[%s5521 + $0x8] sm:$0xf]
    %v5525 = vld [vmem:[%s5521 + $0xc] sm:$0xf]
    %v5526 = vld [vmem:[%s5521 + $0x10] sm:$0xf]
    %v5527 = vld [vmem:[%s5521 + $0x14] sm:$0xf]
    %v5528 = vld [vmem:[%s5521 + $0x18] sm:$0xf]
    %v5529 = vld [vmem:[%s5521 + $0x1c] sm:$0xf]
    %v5530 = vld [vmem:[%s5521 + $0x20] sm:$0xf]
    %v5531 = vld [vmem:[%s5521 + $0x24] sm:$0xf]
    %v5532 = vld [vmem:[%s5521 + $0x28] sm:$0xf]
    %v5533 = vld [vmem:[%s5521 + $0x2c] sm:$0xf]
    %v5534 = vld [vmem:[%s5521 + $0x30] sm:$0xf]
    %v5535 = vld [vmem:[%s5521 + $0x34] sm:$0xf]
    %v5536 = vld [vmem:[%s5521 + $0x38] sm:$0xf]
    %v5537 = vld [vmem:[%s5521 + $0x3c] sm:$0xf]
    %v5554 = vunpack.c.l.b16 %v5522
    %v5555 = vunpack.c.l.b16 %v5523
    %v5556 = vunpack.c.l.b16 %v5524
    %v5557 = vunpack.c.l.b16 %v5525
    %v5558 = vunpack.c.l.b16 %v5526
    %v5559 = vunpack.c.l.b16 %v5527
    %v5560 = vunpack.c.l.b16 %v5528
    %v5561 = vunpack.c.l.b16 %v5529
    %v5562 = vunpack.c.l.b16 %v5530
    %v5563 = vunpack.c.l.b16 %v5531
    %v5564 = vunpack.c.l.b16 %v5532
    %v5565 = vunpack.c.l.b16 %v5533
    %v5566 = vunpack.c.l.b16 %v5534
    %v5567 = vunpack.c.l.b16 %v5535
    %v5568 = vunpack.c.l.b16 %v5536
    %v5569 = vunpack.c.l.b16 %v5537
    %v5570 = vpack.c.b16 %v5555, %v5554
    %v5571 = vpack.c.b16 %v5557, %v5556
    %v5572 = vpack.c.b16 %v5559, %v5558
    %v5573 = vpack.c.b16 %v5561, %v5560
    %v5574 = vpack.c.b16 %v5563, %v5562
    %v5575 = vpack.c.b16 %v5565, %v5564
    %v5576 = vpack.c.b16 %v5567, %v5566
    %v5577 = vpack.c.b16 %v5569, %v5568
    %5586 = vmatprep.subr.bf16.mxu0 0
    %5587 = vmatpush1.bf16.msra.mxu0 %v5577
    %5588 = vmatprep.subr.bf16.mxu0 0
    %5589 = vmatpush1.bf16.msra.mxu0 %v5576
    %5590 = vmatprep.subr.bf16.mxu0 0
    %5591 = vmatpush1.bf16.msra.mxu0 %v5575
    %5592 = vmatprep.subr.bf16.mxu0 0
    %5593 = vmatpush1.bf16.msra.mxu0 %v5574
    %5594 = vmatprep.subr.bf16.mxu0 0
    %5595 = vmatpush1.bf16.msra.mxu0 %v5573
    %5596 = vmatprep.subr.bf16.mxu0 0
    %5597 = vmatpush1.bf16.msra.mxu0 %v5572
    %5598 = vmatprep.subr.bf16.mxu0 0
    %5599 = vmatpush1.bf16.msra.mxu0 %v5571
    %5600 = vmatprep.subr.bf16.mxu0 0
    %5601 = vmatpush1.bf16.msra.mxu0 %v5570
    %5602 = vmatprep.subr.bf16.mxu0 0
    %5603 = vmatpush2.bf16.msra.mxu0 0
    %5604 = vmatprep.subr.bf16.mxu0 0
    %5605 = vmatpush2.bf16.msra.mxu0 0
    %5606 = vmatprep.subr.bf16.mxu0 0
    %5607 = vmatpush2.bf16.msra.mxu0 0
    %5608 = vmatprep.subr.bf16.mxu0 0
    %5609 = vmatpush2.bf16.msra.mxu0 0
    %5610 = vmatprep.subr.bf16.mxu0 0
    %5611 = vmatpush2.bf16.msra.mxu0 0
    %5612 = vmatprep.subr.bf16.mxu0 0
    %5613 = vmatpush2.bf16.msra.mxu0 0
    %5614 = vmatprep.subr.bf16.mxu0 0
    %5615 = vmatpush2.bf16.msra.mxu0 0
    %5616 = vmatprep.subr.bf16.mxu0 0
    %5617 = vmatpush2.bf16.msra.mxu0 0
    %5618 = vmatprep.mubr.bf16.mxu0 0
    %5619 = vmatmul.mubr.bf16.gmra.mxu0 %v5505
    %v5620 = vpop.f32.mrf.mxu0
    %v5621 = vadd.f32 0.0, %v5620
    %v5622 = vpop.f32.mrf.mxu0
    %v5623 = vpop.f32.mrf.mxu0
    %v5624 = vadd.f32 0.0, %v5623
    %v5625 = vpop.f32.mrf.mxu0
    %5626 = vmatprep.mubr.bf16.mxu0 0
    %5627 = vmatmul.mubr.bf16.gmra.mxu0 %v5506
    %v5628 = vpop.f32.mrf.mxu0
    %v5629 = vadd.f32 0.0, %v5628
    %v5630 = vpop.f32.mrf.mxu0
    %v5631 = vpop.f32.mrf.mxu0
    %v5632 = vadd.f32 0.0, %v5631
    %v5633 = vpop.f32.mrf.mxu0
    %5634 = vmatprep.mubr.bf16.mxu0 0
    %5635 = vmatmul.mubr.bf16.gmra.mxu0 %v5507
    %v5636 = vpop.f32.mrf.mxu0
    %v5637 = vadd.f32 0.0, %v5636
    %v5638 = vpop.f32.mrf.mxu0
    %v5639 = vpop.f32.mrf.mxu0
    %v5640 = vadd.f32 0.0, %v5639
    %v5641 = vpop.f32.mrf.mxu0
    %5642 = vmatprep.mubr.bf16.mxu0 0
    %5643 = vmatmul.mubr.bf16.gmra.mxu0 %v5508
    %v5644 = vpop.f32.mrf.mxu0
    %v5645 = vadd.f32 0.0, %v5644
    %v5646 = vpop.f32.mrf.mxu0
    %v5647 = vpop.f32.mrf.mxu0
    %v5648 = vadd.f32 0.0, %v5647
    %v5649 = vpop.f32.mrf.mxu0
    %5650 = vmatprep.mubr.bf16.mxu0 0
    %5651 = vmatmul.mubr.bf16.gmra.mxu0 %v5509
    %v5652 = vpop.f32.mrf.mxu0
    %v5653 = vadd.f32 0.0, %v5652
    %v5654 = vpop.f32.mrf.mxu0
    %v5655 = vpop.f32.mrf.mxu0
    %v5656 = vadd.f32 0.0, %v5655
    %v5657 = vpop.f32.mrf.mxu0
    %5658 = vmatprep.mubr.bf16.mxu0 0
    %5659 = vmatmul.mubr.bf16.gmra.mxu0 %v5510
    %v5660 = vpop.f32.mrf.mxu0
    %v5661 = vadd.f32 0.0, %v5660
    %v5662 = vpop.f32.mrf.mxu0
    %v5663 = vpop.f32.mrf.mxu0
    %v5664 = vadd.f32 0.0, %v5663
    %v5665 = vpop.f32.mrf.mxu0
    %5666 = vmatprep.mubr.bf16.mxu0 0
    %5667 = vmatmul.mubr.bf16.gmra.mxu0 %v5511
    %v5668 = vpop.f32.mrf.mxu0
    %v5669 = vadd.f32 0.0, %v5668
    %v5670 = vpop.f32.mrf.mxu0
    %v5671 = vpop.f32.mrf.mxu0
    %v5672 = vadd.f32 0.0, %v5671
    %v5673 = vpop.f32.mrf.mxu0
    %5674 = vmatprep.mubr.bf16.mxu0 0
    %5675 = vmatmul.mubr.bf16.gmra.mxu0 %v5512
    %v5676 = vpop.f32.mrf.mxu0
    %v5677 = vadd.f32 0.0, %v5676
    %v5678 = vpop.f32.mrf.mxu0
    %v5679 = vpop.f32.mrf.mxu0
    %v5680 = vadd.f32 0.0, %v5679
    %v5681 = vpop.f32.mrf.mxu0
    %5682 = vmatprep.mubr.bf16.mxu0 0
    %5683 = vmatmul.mubr.bf16.gmra.mxu0 %v5513
    %v5684 = vpop.f32.mrf.mxu0
    %v5685 = vadd.f32 0.0, %v5684
    %v5686 = vpop.f32.mrf.mxu0
    %v5687 = vpop.f32.mrf.mxu0
    %v5688 = vadd.f32 0.0, %v5687
    %v5689 = vpop.f32.mrf.mxu0
    %5690 = vmatprep.mubr.bf16.mxu0 0
    %5691 = vmatmul.mubr.bf16.gmra.mxu0 %v5514
    %v5692 = vpop.f32.mrf.mxu0
    %v5693 = vadd.f32 0.0, %v5692
    %v5694 = vpop.f32.mrf.mxu0
    %v5695 = vpop.f32.mrf.mxu0
    %v5696 = vadd.f32 0.0, %v5695
    %v5697 = vpop.f32.mrf.mxu0
    %5698 = vmatprep.mubr.bf16.mxu0 0
    %5699 = vmatmul.mubr.bf16.gmra.mxu0 %v5515
    %v5700 = vpop.f32.mrf.mxu0
    %v5701 = vadd.f32 0.0, %v5700
    %v5702 = vpop.f32.mrf.mxu0
    %v5703 = vpop.f32.mrf.mxu0
    %v5704 = vadd.f32 0.0, %v5703
    %v5705 = vpop.f32.mrf.mxu0
    %5706 = vmatprep.mubr.bf16.mxu0 0
    %5707 = vmatmul.mubr.bf16.gmra.mxu0 %v5516
    %v5708 = vpop.f32.mrf.mxu0
    %v5709 = vadd.f32 0.0, %v5708
    %v5710 = vpop.f32.mrf.mxu0
    %v5711 = vpop.f32.mrf.mxu0
    %v5712 = vadd.f32 0.0, %v5711
    %v5713 = vpop.f32.mrf.mxu0
    %5714 = vmatprep.mubr.bf16.mxu0 0
    %5715 = vmatmul.mubr.bf16.gmra.mxu0 %v5517
    %v5716 = vpop.f32.mrf.mxu0
    %v5717 = vadd.f32 0.0, %v5716
    %v5718 = vpop.f32.mrf.mxu0
    %v5719 = vpop.f32.mrf.mxu0
    %v5720 = vadd.f32 0.0, %v5719
    %v5721 = vpop.f32.mrf.mxu0
    %5722 = vmatprep.mubr.bf16.mxu0 0
    %5723 = vmatmul.mubr.bf16.gmra.mxu0 %v5518
    %v5724 = vpop.f32.mrf.mxu0
    %v5725 = vadd.f32 0.0, %v5724
    %v5726 = vpop.f32.mrf.mxu0
    %v5727 = vpop.f32.mrf.mxu0
    %v5728 = vadd.f32 0.0, %v5727
    %v5729 = vpop.f32.mrf.mxu0
    %5730 = vmatprep.mubr.bf16.mxu0 0
    %5731 = vmatmul.mubr.bf16.gmra.mxu0 %v5519
    %v5732 = vpop.f32.mrf.mxu0
    %v5733 = vadd.f32 0.0, %v5732
    %v5734 = vpop.f32.mrf.mxu0
    %v5735 = vpop.f32.mrf.mxu0
    %v5736 = vadd.f32 0.0, %v5735
    %v5737 = vpop.f32.mrf.mxu0
    %5738 = vmatprep.mubr.bf16.mxu0 0
    %5739 = vmatmul.mubr.bf16.gmra.mxu0 %v5520
    %v5740 = vpop.f32.mrf.mxu0
    %v5741 = vadd.f32 0.0, %v5740
    %v5742 = vpop.f32.mrf.mxu0
    %v5743 = vpop.f32.mrf.mxu0
    %v5744 = vadd.f32 0.0, %v5743
    %v5745 = vpop.f32.mrf.mxu0
    %5746 = vdwg.mxu0
    %v5747 = vadd.f32 %v5441, %v5621
    %v5748 = vadd.f32 %v5442, %v5624
    %v5749 = vadd.f32 %v5443, %v5629
    %v5750 = vadd.f32 %v5444, %v5632
    %v5751 = vadd.f32 %v5445, %v5637
    %v5752 = vadd.f32 %v5446, %v5640
    %v5753 = vadd.f32 %v5447, %v5645
    %v5754 = vadd.f32 %v5448, %v5648
    %v5755 = vadd.f32 %v5449, %v5653
    %v5756 = vadd.f32 %v5450, %v5656
    %v5757 = vadd.f32 %v5451, %v5661
    %v5758 = vadd.f32 %v5452, %v5664
    %v5759 = vadd.f32 %v5453, %v5669
    %v5760 = vadd.f32 %v5454, %v5672
    %v5761 = vadd.f32 %v5455, %v5677
    %v5762 = vadd.f32 %v5456, %v5680
    %v5763 = vadd.f32 %v5457, %v5685
    %v5764 = vadd.f32 %v5458, %v5688
    %v5765 = vadd.f32 %v5459, %v5693
    %v5766 = vadd.f32 %v5460, %v5696
    %v5767 = vadd.f32 %v5461, %v5701
    %v5768 = vadd.f32 %v5462, %v5704
    %v5769 = vadd.f32 %v5463, %v5709
    %v5770 = vadd.f32 %v5464, %v5712
    %v5771 = vadd.f32 %v5465, %v5717
    %v5772 = vadd.f32 %v5466, %v5720
    %v5773 = vadd.f32 %v5467, %v5725
    %v5774 = vadd.f32 %v5468, %v5728
    %v5775 = vadd.f32 %v5469, %v5733
    %v5776 = vadd.f32 %v5470, %v5736
    %v5777 = vadd.f32 %v5471, %v5741
    %v5778 = vadd.f32 %v5472, %v5744
    %s5779 = scalar_lea.vmem %s2, 1
    %v5780 = vld [vmem:[%s5779] sm:$0x1]
    %v5782 = vlaneseq
    %v5783 = vshrl.u32 %v5782, 7
    %v5784 = vsub.s32 0, %v5783
    %v5785 = vrot.slane %v5780, %v5784
    %v5787 = vadd.f32 %v5747, %v5785
    %v5788 = vadd.f32 %v5748, %v5785
    %v5789 = vadd.f32 %v5749, %v5785
    %v5790 = vadd.f32 %v5750, %v5785
    %v5791 = vadd.f32 %v5751, %v5785
    %v5792 = vadd.f32 %v5752, %v5785
    %v5793 = vadd.f32 %v5753, %v5785
    %v5794 = vadd.f32 %v5754, %v5785
    %v5795 = vadd.f32 %v5755, %v5785
    %v5796 = vadd.f32 %v5756, %v5785
    %v5797 = vadd.f32 %v5757, %v5785
    %v5798 = vadd.f32 %v5758, %v5785
    %v5799 = vadd.f32 %v5759, %v5785
    %v5800 = vadd.f32 %v5760, %v5785
    %v5801 = vadd.f32 %v5761, %v5785
    %v5802 = vadd.f32 %v5762, %v5785
    %v5803 = vadd.f32 %v5763, %v5785
    %v5804 = vadd.f32 %v5764, %v5785
    %v5805 = vadd.f32 %v5765, %v5785
    %v5806 = vadd.f32 %v5766, %v5785
    %v5807 = vadd.f32 %v5767, %v5785
    %v5808 = vadd.f32 %v5768, %v5785
    %v5809 = vadd.f32 %v5769, %v5785
    %v5810 = vadd.f32 %v5770, %v5785
    %v5811 = vadd.f32 %v5771, %v5785
    %v5812 = vadd.f32 %v5772, %v5785
    %v5813 = vadd.f32 %v5773, %v5785
    %v5814 = vadd.f32 %v5774, %v5785
    %v5815 = vadd.f32 %v5775, %v5785
    %v5816 = vadd.f32 %v5776, %v5785
    %v5817 = vadd.f32 %v5777, %v5785
    %v5818 = vadd.f32 %v5778, %v5785
    %v5819 = vmax.f32 %v5787, 0.0
    %v5820 = vmax.f32 %v5788, 0.0
    %v5821 = vmax.f32 %v5789, 0.0
    %v5822 = vmax.f32 %v5790, 0.0
    %v5823 = vmax.f32 %v5791, 0.0
    %v5824 = vmax.f32 %v5792, 0.0
    %v5825 = vmax.f32 %v5793, 0.0
    %v5826 = vmax.f32 %v5794, 0.0
    %v5827 = vmax.f32 %v5795, 0.0
    %v5828 = vmax.f32 %v5796, 0.0
    %v5829 = vmax.f32 %v5797, 0.0
    %v5830 = vmax.f32 %v5798, 0.0
    %v5831 = vmax.f32 %v5799, 0.0
    %v5832 = vmax.f32 %v5800, 0.0
    %v5833 = vmax.f32 %v5801, 0.0
    %v5834 = vmax.f32 %v5802, 0.0
    %v5835 = vmax.f32 %v5803, 0.0
    %v5836 = vmax.f32 %v5804, 0.0
    %v5837 = vmax.f32 %v5805, 0.0
    %v5838 = vmax.f32 %v5806, 0.0
    %v5839 = vmax.f32 %v5807, 0.0
    %v5840 = vmax.f32 %v5808, 0.0
    %v5841 = vmax.f32 %v5809, 0.0
    %v5842 = vmax.f32 %v5810, 0.0
    %v5843 = vmax.f32 %v5811, 0.0
    %v5844 = vmax.f32 %v5812, 0.0
    %v5845 = vmax.f32 %v5813, 0.0
    %v5846 = vmax.f32 %v5814, 0.0
    %v5847 = vmax.f32 %v5815, 0.0
    %v5848 = vmax.f32 %v5816, 0.0
    %v5849 = vmax.f32 %v5817, 0.0
    %v5850 = vmax.f32 %v5818, 0.0
    %v5851 = vadd.f32 %v5819, %v5820
    %v5852 = vadd.f32 %v5851, %v5821
    %v5853 = vadd.f32 %v5852, %v5822
    %v5854 = vadd.f32 %v5853, %v5823
    %v5855 = vadd.f32 %v5854, %v5824
    %v5856 = vadd.f32 %v5855, %v5825
    %v5857 = vadd.f32 %v5856, %v5826
    %v5858 = vadd.f32 %v5857, %v5827
    %v5859 = vadd.f32 %v5858, %v5828
    %v5860 = vadd.f32 %v5859, %v5829
    %v5861 = vadd.f32 %v5860, %v5830
    %v5862 = vadd.f32 %v5861, %v5831
    %v5863 = vadd.f32 %v5862, %v5832
    %v5864 = vadd.f32 %v5863, %v5833
    %v5865 = vadd.f32 %v5864, %v5834
    %v5866 = vadd.f32 %v5865, %v5835
    %v5867 = vadd.f32 %v5866, %v5836
    %v5868 = vadd.f32 %v5867, %v5837
    %v5869 = vadd.f32 %v5868, %v5838
    %v5870 = vadd.f32 %v5869, %v5839
    %v5871 = vadd.f32 %v5870, %v5840
    %v5872 = vadd.f32 %v5871, %v5841
    %v5873 = vadd.f32 %v5872, %v5842
    %v5874 = vadd.f32 %v5873, %v5843
    %v5875 = vadd.f32 %v5874, %v5844
    %v5876 = vadd.f32 %v5875, %v5845
    %v5877 = vadd.f32 %v5876, %v5846
    %v5878 = vadd.f32 %v5877, %v5847
    %v5879 = vadd.f32 %v5878, %v5848
    %v5880 = vadd.f32 %v5879, %v5849
    %v5881 = vadd.f32 %v5880, %v5850
    %v5882 = vrot.slane %v5881, 4
    %v5883 = vadd.f32 %v5881, %v5882
    %v5884 = vrot.slane %v5883, 2
    %v5885 = vadd.f32 %v5883, %v5884
    %v5886 = vrot.slane %v5885, 1
    %v5887 = vadd.f32 %v5885, %v5886
    %v5888 = vmul.f32 %v5887, %v2946
    %v5889 = vpack.c.bf16 %v5888, %v5888
    %s5890 = scalar_lea.vmem [#allocation3], 64
    %v5891 = vld [vmem:[%s5890] sm:$0xf]
    %v5892 = vld [vmem:[%s5890 + $0x4] sm:$0xf]
    %v5893 = vld [vmem:[%s5890 + $0x8] sm:$0xf]
    %v5894 = vld [vmem:[%s5890 + $0xc] sm:$0xf]
    %v5895 = vld [vmem:[%s5890 + $0x10] sm:$0xf]
    %v5896 = vld [vmem:[%s5890 + $0x14] sm:$0xf]
    %v5897 = vld [vmem:[%s5890 + $0x18] sm:$0xf]
    %v5898 = vld [vmem:[%s5890 + $0x1c] sm:$0xf]
    %v5899 = vld [vmem:[%s5890 + $0x20] sm:$0xf]
    %v5900 = vld [vmem:[%s5890 + $0x24] sm:$0xf]
    %v5901 = vld [vmem:[%s5890 + $0x28] sm:$0xf]
    %v5902 = vld [vmem:[%s5890 + $0x2c] sm:$0xf]
    %v5903 = vld [vmem:[%s5890 + $0x30] sm:$0xf]
    %v5904 = vld [vmem:[%s5890 + $0x34] sm:$0xf]
    %v5905 = vld [vmem:[%s5890 + $0x38] sm:$0xf]
    %v5906 = vld [vmem:[%s5890 + $0x3c] sm:$0xf]
    %s5907 = scalar_lea.vmem %s4, 1
    %v5908 = vld [vmem:[%s5907] sm:$0x1]
    %v5925 = vunpack.c.l.b16 %v5891
    %v5926 = vunpack.c.l.b16 %v5892
    %v5927 = vunpack.c.l.b16 %v5893
    %v5928 = vunpack.c.l.b16 %v5894
    %v5929 = vunpack.c.l.b16 %v5895
    %v5930 = vunpack.c.l.b16 %v5896
    %v5931 = vunpack.c.l.b16 %v5897
    %v5932 = vunpack.c.l.b16 %v5898
    %v5933 = vunpack.c.l.b16 %v5899
    %v5934 = vunpack.c.l.b16 %v5900
    %v5935 = vunpack.c.l.b16 %v5901
    %v5936 = vunpack.c.l.b16 %v5902
    %v5937 = vunpack.c.l.b16 %v5903
    %v5938 = vunpack.c.l.b16 %v5904
    %v5939 = vunpack.c.l.b16 %v5905
    %v5940 = vunpack.c.l.b16 %v5906
    %v5941 = vpack.c.b16 %v5926, %v5925
    %v5942 = vpack.c.b16 %v5928, %v5927
    %v5943 = vpack.c.b16 %v5930, %v5929
    %v5944 = vpack.c.b16 %v5932, %v5931
    %v5945 = vpack.c.b16 %v5934, %v5933
    %v5946 = vpack.c.b16 %v5936, %v5935
    %v5947 = vpack.c.b16 %v5938, %v5937
    %v5948 = vpack.c.b16 %v5940, %v5939
    %5957 = vmatprep.subr.bf16.mxu0 0
    %5958 = vmatpush1.bf16.msra.mxu0 %v5948
    %5959 = vmatprep.subr.bf16.mxu0 0
    %5960 = vmatpush1.bf16.msra.mxu0 %v5947
    %5961 = vmatprep.subr.bf16.mxu0 0
    %5962 = vmatpush1.bf16.msra.mxu0 %v5946
    %5963 = vmatprep.subr.bf16.mxu0 0
    %5964 = vmatpush1.bf16.msra.mxu0 %v5945
    %5965 = vmatprep.subr.bf16.mxu0 0
    %5966 = vmatpush1.bf16.msra.mxu0 %v5944
    %5967 = vmatprep.subr.bf16.mxu0 0
    %5968 = vmatpush1.bf16.msra.mxu0 %v5943
    %5969 = vmatprep.subr.bf16.mxu0 0
    %5970 = vmatpush1.bf16.msra.mxu0 %v5942
    %5971 = vmatprep.subr.bf16.mxu0 0
    %5972 = vmatpush1.bf16.msra.mxu0 %v5941
    %5973 = vmatprep.subr.bf16.mxu0 0
    %5974 = vmatpush2.bf16.msra.mxu0 0
    %5975 = vmatprep.subr.bf16.mxu0 0
    %5976 = vmatpush2.bf16.msra.mxu0 0
    %5977 = vmatprep.subr.bf16.mxu0 0
    %5978 = vmatpush2.bf16.msra.mxu0 0
    %5979 = vmatprep.subr.bf16.mxu0 0
    %5980 = vmatpush2.bf16.msra.mxu0 0
    %5981 = vmatprep.subr.bf16.mxu0 0
    %5982 = vmatpush2.bf16.msra.mxu0 0
    %5983 = vmatprep.subr.bf16.mxu0 0
    %5984 = vmatpush2.bf16.msra.mxu0 0
    %5985 = vmatprep.subr.bf16.mxu0 0
    %5986 = vmatpush2.bf16.msra.mxu0 0
    %5987 = vmatprep.subr.bf16.mxu0 0
    %5988 = vmatpush2.bf16.msra.mxu0 0
    %5989 = vmatprep.mubr.bf16.mxu0 0
    %5990 = vmatmul.mubr.bf16.gmra.mxu0 %v5889
    %v5991 = vpop.f32.mrf.mxu0
    %v5992 = vadd.f32 %v5908, %v5991
    %v5993 = vpop.f32.mrf.mxu0
    %v5994 = vpop.f32.mrf.mxu0
    %v5995 = vpop.f32.mrf.mxu0
    %5996 = vdwg.mxu0
    %v5997 = vsel %vm3054, %v5992, -inf
    %5998 = vmax.xlane.f32.xlu0 %v5997
    %v5999 = vpop.xlane.xlu0 %5998
    %v6000 = vsub.f32 %v5992, %v5999
    %v6001 = vmul.f32 %v6000, 1.442695
    %v6002 = vpow.pop %v6001
    %v6003 = vsel %vm3054, %v6002, 0.0
    %6004 = vadd.xlane.f32.xlu0 %v6003
    %v6005 = vpop.xlane.xlu0 %6004
    %v6006 = vrcp.pop %v6005
    %v6007 = vmul.f32 %v6002, %v6006
    %v6008 = vsel %vm3054, %v6007, -inf
    %6009 = vmax.xlane.f32.xlu0 %v6008
    %v6010 = vpop.xlane.xlu0 %6009
    %vm6011 = vcmp.ge.f32.partialorder %v6007, %v6010
    %v6012 = vsel %vm6011, %v3070, 128
    %v6013 = vsel %vm3054, %v6012, 2147483647
    %v6014 = vand.u32 %v6013, 65535
    %v6015 = vshra.s32 %v6013, 16
    %v6016 = vcvt.s32.f32 %v6014
    %v6017 = vcvt.s32.f32 %v6015
    %6018 = vmin.xlane.f32.xlu0 %v6017
    %v6019 = vpop.xlane.xlu0 %6018
    %vm6020 = vcmp.eq.f32.partialorder %v6017, %v6019
    %v6021 = vsel %vm6020, %v6016, inf
    %6022 = vmin.xlane.f32.xlu0 %v6021
    %v6023 = vpop.xlane.xlu0 %6022
    %v6024 = vcvt.f32.s32 %v6023
    %v6025 = vcvt.f32.s32 %v6019
    %v6026 = vshll.u32 %v6025, 16
    %v6027 = vadd.s32 %v6026, %v6024
    %v6029 = vrot.slane %v5992, 7
    %v6031 = vsel %vm3054, %v3049, %v6029
    %6032 = vst [vmem:[#allocation6] sm:$0x3] %v6031
    %v6034 = vrot.slane %v6010, 7
    %v6036 = vsel %vm3054, %v3068, %v6034
    %6037 = vst [vmem:[#allocation7] sm:$0x3] %v6036
    %v6038 = vrot.slane %v6027, 7
    %v6039 = vsel %vm3054, %v3087, %v6038
    %6040 = vst [vmem:[#allocation9] sm:$0x3] %v6039
    %6041 = vst [vmem:[#allocation10] sm:$0xff] %v5819
    %6042 = vst [vmem:[#allocation10 + $0x8] sm:$0xff] %v5820
    %6043 = vst [vmem:[#allocation10 + $0x10] sm:$0xff] %v5821
    %6044 = vst [vmem:[#allocation10 + $0x18] sm:$0xff] %v5822
    %6045 = vst [vmem:[#allocation10 + $0x20] sm:$0xff] %v5823
    %6046 = vst [vmem:[#allocation10 + $0x28] sm:$0xff] %v5824
    %6047 = vst [vmem:[#allocation10 + $0x30] sm:$0xff] %v5825
    %6048 = vst [vmem:[#allocation10 + $0x38] sm:$0xff] %v5826
    %6049 = vst [vmem:[#allocation10 + $0x40] sm:$0xff] %v5827
    %6050 = vst [vmem:[#allocation10 + $0x48] sm:$0xff] %v5828
    %6051 = vst [vmem:[#allocation10 + $0x50] sm:$0xff] %v5829
    %6052 = vst [vmem:[#allocation10 + $0x58] sm:$0xff] %v5830
    %6053 = vst [vmem:[#allocation10 + $0x60] sm:$0xff] %v5831
    %6054 = vst [vmem:[#allocation10 + $0x68] sm:$0xff] %v5832
    %6055 = vst [vmem:[#allocation10 + $0x70] sm:$0xff] %v5833
    %6056 = vst [vmem:[#allocation10 + $0x78] sm:$0xff] %v5834
    %6057 = vst [vmem:[#allocation10 + $0x80] sm:$0xff] %v5835
    %6058 = vst [vmem:[#allocation10 + $0x88] sm:$0xff] %v5836
    %6059 = vst [vmem:[#allocation10 + $0x90] sm:$0xff] %v5837
    %6060 = vst [vmem:[#allocation10 + $0x98] sm:$0xff] %v5838
    %6061 = vst [vmem:[#allocation10 + $0xa0] sm:$0xff] %v5839
    %6062 = vst [vmem:[#allocation10 + $0xa8] sm:$0xff] %v5840
    %6063 = vst [vmem:[#allocation10 + $0xb0] sm:$0xff] %v5841
    %6064 = vst [vmem:[#allocation10 + $0xb8] sm:$0xff] %v5842
    %6065 = vst [vmem:[#allocation10 + $0xc0] sm:$0xff] %v5843
    %6066 = vst [vmem:[#allocation10 + $0xc8] sm:$0xff] %v5844
    %6067 = vst [vmem:[#allocation10 + $0xd0] sm:$0xff] %v5845
    %6068 = vst [vmem:[#allocation10 + $0xd8] sm:$0xff] %v5846
    %6069 = vst [vmem:[#allocation10 + $0xe0] sm:$0xff] %v5847
    %6070 = vst [vmem:[#allocation10 + $0xe8] sm:$0xff] %v5848
    %6071 = vst [vmem:[#allocation10 + $0xf0] sm:$0xff] %v5849
    %6072 = vst [vmem:[#allocation10 + $0xf8] sm:$0xff] %v5850
    // Predicated region
    $region26: #{_branches_forward.1} parent=1 // pred_check
      _
    $region27: #{_branches_forward.1} parent=1 // pred_check_branch
      %6074 = sbr.rel (0) target = $region29
    $region28: #{_branches_forward.1} parent=1 // pred_region
      %s6076 = ssub.s32 32, 32
      %6077 = vsyncadd [#allocation5], %s6076
      %s6079 = sshll.u32 [#allocation6], 4
      %s6080 = int_to_ptr.vmem [resolvable:$true] %s6079
      %6082 = dma.vmem_to_hbm [thread:$0]  %s6080, 32, %s5, [#allocation5]
    $region29: #{_branches_forward.1} parent=1 // pred_fallthru
      _
    // Predicated region
    $region30: #{_branches_forward.1} parent=1 // pred_check
      _
    $region31: #{_branches_forward.1} parent=1 // pred_check_branch
      %6084 = sbr.rel (0) target = $region33
    $region32: #{_branches_forward.1} parent=1 // pred_region
      %s6086 = ssub.s32 32, 32
      %6087 = vsyncadd [#allocation8], %s6086
      %s6089 = sshll.u32 [#allocation7], 4
      %s6090 = int_to_ptr.vmem [resolvable:$true] %s6089
      %6092 = dma.vmem_to_hbm [thread:$0]  %s6090, 32, %s6, [#allocation8]
    $region33: #{_branches_forward.1} parent=1 // pred_fallthru
      _
    // Predicated region
    $region34: #{_branches_forward.1} parent=1 // pred_check
      _
    $region35: #{_branches_forward.1} parent=1 // pred_check_branch
      %6094 = sbr.rel (0) target = $region37
    $region36: #{_branches_forward.1} parent=1 // pred_region
      %s6096 = ssub.s32 32, 32
      %6097 = vsyncadd [#allocation8], %s6096
      %s6099 = sshll.u32 [#allocation9], 4
      %s6100 = int_to_ptr.vmem [resolvable:$true] %s6099
      %6102 = dma.vmem_to_hbm [thread:$0]  %s6100, 32, %s7, [#allocation8]
    $region37: #{_branches_forward.1} parent=1 // pred_fallthru
      _
    // Predicated region
    $region38: #{_branches_forward.1} parent=1 // pred_check
      _
    $region39: #{_branches_forward.1} parent=1 // pred_check_branch
      %6104 = sbr.rel (0) target = $region41
    $region40: #{_branches_forward.1} parent=1 // pred_region
      %s6106 = ssub.s32 4096, 4096
      %6107 = vsyncadd [#allocation11], %s6106
      %s6108 = sshll.u32 [#allocation10], 4
      %s6109 = int_to_ptr.vmem [resolvable:$true] %s6108
      %6114 = dma.vmem_to_hbm [thread:$0]  %s6109, 4096, %s8, [#allocation11], 128, 128, 8
    $region41: #{_branches_forward.1} parent=1 // pred_fallthru
      _
    // Predicated region
    $region42: #{_branches_forward.1} parent=1 // pred_check
      _
    $region43: #{_branches_forward.1} parent=1 // pred_check_branch
      %6116 = sbr.rel (0) target = $region45
    $region44: #{_branches_forward.1} parent=1 // pred_region
      %6117 = dma.done [#allocation5], 32
    $region45: #{_branches_forward.1} parent=1 // pred_fallthru
      _
    // Predicated region
    $region46: #{_branches_forward.1} parent=1 // pred_check
      _
    $region47: #{_branches_forward.1} parent=1 // pred_check_branch
      %6119 = sbr.rel (0) target = $region49
    $region48: #{_branches_forward.1} parent=1 // pred_region
      %6120 = dma.done [#allocation8], 32
    $region49: #{_branches_forward.1} parent=1 // pred_fallthru
      _
    // Predicated region
    $region50: #{_branches_forward.1} parent=1 // pred_check
      _
    $region51: #{_branches_forward.1} parent=1 // pred_check_branch
      %6122 = sbr.rel (0) target = $region53
    $region52: #{_branches_forward.1} parent=1 // pred_region
      %6123 = dma.done [#allocation8], 32
    $region53: #{_branches_forward.1} parent=1 // pred_fallthru
      _
    // Predicated region
    $region54: #{_branches_forward.1} parent=1 // pred_check
      _
    $region55: #{_branches_forward.1} parent=1 // pred_check_branch
      %6125 = sbr.rel (0) target = $region57
    $region56: #{_branches_forward.1} parent=1 // pred_region
      %6126 = dma.done [#allocation11], 4096
    $region57: #{_branches_forward.1} parent=1 // pred_fallthru
      _
    %6127 = vsyncpa [#allocation4], 1
    %6128 = vsyncpa [#allocation5], 1
    %6129 = vsyncpa [#allocation8], 1
    %6130 = vsyncpa [#allocation11], 1

</llo_original>
